<compile_context>
chip_gen: v6e
topology: v6e:2x2x1
jax: 0.10.0
libtpu: 0.0.40
codegen_flags: <defaults>
</compile_context>

<pallas_src>
import functools

import jax
import jax.numpy as jnp
from jax import lax
from jax.experimental import pallas as pl
from jax.experimental.pallas import tpu as pltpu

BN_EPS = 1e-5
C_LANES = 128                      # conv channel dim padded to a full lane width
TM_MAX = 1024                      # max conv row tile (adaptive for small inputs)
TK_FC1 = 16384                     # fc1 reduction tile
VMEM_LIMIT = 32 * 1024 * 1024      # v7x-safe; v6e (128 MiB VMEM) could raise this


def _round_up(x, m):
    return (x + m - 1) // m * m


# ---------------------------------------------------------------------------
# Conv pass 1: im2col matmul (bf16 -> f32 acc) + per-tile BN partial statistics
# ---------------------------------------------------------------------------
def conv_stats_kernel(x_ref, w_ref, y_ref, sum_ref, ssq_ref):
    acc = jnp.dot(x_ref[...], w_ref[...], preferred_element_type=jnp.float32)
    y_ref[...] = acc.astype(y_ref.dtype)                     # bf16 intermediate
    # Padded M rows are all-zero patches (and conv bias is omitted), so they
    # contribute exactly zero to both statistics.  Two direct stores; no
    # in-kernel concatenate/relayout.
    sum_ref[...] = jnp.sum(acc, axis=0, keepdims=True).reshape(1, 1, C_LANES)
    ssq_ref[...] = jnp.sum(acc * acc, axis=0, keepdims=True).reshape(1, 1, C_LANES)


# ---------------------------------------------------------------------------
# Conv pass 2: precomputed BN affine + (ReLU | masked channel LogSoftmax)
# ---------------------------------------------------------------------------
def bn_act_kernel(y_ref, scale_ref, shift_ref, out_ref, *, c_real, act):
    y = y_ref[...].astype(jnp.float32) * scale_ref[...] + shift_ref[...]
    if act == "relu":
        y = jnp.maximum(y, 0.0)
    else:  # log-softmax over the channel axis; mask the padded lanes
        lane = lax.broadcasted_iota(jnp.int32, y.shape, 1)
        valid = lane < c_real
        ym = jnp.where(valid, y, -1e30)
        m = jnp.max(ym, axis=-1, keepdims=True)
        z = ym - m
        lse = jnp.log(jnp.sum(jnp.exp(z), axis=-1, keepdims=True))
        y = jnp.where(valid, z - lse, 0.0)
    out_ref[...] = y.astype(out_ref.dtype)


def conv_block(x, w, gamma, beta, act):
    """'valid' conv2d + train-mode BatchNorm + activation. NHWC in / bf16 NHWC out."""
    N, H, W, Cin = x.shape
    KH, KW, _, Cout = w.shape
    Ho, Wo = H - KH + 1, W - KW + 1
    M, K = N * Ho * Wo, KH * KW * Cin
    tm = min(TM_MAX, _round_up(M, 8))
    M_pad = _round_up(M, tm)
    n_tiles = M_pad // tm

    # TODO(synk): for full-size inputs, stream conv2/conv3 patches through a
    # kh/kw reduction grid axis (or an in-kernel DMA gather) instead of
    # materializing the full (M, KH*KW*Cin) im2col matrix in HBM (KH*KW x dup).
    patches = jnp.concatenate(
        [x[:, i:i + Ho, j:j + Wo, :] for i in range(KH) for j in range(KW)],
        axis=-1).reshape(M, K).astype(jnp.bfloat16)
    patches = jnp.pad(patches, ((0, M_pad - M), (0, 0)))
    w2 = jnp.pad(w.reshape(K, Cout),
                 ((0, 0), (0, C_LANES - Cout))).astype(jnp.bfloat16)

    y, s, ss = pl.pallas_call(
        conv_stats_kernel,
        grid=(n_tiles,),
        in_specs=[pl.BlockSpec((tm, K), lambda i: (i, 0)),
                  pl.BlockSpec((K, C_LANES), lambda i: (0, 0))],
        out_specs=(pl.BlockSpec((tm, C_LANES), lambda i: (i, 0)),
                   pl.BlockSpec((1, 1, C_LANES), lambda i: (i, 0, 0)),
                   pl.BlockSpec((1, 1, C_LANES), lambda i: (i, 0, 0))),
        out_shape=(jax.ShapeDtypeStruct((M_pad, C_LANES), jnp.bfloat16),
                   jax.ShapeDtypeStruct((n_tiles, 1, C_LANES), jnp.float32),
                   jax.ShapeDtypeStruct((n_tiles, 1, C_LANES), jnp.float32)),
        compiler_params=pltpu.CompilerParams(
            dimension_semantics=("parallel",), vmem_limit_bytes=VMEM_LIMIT),
        cost_estimate=pl.CostEstimate(
            flops=2 * M_pad * K * C_LANES,
            transcendentals=0,
            bytes_accessed=(patches.size * 2 + w2.size * 2
                            + M_pad * C_LANES * 2 + 2 * n_tiles * C_LANES * 4)),
    )(patches, w2)

    # Per-channel train-mode BN scale/shift computed once (tiny XLA ops).
    inv_m = 1.0 / float(M)
    mean = jnp.sum(s[:, 0, :], axis=0, keepdims=True) * inv_m          # (1, C)
    ex2 = jnp.sum(ss[:, 0, :], axis=0, keepdims=True) * inv_m
    var = jnp.maximum(ex2 - mean * mean, 0.0)                          # biased
    g2 = jnp.pad(gamma, (0, C_LANES - Cout)).reshape(1, C_LANES)
    b2 = jnp.pad(beta, (0, C_LANES - Cout)).reshape(1, C_LANES)
    scale = (g2 * lax.rsqrt(var + BN_EPS)).astype(jnp.float32)
    shift = (b2 - mean * scale).astype(jnp.float32)

    out = pl.pallas_call(
        functools.partial(bn_act_kernel, c_real=Cout, act=act),
        grid=(n_tiles,),
        in_specs=[pl.BlockSpec((tm, C_LANES), lambda i: (i, 0)),
                  pl.BlockSpec((1, C_LANES), lambda i: (0, 0)),
                  pl.BlockSpec((1, C_LANES), lambda i: (0, 0))],
        out_specs=pl.BlockSpec((tm, C_LANES), lambda i: (i, 0)),
        out_shape=jax.ShapeDtypeStruct((M_pad, C_LANES), jnp.bfloat16),
        compiler_params=pltpu.CompilerParams(
            dimension_semantics=("parallel",), vmem_limit_bytes=VMEM_LIMIT),
    )(y, scale, shift)

    # Drop padded rows, restore NHWC, drop padded channels (cheap XLA slice).
    return out[:M].reshape(N, Ho, Wo, C_LANES)[..., :Cout]


# ---------------------------------------------------------------------------
# MLP: K-tiled, column-split fc1 (f32 accumulate into the resident out block)
#      + fused fc2..fc4 + LogSoftmax(dim=1) tail
# ---------------------------------------------------------------------------
def fc1_kernel(x_ref, w_ref, h_ref):
    @pl.when(pl.program_id(1) == 0)
    def _():
        h_ref[...] = jnp.zeros_like(h_ref)
    h_ref[...] += jnp.dot(x_ref[...], w_ref[...],
                          preferred_element_type=jnp.float32)


def mlp_tail_kernel(h_ref, b1_ref, w2_ref, b2_ref, w3_ref, b3_ref,
                    w4_ref, b4_ref, out_ref):
    h = h_ref[...] + b1_ref[...]                                     # fc1 bias
    h = jnp.dot(h.astype(jnp.bfloat16), w2_ref[...],
                preferred_element_type=jnp.float32) + b2_ref[...]    # fc2
    h = jnp.dot(h.astype(jnp.bfloat16), w3_ref[...],
                preferred_element_type=jnp.float32) + b3_ref[...]    # fc3
    h = jnp.dot(h.astype(jnp.bfloat16), w4_ref[...],
                preferred_element_type=jnp.float32) + b4_ref[...]    # fc4
    m = jnp.max(h, axis=-1, keepdims=True)
    z = h - m
    out_ref[...] = z - jnp.log(jnp.sum(jnp.exp(z), axis=-1, keepdims=True))


def mlp_logsoftmax(x, w1, b1, w2, b2, w3, b3, w4, b4):
    N, K = x.shape
    ncls = w4.shape[1]
    h1 = w1.shape[1]                         # 128
    half = h1 // 2                           # 64 per core
    N_pad = _round_up(max(N, 8), 8)          # full sublanes
    tk = min(TK_FC1, _round_up(K, 128))
    K_pad = _round_up(K, tk)
    nk = K_pad // tk

    xb = jnp.pad(x.astype(jnp.bfloat16), ((0, N_pad - N), (0, K_pad - K)))
    w1b = jnp.pad(w1.astype(jnp.bfloat16), ((0, K_pad - K), (0, 0)))
    # Column split so the leading "parallel" grid axis shares the w1 stream
    # across both TensorCores on v7x (layout plumbing; hoisted/cached in practice).
    w1s = w1b.reshape(K_pad, 2, half).transpose(1, 0, 2)             # (2, K_pad, 64)

    h = pl.pallas_call(
        fc1_kernel,
        grid=(2, nk),
        in_specs=[pl.BlockSpec((N_pad, tk), lambda c, k: (0, k)),
                  pl.BlockSpec((None, tk, half), lambda c, k: (c, k, 0))],
        out_specs=pl.BlockSpec((None, N_pad, half), lambda c, k: (c, 0, 0)),
        out_shape=jax.ShapeDtypeStruct((2, N_pad, half), jnp.float32),
        compiler_params=pltpu.CompilerParams(
            dimension_semantics=("parallel", "arbitrary"),
            vmem_limit_bytes=VMEM_LIMIT),
        cost_estimate=pl.CostEstimate(
            flops=2 * N_pad * K_pad * h1,
            transcendentals=0,
            bytes_accessed=2 * xb.size * 2 + w1s.size * 2 + 2 * N_pad * half * 4),
    )(xb, w1s)

    h_full = jnp.concatenate([h[0], h[1]], axis=-1)                  # (N_pad, 128)

    out = pl.pallas_call(
        mlp_tail_kernel,
        out_shape=jax.ShapeDtypeStruct((N_pad, ncls), jnp.float32),
        compiler_params=pltpu.CompilerParams(vmem_limit_bytes=VMEM_LIMIT),
    )(h_full, b1.reshape(1, -1),
      w2.astype(jnp.bfloat16), b2.reshape(1, -1),
      w3.astype(jnp.bfloat16), b3.reshape(1, -1),
      w4.astype(jnp.bfloat16), b4.reshape(1, -1))

    return out[:N]


# ---------------------------------------------------------------------------
# Params (deterministic PyTorch-like uniform(+-1/sqrt(fan_in))) and forward
# ---------------------------------------------------------------------------
def _uniform(key, shape, bound):
    return jax.random.uniform(key, shape, jnp.float32, minval=-bound, maxval=bound)


def init_params(key, num_classes, h3, w3):
    ks = jax.random.split(key, 24)
    p = {}

    def conv(kw_key, kb_key, kh, kw, cin, cout):
        bound = (cin * kh * kw) ** -0.5
        return (_uniform(kw_key, (kh, kw, cin, cout), bound),
                _uniform(kb_key, (cout,), bound))

    def lin(kw_key, kb_key, fin, fout):
        bound = fin ** -0.5
        return (_uniform(kw_key, (fin, fout), bound),
                _uniform(kb_key, (fout,), bound))

    # Conv biases exist for parity with the module but are no-ops under
    # train-mode BatchNorm (batch-mean subtraction cancels per-channel constants).
    p["conv1_w"], p["conv1_b"] = conv(ks[0], ks[1], 3, 3, 3, 16)
    p["conv2_w"], p["conv2_b"] = conv(ks[2], ks[3], 3, 3, 16, 32)
    p["conv3_w"], p["conv3_b"] = conv(ks[4], ks[5], 5, 5, 32, 64)
    for i, c in enumerate((16, 32, 64), start=1):
        p[f"bn{i}_g"] = 1.0 + 0.1 * jax.random.normal(ks[6 + 2 * i], (c,), jnp.float32)
        p[f"bn{i}_b"] = 0.1 * jax.random.normal(ks[7 + 2 * i], (c,), jnp.float32)
    # fc1 rows stored in NHWC-flatten order (fixed permutation of PyTorch's
    # (C,H,W)-flatten order) so the wrapper needs no activation transpose.
    feat = h3 * w3 * 64
    p["fc1_w"], p["fc1_b"] = lin(ks[14], ks[15], feat, 128)
    p["fc2_w"], p["fc2_b"] = lin(ks[16], ks[17], 128, 64)
    p["fc3_w"], p["fc3_b"] = lin(ks[18], ks[19], 64, 32)
    p["fc4_w"], p["fc4_b"] = lin(ks[20], ks[21], 32, num_classes)
    return p


def nn2_forward(x_nchw, p):
    x = jnp.transpose(x_nchw, (0, 2, 3, 1)).astype(jnp.float32)      # NCHW -> NHWC
    a1 = conv_block(x, p["conv1_w"], p["bn1_g"], p["bn1_b"], act="relu")
    a2 = conv_block(a1, p["conv2_w"], p["bn2_g"], p["bn2_b"], act="relu")
    a3 = conv_block(a2, p["conv3_w"], p["bn3_g"], p["bn3_b"], act="logsoftmax")
    feat = a3.reshape(a3.shape[0], -1)        # NHWC flatten (matches fc1_w rows)
    return mlp_logsoftmax(feat, p["fc1_w"], p["fc1_b"], p["fc2_w"], p["fc2_b"],
                          p["fc3_w"], p["fc3_b"], p["fc4_w"], p["fc4_b"])


if __name__ == "__main__":
    key = jax.random.PRNGKey(0)
    k_x, k_p = jax.random.split(key)

    N, Cin, H, W = 2, 3, 16, 16               # small NCHW example input
    num_classes = 10
    H3, W3 = H - 2 - 2 - 4, W - 2 - 2 - 4     # spatial size after the 3 valid convs

    x_nchw = jax.random.normal(k_x, (N, Cin, H, W), jnp.float32)
    params = init_params(k_p, num_classes, H3, W3)

    fwd = jax.jit(nn2_forward)
    logits = jax.block_until_ready(fwd(x_nchw, params))

    assert logits.shape == (N, num_classes)
    # log-softmax rows must exponentiate-sum to ~1
    assert bool(jnp.all(jnp.abs(jnp.sum(jnp.exp(logits), axis=1) - 1.0) < 1e-3))
    print("KERNEL_OK")
</pallas_src>

<mosaic_0001>
module attributes {stable_mosaic.version = 11 : i64} {
  func.func @conv_stats_kernel(%arg0: i32, %arg1: memref<392x27xbf16, #tpu.memory_space<vmem>>, %arg2: memref<27x128xbf16, #tpu.memory_space<vmem>>, %arg3: memref<392x128xbf16, #tpu.memory_space<vmem>>, %arg4: memref<1x1x128xf32, #tpu.memory_space<vmem>>, %arg5: memref<1x1x128xf32, #tpu.memory_space<vmem>>) attributes {dimension_semantics = [#tpu.dimension_semantics<parallel>], iteration_bounds = array<i64: 1>, scalar_prefetch = 0 : i64, scratch_operands = 0 : i64, tpu.core_type = #tpu.core_type<tc>, window_params = [{transform_indices = @transform_0, window_bounds = array<i64: 392, 27>}, {pipeline_mode = #tpu.pipeline_mode<synchronous>, transform_indices = @transform_1, window_bounds = array<i64: 27, 128>}, {transform_indices = @transform_2, window_bounds = array<i64: 392, 128>}, {transform_indices = @transform_3, window_bounds = array<i64: 1, 1, 128>}, {transform_indices = @transform_4, window_bounds = array<i64: 1, 1, 128>}]} {
    %c0 = arith.constant 0 : index
    %c0_0 = arith.constant 0 : index
    %0 = vector.load %arg1[%c0, %c0_0] : memref<392x27xbf16, #tpu.memory_space<vmem>>, vector<392x27xbf16>
    %c0_1 = arith.constant 0 : index
    %c0_2 = arith.constant 0 : index
    %1 = vector.load %arg2[%c0_1, %c0_2] : memref<27x128xbf16, #tpu.memory_space<vmem>>, vector<27x128xbf16>
    %cst = arith.constant dense<0.000000e+00> : vector<392x128xf32>
    %2 = tpu.matmul %0, %1, %cst {dimension_numbers = #tpu.dot_dimension_numbers<[1], [0], [0], [1], [0, 0, 1, 1], [], []>} : vector<392x27xbf16>, vector<27x128xbf16>, vector<392x128xf32> -> vector<392x128xf32>
    %3 = arith.truncf %2 : vector<392x128xf32> to vector<392x128xbf16>
    %c0_3 = arith.constant 0 : index
    %c0_4 = arith.constant 0 : index
    %4 = vector.load %arg3[%c0_3, %c0_4] : memref<392x128xbf16, #tpu.memory_space<vmem>>, vector<392x128xbf16>
    tpu.vector_store %arg3[%c0_3, %c0_4], %3 {strides = array<i32>} : memref<392x128xbf16, #tpu.memory_space<vmem>>, vector<392x128xbf16>,
    %cst_5 = arith.constant dense<0.000000e+00> : vector<128xf32>
    %5 = vector.multi_reduction <add>, %2, %cst_5 [0] : vector<392x128xf32> to vector<128xf32>
    %6 = vector.shape_cast %5 : vector<128xf32> to vector<1x128xf32>
    %7 = vector.shape_cast %6 : vector<1x128xf32> to vector<1x1x128xf32>
    %c0_6 = arith.constant 0 : index
    %c0_7 = arith.constant 0 : index
    %c0_8 = arith.constant 0 : index
    %8 = vector.load %arg4[%c0_6, %c0_7, %c0_8] : memref<1x1x128xf32, #tpu.memory_space<vmem>>, vector<1x1x128xf32>
    tpu.vector_store %arg4[%c0_6, %c0_7, %c0_8], %7 {strides = array<i32>} : memref<1x1x128xf32, #tpu.memory_space<vmem>>, vector<1x1x128xf32>,
    %9 = arith.mulf %2, %2 : vector<392x128xf32>
    %cst_9 = arith.constant dense<0.000000e+00> : vector<128xf32>
    %10 = vector.multi_reduction <add>, %9, %cst_9 [0] : vector<392x128xf32> to vector<128xf32>
    %11 = vector.shape_cast %10 : vector<128xf32> to vector<1x128xf32>
    %12 = vector.shape_cast %11 : vector<1x128xf32> to vector<1x1x128xf32>
    %c0_10 = arith.constant 0 : index
    %c0_11 = arith.constant 0 : index
    %c0_12 = arith.constant 0 : index
    %13 = vector.load %arg5[%c0_10, %c0_11, %c0_12] : memref<1x1x128xf32, #tpu.memory_space<vmem>>, vector<1x1x128xf32>
    tpu.vector_store %arg5[%c0_10, %c0_11, %c0_12], %12 {strides = array<i32>} : memref<1x1x128xf32, #tpu.memory_space<vmem>>, vector<1x1x128xf32>,
    return
  }
  func.func @transform_0(%arg0: i32) -> (i32, i32) {
    %c0_i32 = arith.constant 0 : i32
    %c0_i32_0 = arith.constant 0 : i32
    return %arg0, %c0_i32 : i32, i32
  }
  func.func @transform_1(%arg0: i32) -> (i32, i32) {
    %c0_i32 = arith.constant 0 : i32
    %c0_i32_0 = arith.constant 0 : i32
    %c0_i32_1 = arith.constant 0 : i32
    return %c0_i32, %c0_i32_0 : i32, i32
  }
  func.func @transform_2(%arg0: i32) -> (i32, i32) {
    %c0_i32 = arith.constant 0 : i32
    %c0_i32_0 = arith.constant 0 : i32
    return %arg0, %c0_i32 : i32, i32
  }
  func.func @transform_3(%arg0: i32) -> (i32, i32, i32) {
    %c0_i32 = arith.constant 0 : i32
    %c0_i32_0 = arith.constant 0 : i32
    %c0_i32_1 = arith.constant 0 : i32
    return %arg0, %c0_i32, %c0_i32_0 : i32, i32, i32
  }
  func.func @transform_4(%arg0: i32) -> (i32, i32, i32) {
    %c0_i32 = arith.constant 0 : i32
    %c0_i32_0 = arith.constant 0 : i32
    %c0_i32_1 = arith.constant 0 : i32
    return %arg0, %c0_i32, %c0_i32_0 : i32, i32, i32
  }
}

module attributes {stable_mosaic.version = 11 : i64} {
  func.func @bn_act_kernel(%arg0: i32, %arg1: memref<392x128xbf16, #tpu.memory_space<vmem>>, %arg2: memref<1x128xf32, #tpu.memory_space<vmem>>, %arg3: memref<1x128xf32, #tpu.memory_space<vmem>>, %arg4: memref<392x128xbf16, #tpu.memory_space<vmem>>) attributes {dimension_semantics = [#tpu.dimension_semantics<parallel>], iteration_bounds = array<i64: 1>, scalar_prefetch = 0 : i64, scratch_operands = 0 : i64, tpu.core_type = #tpu.core_type<tc>, window_params = [{transform_indices = @transform_0, window_bounds = array<i64: 392, 128>}, {pipeline_mode = #tpu.pipeline_mode<synchronous>, transform_indices = @transform_1, window_bounds = array<i64: 1, 128>}, {pipeline_mode = #tpu.pipeline_mode<synchronous>, transform_indices = @transform_2, window_bounds = array<i64: 1, 128>}, {transform_indices = @transform_3, window_bounds = array<i64: 392, 128>}]} {
    %c0 = arith.constant 0 : index
    %c0_0 = arith.constant 0 : index
    %0 = vector.load %arg1[%c0, %c0_0] : memref<392x128xbf16, #tpu.memory_space<vmem>>, vector<392x128xbf16>
    %1 = arith.extf %0 : vector<392x128xbf16> to vector<392x128xf32>
    %c0_1 = arith.constant 0 : index
    %c0_2 = arith.constant 0 : index
    %2 = vector.load %arg2[%c0_1, %c0_2] : memref<1x128xf32, #tpu.memory_space<vmem>>, vector<1x128xf32>
    %3 = vector.broadcast %2 : vector<1x128xf32> to vector<392x128xf32>
    %4 = arith.mulf %1, %3 : vector<392x128xf32>
    %c0_3 = arith.constant 0 : index
    %c0_4 = arith.constant 0 : index
    %5 = vector.load %arg3[%c0_3, %c0_4] : memref<1x128xf32, #tpu.memory_space<vmem>>, vector<1x128xf32>
    %6 = vector.broadcast %5 : vector<1x128xf32> to vector<392x128xf32>
    %7 = arith.addf %4, %6 : vector<392x128xf32>
    %cst = arith.constant 0.000000e+00 : f32
    %8 = vector.broadcast %cst : f32 to vector<392x128xf32>
    %9 = arith.maximumf %7, %8 : vector<392x128xf32>
    %10 = arith.truncf %9 : vector<392x128xf32> to vector<392x128xbf16>
    %c0_5 = arith.constant 0 : index
    %c0_6 = arith.constant 0 : index
    %11 = vector.load %arg4[%c0_5, %c0_6] : memref<392x128xbf16, #tpu.memory_space<vmem>>, vector<392x128xbf16>
    tpu.vector_store %arg4[%c0_5, %c0_6], %10 {strides = array<i32>} : memref<392x128xbf16, #tpu.memory_space<vmem>>, vector<392x128xbf16>,
    return
  }
  func.func @transform_0(%arg0: i32) -> (i32, i32) {
    %c0_i32 = arith.constant 0 : i32
    %c0_i32_0 = arith.constant 0 : i32
    return %arg0, %c0_i32 : i32, i32
  }
  func.func @transform_1(%arg0: i32) -> (i32, i32) {
    %c0_i32 = arith.constant 0 : i32
    %c0_i32_0 = arith.constant 0 : i32
    %c0_i32_1 = arith.constant 0 : i32
    return %c0_i32, %c0_i32_0 : i32, i32
  }
  func.func @transform_2(%arg0: i32) -> (i32, i32) {
    %c0_i32 = arith.constant 0 : i32
    %c0_i32_0 = arith.constant 0 : i32
    %c0_i32_1 = arith.constant 0 : i32
    return %c0_i32, %c0_i32_0 : i32, i32
  }
  func.func @transform_3(%arg0: i32) -> (i32, i32) {
    %c0_i32 = arith.constant 0 : i32
    %c0_i32_0 = arith.constant 0 : i32
    return %arg0, %c0_i32 : i32, i32
  }
}

module attributes {stable_mosaic.version = 11 : i64} {
  func.func @conv_stats_kernel(%arg0: i32, %arg1: memref<288x144xbf16, #tpu.memory_space<vmem>>, %arg2: memref<144x128xbf16, #tpu.memory_space<vmem>>, %arg3: memref<288x128xbf16, #tpu.memory_space<vmem>>, %arg4: memref<1x1x128xf32, #tpu.memory_space<vmem>>, %arg5: memref<1x1x128xf32, #tpu.memory_space<vmem>>) attributes {dimension_semantics = [#tpu.dimension_semantics<parallel>], iteration_bounds = array<i64: 1>, scalar_prefetch = 0 : i64, scratch_operands = 0 : i64, tpu.core_type = #tpu.core_type<tc>, window_params = [{transform_indices = @transform_0, window_bounds = array<i64: 288, 144>}, {pipeline_mode = #tpu.pipeline_mode<synchronous>, transform_indices = @transform_1, window_bounds = array<i64: 144, 128>}, {transform_indices = @transform_2, window_bounds = array<i64: 288, 128>}, {transform_indices = @transform_3, window_bounds = array<i64: 1, 1, 128>}, {transform_indices = @transform_4, window_bounds = array<i64: 1, 1, 128>}]} {
    %c0 = arith.constant 0 : index
    %c0_0 = arith.constant 0 : index
    %0 = vector.load %arg1[%c0, %c0_0] : memref<288x144xbf16, #tpu.memory_space<vmem>>, vector<288x144xbf16>
    %c0_1 = arith.constant 0 : index
    %c0_2 = arith.constant 0 : index
    %1 = vector.load %arg2[%c0_1, %c0_2] : memref<144x128xbf16, #tpu.memory_space<vmem>>, vector<144x128xbf16>
    %cst = arith.constant dense<0.000000e+00> : vector<288x128xf32>
    %2 = tpu.matmul %0, %1, %cst {dimension_numbers = #tpu.dot_dimension_numbers<[1], [0], [0], [1], [0, 0, 1, 1], [], []>} : vector<288x144xbf16>, vector<144x128xbf16>, vector<288x128xf32> -> vector<288x128xf32>
    %3 = arith.truncf %2 : vector<288x128xf32> to vector<288x128xbf16>
    %c0_3 = arith.constant 0 : index
    %c0_4 = arith.constant 0 : index
    %4 = vector.load %arg3[%c0_3, %c0_4] : memref<288x128xbf16, #tpu.memory_space<vmem>>, vector<288x128xbf16>
    tpu.vector_store %arg3[%c0_3, %c0_4], %3 {strides = array<i32>} : memref<288x128xbf16, #tpu.memory_space<vmem>>, vector<288x128xbf16>,
    %cst_5 = arith.constant dense<0.000000e+00> : vector<128xf32>
    %5 = vector.multi_reduction <add>, %2, %cst_5 [0] : vector<288x128xf32> to vector<128xf32>
    %6 = vector.shape_cast %5 : vector<128xf32> to vector<1x128xf32>
    %7 = vector.shape_cast %6 : vector<1x128xf32> to vector<1x1x128xf32>
    %c0_6 = arith.constant 0 : index
    %c0_7 = arith.constant 0 : index
    %c0_8 = arith.constant 0 : index
    %8 = vector.load %arg4[%c0_6, %c0_7, %c0_8] : memref<1x1x128xf32, #tpu.memory_space<vmem>>, vector<1x1x128xf32>
    tpu.vector_store %arg4[%c0_6, %c0_7, %c0_8], %7 {strides = array<i32>} : memref<1x1x128xf32, #tpu.memory_space<vmem>>, vector<1x1x128xf32>,
    %9 = arith.mulf %2, %2 : vector<288x128xf32>
    %cst_9 = arith.constant dense<0.000000e+00> : vector<128xf32>
    %10 = vector.multi_reduction <add>, %9, %cst_9 [0] : vector<288x128xf32> to vector<128xf32>
    %11 = vector.shape_cast %10 : vector<128xf32> to vector<1x128xf32>
    %12 = vector.shape_cast %11 : vector<1x128xf32> to vector<1x1x128xf32>
    %c0_10 = arith.constant 0 : index
    %c0_11 = arith.constant 0 : index
    %c0_12 = arith.constant 0 : index
    %13 = vector.load %arg5[%c0_10, %c0_11, %c0_12] : memref<1x1x128xf32, #tpu.memory_space<vmem>>, vector<1x1x128xf32>
    tpu.vector_store %arg5[%c0_10, %c0_11, %c0_12], %12 {strides = array<i32>} : memref<1x1x128xf32, #tpu.memory_space<vmem>>, vector<1x1x128xf32>,
    return
  }
  func.func @transform_0(%arg0: i32) -> (i32, i32) {
    %c0_i32 = arith.constant 0 : i32
    %c0_i32_0 = arith.constant 0 : i32
    return %arg0, %c0_i32 : i32, i32
  }
  func.func @transform_1(%arg0: i32) -> (i32, i32) {
    %c0_i32 = arith.constant 0 : i32
    %c0_i32_0 = arith.constant 0 : i32
    %c0_i32_1 = arith.constant 0 : i32
    return %c0_i32, %c0_i32_0 : i32, i32
  }
  func.func @transform_2(%arg0: i32) -> (i32, i32) {
    %c0_i32 = arith.constant 0 : i32
    %c0_i32_0 = arith.constant 0 : i32
    return %arg0, %c0_i32 : i32, i32
  }
  func.func @transform_3(%arg0: i32) -> (i32, i32, i32) {
    %c0_i32 = arith.constant 0 : i32
    %c0_i32_0 = arith.constant 0 : i32
    %c0_i32_1 = arith.constant 0 : i32
    return %arg0, %c0_i32, %c0_i32_0 : i32, i32, i32
  }
  func.func @transform_4(%arg0: i32) -> (i32, i32, i32) {
    %c0_i32 = arith.constant 0 : i32
    %c0_i32_0 = arith.constant 0 : i32
    %c0_i32_1 = arith.constant 0 : i32
    return %arg0, %c0_i32, %c0_i32_0 : i32, i32, i32
  }
}

module attributes {stable_mosaic.version = 11 : i64} {
  func.func @bn_act_kernel(%arg0: i32, %arg1: memref<288x128xbf16, #tpu.memory_space<vmem>>, %arg2: memref<1x128xf32, #tpu.memory_space<vmem>>, %arg3: memref<1x128xf32, #tpu.memory_space<vmem>>, %arg4: memref<288x128xbf16, #tpu.memory_space<vmem>>) attributes {dimension_semantics = [#tpu.dimension_semantics<parallel>], iteration_bounds = array<i64: 1>, scalar_prefetch = 0 : i64, scratch_operands = 0 : i64, tpu.core_type = #tpu.core_type<tc>, window_params = [{transform_indices = @transform_0, window_bounds = array<i64: 288, 128>}, {pipeline_mode = #tpu.pipeline_mode<synchronous>, transform_indices = @transform_1, window_bounds = array<i64: 1, 128>}, {pipeline_mode = #tpu.pipeline_mode<synchronous>, transform_indices = @transform_2, window_bounds = array<i64: 1, 128>}, {transform_indices = @transform_3, window_bounds = array<i64: 288, 128>}]} {
    %c0 = arith.constant 0 : index
    %c0_0 = arith.constant 0 : index
    %0 = vector.load %arg1[%c0, %c0_0] : memref<288x128xbf16, #tpu.memory_space<vmem>>, vector<288x128xbf16>
    %1 = arith.extf %0 : vector<288x128xbf16> to vector<288x128xf32>
    %c0_1 = arith.constant 0 : index
    %c0_2 = arith.constant 0 : index
    %2 = vector.load %arg2[%c0_1, %c0_2] : memref<1x128xf32, #tpu.memory_space<vmem>>, vector<1x128xf32>
    %3 = vector.broadcast %2 : vector<1x128xf32> to vector<288x128xf32>
    %4 = arith.mulf %1, %3 : vector<288x128xf32>
    %c0_3 = arith.constant 0 : index
    %c0_4 = arith.constant 0 : index
    %5 = vector.load %arg3[%c0_3, %c0_4] : memref<1x128xf32, #tpu.memory_space<vmem>>, vector<1x128xf32>
    %6 = vector.broadcast %5 : vector<1x128xf32> to vector<288x128xf32>
    %7 = arith.addf %4, %6 : vector<288x128xf32>
    %cst = arith.constant 0.000000e+00 : f32
    %8 = vector.broadcast %cst : f32 to vector<288x128xf32>
    %9 = arith.maximumf %7, %8 : vector<288x128xf32>
    %10 = arith.truncf %9 : vector<288x128xf32> to vector<288x128xbf16>
    %c0_5 = arith.constant 0 : index
    %c0_6 = arith.constant 0 : index
    %11 = vector.load %arg4[%c0_5, %c0_6] : memref<288x128xbf16, #tpu.memory_space<vmem>>, vector<288x128xbf16>
    tpu.vector_store %arg4[%c0_5, %c0_6], %10 {strides = array<i32>} : memref<288x128xbf16, #tpu.memory_space<vmem>>, vector<288x128xbf16>,
    return
  }
  func.func @transform_0(%arg0: i32) -> (i32, i32) {
    %c0_i32 = arith.constant 0 : i32
    %c0_i32_0 = arith.constant 0 : i32
    return %arg0, %c0_i32 : i32, i32
  }
  func.func @transform_1(%arg0: i32) -> (i32, i32) {
    %c0_i32 = arith.constant 0 : i32
    %c0_i32_0 = arith.constant 0 : i32
    %c0_i32_1 = arith.constant 0 : i32
    return %c0_i32, %c0_i32_0 : i32, i32
  }
  func.func @transform_2(%arg0: i32) -> (i32, i32) {
    %c0_i32 = arith.constant 0 : i32
    %c0_i32_0 = arith.constant 0 : i32
    %c0_i32_1 = arith.constant 0 : i32
    return %c0_i32, %c0_i32_0 : i32, i32
  }
  func.func @transform_3(%arg0: i32) -> (i32, i32) {
    %c0_i32 = arith.constant 0 : i32
    %c0_i32_0 = arith.constant 0 : i32
    return %arg0, %c0_i32 : i32, i32
  }
}

module attributes {stable_mosaic.version = 11 : i64} {
  func.func @conv_stats_kernel(%arg0: i32, %arg1: memref<128x800xbf16, #tpu.memory_space<vmem>>, %arg2: memref<800x128xbf16, #tpu.memory_space<vmem>>, %arg3: memref<128x128xbf16, #tpu.memory_space<vmem>>, %arg4: memref<1x1x128xf32, #tpu.memory_space<vmem>>, %arg5: memref<1x1x128xf32, #tpu.memory_space<vmem>>) attributes {dimension_semantics = [#tpu.dimension_semantics<parallel>], iteration_bounds = array<i64: 1>, scalar_prefetch = 0 : i64, scratch_operands = 0 : i64, tpu.core_type = #tpu.core_type<tc>, window_params = [{transform_indices = @transform_0, window_bounds = array<i64: 128, 800>}, {pipeline_mode = #tpu.pipeline_mode<synchronous>, transform_indices = @transform_1, window_bounds = array<i64: 800, 128>}, {transform_indices = @transform_2, window_bounds = array<i64: 128, 128>}, {transform_indices = @transform_3, window_bounds = array<i64: 1, 1, 128>}, {transform_indices = @transform_4, window_bounds = array<i64: 1, 1, 128>}]} {
    %c0 = arith.constant 0 : index
    %c0_0 = arith.constant 0 : index
    %0 = vector.load %arg1[%c0, %c0_0] : memref<128x800xbf16, #tpu.memory_space<vmem>>, vector<128x800xbf16>
    %c0_1 = arith.constant 0 : index
    %c0_2 = arith.constant 0 : index
    %1 = vector.load %arg2[%c0_1, %c0_2] : memref<800x128xbf16, #tpu.memory_space<vmem>>, vector<800x128xbf16>
    %cst = arith.constant dense<0.000000e+00> : vector<128x128xf32>
    %2 = tpu.matmul %0, %1, %cst {dimension_numbers = #tpu.dot_dimension_numbers<[1], [0], [0], [1], [0, 0, 1, 1], [], []>} : vector<128x800xbf16>, vector<800x128xbf16>, vector<128x128xf32> -> vector<128x128xf32>
    %3 = arith.truncf %2 : vector<128x128xf32> to vector<128x128xbf16>
    %c0_3 = arith.constant 0 : index
    %c0_4 = arith.constant 0 : index
    %4 = vector.load %arg3[%c0_3, %c0_4] : memref<128x128xbf16, #tpu.memory_space<vmem>>, vector<128x128xbf16>
    tpu.vector_store %arg3[%c0_3, %c0_4], %3 {strides = array<i32>} : memref<128x128xbf16, #tpu.memory_space<vmem>>, vector<128x128xbf16>,
    %cst_5 = arith.constant dense<0.000000e+00> : vector<128xf32>
    %5 = vector.multi_reduction <add>, %2, %cst_5 [0] : vector<128x128xf32> to vector<128xf32>
    %6 = vector.shape_cast %5 : vector<128xf32> to vector<1x128xf32>
    %7 = vector.shape_cast %6 : vector<1x128xf32> to vector<1x1x128xf32>
    %c0_6 = arith.constant 0 : index
    %c0_7 = arith.constant 0 : index
    %c0_8 = arith.constant 0 : index
    %8 = vector.load %arg4[%c0_6, %c0_7, %c0_8] : memref<1x1x128xf32, #tpu.memory_space<vmem>>, vector<1x1x128xf32>
    tpu.vector_store %arg4[%c0_6, %c0_7, %c0_8], %7 {strides = array<i32>} : memref<1x1x128xf32, #tpu.memory_space<vmem>>, vector<1x1x128xf32>,
    %9 = arith.mulf %2, %2 : vector<128x128xf32>
    %cst_9 = arith.constant dense<0.000000e+00> : vector<128xf32>
    %10 = vector.multi_reduction <add>, %9, %cst_9 [0] : vector<128x128xf32> to vector<128xf32>
    %11 = vector.shape_cast %10 : vector<128xf32> to vector<1x128xf32>
    %12 = vector.shape_cast %11 : vector<1x128xf32> to vector<1x1x128xf32>
    %c0_10 = arith.constant 0 : index
    %c0_11 = arith.constant 0 : index
    %c0_12 = arith.constant 0 : index
    %13 = vector.load %arg5[%c0_10, %c0_11, %c0_12] : memref<1x1x128xf32, #tpu.memory_space<vmem>>, vector<1x1x128xf32>
    tpu.vector_store %arg5[%c0_10, %c0_11, %c0_12], %12 {strides = array<i32>} : memref<1x1x128xf32, #tpu.memory_space<vmem>>, vector<1x1x128xf32>,
    return
  }
  func.func @transform_0(%arg0: i32) -> (i32, i32) {
    %c0_i32 = arith.constant 0 : i32
    %c0_i32_0 = arith.constant 0 : i32
    return %arg0, %c0_i32 : i32, i32
  }
  func.func @transform_1(%arg0: i32) -> (i32, i32) {
    %c0_i32 = arith.constant 0 : i32
    %c0_i32_0 = arith.constant 0 : i32
    %c0_i32_1 = arith.constant 0 : i32
    return %c0_i32, %c0_i32_0 : i32, i32
  }
  func.func @transform_2(%arg0: i32) -> (i32, i32) {
    %c0_i32 = arith.constant 0 : i32
    %c0_i32_0 = arith.constant 0 : i32
    return %arg0, %c0_i32 : i32, i32
  }
  func.func @transform_3(%arg0: i32) -> (i32, i32, i32) {
    %c0_i32 = arith.constant 0 : i32
    %c0_i32_0 = arith.constant 0 : i32
    %c0_i32_1 = arith.constant 0 : i32
    return %arg0, %c0_i32, %c0_i32_0 : i32, i32, i32
  }
  func.func @transform_4(%arg0: i32) -> (i32, i32, i32) {
    %c0_i32 = arith.constant 0 : i32
    %c0_i32_0 = arith.constant 0 : i32
    %c0_i32_1 = arith.constant 0 : i32
    return %arg0, %c0_i32, %c0_i32_0 : i32, i32, i32
  }
}

module attributes {stable_mosaic.version = 11 : i64} {
  func.func @bn_act_kernel(%arg0: i32, %arg1: memref<128x128xbf16, #tpu.memory_space<vmem>>, %arg2: memref<1x128xf32, #tpu.memory_space<vmem>>, %arg3: memref<1x128xf32, #tpu.memory_space<vmem>>, %arg4: memref<128x128xbf16, #tpu.memory_space<vmem>>) attributes {dimension_semantics = [#tpu.dimension_semantics<parallel>], iteration_bounds = array<i64: 1>, scalar_prefetch = 0 : i64, scratch_operands = 0 : i64, tpu.core_type = #tpu.core_type<tc>, window_params = [{transform_indices = @transform_0, window_bounds = array<i64: 128, 128>}, {pipeline_mode = #tpu.pipeline_mode<synchronous>, transform_indices = @transform_1, window_bounds = array<i64: 1, 128>}, {pipeline_mode = #tpu.pipeline_mode<synchronous>, transform_indices = @transform_2, window_bounds = array<i64: 1, 128>}, {transform_indices = @transform_3, window_bounds = array<i64: 128, 128>}]} {
    %c0 = arith.constant 0 : index
    %c0_0 = arith.constant 0 : index
    %0 = vector.load %arg1[%c0, %c0_0] : memref<128x128xbf16, #tpu.memory_space<vmem>>, vector<128x128xbf16>
    %1 = arith.extf %0 : vector<128x128xbf16> to vector<128x128xf32>
    %c0_1 = arith.constant 0 : index
    %c0_2 = arith.constant 0 : index
    %2 = vector.load %arg2[%c0_1, %c0_2] : memref<1x128xf32, #tpu.memory_space<vmem>>, vector<1x128xf32>
    %3 = vector.broadcast %2 : vector<1x128xf32> to vector<128x128xf32>
    %4 = arith.mulf %1, %3 : vector<128x128xf32>
    %c0_3 = arith.constant 0 : index
    %c0_4 = arith.constant 0 : index
    %5 = vector.load %arg3[%c0_3, %c0_4] : memref<1x128xf32, #tpu.memory_space<vmem>>, vector<1x128xf32>
    %6 = vector.broadcast %5 : vector<1x128xf32> to vector<128x128xf32>
    %7 = arith.addf %4, %6 : vector<128x128xf32>
    %8 = tpu.iota {dimensions = array<i32: 1>} : vector<128x128xi32>
    %c64_i32 = arith.constant 64 : i32
    %9 = vector.broadcast %c64_i32 : i32 to vector<128x128xi32>
    %10 = arith.cmpi slt, %8, %9 : vector<128x128xi32>
    %cst = arith.constant -1.000000e+30 : f32
    %11 = vector.broadcast %cst : f32 to vector<128x128xf32>
    %12 = arith.select %10, %7, %11 : vector<128x128xi1>, vector<128x128xf32>
    %cst_5 = arith.constant dense<0xFF800000> : vector<128xf32>
    %13 = vector.multi_reduction <maximumf>, %12, %cst_5 [1] : vector<128x128xf32> to vector<128xf32>
    %14 = vector.shape_cast %13 : vector<128xf32> to vector<128x1xf32>
    %15 = vector.broadcast %14 : vector<128x1xf32> to vector<128x128xf32>
    %16 = arith.subf %12, %15 : vector<128x128xf32>
    %17 = math.exp %16 : vector<128x128xf32>
    %cst_6 = arith.constant dense<0.000000e+00> : vector<128xf32>
    %18 = vector.multi_reduction <add>, %17, %cst_6 [1] : vector<128x128xf32> to vector<128xf32>
    %19 = vector.shape_cast %18 : vector<128xf32> to vector<128x1xf32>
    %20 = math.log %19 : vector<128x1xf32>
    %21 = vector.broadcast %20 : vector<128x1xf32> to vector<128x128xf32>
    %22 = arith.subf %16, %21 : vector<128x128xf32>
    %cst_7 = arith.constant 0.000000e+00 : f32
    %23 = vector.broadcast %cst_7 : f32 to vector<128x128xf32>
    %24 = arith.select %10, %22, %23 : vector<128x128xi1>, vector<128x128xf32>
    %25 = arith.truncf %24 : vector<128x128xf32> to vector<128x128xbf16>
    %c0_8 = arith.constant 0 : index
    %c0_9 = arith.constant 0 : index
    %26 = vector.load %arg4[%c0_8, %c0_9] : memref<128x128xbf16, #tpu.memory_space<vmem>>, vector<128x128xbf16>
    tpu.vector_store %arg4[%c0_8, %c0_9], %25 {strides = array<i32>} : memref<128x128xbf16, #tpu.memory_space<vmem>>, vector<128x128xbf16>,
    return
  }
  func.func @transform_0(%arg0: i32) -> (i32, i32) {
    %c0_i32 = arith.constant 0 : i32
    %c0_i32_0 = arith.constant 0 : i32
    return %arg0, %c0_i32 : i32, i32
  }
  func.func @transform_1(%arg0: i32) -> (i32, i32) {
    %c0_i32 = arith.constant 0 : i32
    %c0_i32_0 = arith.constant 0 : i32
    %c0_i32_1 = arith.constant 0 : i32
    return %c0_i32, %c0_i32_0 : i32, i32
  }
  func.func @transform_2(%arg0: i32) -> (i32, i32) {
    %c0_i32 = arith.constant 0 : i32
    %c0_i32_0 = arith.constant 0 : i32
    %c0_i32_1 = arith.constant 0 : i32
    return %c0_i32, %c0_i32_0 : i32, i32
  }
  func.func @transform_3(%arg0: i32) -> (i32, i32) {
    %c0_i32 = arith.constant 0 : i32
    %c0_i32_0 = arith.constant 0 : i32
    return %arg0, %c0_i32 : i32, i32
  }
}

module attributes {stable_mosaic.version = 11 : i64} {
  func.func @fc1_kernel(%arg0: i32, %arg1: i32, %arg2: memref<8x4096xbf16, #tpu.memory_space<vmem>>, %arg3: memref<1x4096x64xbf16, #tpu.memory_space<vmem>>, %arg4: memref<1x8x64xf32, #tpu.memory_space<vmem>>) attributes {dimension_semantics = [#tpu.dimension_semantics<parallel>, #tpu.dimension_semantics<arbitrary>], iteration_bounds = array<i64: 2, 1>, scalar_prefetch = 0 : i64, scratch_operands = 0 : i64, tpu.core_type = #tpu.core_type<tc>, window_params = [{transform_indices = @transform_0, window_bounds = array<i64: 8, 4096>}, {transform_indices = @transform_1, window_bounds = array<i64: 1, 4096, 64>}, {transform_indices = @transform_2, window_bounds = array<i64: 1, 8, 64>}]} {
    %c0_i32 = arith.constant 0 : i32
    %0 = arith.cmpi eq, %arg1, %c0_i32 : i32
    %1 = arith.extui %0 : i1 to i32
    %c0_i32_0 = arith.constant 0 : i32
    %2 = arith.cmpi ne, %1, %c0_i32_0 : i32
    scf.if %2 {
      %cst_11 = arith.constant 0.000000e+00 : f32
      %13 = vector.broadcast %cst_11 : f32 to vector<8x64xf32>
      %c0_12 = arith.constant 0 : index
      %c0_13 = arith.constant 0 : index
      %c0_14 = arith.constant 0 : index
      %14 = vector.load %arg4[%c0_12, %c0_13, %c0_14] : memref<1x8x64xf32, #tpu.memory_space<vmem>>, vector<1x8x64xf32>
      %15 = vector.shape_cast %14 : vector<1x8x64xf32> to vector<8x64xf32>
      %16 = vector.shape_cast %13 : vector<8x64xf32> to vector<1x8x64xf32>
      tpu.vector_store %arg4[%c0_12, %c0_13, %c0_14], %16 {strides = array<i32>} : memref<1x8x64xf32, #tpu.memory_space<vmem>>, vector<1x8x64xf32>,
    } else {
    }
    %c0 = arith.constant 0 : index
    %c0_1 = arith.constant 0 : index
    %c0_2 = arith.constant 0 : index
    %3 = vector.load %arg4[%c0, %c0_1, %c0_2] : memref<1x8x64xf32, #tpu.memory_space<vmem>>, vector<1x8x64xf32>
    %4 = vector.shape_cast %3 : vector<1x8x64xf32> to vector<8x64xf32>
    %c0_3 = arith.constant 0 : index
    %c0_4 = arith.constant 0 : index
    %5 = vector.load %arg2[%c0_3, %c0_4] : memref<8x4096xbf16, #tpu.memory_space<vmem>>, vector<8x4096xbf16>
    %c0_5 = arith.constant 0 : index
    %c0_6 = arith.constant 0 : index
    %c0_7 = arith.constant 0 : index
    %6 = vector.load %arg3[%c0_5, %c0_6, %c0_7] : memref<1x4096x64xbf16, #tpu.memory_space<vmem>>, vector<1x4096x64xbf16>
    %7 = vector.shape_cast %6 : vector<1x4096x64xbf16> to vector<4096x64xbf16>
    %cst = arith.constant dense<0.000000e+00> : vector<8x64xf32>
    %8 = tpu.matmul %5, %7, %cst {dimension_numbers = #tpu.dot_dimension_numbers<[1], [0], [0], [1], [0, 0, 1, 1], [], []>} : vector<8x4096xbf16>, vector<4096x64xbf16>, vector<8x64xf32> -> vector<8x64xf32>
    %9 = arith.addf %4, %8 : vector<8x64xf32>
    %c0_8 = arith.constant 0 : index
    %c0_9 = arith.constant 0 : index
    %c0_10 = arith.constant 0 : index
    %10 = vector.load %arg4[%c0_8, %c0_9, %c0_10] : memref<1x8x64xf32, #tpu.memory_space<vmem>>, vector<1x8x64xf32>
    %11 = vector.shape_cast %10 : vector<1x8x64xf32> to vector<8x64xf32>
    %12 = vector.shape_cast %9 : vector<8x64xf32> to vector<1x8x64xf32>
    tpu.vector_store %arg4[%c0_8, %c0_9, %c0_10], %12 {strides = array<i32>} : memref<1x8x64xf32, #tpu.memory_space<vmem>>, vector<1x8x64xf32>,
    return
  }
  func.func @transform_0(%arg0: i32, %arg1: i32) -> (i32, i32) {
    %c0_i32 = arith.constant 0 : i32
    %c0_i32_0 = arith.constant 0 : i32
    return %c0_i32, %arg1 : i32, i32
  }
  func.func @transform_1(%arg0: i32, %arg1: i32) -> (i32, i32, i32) {
    %c0_i32 = arith.constant 0 : i32
    %c0_i32_0 = arith.constant 0 : i32
    return %arg0, %arg1, %c0_i32 : i32, i32, i32
  }
  func.func @transform_2(%arg0: i32, %arg1: i32) -> (i32, i32, i32) {
    %c0_i32 = arith.constant 0 : i32
    %c0_i32_0 = arith.constant 0 : i32
    %c0_i32_1 = arith.constant 0 : i32
    return %arg0, %c0_i32, %c0_i32_0 : i32, i32, i32
  }
}

module attributes {stable_mosaic.version = 11 : i64} {
  func.func @mlp_tail_kernel(%arg0: memref<8x128xf32, #tpu.memory_space<vmem>>, %arg1: memref<1x128xf32, #tpu.memory_space<vmem>>, %arg2: memref<128x64xbf16, #tpu.memory_space<vmem>>, %arg3: memref<1x64xf32, #tpu.memory_space<vmem>>, %arg4: memref<64x32xbf16, #tpu.memory_space<vmem>>, %arg5: memref<1x32xf32, #tpu.memory_space<vmem>>, %arg6: memref<32x10xbf16, #tpu.memory_space<vmem>>, %arg7: memref<1x10xf32, #tpu.memory_space<vmem>>, %arg8: memref<8x10xf32, #tpu.memory_space<vmem>>) attributes {dimension_semantics = [], scalar_prefetch = 0 : i64, scratch_operands = 0 : i64, tpu.core_type = #tpu.core_type<tc>} {
    %c0 = arith.constant 0 : index
    %c0_0 = arith.constant 0 : index
    %0 = vector.load %arg0[%c0, %c0_0] : memref<8x128xf32, #tpu.memory_space<vmem>>, vector<8x128xf32>
    %c0_1 = arith.constant 0 : index
    %c0_2 = arith.constant 0 : index
    %1 = vector.load %arg1[%c0_1, %c0_2] : memref<1x128xf32, #tpu.memory_space<vmem>>, vector<1x128xf32>
    %2 = vector.broadcast %1 : vector<1x128xf32> to vector<8x128xf32>
    %3 = arith.addf %0, %2 : vector<8x128xf32>
    %4 = arith.truncf %3 : vector<8x128xf32> to vector<8x128xbf16>
    %c0_3 = arith.constant 0 : index
    %c0_4 = arith.constant 0 : index
    %5 = vector.load %arg2[%c0_3, %c0_4] : memref<128x64xbf16, #tpu.memory_space<vmem>>, vector<128x64xbf16>
    %cst = arith.constant dense<0.000000e+00> : vector<8x64xf32>
    %6 = tpu.matmul %4, %5, %cst {dimension_numbers = #tpu.dot_dimension_numbers<[1], [0], [0], [1], [0, 0, 1, 1], [], []>} : vector<8x128xbf16>, vector<128x64xbf16>, vector<8x64xf32> -> vector<8x64xf32>
    %c0_5 = arith.constant 0 : index
    %c0_6 = arith.constant 0 : index
    %7 = vector.load %arg3[%c0_5, %c0_6] : memref<1x64xf32, #tpu.memory_space<vmem>>, vector<1x64xf32>
    %8 = vector.broadcast %7 : vector<1x64xf32> to vector<8x64xf32>
    %9 = arith.addf %6, %8 : vector<8x64xf32>
    %10 = arith.truncf %9 : vector<8x64xf32> to vector<8x64xbf16>
    %c0_7 = arith.constant 0 : index
    %c0_8 = arith.constant 0 : index
    %11 = vector.load %arg4[%c0_7, %c0_8] : memref<64x32xbf16, #tpu.memory_space<vmem>>, vector<64x32xbf16>
    %cst_9 = arith.constant dense<0.000000e+00> : vector<8x32xf32>
    %12 = tpu.matmul %10, %11, %cst_9 {dimension_numbers = #tpu.dot_dimension_numbers<[1], [0], [0], [1], [0, 0, 1, 1], [], []>} : vector<8x64xbf16>, vector<64x32xbf16>, vector<8x32xf32> -> vector<8x32xf32>
    %c0_10 = arith.constant 0 : index
    %c0_11 = arith.constant 0 : index
    %13 = vector.load %arg5[%c0_10, %c0_11] : memref<1x32xf32, #tpu.memory_space<vmem>>, vector<1x32xf32>
    %14 = vector.broadcast %13 : vector<1x32xf32> to vector<8x32xf32>
    %15 = arith.addf %12, %14 : vector<8x32xf32>
    %16 = arith.truncf %15 : vector<8x32xf32> to vector<8x32xbf16>
    %c0_12 = arith.constant 0 : index
    %c0_13 = arith.constant 0 : index
    %17 = vector.load %arg6[%c0_12, %c0_13] : memref<32x10xbf16, #tpu.memory_space<vmem>>, vector<32x10xbf16>
    %cst_14 = arith.constant dense<0.000000e+00> : vector<8x10xf32>
    %18 = tpu.matmul %16, %17, %cst_14 {dimension_numbers = #tpu.dot_dimension_numbers<[1], [0], [0], [1], [0, 0, 1, 1], [], []>} : vector<8x32xbf16>, vector<32x10xbf16>, vector<8x10xf32> -> vector<8x10xf32>
    %c0_15 = arith.constant 0 : index
    %c0_16 = arith.constant 0 : index
    %19 = vector.load %arg7[%c0_15, %c0_16] : memref<1x10xf32, #tpu.memory_space<vmem>>, vector<1x10xf32>
    %20 = vector.broadcast %19 : vector<1x10xf32> to vector<8x10xf32>
    %21 = arith.addf %18, %20 : vector<8x10xf32>
    %cst_17 = arith.constant dense<0xFF800000> : vector<8xf32>
    %22 = vector.multi_reduction <maximumf>, %21, %cst_17 [1] : vector<8x10xf32> to vector<8xf32>
    %23 = vector.shape_cast %22 : vector<8xf32> to vector<8x1xf32>
    %24 = vector.broadcast %23 : vector<8x1xf32> to vector<8x10xf32>
    %25 = arith.subf %21, %24 : vector<8x10xf32>
    %26 = math.exp %25 : vector<8x10xf32>
    %cst_18 = arith.constant dense<0.000000e+00> : vector<8xf32>
    %27 = vector.multi_reduction <add>, %26, %cst_18 [1] : vector<8x10xf32> to vector<8xf32>
    %28 = vector.shape_cast %27 : vector<8xf32> to vector<8x1xf32>
    %29 = math.log %28 : vector<8x1xf32>
    %30 = vector.broadcast %29 : vector<8x1xf32> to vector<8x10xf32>
    %31 = arith.subf %25, %30 : vector<8x10xf32>
    %c0_19 = arith.constant 0 : index
    %c0_20 = arith.constant 0 : index
    %32 = vector.load %arg8[%c0_19, %c0_20] : memref<8x10xf32, #tpu.memory_space<vmem>>, vector<8x10xf32>
    tpu.vector_store %arg8[%c0_19, %c0_20], %31 {strides = array<i32>} : memref<8x10xf32, #tpu.memory_space<vmem>>, vector<8x10xf32>,
    return
  }
}

</mosaic_0001>

<llo_original>
// kernel: nn2_forward.8
$region0: #{nn2_forward.8}
  #allocation0 [shape = 'u32[]', space=smem, size = 0x4, offset = 0x4, fixed_abs, tag = 'smem constant byte address 0x4 - core index']
  #allocation1 [shape = 'u32[144,128]{1,0:T(1,128)}', space=vmem, size = 0x12000, scoped, tag = 'internal scratch']
  %s0 = inlined_call_operand.vmem [shape: bf16[392,27], index: 0, kind: input, shape index: {}]
  %s1 = inlined_call_operand.vmem [shape: bf16[27,128], index: 1, kind: input, shape index: {}]
  %s2 = inlined_call_operand.vmem [shape: bf16[392,128], index: 2, kind: output, shape index: {0}]
  %s3 = inlined_call_operand.vmem [shape: f32[1,1,128], index: 3, kind: output, shape index: {1}]
  %s4 = inlined_call_operand.vmem [shape: f32[1,1,128], index: 4, kind: output, shape index: {2}]
  %5 = xla_tuple %s2, %s3, %s4
  %s6 = sld [smem:[#allocation0]]
  $region34: #{nn2_forward.8} parent=0
    _
  %s8 = ssub.s32 1, %s6
  %s9 = scalar_select 0, %s8, %s6
  // Predicated region
  $region2: #{nn2_forward.8} parent=0 // pred_check
    _
  $region3: #{nn2_forward.8} parent=0 // pred_check_branch
    %11 = sbr.rel (0) target = $region5
  $region4: #{nn2_forward.8} parent=0 // pred_region
    _
  $region5: #{nn2_forward.8} parent=0 // pred_fallthru
    _
  // Predicated region
  $region6: #{nn2_forward.8} parent=0 // pred_check
    _
  $region7: #{nn2_forward.8} parent=0 // pred_check_branch
    %13 = sbr.rel (0) target = $region9
  $region8: #{nn2_forward.8} parent=0 // pred_region
    _
  $region9: #{nn2_forward.8} parent=0 // pred_fallthru
    _
  %v15 = vld [vmem:[%s0] sm:$0xf]
  %v16 = vld [vmem:[%s0 + $0x4] sm:$0xf]
  %v17 = vld [vmem:[%s0 + $0x8] sm:$0xf]
  %v18 = vld [vmem:[%s0 + $0xc] sm:$0xf]
  %v19 = vld [vmem:[%s0 + $0x10] sm:$0xf]
  %v20 = vld [vmem:[%s0 + $0x14] sm:$0xf]
  %v21 = vld [vmem:[%s0 + $0x18] sm:$0xf]
  %v22 = vld [vmem:[%s0 + $0x1c] sm:$0xf]
  %v23 = vld [vmem:[%s0 + $0x20] sm:$0xf]
  %v24 = vld [vmem:[%s0 + $0x24] sm:$0xf]
  %v25 = vld [vmem:[%s0 + $0x28] sm:$0xf]
  %v26 = vld [vmem:[%s0 + $0x2c] sm:$0xf]
  %v27 = vld [vmem:[%s0 + $0x30] sm:$0xf]
  %v28 = vld [vmem:[%s0 + $0x34] sm:$0xf]
  %v29 = vld [vmem:[%s0 + $0x38] sm:$0xf]
  %v30 = vld [vmem:[%s0 + $0x3c] sm:$0xf]
  %v31 = vld [vmem:[%s0 + $0x40] sm:$0xf]
  %v32 = vld [vmem:[%s0 + $0x44] sm:$0xf]
  %v33 = vld [vmem:[%s0 + $0x48] sm:$0xf]
  %v34 = vld [vmem:[%s0 + $0x4c] sm:$0xf]
  %v35 = vld [vmem:[%s0 + $0x50] sm:$0xf]
  %v36 = vld [vmem:[%s0 + $0x54] sm:$0xf]
  %v37 = vld [vmem:[%s0 + $0x58] sm:$0xf]
  %v38 = vld [vmem:[%s0 + $0x5c] sm:$0xf]
  %v39 = vld [vmem:[%s0 + $0x60] sm:$0xf]
  %v40 = vld [vmem:[%s0 + $0x64] sm:$0xf]
  %v41 = vld [vmem:[%s0 + $0x68] sm:$0xf]
  %v42 = vld [vmem:[%s0 + $0x6c] sm:$0xf]
  %v43 = vld [vmem:[%s0 + $0x70] sm:$0xf]
  %v44 = vld [vmem:[%s0 + $0x74] sm:$0xf]
  %v45 = vld [vmem:[%s0 + $0x78] sm:$0xf]
  %v46 = vld [vmem:[%s0 + $0x7c] sm:$0xf]
  %v47 = vld [vmem:[%s0 + $0x80] sm:$0xf]
  %v48 = vld [vmem:[%s0 + $0x84] sm:$0xf]
  %v49 = vld [vmem:[%s0 + $0x88] sm:$0xf]
  %v50 = vld [vmem:[%s0 + $0x8c] sm:$0xf]
  %v51 = vld [vmem:[%s0 + $0x90] sm:$0xf]
  %v52 = vld [vmem:[%s0 + $0x94] sm:$0xf]
  %v53 = vld [vmem:[%s0 + $0x98] sm:$0xf]
  %v54 = vld [vmem:[%s0 + $0x9c] sm:$0xf]
  %v55 = vld [vmem:[%s0 + $0xa0] sm:$0xf]
  %v56 = vld [vmem:[%s0 + $0xa4] sm:$0xf]
  %v57 = vld [vmem:[%s0 + $0xa8] sm:$0xf]
  %v58 = vld [vmem:[%s0 + $0xac] sm:$0xf]
  %v59 = vld [vmem:[%s0 + $0xb0] sm:$0xf]
  %v60 = vld [vmem:[%s0 + $0xb4] sm:$0xf]
  %v61 = vld [vmem:[%s0 + $0xb8] sm:$0xf]
  %v62 = vld [vmem:[%s0 + $0xbc] sm:$0xf]
  %v63 = vld [vmem:[%s0 + $0xc0] sm:$0xf]
  %v64 = vld [vmem:[%s1] sm:$0xf]
  %v65 = vld [vmem:[%s1 + $0x4] sm:$0xf]
  %v66 = vld [vmem:[%s1 + $0x8] sm:$0xf]
  %v67 = vld [vmem:[%s1 + $0xc] sm:$0x3]
  %v117 = vunpack.c.l.b16 %v15
  %v118 = vunpack.c.l.b16 %v16
  %v119 = vunpack.c.l.b16 %v17
  %v120 = vunpack.c.l.b16 %v18
  %v121 = vunpack.c.l.b16 %v19
  %v122 = vunpack.c.l.b16 %v20
  %v123 = vunpack.c.l.b16 %v21
  %v124 = vunpack.c.l.b16 %v22
  %v125 = vunpack.c.l.b16 %v23
  %v126 = vunpack.c.l.b16 %v24
  %v127 = vunpack.c.l.b16 %v25
  %v128 = vunpack.c.l.b16 %v26
  %v129 = vunpack.c.l.b16 %v27
  %v130 = vunpack.c.l.b16 %v28
  %v131 = vunpack.c.l.b16 %v29
  %v132 = vunpack.c.l.b16 %v30
  %v133 = vunpack.c.l.b16 %v31
  %v134 = vunpack.c.l.b16 %v32
  %v135 = vunpack.c.l.b16 %v33
  %v136 = vunpack.c.l.b16 %v34
  %v137 = vunpack.c.l.b16 %v35
  %v138 = vunpack.c.l.b16 %v36
  %v139 = vunpack.c.l.b16 %v37
  %v140 = vunpack.c.l.b16 %v38
  %v141 = vunpack.c.l.b16 %v39
  %v142 = vunpack.c.l.b16 %v40
  %v143 = vunpack.c.l.b16 %v41
  %v144 = vunpack.c.l.b16 %v42
  %v145 = vunpack.c.l.b16 %v43
  %v146 = vunpack.c.l.b16 %v44
  %v147 = vunpack.c.l.b16 %v45
  %v148 = vunpack.c.l.b16 %v46
  %v149 = vunpack.c.l.b16 %v47
  %v150 = vunpack.c.l.b16 %v48
  %v151 = vunpack.c.l.b16 %v49
  %v152 = vunpack.c.l.b16 %v50
  %v153 = vunpack.c.l.b16 %v51
  %v154 = vunpack.c.l.b16 %v52
  %v155 = vunpack.c.l.b16 %v53
  %v156 = vunpack.c.l.b16 %v54
  %v157 = vunpack.c.l.b16 %v55
  %v158 = vunpack.c.l.b16 %v56
  %v159 = vunpack.c.l.b16 %v57
  %v160 = vunpack.c.l.b16 %v58
  %v161 = vunpack.c.l.b16 %v59
  %v162 = vunpack.c.l.b16 %v60
  %v163 = vunpack.c.l.b16 %v61
  %v164 = vunpack.c.l.b16 %v62
  %v165 = vunpack.c.l.b16 %v63
  %v166 = vpack.c.b16 %v118, %v117
  %v167 = vpack.c.b16 %v120, %v119
  %v168 = vpack.c.b16 %v122, %v121
  %v169 = vpack.c.b16 %v124, %v123
  %v170 = vpack.c.b16 %v126, %v125
  %v171 = vpack.c.b16 %v128, %v127
  %v172 = vpack.c.b16 %v130, %v129
  %v173 = vpack.c.b16 %v132, %v131
  %v174 = vpack.c.b16 %v134, %v133
  %v175 = vpack.c.b16 %v136, %v135
  %v176 = vpack.c.b16 %v138, %v137
  %v177 = vpack.c.b16 %v140, %v139
  %v178 = vpack.c.b16 %v142, %v141
  %v179 = vpack.c.b16 %v144, %v143
  %v180 = vpack.c.b16 %v146, %v145
  %v181 = vpack.c.b16 %v148, %v147
  %v182 = vpack.c.b16 %v150, %v149
  %v183 = vpack.c.b16 %v152, %v151
  %v184 = vpack.c.b16 %v154, %v153
  %v185 = vpack.c.b16 %v156, %v155
  %v186 = vpack.c.b16 %v158, %v157
  %v187 = vpack.c.b16 %v160, %v159
  %v188 = vpack.c.b16 %v162, %v161
  %v189 = vpack.c.b16 %v164, %v163
  %v190 = vpack.c.b16 %v165, %v165
  %v195 = vunpack.c.l.b16 %v64
  %v196 = vunpack.c.l.b16 %v65
  %v197 = vunpack.c.l.b16 %v66
  %v198 = vunpack.c.l.b16 %v67
  %v199 = vpack.c.b16 %v196, %v195
  %v200 = vpack.c.b16 %v198, %v197
  %vm202 = vcmask 220160
  %v204 = vsel %vm202, %v166, 0
  %v207 = vsel %vm202, %v167, 0
  %v210 = vsel %vm202, %v168, 0
  %v213 = vsel %vm202, %v169, 0
  %v216 = vsel %vm202, %v170, 0
  %v219 = vsel %vm202, %v171, 0
  %v222 = vsel %vm202, %v172, 0
  %v225 = vsel %vm202, %v173, 0
  %v228 = vsel %vm202, %v174, 0
  %v231 = vsel %vm202, %v175, 0
  %v234 = vsel %vm202, %v176, 0
  %v237 = vsel %vm202, %v177, 0
  %v240 = vsel %vm202, %v178, 0
  %v243 = vsel %vm202, %v179, 0
  %v246 = vsel %vm202, %v180, 0
  %v249 = vsel %vm202, %v181, 0
  %v252 = vsel %vm202, %v182, 0
  %v255 = vsel %vm202, %v183, 0
  %v258 = vsel %vm202, %v184, 0
  %v261 = vsel %vm202, %v185, 0
  %v264 = vsel %vm202, %v186, 0
  %v267 = vsel %vm202, %v187, 0
  %v270 = vsel %vm202, %v188, 0
  %v273 = vsel %vm202, %v189, 0
  %v276 = vsel %vm202, %v190, 0
  %vm278 = vcmask 1044480
  %vm279 = vcmask 1045504
  %v280 = vsel %vm278, 4294967295, 65535
  %v281 = vsel %vm279, %v280, 0
  %v283 = vand.u32 %v200, %v281
  %285 = vmatprep.subr.bf16.mxu0 0
  %286 = vmatpush1.bf16.msra.mxu0 0
  %287 = vmatprep.subr.bf16.mxu0 0
  %288 = vmatpush1.bf16.msra.mxu0 0
  %289 = vmatprep.subr.bf16.mxu0 0
  %290 = vmatpush1.bf16.msra.mxu0 0
  %291 = vmatprep.subr.bf16.mxu0 0
  %292 = vmatpush1.bf16.msra.mxu0 0
  %293 = vmatprep.subr.bf16.mxu0 0
  %294 = vmatpush1.bf16.msra.mxu0 0
  %295 = vmatprep.subr.bf16.mxu0 0
  %296 = vmatpush1.bf16.msra.mxu0 0
  %297 = vmatprep.subr.bf16.mxu0 0
  %298 = vmatpush1.bf16.msra.mxu0 %v283
  %299 = vmatprep.subr.bf16.mxu0 0
  %300 = vmatpush1.bf16.msra.mxu0 %v199
  %301 = vmatprep.subr.bf16.mxu0 0
  %302 = vmatpush2.bf16.msra.mxu0 0
  %303 = vmatprep.subr.bf16.mxu0 0
  %304 = vmatpush2.bf16.msra.mxu0 0
  %305 = vmatprep.subr.bf16.mxu0 0
  %306 = vmatpush2.bf16.msra.mxu0 0
  %307 = vmatprep.subr.bf16.mxu0 0
  %308 = vmatpush2.bf16.msra.mxu0 0
  %309 = vmatprep.subr.bf16.mxu0 0
  %310 = vmatpush2.bf16.msra.mxu0 0
  %311 = vmatprep.subr.bf16.mxu0 0
  %312 = vmatpush2.bf16.msra.mxu0 0
  %313 = vmatprep.subr.bf16.mxu0 0
  %314 = vmatpush2.bf16.msra.mxu0 0
  %315 = vmatprep.subr.bf16.mxu0 0
  %316 = vmatpush2.bf16.msra.mxu0 0
  %317 = vmatprep.mubr.bf16.mxu0 0
  %318 = vmatmul.mubr.bf16.gmra.mxu0 %v204
  %v319 = vpop.f32.mrf.mxu0
  %v320 = vadd.f32 0.0, %v319
  %v321 = vpop.f32.mrf.mxu0
  %v322 = vpop.f32.mrf.mxu0
  %v323 = vadd.f32 0.0, %v322
  %v324 = vpop.f32.mrf.mxu0
  %325 = vmatprep.mubr.bf16.mxu0 0
  %326 = vmatmul.mubr.bf16.gmra.mxu0 %v207
  %v327 = vpop.f32.mrf.mxu0
  %v328 = vadd.f32 0.0, %v327
  %v329 = vpop.f32.mrf.mxu0
  %v330 = vpop.f32.mrf.mxu0
  %v331 = vadd.f32 0.0, %v330
  %v332 = vpop.f32.mrf.mxu0
  %333 = vmatprep.mubr.bf16.mxu0 0
  %334 = vmatmul.mubr.bf16.gmra.mxu0 %v210
  %v335 = vpop.f32.mrf.mxu0
  %v336 = vadd.f32 0.0, %v335
  %v337 = vpop.f32.mrf.mxu0
  %v338 = vpop.f32.mrf.mxu0
  %v339 = vadd.f32 0.0, %v338
  %v340 = vpop.f32.mrf.mxu0
  %341 = vmatprep.mubr.bf16.mxu0 0
  %342 = vmatmul.mubr.bf16.gmra.mxu0 %v213
  %v343 = vpop.f32.mrf.mxu0
  %v344 = vadd.f32 0.0, %v343
  %v345 = vpop.f32.mrf.mxu0
  %v346 = vpop.f32.mrf.mxu0
  %v347 = vadd.f32 0.0, %v346
  %v348 = vpop.f32.mrf.mxu0
  %349 = vmatprep.mubr.bf16.mxu0 0
  %350 = vmatmul.mubr.bf16.gmra.mxu0 %v216
  %v351 = vpop.f32.mrf.mxu0
  %v352 = vadd.f32 0.0, %v351
  %v353 = vpop.f32.mrf.mxu0
  %v354 = vpop.f32.mrf.mxu0
  %v355 = vadd.f32 0.0, %v354
  %v356 = vpop.f32.mrf.mxu0
  %357 = vmatprep.mubr.bf16.mxu0 0
  %358 = vmatmul.mubr.bf16.gmra.mxu0 %v219
  %v359 = vpop.f32.mrf.mxu0
  %v360 = vadd.f32 0.0, %v359
  %v361 = vpop.f32.mrf.mxu0
  %v362 = vpop.f32.mrf.mxu0
  %v363 = vadd.f32 0.0, %v362
  %v364 = vpop.f32.mrf.mxu0
  %365 = vmatprep.mubr.bf16.mxu0 0
  %366 = vmatmul.mubr.bf16.gmra.mxu0 %v222
  %v367 = vpop.f32.mrf.mxu0
  %v368 = vadd.f32 0.0, %v367
  %v369 = vpop.f32.mrf.mxu0
  %v370 = vpop.f32.mrf.mxu0
  %v371 = vadd.f32 0.0, %v370
  %v372 = vpop.f32.mrf.mxu0
  %373 = vmatprep.mubr.bf16.mxu0 0
  %374 = vmatmul.mubr.bf16.gmra.mxu0 %v225
  %v375 = vpop.f32.mrf.mxu0
  %v376 = vadd.f32 0.0, %v375
  %v377 = vpop.f32.mrf.mxu0
  %v378 = vpop.f32.mrf.mxu0
  %v379 = vadd.f32 0.0, %v378
  %v380 = vpop.f32.mrf.mxu0
  %381 = vmatprep.mubr.bf16.mxu0 0
  %382 = vmatmul.mubr.bf16.gmra.mxu0 %v228
  %v383 = vpop.f32.mrf.mxu0
  %v384 = vadd.f32 0.0, %v383
  %v385 = vpop.f32.mrf.mxu0
  %v386 = vpop.f32.mrf.mxu0
  %v387 = vadd.f32 0.0, %v386
  %v388 = vpop.f32.mrf.mxu0
  %389 = vmatprep.mubr.bf16.mxu0 0
  %390 = vmatmul.mubr.bf16.gmra.mxu0 %v231
  %v391 = vpop.f32.mrf.mxu0
  %v392 = vadd.f32 0.0, %v391
  %v393 = vpop.f32.mrf.mxu0
  %v394 = vpop.f32.mrf.mxu0
  %v395 = vadd.f32 0.0, %v394
  %v396 = vpop.f32.mrf.mxu0
  %397 = vmatprep.mubr.bf16.mxu0 0
  %398 = vmatmul.mubr.bf16.gmra.mxu0 %v234
  %v399 = vpop.f32.mrf.mxu0
  %v400 = vadd.f32 0.0, %v399
  %v401 = vpop.f32.mrf.mxu0
  %v402 = vpop.f32.mrf.mxu0
  %v403 = vadd.f32 0.0, %v402
  %v404 = vpop.f32.mrf.mxu0
  %405 = vmatprep.mubr.bf16.mxu0 0
  %406 = vmatmul.mubr.bf16.gmra.mxu0 %v237
  %v407 = vpop.f32.mrf.mxu0
  %v408 = vadd.f32 0.0, %v407
  %v409 = vpop.f32.mrf.mxu0
  %v410 = vpop.f32.mrf.mxu0
  %v411 = vadd.f32 0.0, %v410
  %v412 = vpop.f32.mrf.mxu0
  %413 = vmatprep.mubr.bf16.mxu0 0
  %414 = vmatmul.mubr.bf16.gmra.mxu0 %v240
  %v415 = vpop.f32.mrf.mxu0
  %v416 = vadd.f32 0.0, %v415
  %v417 = vpop.f32.mrf.mxu0
  %v418 = vpop.f32.mrf.mxu0
  %v419 = vadd.f32 0.0, %v418
  %v420 = vpop.f32.mrf.mxu0
  %421 = vmatprep.mubr.bf16.mxu0 0
  %422 = vmatmul.mubr.bf16.gmra.mxu0 %v243
  %v423 = vpop.f32.mrf.mxu0
  %v424 = vadd.f32 0.0, %v423
  %v425 = vpop.f32.mrf.mxu0
  %v426 = vpop.f32.mrf.mxu0
  %v427 = vadd.f32 0.0, %v426
  %v428 = vpop.f32.mrf.mxu0
  %429 = vmatprep.mubr.bf16.mxu0 0
  %430 = vmatmul.mubr.bf16.gmra.mxu0 %v246
  %v431 = vpop.f32.mrf.mxu0
  %v432 = vadd.f32 0.0, %v431
  %v433 = vpop.f32.mrf.mxu0
  %v434 = vpop.f32.mrf.mxu0
  %v435 = vadd.f32 0.0, %v434
  %v436 = vpop.f32.mrf.mxu0
  %437 = vmatprep.mubr.bf16.mxu0 0
  %438 = vmatmul.mubr.bf16.gmra.mxu0 %v249
  %v439 = vpop.f32.mrf.mxu0
  %v440 = vadd.f32 0.0, %v439
  %v441 = vpop.f32.mrf.mxu0
  %v442 = vpop.f32.mrf.mxu0
  %v443 = vadd.f32 0.0, %v442
  %v444 = vpop.f32.mrf.mxu0
  %445 = vmatprep.mubr.bf16.mxu0 0
  %446 = vmatmul.mubr.bf16.gmra.mxu0 %v252
  %v447 = vpop.f32.mrf.mxu0
  %v448 = vadd.f32 0.0, %v447
  %v449 = vpop.f32.mrf.mxu0
  %v450 = vpop.f32.mrf.mxu0
  %v451 = vadd.f32 0.0, %v450
  %v452 = vpop.f32.mrf.mxu0
  %453 = vmatprep.mubr.bf16.mxu0 0
  %454 = vmatmul.mubr.bf16.gmra.mxu0 %v255
  %v455 = vpop.f32.mrf.mxu0
  %v456 = vadd.f32 0.0, %v455
  %v457 = vpop.f32.mrf.mxu0
  %v458 = vpop.f32.mrf.mxu0
  %v459 = vadd.f32 0.0, %v458
  %v460 = vpop.f32.mrf.mxu0
  %461 = vmatprep.mubr.bf16.mxu0 0
  %462 = vmatmul.mubr.bf16.gmra.mxu0 %v258
  %v463 = vpop.f32.mrf.mxu0
  %v464 = vadd.f32 0.0, %v463
  %v465 = vpop.f32.mrf.mxu0
  %v466 = vpop.f32.mrf.mxu0
  %v467 = vadd.f32 0.0, %v466
  %v468 = vpop.f32.mrf.mxu0
  %469 = vmatprep.mubr.bf16.mxu0 0
  %470 = vmatmul.mubr.bf16.gmra.mxu0 %v261
  %v471 = vpop.f32.mrf.mxu0
  %v472 = vadd.f32 0.0, %v471
  %v473 = vpop.f32.mrf.mxu0
  %v474 = vpop.f32.mrf.mxu0
  %v475 = vadd.f32 0.0, %v474
  %v476 = vpop.f32.mrf.mxu0
  %477 = vmatprep.mubr.bf16.mxu0 0
  %478 = vmatmul.mubr.bf16.gmra.mxu0 %v264
  %v479 = vpop.f32.mrf.mxu0
  %v480 = vadd.f32 0.0, %v479
  %v481 = vpop.f32.mrf.mxu0
  %v482 = vpop.f32.mrf.mxu0
  %v483 = vadd.f32 0.0, %v482
  %v484 = vpop.f32.mrf.mxu0
  %485 = vmatprep.mubr.bf16.mxu0 0
  %486 = vmatmul.mubr.bf16.gmra.mxu0 %v267
  %v487 = vpop.f32.mrf.mxu0
  %v488 = vadd.f32 0.0, %v487
  %v489 = vpop.f32.mrf.mxu0
  %v490 = vpop.f32.mrf.mxu0
  %v491 = vadd.f32 0.0, %v490
  %v492 = vpop.f32.mrf.mxu0
  %493 = vmatprep.mubr.bf16.mxu0 0
  %494 = vmatmul.mubr.bf16.gmra.mxu0 %v270
  %v495 = vpop.f32.mrf.mxu0
  %v496 = vadd.f32 0.0, %v495
  %v497 = vpop.f32.mrf.mxu0
  %v498 = vpop.f32.mrf.mxu0
  %v499 = vadd.f32 0.0, %v498
  %v500 = vpop.f32.mrf.mxu0
  %501 = vmatprep.mubr.bf16.mxu0 0
  %502 = vmatmul.mubr.bf16.gmra.mxu0 %v273
  %v503 = vpop.f32.mrf.mxu0
  %v504 = vadd.f32 0.0, %v503
  %v505 = vpop.f32.mrf.mxu0
  %v506 = vpop.f32.mrf.mxu0
  %v507 = vadd.f32 0.0, %v506
  %v508 = vpop.f32.mrf.mxu0
  %509 = vmatprep.mubr.bf16.mxu0 0
  %510 = vmatmul.mubr.bf16.gmra.mxu0 %v276
  %v511 = vpop.f32.mrf.mxu0
  %v512 = vadd.f32 0.0, %v511
  %v513 = vpop.f32.mrf.mxu0
  %v514 = vpop.f32.mrf.mxu0
  %v515 = vpop.f32.mrf.mxu0
  %516 = vdwg.mxu0
  %v517 = vpack.c.bf16 %v323, %v320
  %v518 = vpack.c.bf16 %v331, %v328
  %v519 = vpack.c.bf16 %v339, %v336
  %v520 = vpack.c.bf16 %v347, %v344
  %v521 = vpack.c.bf16 %v355, %v352
  %v522 = vpack.c.bf16 %v363, %v360
  %v523 = vpack.c.bf16 %v371, %v368
  %v524 = vpack.c.bf16 %v379, %v376
  %v525 = vpack.c.bf16 %v387, %v384
  %v526 = vpack.c.bf16 %v395, %v392
  %v527 = vpack.c.bf16 %v403, %v400
  %v528 = vpack.c.bf16 %v411, %v408
  %v529 = vpack.c.bf16 %v419, %v416
  %v530 = vpack.c.bf16 %v427, %v424
  %v531 = vpack.c.bf16 %v435, %v432
  %v532 = vpack.c.bf16 %v443, %v440
  %v533 = vpack.c.bf16 %v451, %v448
  %v534 = vpack.c.bf16 %v459, %v456
  %v535 = vpack.c.bf16 %v467, %v464
  %v536 = vpack.c.bf16 %v475, %v472
  %v537 = vpack.c.bf16 %v483, %v480
  %v538 = vpack.c.bf16 %v491, %v488
  %v539 = vpack.c.bf16 %v499, %v496
  %v540 = vpack.c.bf16 %v507, %v504
  %v541 = vpack.c.bf16 %v512, %v512
  %v567 = vunpack.c.l.b16 %v517
  %v568 = vunpack.c.h.b16 %v517
  %v569 = vunpack.c.l.b16 %v518
  %v570 = vunpack.c.h.b16 %v518
  %v571 = vunpack.c.l.b16 %v519
  %v572 = vunpack.c.h.b16 %v519
  %v573 = vunpack.c.l.b16 %v520
  %v574 = vunpack.c.h.b16 %v520
  %v575 = vunpack.c.l.b16 %v521
  %v576 = vunpack.c.h.b16 %v521
  %v577 = vunpack.c.l.b16 %v522
  %v578 = vunpack.c.h.b16 %v522
  %v579 = vunpack.c.l.b16 %v523
  %v580 = vunpack.c.h.b16 %v523
  %v581 = vunpack.c.l.b16 %v524
  %v582 = vunpack.c.h.b16 %v524
  %v583 = vunpack.c.l.b16 %v525
  %v584 = vunpack.c.h.b16 %v525
  %v585 = vunpack.c.l.b16 %v526
  %v586 = vunpack.c.h.b16 %v526
  %v587 = vunpack.c.l.b16 %v527
  %v588 = vunpack.c.h.b16 %v527
  %v589 = vunpack.c.l.b16 %v528
  %v590 = vunpack.c.h.b16 %v528
  %v591 = vunpack.c.l.b16 %v529
  %v592 = vunpack.c.h.b16 %v529
  %v593 = vunpack.c.l.b16 %v530
  %v594 = vunpack.c.h.b16 %v530
  %v595 = vunpack.c.l.b16 %v531
  %v596 = vunpack.c.h.b16 %v531
  %v597 = vunpack.c.l.b16 %v532
  %v598 = vunpack.c.h.b16 %v532
  %v599 = vunpack.c.l.b16 %v533
  %v600 = vunpack.c.h.b16 %v533
  %v601 = vunpack.c.l.b16 %v534
  %v602 = vunpack.c.h.b16 %v534
  %v603 = vunpack.c.l.b16 %v535
  %v604 = vunpack.c.h.b16 %v535
  %v605 = vunpack.c.l.b16 %v536
  %v606 = vunpack.c.h.b16 %v536
  %v607 = vunpack.c.l.b16 %v537
  %v608 = vunpack.c.h.b16 %v537
  %v609 = vunpack.c.l.b16 %v538
  %v610 = vunpack.c.h.b16 %v538
  %v611 = vunpack.c.l.b16 %v539
  %v612 = vunpack.c.h.b16 %v539
  %v613 = vunpack.c.l.b16 %v540
  %v614 = vunpack.c.h.b16 %v540
  %v615 = vunpack.c.l.b16 %v541
  %v616 = vpack.c.b16 %v567, %v567
  %v617 = vpack.c.b16 %v568, %v568
  %v618 = vpack.c.b16 %v569, %v569
  %v619 = vpack.c.b16 %v570, %v570
  %v620 = vpack.c.b16 %v571, %v571
  %v621 = vpack.c.b16 %v572, %v572
  %v622 = vpack.c.b16 %v573, %v573
  %v623 = vpack.c.b16 %v574, %v574
  %v624 = vpack.c.b16 %v575, %v575
  %v625 = vpack.c.b16 %v576, %v576
  %v626 = vpack.c.b16 %v577, %v577
  %v627 = vpack.c.b16 %v578, %v578
  %v628 = vpack.c.b16 %v579, %v579
  %v629 = vpack.c.b16 %v580, %v580
  %v630 = vpack.c.b16 %v581, %v581
  %v631 = vpack.c.b16 %v582, %v582
  %v632 = vpack.c.b16 %v583, %v583
  %v633 = vpack.c.b16 %v584, %v584
  %v634 = vpack.c.b16 %v585, %v585
  %v635 = vpack.c.b16 %v586, %v586
  %v636 = vpack.c.b16 %v587, %v587
  %v637 = vpack.c.b16 %v588, %v588
  %v638 = vpack.c.b16 %v589, %v589
  %v639 = vpack.c.b16 %v590, %v590
  %v640 = vpack.c.b16 %v591, %v591
  %v641 = vpack.c.b16 %v592, %v592
  %v642 = vpack.c.b16 %v593, %v593
  %v643 = vpack.c.b16 %v594, %v594
  %v644 = vpack.c.b16 %v595, %v595
  %v645 = vpack.c.b16 %v596, %v596
  %v646 = vpack.c.b16 %v597, %v597
  %v647 = vpack.c.b16 %v598, %v598
  %v648 = vpack.c.b16 %v599, %v599
  %v649 = vpack.c.b16 %v600, %v600
  %v650 = vpack.c.b16 %v601, %v601
  %v651 = vpack.c.b16 %v602, %v602
  %v652 = vpack.c.b16 %v603, %v603
  %v653 = vpack.c.b16 %v604, %v604
  %v654 = vpack.c.b16 %v605, %v605
  %v655 = vpack.c.b16 %v606, %v606
  %v656 = vpack.c.b16 %v607, %v607
  %v657 = vpack.c.b16 %v608, %v608
  %v658 = vpack.c.b16 %v609, %v609
  %v659 = vpack.c.b16 %v610, %v610
  %v660 = vpack.c.b16 %v611, %v611
  %v661 = vpack.c.b16 %v612, %v612
  %v662 = vpack.c.b16 %v613, %v613
  %v663 = vpack.c.b16 %v614, %v614
  %v664 = vpack.c.b16 %v615, %v615
  %714 = vst [vmem:[%s2] sm:$0xf] %v616
  %715 = vst [vmem:[%s2 + $0x4] sm:$0xf] %v617
  %716 = vst [vmem:[%s2 + $0x8] sm:$0xf] %v618
  %717 = vst [vmem:[%s2 + $0xc] sm:$0xf] %v619
  %718 = vst [vmem:[%s2 + $0x10] sm:$0xf] %v620
  %719 = vst [vmem:[%s2 + $0x14] sm:$0xf] %v621
  %720 = vst [vmem:[%s2 + $0x18] sm:$0xf] %v622
  %721 = vst [vmem:[%s2 + $0x1c] sm:$0xf] %v623
  %722 = vst [vmem:[%s2 + $0x20] sm:$0xf] %v624
  %723 = vst [vmem:[%s2 + $0x24] sm:$0xf] %v625
  %724 = vst [vmem:[%s2 + $0x28] sm:$0xf] %v626
  %725 = vst [vmem:[%s2 + $0x2c] sm:$0xf] %v627
  %726 = vst [vmem:[%s2 + $0x30] sm:$0xf] %v628
  %727 = vst [vmem:[%s2 + $0x34] sm:$0xf] %v629
  %728 = vst [vmem:[%s2 + $0x38] sm:$0xf] %v630
  %729 = vst [vmem:[%s2 + $0x3c] sm:$0xf] %v631
  %730 = vst [vmem:[%s2 + $0x40] sm:$0xf] %v632
  %731 = vst [vmem:[%s2 + $0x44] sm:$0xf] %v633
  %732 = vst [vmem:[%s2 + $0x48] sm:$0xf] %v634
  %733 = vst [vmem:[%s2 + $0x4c] sm:$0xf] %v635
  %734 = vst [vmem:[%s2 + $0x50] sm:$0xf] %v636
  %735 = vst [vmem:[%s2 + $0x54] sm:$0xf] %v637
  %736 = vst [vmem:[%s2 + $0x58] sm:$0xf] %v638
  %737 = vst [vmem:[%s2 + $0x5c] sm:$0xf] %v639
  %738 = vst [vmem:[%s2 + $0x60] sm:$0xf] %v640
  %739 = vst [vmem:[%s2 + $0x64] sm:$0xf] %v641
  %740 = vst [vmem:[%s2 + $0x68] sm:$0xf] %v642
  %741 = vst [vmem:[%s2 + $0x6c] sm:$0xf] %v643
  %742 = vst [vmem:[%s2 + $0x70] sm:$0xf] %v644
  %743 = vst [vmem:[%s2 + $0x74] sm:$0xf] %v645
  %744 = vst [vmem:[%s2 + $0x78] sm:$0xf] %v646
  %745 = vst [vmem:[%s2 + $0x7c] sm:$0xf] %v647
  %746 = vst [vmem:[%s2 + $0x80] sm:$0xf] %v648
  %747 = vst [vmem:[%s2 + $0x84] sm:$0xf] %v649
  %748 = vst [vmem:[%s2 + $0x88] sm:$0xf] %v650
  %749 = vst [vmem:[%s2 + $0x8c] sm:$0xf] %v651
  %750 = vst [vmem:[%s2 + $0x90] sm:$0xf] %v652
  %751 = vst [vmem:[%s2 + $0x94] sm:$0xf] %v653
  %752 = vst [vmem:[%s2 + $0x98] sm:$0xf] %v654
  %753 = vst [vmem:[%s2 + $0x9c] sm:$0xf] %v655
  %754 = vst [vmem:[%s2 + $0xa0] sm:$0xf] %v656
  %755 = vst [vmem:[%s2 + $0xa4] sm:$0xf] %v657
  %756 = vst [vmem:[%s2 + $0xa8] sm:$0xf] %v658
  %757 = vst [vmem:[%s2 + $0xac] sm:$0xf] %v659
  %758 = vst [vmem:[%s2 + $0xb0] sm:$0xf] %v660
  %759 = vst [vmem:[%s2 + $0xb4] sm:$0xf] %v661
  %760 = vst [vmem:[%s2 + $0xb8] sm:$0xf] %v662
  %761 = vst [vmem:[%s2 + $0xbc] sm:$0xf] %v663
  %762 = vst [vmem:[%s2 + $0xc0] sm:$0xf] %v664
  %v763 = vadd.f32 %v320, %v323
  %v764 = vadd.f32 %v763, %v328
  %v765 = vadd.f32 %v764, %v331
  %v766 = vadd.f32 %v765, %v336
  %v767 = vadd.f32 %v766, %v339
  %v768 = vadd.f32 %v767, %v344
  %v769 = vadd.f32 %v768, %v347
  %v770 = vadd.f32 %v769, %v352
  %v771 = vadd.f32 %v770, %v355
  %v772 = vadd.f32 %v771, %v360
  %v773 = vadd.f32 %v772, %v363
  %v774 = vadd.f32 %v773, %v368
  %v775 = vadd.f32 %v774, %v371
  %v776 = vadd.f32 %v775, %v376
  %v777 = vadd.f32 %v776, %v379
  %v778 = vadd.f32 %v777, %v384
  %v779 = vadd.f32 %v778, %v387
  %v780 = vadd.f32 %v779, %v392
  %v781 = vadd.f32 %v780, %v395
  %v782 = vadd.f32 %v781, %v400
  %v783 = vadd.f32 %v782, %v403
  %v784 = vadd.f32 %v783, %v408
  %v785 = vadd.f32 %v784, %v411
  %v786 = vadd.f32 %v785, %v416
  %v787 = vadd.f32 %v786, %v419
  %v788 = vadd.f32 %v787, %v424
  %v789 = vadd.f32 %v788, %v427
  %v790 = vadd.f32 %v789, %v432
  %v791 = vadd.f32 %v790, %v435
  %v792 = vadd.f32 %v791, %v440
  %v793 = vadd.f32 %v792, %v443
  %v794 = vadd.f32 %v793, %v448
  %v795 = vadd.f32 %v794, %v451
  %v796 = vadd.f32 %v795, %v456
  %v797 = vadd.f32 %v796, %v459
  %v798 = vadd.f32 %v797, %v464
  %v799 = vadd.f32 %v798, %v467
  %v800 = vadd.f32 %v799, %v472
  %v801 = vadd.f32 %v800, %v475
  %v802 = vadd.f32 %v801, %v480
  %v803 = vadd.f32 %v802, %v483
  %v804 = vadd.f32 %v803, %v488
  %v805 = vadd.f32 %v804, %v491
  %v806 = vadd.f32 %v805, %v496
  %v807 = vadd.f32 %v806, %v499
  %v808 = vadd.f32 %v807, %v504
  %v809 = vadd.f32 %v808, %v507
  %v810 = vadd.f32 %v809, %v512
  %v811 = vrot.slane %v810, 4
  %v812 = vadd.f32 %v810, %v811
  %v813 = vrot.slane %v812, 2
  %v814 = vadd.f32 %v812, %v813
  %v815 = vrot.slane %v814, 1
  %v816 = vadd.f32 %v814, %v815
  %817 = vst [vmem:[%s3] sm:$0x1] %v816
  %v818 = vmul.f32 %v320, %v320
  %v819 = vmul.f32 %v323, %v323
  %v820 = vmul.f32 %v328, %v328
  %v821 = vmul.f32 %v331, %v331
  %v822 = vmul.f32 %v336, %v336
  %v823 = vmul.f32 %v339, %v339
  %v824 = vmul.f32 %v344, %v344
  %v825 = vmul.f32 %v347, %v347
  %v826 = vmul.f32 %v352, %v352
  %v827 = vmul.f32 %v355, %v355
  %v828 = vmul.f32 %v360, %v360
  %v829 = vmul.f32 %v363, %v363
  %v830 = vmul.f32 %v368, %v368
  %v831 = vmul.f32 %v371, %v371
  %v832 = vmul.f32 %v376, %v376
  %v833 = vmul.f32 %v379, %v379
  %v834 = vmul.f32 %v384, %v384
  %v835 = vmul.f32 %v387, %v387
  %v836 = vmul.f32 %v392, %v392
  %v837 = vmul.f32 %v395, %v395
  %v838 = vmul.f32 %v400, %v400
  %v839 = vmul.f32 %v403, %v403
  %v840 = vmul.f32 %v408, %v408
  %v841 = vmul.f32 %v411, %v411
  %v842 = vmul.f32 %v416, %v416
  %v843 = vmul.f32 %v419, %v419
  %v844 = vmul.f32 %v424, %v424
  %v845 = vmul.f32 %v427, %v427
  %v846 = vmul.f32 %v432, %v432
  %v847 = vmul.f32 %v435, %v435
  %v848 = vmul.f32 %v440, %v440
  %v849 = vmul.f32 %v443, %v443
  %v850 = vmul.f32 %v448, %v448
  %v851 = vmul.f32 %v451, %v451
  %v852 = vmul.f32 %v456, %v456
  %v853 = vmul.f32 %v459, %v459
  %v854 = vmul.f32 %v464, %v464
  %v855 = vmul.f32 %v467, %v467
  %v856 = vmul.f32 %v472, %v472
  %v857 = vmul.f32 %v475, %v475
  %v858 = vmul.f32 %v480, %v480
  %v859 = vmul.f32 %v483, %v483
  %v860 = vmul.f32 %v488, %v488
  %v861 = vmul.f32 %v491, %v491
  %v862 = vmul.f32 %v496, %v496
  %v863 = vmul.f32 %v499, %v499
  %v864 = vmul.f32 %v504, %v504
  %v865 = vmul.f32 %v507, %v507
  %v866 = vmul.f32 %v512, %v512
  %v867 = vadd.f32 %v818, %v819
  %v868 = vadd.f32 %v867, %v820
  %v869 = vadd.f32 %v868, %v821
  %v870 = vadd.f32 %v869, %v822
  %v871 = vadd.f32 %v870, %v823
  %v872 = vadd.f32 %v871, %v824
  %v873 = vadd.f32 %v872, %v825
  %v874 = vadd.f32 %v873, %v826
  %v875 = vadd.f32 %v874, %v827
  %v876 = vadd.f32 %v875, %v828
  %v877 = vadd.f32 %v876, %v829
  %v878 = vadd.f32 %v877, %v830
  %v879 = vadd.f32 %v878, %v831
  %v880 = vadd.f32 %v879, %v832
  %v881 = vadd.f32 %v880, %v833
  %v882 = vadd.f32 %v881, %v834
  %v883 = vadd.f32 %v882, %v835
  %v884 = vadd.f32 %v883, %v836
  %v885 = vadd.f32 %v884, %v837
  %v886 = vadd.f32 %v885, %v838
  %v887 = vadd.f32 %v886, %v839
  %v888 = vadd.f32 %v887, %v840
  %v889 = vadd.f32 %v888, %v841
  %v890 = vadd.f32 %v889, %v842
  %v891 = vadd.f32 %v890, %v843
  %v892 = vadd.f32 %v891, %v844
  %v893 = vadd.f32 %v892, %v845
  %v894 = vadd.f32 %v893, %v846
  %v895 = vadd.f32 %v894, %v847
  %v896 = vadd.f32 %v895, %v848
  %v897 = vadd.f32 %v896, %v849
  %v898 = vadd.f32 %v897, %v850
  %v899 = vadd.f32 %v898, %v851
  %v900 = vadd.f32 %v899, %v852
  %v901 = vadd.f32 %v900, %v853
  %v902 = vadd.f32 %v901, %v854
  %v903 = vadd.f32 %v902, %v855
  %v904 = vadd.f32 %v903, %v856
  %v905 = vadd.f32 %v904, %v857
  %v906 = vadd.f32 %v905, %v858
  %v907 = vadd.f32 %v906, %v859
  %v908 = vadd.f32 %v907, %v860
  %v909 = vadd.f32 %v908, %v861
  %v910 = vadd.f32 %v909, %v862
  %v911 = vadd.f32 %v910, %v863
  %v912 = vadd.f32 %v911, %v864
  %v913 = vadd.f32 %v912, %v865
  %v914 = vadd.f32 %v913, %v866
  %v915 = vrot.slane %v914, 4
  %v916 = vadd.f32 %v914, %v915
  %v917 = vrot.slane %v916, 2
  %v918 = vadd.f32 %v916, %v917
  %v919 = vrot.slane %v918, 1
  %v920 = vadd.f32 %v918, %v919
  %921 = vst [vmem:[%s4] sm:$0x1] %v920
  // Predicated region
  $region10: #{nn2_forward.8} parent=0 // pred_check
    _
  $region11: #{nn2_forward.8} parent=0 // pred_check_branch
    %923 = sbr.rel (0) target = $region13
  $region12: #{nn2_forward.8} parent=0 // pred_region
    _
  $region13: #{nn2_forward.8} parent=0 // pred_fallthru
    _
  // Predicated region
  $region14: #{nn2_forward.8} parent=0 // pred_check
    _
  $region15: #{nn2_forward.8} parent=0 // pred_check_branch
    %925 = sbr.rel (0) target = $region17
  $region16: #{nn2_forward.8} parent=0 // pred_region
    _
  $region17: #{nn2_forward.8} parent=0 // pred_fallthru
    _
  // Predicated region
  $region18: #{nn2_forward.8} parent=0 // pred_check
    _
  $region19: #{nn2_forward.8} parent=0 // pred_check_branch
    %927 = sbr.rel (0) target = $region21
  $region20: #{nn2_forward.8} parent=0 // pred_region
    _
  $region21: #{nn2_forward.8} parent=0 // pred_fallthru
    _
  // Predicated region
  $region22: #{nn2_forward.8} parent=0 // pred_check
    _
  $region23: #{nn2_forward.8} parent=0 // pred_check_branch
    %929 = sbr.rel (0) target = $region25
  $region24: #{nn2_forward.8} parent=0 // pred_region
    _
  $region25: #{nn2_forward.8} parent=0 // pred_fallthru
    _
  // Predicated region
  $region26: #{nn2_forward.8} parent=0 // pred_check
    _
  $region27: #{nn2_forward.8} parent=0 // pred_check_branch
    %931 = sbr.rel (0) target = $region29
  $region28: #{nn2_forward.8} parent=0 // pred_region
    _
  $region29: #{nn2_forward.8} parent=0 // pred_fallthru
    _
  // Predicated region
  $region30: #{nn2_forward.8} parent=0 // pred_check
    _
  $region31: #{nn2_forward.8} parent=0 // pred_check_branch
    %933 = sbr.rel (0) target = $region33
  $region32: #{nn2_forward.8} parent=0 // pred_region
    _
  $region33: #{nn2_forward.8} parent=0 // pred_fallthru
    _

// kernel: nn2_forward.9
$region0: #{nn2_forward.9}
  #allocation0 [shape = 'u32[]', space=smem, size = 0x4, offset = 0x4, fixed_abs, tag = 'smem constant byte address 0x4 - core index']
  #allocation1 [shape = 'u32[144,128]{1,0:T(1,128)}', space=vmem, size = 0x12000, scoped, tag = 'internal scratch']
  %s0 = inlined_call_operand.vmem [shape: bf16[392,128], index: 0, kind: input, shape index: {}]
  %s1 = inlined_call_operand.vmem [shape: f32[1,128], index: 1, kind: input, shape index: {}]
  %s2 = inlined_call_operand.vmem [shape: f32[1,128], index: 2, kind: input, shape index: {}]
  %s3 = inlined_call_operand.vmem [shape: bf16[392,128], index: 3, kind: output, shape index: {}]
  %s4 = sld [smem:[#allocation0]]
  $region22: #{nn2_forward.9} parent=0
    _
  %s6 = ssub.s32 1, %s4
  %s7 = scalar_select 0, %s6, %s4
  // Predicated region
  $region2: #{nn2_forward.9} parent=0 // pred_check
    _
  $region3: #{nn2_forward.9} parent=0 // pred_check_branch
    %9 = sbr.rel (0) target = $region5
  $region4: #{nn2_forward.9} parent=0 // pred_region
    _
  $region5: #{nn2_forward.9} parent=0 // pred_fallthru
    _
  // Predicated region
  $region6: #{nn2_forward.9} parent=0 // pred_check
    _
  $region7: #{nn2_forward.9} parent=0 // pred_check_branch
    %11 = sbr.rel (0) target = $region9
  $region8: #{nn2_forward.9} parent=0 // pred_region
    _
  $region9: #{nn2_forward.9} parent=0 // pred_fallthru
    _
  // Predicated region
  $region10: #{nn2_forward.9} parent=0 // pred_check
    _
  $region11: #{nn2_forward.9} parent=0 // pred_check_branch
    %13 = sbr.rel (0) target = $region13
  $region12: #{nn2_forward.9} parent=0 // pred_region
    _
  $region13: #{nn2_forward.9} parent=0 // pred_fallthru
    _
  %v14 = vld [vmem:[%s0] sm:$0xf]
  %v15 = vld [vmem:[%s0 + $0x4] sm:$0xf]
  %v16 = vld [vmem:[%s0 + $0x8] sm:$0xf]
  %v17 = vld [vmem:[%s0 + $0xc] sm:$0xf]
  %v18 = vld [vmem:[%s0 + $0x10] sm:$0xf]
  %v19 = vld [vmem:[%s0 + $0x14] sm:$0xf]
  %v20 = vld [vmem:[%s0 + $0x18] sm:$0xf]
  %v21 = vld [vmem:[%s0 + $0x1c] sm:$0xf]
  %v22 = vld [vmem:[%s0 + $0x20] sm:$0xf]
  %v23 = vld [vmem:[%s0 + $0x24] sm:$0xf]
  %v24 = vld [vmem:[%s0 + $0x28] sm:$0xf]
  %v25 = vld [vmem:[%s0 + $0x2c] sm:$0xf]
  %v26 = vld [vmem:[%s0 + $0x30] sm:$0xf]
  %v27 = vld [vmem:[%s0 + $0x34] sm:$0xf]
  %v28 = vld [vmem:[%s0 + $0x38] sm:$0xf]
  %v29 = vld [vmem:[%s0 + $0x3c] sm:$0xf]
  %v30 = vld [vmem:[%s0 + $0x40] sm:$0xf]
  %v31 = vld [vmem:[%s0 + $0x44] sm:$0xf]
  %v32 = vld [vmem:[%s0 + $0x48] sm:$0xf]
  %v33 = vld [vmem:[%s0 + $0x4c] sm:$0xf]
  %v34 = vld [vmem:[%s0 + $0x50] sm:$0xf]
  %v35 = vld [vmem:[%s0 + $0x54] sm:$0xf]
  %v36 = vld [vmem:[%s0 + $0x58] sm:$0xf]
  %v37 = vld [vmem:[%s0 + $0x5c] sm:$0xf]
  %v38 = vld [vmem:[%s0 + $0x60] sm:$0xf]
  %v39 = vld [vmem:[%s0 + $0x64] sm:$0xf]
  %v40 = vld [vmem:[%s0 + $0x68] sm:$0xf]
  %v41 = vld [vmem:[%s0 + $0x6c] sm:$0xf]
  %v42 = vld [vmem:[%s0 + $0x70] sm:$0xf]
  %v43 = vld [vmem:[%s0 + $0x74] sm:$0xf]
  %v44 = vld [vmem:[%s0 + $0x78] sm:$0xf]
  %v45 = vld [vmem:[%s0 + $0x7c] sm:$0xf]
  %v46 = vld [vmem:[%s0 + $0x80] sm:$0xf]
  %v47 = vld [vmem:[%s0 + $0x84] sm:$0xf]
  %v48 = vld [vmem:[%s0 + $0x88] sm:$0xf]
  %v49 = vld [vmem:[%s0 + $0x8c] sm:$0xf]
  %v50 = vld [vmem:[%s0 + $0x90] sm:$0xf]
  %v51 = vld [vmem:[%s0 + $0x94] sm:$0xf]
  %v52 = vld [vmem:[%s0 + $0x98] sm:$0xf]
  %v53 = vld [vmem:[%s0 + $0x9c] sm:$0xf]
  %v54 = vld [vmem:[%s0 + $0xa0] sm:$0xf]
  %v55 = vld [vmem:[%s0 + $0xa4] sm:$0xf]
  %v56 = vld [vmem:[%s0 + $0xa8] sm:$0xf]
  %v57 = vld [vmem:[%s0 + $0xac] sm:$0xf]
  %v58 = vld [vmem:[%s0 + $0xb0] sm:$0xf]
  %v59 = vld [vmem:[%s0 + $0xb4] sm:$0xf]
  %v60 = vld [vmem:[%s0 + $0xb8] sm:$0xf]
  %v61 = vld [vmem:[%s0 + $0xbc] sm:$0xf]
  %v62 = vld [vmem:[%s0 + $0xc0] sm:$0xf]
  %v63 = vunpack.c.l.bf16 %v14
  %v64 = vunpack.c.l.bf16 %v15
  %v65 = vunpack.c.l.bf16 %v16
  %v66 = vunpack.c.l.bf16 %v17
  %v67 = vunpack.c.l.bf16 %v18
  %v68 = vunpack.c.l.bf16 %v19
  %v69 = vunpack.c.l.bf16 %v20
  %v70 = vunpack.c.l.bf16 %v21
  %v71 = vunpack.c.l.bf16 %v22
  %v72 = vunpack.c.l.bf16 %v23
  %v73 = vunpack.c.l.bf16 %v24
  %v74 = vunpack.c.l.bf16 %v25
  %v75 = vunpack.c.l.bf16 %v26
  %v76 = vunpack.c.l.bf16 %v27
  %v77 = vunpack.c.l.bf16 %v28
  %v78 = vunpack.c.l.bf16 %v29
  %v79 = vunpack.c.l.bf16 %v30
  %v80 = vunpack.c.l.bf16 %v31
  %v81 = vunpack.c.l.bf16 %v32
  %v82 = vunpack.c.l.bf16 %v33
  %v83 = vunpack.c.l.bf16 %v34
  %v84 = vunpack.c.l.bf16 %v35
  %v85 = vunpack.c.l.bf16 %v36
  %v86 = vunpack.c.l.bf16 %v37
  %v87 = vunpack.c.l.bf16 %v38
  %v88 = vunpack.c.l.bf16 %v39
  %v89 = vunpack.c.l.bf16 %v40
  %v90 = vunpack.c.l.bf16 %v41
  %v91 = vunpack.c.l.bf16 %v42
  %v92 = vunpack.c.l.bf16 %v43
  %v93 = vunpack.c.l.bf16 %v44
  %v94 = vunpack.c.l.bf16 %v45
  %v95 = vunpack.c.l.bf16 %v46
  %v96 = vunpack.c.l.bf16 %v47
  %v97 = vunpack.c.l.bf16 %v48
  %v98 = vunpack.c.l.bf16 %v49
  %v99 = vunpack.c.l.bf16 %v50
  %v100 = vunpack.c.l.bf16 %v51
  %v101 = vunpack.c.l.bf16 %v52
  %v102 = vunpack.c.l.bf16 %v53
  %v103 = vunpack.c.l.bf16 %v54
  %v104 = vunpack.c.l.bf16 %v55
  %v105 = vunpack.c.l.bf16 %v56
  %v106 = vunpack.c.l.bf16 %v57
  %v107 = vunpack.c.l.bf16 %v58
  %v108 = vunpack.c.l.bf16 %v59
  %v109 = vunpack.c.l.bf16 %v60
  %v110 = vunpack.c.l.bf16 %v61
  %v111 = vunpack.c.l.bf16 %v62
  %v112 = vld [vmem:[%s1] sm:$0x1]
  %v114 = vlaneseq
  %v115 = vshrl.u32 %v114, 7
  %v116 = vsub.s32 0, %v115
  %v117 = vrot.slane %v112, %v116
  %v119 = vmul.f32 %v63, %v117
  %v120 = vmul.f32 %v64, %v117
  %v121 = vmul.f32 %v65, %v117
  %v122 = vmul.f32 %v66, %v117
  %v123 = vmul.f32 %v67, %v117
  %v124 = vmul.f32 %v68, %v117
  %v125 = vmul.f32 %v69, %v117
  %v126 = vmul.f32 %v70, %v117
  %v127 = vmul.f32 %v71, %v117
  %v128 = vmul.f32 %v72, %v117
  %v129 = vmul.f32 %v73, %v117
  %v130 = vmul.f32 %v74, %v117
  %v131 = vmul.f32 %v75, %v117
  %v132 = vmul.f32 %v76, %v117
  %v133 = vmul.f32 %v77, %v117
  %v134 = vmul.f32 %v78, %v117
  %v135 = vmul.f32 %v79, %v117
  %v136 = vmul.f32 %v80, %v117
  %v137 = vmul.f32 %v81, %v117
  %v138 = vmul.f32 %v82, %v117
  %v139 = vmul.f32 %v83, %v117
  %v140 = vmul.f32 %v84, %v117
  %v141 = vmul.f32 %v85, %v117
  %v142 = vmul.f32 %v86, %v117
  %v143 = vmul.f32 %v87, %v117
  %v144 = vmul.f32 %v88, %v117
  %v145 = vmul.f32 %v89, %v117
  %v146 = vmul.f32 %v90, %v117
  %v147 = vmul.f32 %v91, %v117
  %v148 = vmul.f32 %v92, %v117
  %v149 = vmul.f32 %v93, %v117
  %v150 = vmul.f32 %v94, %v117
  %v151 = vmul.f32 %v95, %v117
  %v152 = vmul.f32 %v96, %v117
  %v153 = vmul.f32 %v97, %v117
  %v154 = vmul.f32 %v98, %v117
  %v155 = vmul.f32 %v99, %v117
  %v156 = vmul.f32 %v100, %v117
  %v157 = vmul.f32 %v101, %v117
  %v158 = vmul.f32 %v102, %v117
  %v159 = vmul.f32 %v103, %v117
  %v160 = vmul.f32 %v104, %v117
  %v161 = vmul.f32 %v105, %v117
  %v162 = vmul.f32 %v106, %v117
  %v163 = vmul.f32 %v107, %v117
  %v164 = vmul.f32 %v108, %v117
  %v165 = vmul.f32 %v109, %v117
  %v166 = vmul.f32 %v110, %v117
  %v167 = vmul.f32 %v111, %v117
  %v168 = vld [vmem:[%s2] sm:$0x1]
  %v170 = vlaneseq
  %v171 = vshrl.u32 %v170, 7
  %v172 = vsub.s32 0, %v171
  %v173 = vrot.slane %v168, %v172
  %v175 = vadd.f32 %v119, %v173
  %v176 = vadd.f32 %v120, %v173
  %v177 = vadd.f32 %v121, %v173
  %v178 = vadd.f32 %v122, %v173
  %v179 = vadd.f32 %v123, %v173
  %v180 = vadd.f32 %v124, %v173
  %v181 = vadd.f32 %v125, %v173
  %v182 = vadd.f32 %v126, %v173
  %v183 = vadd.f32 %v127, %v173
  %v184 = vadd.f32 %v128, %v173
  %v185 = vadd.f32 %v129, %v173
  %v186 = vadd.f32 %v130, %v173
  %v187 = vadd.f32 %v131, %v173
  %v188 = vadd.f32 %v132, %v173
  %v189 = vadd.f32 %v133, %v173
  %v190 = vadd.f32 %v134, %v173
  %v191 = vadd.f32 %v135, %v173
  %v192 = vadd.f32 %v136, %v173
  %v193 = vadd.f32 %v137, %v173
  %v194 = vadd.f32 %v138, %v173
  %v195 = vadd.f32 %v139, %v173
  %v196 = vadd.f32 %v140, %v173
  %v197 = vadd.f32 %v141, %v173
  %v198 = vadd.f32 %v142, %v173
  %v199 = vadd.f32 %v143, %v173
  %v200 = vadd.f32 %v144, %v173
  %v201 = vadd.f32 %v145, %v173
  %v202 = vadd.f32 %v146, %v173
  %v203 = vadd.f32 %v147, %v173
  %v204 = vadd.f32 %v148, %v173
  %v205 = vadd.f32 %v149, %v173
  %v206 = vadd.f32 %v150, %v173
  %v207 = vadd.f32 %v151, %v173
  %v208 = vadd.f32 %v152, %v173
  %v209 = vadd.f32 %v153, %v173
  %v210 = vadd.f32 %v154, %v173
  %v211 = vadd.f32 %v155, %v173
  %v212 = vadd.f32 %v156, %v173
  %v213 = vadd.f32 %v157, %v173
  %v214 = vadd.f32 %v158, %v173
  %v215 = vadd.f32 %v159, %v173
  %v216 = vadd.f32 %v160, %v173
  %v217 = vadd.f32 %v161, %v173
  %v218 = vadd.f32 %v162, %v173
  %v219 = vadd.f32 %v163, %v173
  %v220 = vadd.f32 %v164, %v173
  %v221 = vadd.f32 %v165, %v173
  %v222 = vadd.f32 %v166, %v173
  %v223 = vadd.f32 %v167, %v173
  %v224 = vmax.f32 %v175, 0.0
  %v225 = vmax.f32 %v176, 0.0
  %v226 = vmax.f32 %v177, 0.0
  %v227 = vmax.f32 %v178, 0.0
  %v228 = vmax.f32 %v179, 0.0
  %v229 = vmax.f32 %v180, 0.0
  %v230 = vmax.f32 %v181, 0.0
  %v231 = vmax.f32 %v182, 0.0
  %v232 = vmax.f32 %v183, 0.0
  %v233 = vmax.f32 %v184, 0.0
  %v234 = vmax.f32 %v185, 0.0
  %v235 = vmax.f32 %v186, 0.0
  %v236 = vmax.f32 %v187, 0.0
  %v237 = vmax.f32 %v188, 0.0
  %v238 = vmax.f32 %v189, 0.0
  %v239 = vmax.f32 %v190, 0.0
  %v240 = vmax.f32 %v191, 0.0
  %v241 = vmax.f32 %v192, 0.0
  %v242 = vmax.f32 %v193, 0.0
  %v243 = vmax.f32 %v194, 0.0
  %v244 = vmax.f32 %v195, 0.0
  %v245 = vmax.f32 %v196, 0.0
  %v246 = vmax.f32 %v197, 0.0
  %v247 = vmax.f32 %v198, 0.0
  %v248 = vmax.f32 %v199, 0.0
  %v249 = vmax.f32 %v200, 0.0
  %v250 = vmax.f32 %v201, 0.0
  %v251 = vmax.f32 %v202, 0.0
  %v252 = vmax.f32 %v203, 0.0
  %v253 = vmax.f32 %v204, 0.0
  %v254 = vmax.f32 %v205, 0.0
  %v255 = vmax.f32 %v206, 0.0
  %v256 = vmax.f32 %v207, 0.0
  %v257 = vmax.f32 %v208, 0.0
  %v258 = vmax.f32 %v209, 0.0
  %v259 = vmax.f32 %v210, 0.0
  %v260 = vmax.f32 %v211, 0.0
  %v261 = vmax.f32 %v212, 0.0
  %v262 = vmax.f32 %v213, 0.0
  %v263 = vmax.f32 %v214, 0.0
  %v264 = vmax.f32 %v215, 0.0
  %v265 = vmax.f32 %v216, 0.0
  %v266 = vmax.f32 %v217, 0.0
  %v267 = vmax.f32 %v218, 0.0
  %v268 = vmax.f32 %v219, 0.0
  %v269 = vmax.f32 %v220, 0.0
  %v270 = vmax.f32 %v221, 0.0
  %v271 = vmax.f32 %v222, 0.0
  %v272 = vmax.f32 %v223, 0.0
  %v273 = vpack.c.bf16 %v225, %v224
  %v274 = vpack.c.bf16 %v227, %v226
  %v275 = vpack.c.bf16 %v229, %v228
  %v276 = vpack.c.bf16 %v231, %v230
  %v277 = vpack.c.bf16 %v233, %v232
  %v278 = vpack.c.bf16 %v235, %v234
  %v279 = vpack.c.bf16 %v237, %v236
  %v280 = vpack.c.bf16 %v239, %v238
  %v281 = vpack.c.bf16 %v241, %v240
  %v282 = vpack.c.bf16 %v243, %v242
  %v283 = vpack.c.bf16 %v245, %v244
  %v284 = vpack.c.bf16 %v247, %v246
  %v285 = vpack.c.bf16 %v249, %v248
  %v286 = vpack.c.bf16 %v251, %v250
  %v287 = vpack.c.bf16 %v253, %v252
  %v288 = vpack.c.bf16 %v255, %v254
  %v289 = vpack.c.bf16 %v257, %v256
  %v290 = vpack.c.bf16 %v259, %v258
  %v291 = vpack.c.bf16 %v261, %v260
  %v292 = vpack.c.bf16 %v263, %v262
  %v293 = vpack.c.bf16 %v265, %v264
  %v294 = vpack.c.bf16 %v267, %v266
  %v295 = vpack.c.bf16 %v269, %v268
  %v296 = vpack.c.bf16 %v271, %v270
  %v297 = vpack.c.bf16 %v272, %v272
  %v323 = vunpack.c.l.b16 %v273
  %v324 = vunpack.c.h.b16 %v273
  %v325 = vunpack.c.l.b16 %v274
  %v326 = vunpack.c.h.b16 %v274
  %v327 = vunpack.c.l.b16 %v275
  %v328 = vunpack.c.h.b16 %v275
  %v329 = vunpack.c.l.b16 %v276
  %v330 = vunpack.c.h.b16 %v276
  %v331 = vunpack.c.l.b16 %v277
  %v332 = vunpack.c.h.b16 %v277
  %v333 = vunpack.c.l.b16 %v278
  %v334 = vunpack.c.h.b16 %v278
  %v335 = vunpack.c.l.b16 %v279
  %v336 = vunpack.c.h.b16 %v279
  %v337 = vunpack.c.l.b16 %v280
  %v338 = vunpack.c.h.b16 %v280
  %v339 = vunpack.c.l.b16 %v281
  %v340 = vunpack.c.h.b16 %v281
  %v341 = vunpack.c.l.b16 %v282
  %v342 = vunpack.c.h.b16 %v282
  %v343 = vunpack.c.l.b16 %v283
  %v344 = vunpack.c.h.b16 %v283
  %v345 = vunpack.c.l.b16 %v284
  %v346 = vunpack.c.h.b16 %v284
  %v347 = vunpack.c.l.b16 %v285
  %v348 = vunpack.c.h.b16 %v285
  %v349 = vunpack.c.l.b16 %v286
  %v350 = vunpack.c.h.b16 %v286
  %v351 = vunpack.c.l.b16 %v287
  %v352 = vunpack.c.h.b16 %v287
  %v353 = vunpack.c.l.b16 %v288
  %v354 = vunpack.c.h.b16 %v288
  %v355 = vunpack.c.l.b16 %v289
  %v356 = vunpack.c.h.b16 %v289
  %v357 = vunpack.c.l.b16 %v290
  %v358 = vunpack.c.h.b16 %v290
  %v359 = vunpack.c.l.b16 %v291
  %v360 = vunpack.c.h.b16 %v291
  %v361 = vunpack.c.l.b16 %v292
  %v362 = vunpack.c.h.b16 %v292
  %v363 = vunpack.c.l.b16 %v293
  %v364 = vunpack.c.h.b16 %v293
  %v365 = vunpack.c.l.b16 %v294
  %v366 = vunpack.c.h.b16 %v294
  %v367 = vunpack.c.l.b16 %v295
  %v368 = vunpack.c.h.b16 %v295
  %v369 = vunpack.c.l.b16 %v296
  %v370 = vunpack.c.h.b16 %v296
  %v371 = vunpack.c.l.b16 %v297
  %v372 = vpack.c.b16 %v323, %v323
  %v373 = vpack.c.b16 %v324, %v324
  %v374 = vpack.c.b16 %v325, %v325
  %v375 = vpack.c.b16 %v326, %v326
  %v376 = vpack.c.b16 %v327, %v327
  %v377 = vpack.c.b16 %v328, %v328
  %v378 = vpack.c.b16 %v329, %v329
  %v379 = vpack.c.b16 %v330, %v330
  %v380 = vpack.c.b16 %v331, %v331
  %v381 = vpack.c.b16 %v332, %v332
  %v382 = vpack.c.b16 %v333, %v333
  %v383 = vpack.c.b16 %v334, %v334
  %v384 = vpack.c.b16 %v335, %v335
  %v385 = vpack.c.b16 %v336, %v336
  %v386 = vpack.c.b16 %v337, %v337
  %v387 = vpack.c.b16 %v338, %v338
  %v388 = vpack.c.b16 %v339, %v339
  %v389 = vpack.c.b16 %v340, %v340
  %v390 = vpack.c.b16 %v341, %v341
  %v391 = vpack.c.b16 %v342, %v342
  %v392 = vpack.c.b16 %v343, %v343
  %v393 = vpack.c.b16 %v344, %v344
  %v394 = vpack.c.b16 %v345, %v345
  %v395 = vpack.c.b16 %v346, %v346
  %v396 = vpack.c.b16 %v347, %v347
  %v397 = vpack.c.b16 %v348, %v348
  %v398 = vpack.c.b16 %v349, %v349
  %v399 = vpack.c.b16 %v350, %v350
  %v400 = vpack.c.b16 %v351, %v351
  %v401 = vpack.c.b16 %v352, %v352
  %v402 = vpack.c.b16 %v353, %v353
  %v403 = vpack.c.b16 %v354, %v354
  %v404 = vpack.c.b16 %v355, %v355
  %v405 = vpack.c.b16 %v356, %v356
  %v406 = vpack.c.b16 %v357, %v357
  %v407 = vpack.c.b16 %v358, %v358
  %v408 = vpack.c.b16 %v359, %v359
  %v409 = vpack.c.b16 %v360, %v360
  %v410 = vpack.c.b16 %v361, %v361
  %v411 = vpack.c.b16 %v362, %v362
  %v412 = vpack.c.b16 %v363, %v363
  %v413 = vpack.c.b16 %v364, %v364
  %v414 = vpack.c.b16 %v365, %v365
  %v415 = vpack.c.b16 %v366, %v366
  %v416 = vpack.c.b16 %v367, %v367
  %v417 = vpack.c.b16 %v368, %v368
  %v418 = vpack.c.b16 %v369, %v369
  %v419 = vpack.c.b16 %v370, %v370
  %v420 = vpack.c.b16 %v371, %v371
  %470 = vst [vmem:[%s3] sm:$0xf] %v372
  %471 = vst [vmem:[%s3 + $0x4] sm:$0xf] %v373
  %472 = vst [vmem:[%s3 + $0x8] sm:$0xf] %v374
  %473 = vst [vmem:[%s3 + $0xc] sm:$0xf] %v375
  %474 = vst [vmem:[%s3 + $0x10] sm:$0xf] %v376
  %475 = vst [vmem:[%s3 + $0x14] sm:$0xf] %v377
  %476 = vst [vmem:[%s3 + $0x18] sm:$0xf] %v378
  %477 = vst [vmem:[%s3 + $0x1c] sm:$0xf] %v379
  %478 = vst [vmem:[%s3 + $0x20] sm:$0xf] %v380
  %479 = vst [vmem:[%s3 + $0x24] sm:$0xf] %v381
  %480 = vst [vmem:[%s3 + $0x28] sm:$0xf] %v382
  %481 = vst [vmem:[%s3 + $0x2c] sm:$0xf] %v383
  %482 = vst [vmem:[%s3 + $0x30] sm:$0xf] %v384
  %483 = vst [vmem:[%s3 + $0x34] sm:$0xf] %v385
  %484 = vst [vmem:[%s3 + $0x38] sm:$0xf] %v386
  %485 = vst [vmem:[%s3 + $0x3c] sm:$0xf] %v387
  %486 = vst [vmem:[%s3 + $0x40] sm:$0xf] %v388
  %487 = vst [vmem:[%s3 + $0x44] sm:$0xf] %v389
  %488 = vst [vmem:[%s3 + $0x48] sm:$0xf] %v390
  %489 = vst [vmem:[%s3 + $0x4c] sm:$0xf] %v391
  %490 = vst [vmem:[%s3 + $0x50] sm:$0xf] %v392
  %491 = vst [vmem:[%s3 + $0x54] sm:$0xf] %v393
  %492 = vst [vmem:[%s3 + $0x58] sm:$0xf] %v394
  %493 = vst [vmem:[%s3 + $0x5c] sm:$0xf] %v395
  %494 = vst [vmem:[%s3 + $0x60] sm:$0xf] %v396
  %495 = vst [vmem:[%s3 + $0x64] sm:$0xf] %v397
  %496 = vst [vmem:[%s3 + $0x68] sm:$0xf] %v398
  %497 = vst [vmem:[%s3 + $0x6c] sm:$0xf] %v399
  %498 = vst [vmem:[%s3 + $0x70] sm:$0xf] %v400
  %499 = vst [vmem:[%s3 + $0x74] sm:$0xf] %v401
  %500 = vst [vmem:[%s3 + $0x78] sm:$0xf] %v402
  %501 = vst [vmem:[%s3 + $0x7c] sm:$0xf] %v403
  %502 = vst [vmem:[%s3 + $0x80] sm:$0xf] %v404
  %503 = vst [vmem:[%s3 + $0x84] sm:$0xf] %v405
  %504 = vst [vmem:[%s3 + $0x88] sm:$0xf] %v406
  %505 = vst [vmem:[%s3 + $0x8c] sm:$0xf] %v407
  %506 = vst [vmem:[%s3 + $0x90] sm:$0xf] %v408
  %507 = vst [vmem:[%s3 + $0x94] sm:$0xf] %v409
  %508 = vst [vmem:[%s3 + $0x98] sm:$0xf] %v410
  %509 = vst [vmem:[%s3 + $0x9c] sm:$0xf] %v411
  %510 = vst [vmem:[%s3 + $0xa0] sm:$0xf] %v412
  %511 = vst [vmem:[%s3 + $0xa4] sm:$0xf] %v413
  %512 = vst [vmem:[%s3 + $0xa8] sm:$0xf] %v414
  %513 = vst [vmem:[%s3 + $0xac] sm:$0xf] %v415
  %514 = vst [vmem:[%s3 + $0xb0] sm:$0xf] %v416
  %515 = vst [vmem:[%s3 + $0xb4] sm:$0xf] %v417
  %516 = vst [vmem:[%s3 + $0xb8] sm:$0xf] %v418
  %517 = vst [vmem:[%s3 + $0xbc] sm:$0xf] %v419
  %518 = vst [vmem:[%s3 + $0xc0] sm:$0xf] %v420
  // Predicated region
  $region14: #{nn2_forward.9} parent=0 // pred_check
    _
  $region15: #{nn2_forward.9} parent=0 // pred_check_branch
    %520 = sbr.rel (0) target = $region17
  $region16: #{nn2_forward.9} parent=0 // pred_region
    _
  $region17: #{nn2_forward.9} parent=0 // pred_fallthru
    _
  // Predicated region
  $region18: #{nn2_forward.9} parent=0 // pred_check
    _
  $region19: #{nn2_forward.9} parent=0 // pred_check_branch
    %522 = sbr.rel (0) target = $region21
  $region20: #{nn2_forward.9} parent=0 // pred_region
    _
  $region21: #{nn2_forward.9} parent=0 // pred_fallthru
    _

// kernel: nn2_forward.11
$region0: #{nn2_forward.11}
  #allocation0 [shape = 'u32[]', space=smem, size = 0x4, offset = 0x4, fixed_abs, tag = 'smem constant byte address 0x4 - core index']
  #allocation1 [shape = 'u32[144,128]{1,0:T(1,128)}', space=vmem, size = 0x12000, scoped, tag = 'internal scratch']
  %s0 = inlined_call_operand.vmem [shape: bf16[288,128], index: 0, kind: input, shape index: {}]
  %s1 = inlined_call_operand.vmem [shape: f32[1,128], index: 1, kind: input, shape index: {}]
  %s2 = inlined_call_operand.vmem [shape: f32[1,128], index: 2, kind: input, shape index: {}]
  %s3 = inlined_call_operand.vmem [shape: bf16[288,128], index: 3, kind: output, shape index: {}]
  %s4 = sld [smem:[#allocation0]]
  $region22: #{nn2_forward.11} parent=0
    _
  %s6 = ssub.s32 1, %s4
  %s7 = scalar_select 0, %s6, %s4
  // Predicated region
  $region2: #{nn2_forward.11} parent=0 // pred_check
    _
  $region3: #{nn2_forward.11} parent=0 // pred_check_branch
    %9 = sbr.rel (0) target = $region5
  $region4: #{nn2_forward.11} parent=0 // pred_region
    _
  $region5: #{nn2_forward.11} parent=0 // pred_fallthru
    _
  // Predicated region
  $region6: #{nn2_forward.11} parent=0 // pred_check
    _
  $region7: #{nn2_forward.11} parent=0 // pred_check_branch
    %11 = sbr.rel (0) target = $region9
  $region8: #{nn2_forward.11} parent=0 // pred_region
    _
  $region9: #{nn2_forward.11} parent=0 // pred_fallthru
    _
  // Predicated region
  $region10: #{nn2_forward.11} parent=0 // pred_check
    _
  $region11: #{nn2_forward.11} parent=0 // pred_check_branch
    %13 = sbr.rel (0) target = $region13
  $region12: #{nn2_forward.11} parent=0 // pred_region
    _
  $region13: #{nn2_forward.11} parent=0 // pred_fallthru
    _
  %v14 = vld [vmem:[%s0] sm:$0xf]
  %v15 = vld [vmem:[%s0 + $0x4] sm:$0xf]
  %v16 = vld [vmem:[%s0 + $0x8] sm:$0xf]
  %v17 = vld [vmem:[%s0 + $0xc] sm:$0xf]
  %v18 = vld [vmem:[%s0 + $0x10] sm:$0xf]
  %v19 = vld [vmem:[%s0 + $0x14] sm:$0xf]
  %v20 = vld [vmem:[%s0 + $0x18] sm:$0xf]
  %v21 = vld [vmem:[%s0 + $0x1c] sm:$0xf]
  %v22 = vld [vmem:[%s0 + $0x20] sm:$0xf]
  %v23 = vld [vmem:[%s0 + $0x24] sm:$0xf]
  %v24 = vld [vmem:[%s0 + $0x28] sm:$0xf]
  %v25 = vld [vmem:[%s0 + $0x2c] sm:$0xf]
  %v26 = vld [vmem:[%s0 + $0x30] sm:$0xf]
  %v27 = vld [vmem:[%s0 + $0x34] sm:$0xf]
  %v28 = vld [vmem:[%s0 + $0x38] sm:$0xf]
  %v29 = vld [vmem:[%s0 + $0x3c] sm:$0xf]
  %v30 = vld [vmem:[%s0 + $0x40] sm:$0xf]
  %v31 = vld [vmem:[%s0 + $0x44] sm:$0xf]
  %v32 = vld [vmem:[%s0 + $0x48] sm:$0xf]
  %v33 = vld [vmem:[%s0 + $0x4c] sm:$0xf]
  %v34 = vld [vmem:[%s0 + $0x50] sm:$0xf]
  %v35 = vld [vmem:[%s0 + $0x54] sm:$0xf]
  %v36 = vld [vmem:[%s0 + $0x58] sm:$0xf]
  %v37 = vld [vmem:[%s0 + $0x5c] sm:$0xf]
  %v38 = vld [vmem:[%s0 + $0x60] sm:$0xf]
  %v39 = vld [vmem:[%s0 + $0x64] sm:$0xf]
  %v40 = vld [vmem:[%s0 + $0x68] sm:$0xf]
  %v41 = vld [vmem:[%s0 + $0x6c] sm:$0xf]
  %v42 = vld [vmem:[%s0 + $0x70] sm:$0xf]
  %v43 = vld [vmem:[%s0 + $0x74] sm:$0xf]
  %v44 = vld [vmem:[%s0 + $0x78] sm:$0xf]
  %v45 = vld [vmem:[%s0 + $0x7c] sm:$0xf]
  %v46 = vld [vmem:[%s0 + $0x80] sm:$0xf]
  %v47 = vld [vmem:[%s0 + $0x84] sm:$0xf]
  %v48 = vld [vmem:[%s0 + $0x88] sm:$0xf]
  %v49 = vld [vmem:[%s0 + $0x8c] sm:$0xf]
  %v50 = vunpack.c.l.bf16 %v14
  %v51 = vunpack.c.l.bf16 %v15
  %v52 = vunpack.c.l.bf16 %v16
  %v53 = vunpack.c.l.bf16 %v17
  %v54 = vunpack.c.l.bf16 %v18
  %v55 = vunpack.c.l.bf16 %v19
  %v56 = vunpack.c.l.bf16 %v20
  %v57 = vunpack.c.l.bf16 %v21
  %v58 = vunpack.c.l.bf16 %v22
  %v59 = vunpack.c.l.bf16 %v23
  %v60 = vunpack.c.l.bf16 %v24
  %v61 = vunpack.c.l.bf16 %v25
  %v62 = vunpack.c.l.bf16 %v26
  %v63 = vunpack.c.l.bf16 %v27
  %v64 = vunpack.c.l.bf16 %v28
  %v65 = vunpack.c.l.bf16 %v29
  %v66 = vunpack.c.l.bf16 %v30
  %v67 = vunpack.c.l.bf16 %v31
  %v68 = vunpack.c.l.bf16 %v32
  %v69 = vunpack.c.l.bf16 %v33
  %v70 = vunpack.c.l.bf16 %v34
  %v71 = vunpack.c.l.bf16 %v35
  %v72 = vunpack.c.l.bf16 %v36
  %v73 = vunpack.c.l.bf16 %v37
  %v74 = vunpack.c.l.bf16 %v38
  %v75 = vunpack.c.l.bf16 %v39
  %v76 = vunpack.c.l.bf16 %v40
  %v77 = vunpack.c.l.bf16 %v41
  %v78 = vunpack.c.l.bf16 %v42
  %v79 = vunpack.c.l.bf16 %v43
  %v80 = vunpack.c.l.bf16 %v44
  %v81 = vunpack.c.l.bf16 %v45
  %v82 = vunpack.c.l.bf16 %v46
  %v83 = vunpack.c.l.bf16 %v47
  %v84 = vunpack.c.l.bf16 %v48
  %v85 = vunpack.c.l.bf16 %v49
  %v86 = vld [vmem:[%s1] sm:$0x1]
  %v88 = vlaneseq
  %v89 = vshrl.u32 %v88, 7
  %v90 = vsub.s32 0, %v89
  %v91 = vrot.slane %v86, %v90
  %v93 = vmul.f32 %v50, %v91
  %v94 = vmul.f32 %v51, %v91
  %v95 = vmul.f32 %v52, %v91
  %v96 = vmul.f32 %v53, %v91
  %v97 = vmul.f32 %v54, %v91
  %v98 = vmul.f32 %v55, %v91
  %v99 = vmul.f32 %v56, %v91
  %v100 = vmul.f32 %v57, %v91
  %v101 = vmul.f32 %v58, %v91
  %v102 = vmul.f32 %v59, %v91
  %v103 = vmul.f32 %v60, %v91
  %v104 = vmul.f32 %v61, %v91
  %v105 = vmul.f32 %v62, %v91
  %v106 = vmul.f32 %v63, %v91
  %v107 = vmul.f32 %v64, %v91
  %v108 = vmul.f32 %v65, %v91
  %v109 = vmul.f32 %v66, %v91
  %v110 = vmul.f32 %v67, %v91
  %v111 = vmul.f32 %v68, %v91
  %v112 = vmul.f32 %v69, %v91
  %v113 = vmul.f32 %v70, %v91
  %v114 = vmul.f32 %v71, %v91
  %v115 = vmul.f32 %v72, %v91
  %v116 = vmul.f32 %v73, %v91
  %v117 = vmul.f32 %v74, %v91
  %v118 = vmul.f32 %v75, %v91
  %v119 = vmul.f32 %v76, %v91
  %v120 = vmul.f32 %v77, %v91
  %v121 = vmul.f32 %v78, %v91
  %v122 = vmul.f32 %v79, %v91
  %v123 = vmul.f32 %v80, %v91
  %v124 = vmul.f32 %v81, %v91
  %v125 = vmul.f32 %v82, %v91
  %v126 = vmul.f32 %v83, %v91
  %v127 = vmul.f32 %v84, %v91
  %v128 = vmul.f32 %v85, %v91
  %v129 = vld [vmem:[%s2] sm:$0x1]
  %v131 = vlaneseq
  %v132 = vshrl.u32 %v131, 7
  %v133 = vsub.s32 0, %v132
  %v134 = vrot.slane %v129, %v133
  %v136 = vadd.f32 %v93, %v134
  %v137 = vadd.f32 %v94, %v134
  %v138 = vadd.f32 %v95, %v134
  %v139 = vadd.f32 %v96, %v134
  %v140 = vadd.f32 %v97, %v134
  %v141 = vadd.f32 %v98, %v134
  %v142 = vadd.f32 %v99, %v134
  %v143 = vadd.f32 %v100, %v134
  %v144 = vadd.f32 %v101, %v134
  %v145 = vadd.f32 %v102, %v134
  %v146 = vadd.f32 %v103, %v134
  %v147 = vadd.f32 %v104, %v134
  %v148 = vadd.f32 %v105, %v134
  %v149 = vadd.f32 %v106, %v134
  %v150 = vadd.f32 %v107, %v134
  %v151 = vadd.f32 %v108, %v134
  %v152 = vadd.f32 %v109, %v134
  %v153 = vadd.f32 %v110, %v134
  %v154 = vadd.f32 %v111, %v134
  %v155 = vadd.f32 %v112, %v134
  %v156 = vadd.f32 %v113, %v134
  %v157 = vadd.f32 %v114, %v134
  %v158 = vadd.f32 %v115, %v134
  %v159 = vadd.f32 %v116, %v134
  %v160 = vadd.f32 %v117, %v134
  %v161 = vadd.f32 %v118, %v134
  %v162 = vadd.f32 %v119, %v134
  %v163 = vadd.f32 %v120, %v134
  %v164 = vadd.f32 %v121, %v134
  %v165 = vadd.f32 %v122, %v134
  %v166 = vadd.f32 %v123, %v134
  %v167 = vadd.f32 %v124, %v134
  %v168 = vadd.f32 %v125, %v134
  %v169 = vadd.f32 %v126, %v134
  %v170 = vadd.f32 %v127, %v134
  %v171 = vadd.f32 %v128, %v134
  %v172 = vmax.f32 %v136, 0.0
  %v173 = vmax.f32 %v137, 0.0
  %v174 = vmax.f32 %v138, 0.0
  %v175 = vmax.f32 %v139, 0.0
  %v176 = vmax.f32 %v140, 0.0
  %v177 = vmax.f32 %v141, 0.0
  %v178 = vmax.f32 %v142, 0.0
  %v179 = vmax.f32 %v143, 0.0
  %v180 = vmax.f32 %v144, 0.0
  %v181 = vmax.f32 %v145, 0.0
  %v182 = vmax.f32 %v146, 0.0
  %v183 = vmax.f32 %v147, 0.0
  %v184 = vmax.f32 %v148, 0.0
  %v185 = vmax.f32 %v149, 0.0
  %v186 = vmax.f32 %v150, 0.0
  %v187 = vmax.f32 %v151, 0.0
  %v188 = vmax.f32 %v152, 0.0
  %v189 = vmax.f32 %v153, 0.0
  %v190 = vmax.f32 %v154, 0.0
  %v191 = vmax.f32 %v155, 0.0
  %v192 = vmax.f32 %v156, 0.0
  %v193 = vmax.f32 %v157, 0.0
  %v194 = vmax.f32 %v158, 0.0
  %v195 = vmax.f32 %v159, 0.0
  %v196 = vmax.f32 %v160, 0.0
  %v197 = vmax.f32 %v161, 0.0
  %v198 = vmax.f32 %v162, 0.0
  %v199 = vmax.f32 %v163, 0.0
  %v200 = vmax.f32 %v164, 0.0
  %v201 = vmax.f32 %v165, 0.0
  %v202 = vmax.f32 %v166, 0.0
  %v203 = vmax.f32 %v167, 0.0
  %v204 = vmax.f32 %v168, 0.0
  %v205 = vmax.f32 %v169, 0.0
  %v206 = vmax.f32 %v170, 0.0
  %v207 = vmax.f32 %v171, 0.0
  %v208 = vpack.c.bf16 %v173, %v172
  %v209 = vpack.c.bf16 %v175, %v174
  %v210 = vpack.c.bf16 %v177, %v176
  %v211 = vpack.c.bf16 %v179, %v178
  %v212 = vpack.c.bf16 %v181, %v180
  %v213 = vpack.c.bf16 %v183, %v182
  %v214 = vpack.c.bf16 %v185, %v184
  %v215 = vpack.c.bf16 %v187, %v186
  %v216 = vpack.c.bf16 %v189, %v188
  %v217 = vpack.c.bf16 %v191, %v190
  %v218 = vpack.c.bf16 %v193, %v192
  %v219 = vpack.c.bf16 %v195, %v194
  %v220 = vpack.c.bf16 %v197, %v196
  %v221 = vpack.c.bf16 %v199, %v198
  %v222 = vpack.c.bf16 %v201, %v200
  %v223 = vpack.c.bf16 %v203, %v202
  %v224 = vpack.c.bf16 %v205, %v204
  %v225 = vpack.c.bf16 %v207, %v206
  %v244 = vunpack.c.l.b16 %v208
  %v245 = vunpack.c.h.b16 %v208
  %v246 = vunpack.c.l.b16 %v209
  %v247 = vunpack.c.h.b16 %v209
  %v248 = vunpack.c.l.b16 %v210
  %v249 = vunpack.c.h.b16 %v210
  %v250 = vunpack.c.l.b16 %v211
  %v251 = vunpack.c.h.b16 %v211
  %v252 = vunpack.c.l.b16 %v212
  %v253 = vunpack.c.h.b16 %v212
  %v254 = vunpack.c.l.b16 %v213
  %v255 = vunpack.c.h.b16 %v213
  %v256 = vunpack.c.l.b16 %v214
  %v257 = vunpack.c.h.b16 %v214
  %v258 = vunpack.c.l.b16 %v215
  %v259 = vunpack.c.h.b16 %v215
  %v260 = vunpack.c.l.b16 %v216
  %v261 = vunpack.c.h.b16 %v216
  %v262 = vunpack.c.l.b16 %v217
  %v263 = vunpack.c.h.b16 %v217
  %v264 = vunpack.c.l.b16 %v218
  %v265 = vunpack.c.h.b16 %v218
  %v266 = vunpack.c.l.b16 %v219
  %v267 = vunpack.c.h.b16 %v219
  %v268 = vunpack.c.l.b16 %v220
  %v269 = vunpack.c.h.b16 %v220
  %v270 = vunpack.c.l.b16 %v221
  %v271 = vunpack.c.h.b16 %v221
  %v272 = vunpack.c.l.b16 %v222
  %v273 = vunpack.c.h.b16 %v222
  %v274 = vunpack.c.l.b16 %v223
  %v275 = vunpack.c.h.b16 %v223
  %v276 = vunpack.c.l.b16 %v224
  %v277 = vunpack.c.h.b16 %v224
  %v278 = vunpack.c.l.b16 %v225
  %v279 = vunpack.c.h.b16 %v225
  %v280 = vpack.c.b16 %v244, %v244
  %v281 = vpack.c.b16 %v245, %v245
  %v282 = vpack.c.b16 %v246, %v246
  %v283 = vpack.c.b16 %v247, %v247
  %v284 = vpack.c.b16 %v248, %v248
  %v285 = vpack.c.b16 %v249, %v249
  %v286 = vpack.c.b16 %v250, %v250
  %v287 = vpack.c.b16 %v251, %v251
  %v288 = vpack.c.b16 %v252, %v252
  %v289 = vpack.c.b16 %v253, %v253
  %v290 = vpack.c.b16 %v254, %v254
  %v291 = vpack.c.b16 %v255, %v255
  %v292 = vpack.c.b16 %v256, %v256
  %v293 = vpack.c.b16 %v257, %v257
  %v294 = vpack.c.b16 %v258, %v258
  %v295 = vpack.c.b16 %v259, %v259
  %v296 = vpack.c.b16 %v260, %v260
  %v297 = vpack.c.b16 %v261, %v261
  %v298 = vpack.c.b16 %v262, %v262
  %v299 = vpack.c.b16 %v263, %v263
  %v300 = vpack.c.b16 %v264, %v264
  %v301 = vpack.c.b16 %v265, %v265
  %v302 = vpack.c.b16 %v266, %v266
  %v303 = vpack.c.b16 %v267, %v267
  %v304 = vpack.c.b16 %v268, %v268
  %v305 = vpack.c.b16 %v269, %v269
  %v306 = vpack.c.b16 %v270, %v270
  %v307 = vpack.c.b16 %v271, %v271
  %v308 = vpack.c.b16 %v272, %v272
  %v309 = vpack.c.b16 %v273, %v273
  %v310 = vpack.c.b16 %v274, %v274
  %v311 = vpack.c.b16 %v275, %v275
  %v312 = vpack.c.b16 %v276, %v276
  %v313 = vpack.c.b16 %v277, %v277
  %v314 = vpack.c.b16 %v278, %v278
  %v315 = vpack.c.b16 %v279, %v279
  %352 = vst [vmem:[%s3] sm:$0xf] %v280
  %353 = vst [vmem:[%s3 + $0x4] sm:$0xf] %v281
  %354 = vst [vmem:[%s3 + $0x8] sm:$0xf] %v282
  %355 = vst [vmem:[%s3 + $0xc] sm:$0xf] %v283
  %356 = vst [vmem:[%s3 + $0x10] sm:$0xf] %v284
  %357 = vst [vmem:[%s3 + $0x14] sm:$0xf] %v285
  %358 = vst [vmem:[%s3 + $0x18] sm:$0xf] %v286
  %359 = vst [vmem:[%s3 + $0x1c] sm:$0xf] %v287
  %360 = vst [vmem:[%s3 + $0x20] sm:$0xf] %v288
  %361 = vst [vmem:[%s3 + $0x24] sm:$0xf] %v289
  %362 = vst [vmem:[%s3 + $0x28] sm:$0xf] %v290
  %363 = vst [vmem:[%s3 + $0x2c] sm:$0xf] %v291
  %364 = vst [vmem:[%s3 + $0x30] sm:$0xf] %v292
  %365 = vst [vmem:[%s3 + $0x34] sm:$0xf] %v293
  %366 = vst [vmem:[%s3 + $0x38] sm:$0xf] %v294
  %367 = vst [vmem:[%s3 + $0x3c] sm:$0xf] %v295
  %368 = vst [vmem:[%s3 + $0x40] sm:$0xf] %v296
  %369 = vst [vmem:[%s3 + $0x44] sm:$0xf] %v297
  %370 = vst [vmem:[%s3 + $0x48] sm:$0xf] %v298
  %371 = vst [vmem:[%s3 + $0x4c] sm:$0xf] %v299
  %372 = vst [vmem:[%s3 + $0x50] sm:$0xf] %v300
  %373 = vst [vmem:[%s3 + $0x54] sm:$0xf] %v301
  %374 = vst [vmem:[%s3 + $0x58] sm:$0xf] %v302
  %375 = vst [vmem:[%s3 + $0x5c] sm:$0xf] %v303
  %376 = vst [vmem:[%s3 + $0x60] sm:$0xf] %v304
  %377 = vst [vmem:[%s3 + $0x64] sm:$0xf] %v305
  %378 = vst [vmem:[%s3 + $0x68] sm:$0xf] %v306
  %379 = vst [vmem:[%s3 + $0x6c] sm:$0xf] %v307
  %380 = vst [vmem:[%s3 + $0x70] sm:$0xf] %v308
  %381 = vst [vmem:[%s3 + $0x74] sm:$0xf] %v309
  %382 = vst [vmem:[%s3 + $0x78] sm:$0xf] %v310
  %383 = vst [vmem:[%s3 + $0x7c] sm:$0xf] %v311
  %384 = vst [vmem:[%s3 + $0x80] sm:$0xf] %v312
  %385 = vst [vmem:[%s3 + $0x84] sm:$0xf] %v313
  %386 = vst [vmem:[%s3 + $0x88] sm:$0xf] %v314
  %387 = vst [vmem:[%s3 + $0x8c] sm:$0xf] %v315
  // Predicated region
  $region14: #{nn2_forward.11} parent=0 // pred_check
    _
  $region15: #{nn2_forward.11} parent=0 // pred_check_branch
    %389 = sbr.rel (0) target = $region17
  $region16: #{nn2_forward.11} parent=0 // pred_region
    _
  $region17: #{nn2_forward.11} parent=0 // pred_fallthru
    _
  // Predicated region
  $region18: #{nn2_forward.11} parent=0 // pred_check
    _
  $region19: #{nn2_forward.11} parent=0 // pred_check_branch
    %391 = sbr.rel (0) target = $region21
  $region20: #{nn2_forward.11} parent=0 // pred_region
    _
  $region21: #{nn2_forward.11} parent=0 // pred_fallthru
    _

// kernel: nn2_forward.10
$region0: #{nn2_forward.10}
  #allocation0 [shape = 'u32[]', space=smem, size = 0x4, offset = 0x4, fixed_abs, tag = 'smem constant byte address 0x4 - core index']
  #allocation1 [shape = 'u32[144,128]{1,0:T(1,128)}', space=vmem, size = 0x12000, scoped, tag = 'internal scratch']
  %s0 = inlined_call_operand.vmem [shape: bf16[288,144], index: 0, kind: input, shape index: {}]
  %s1 = inlined_call_operand.vmem [shape: bf16[144,128], index: 1, kind: input, shape index: {}]
  %s2 = inlined_call_operand.vmem [shape: bf16[288,128], index: 2, kind: output, shape index: {0}]
  %s3 = inlined_call_operand.vmem [shape: f32[1,1,128], index: 3, kind: output, shape index: {1}]
  %s4 = inlined_call_operand.vmem [shape: f32[1,1,128], index: 4, kind: output, shape index: {2}]
  %5 = xla_tuple %s2, %s3, %s4
  %s6 = sld [smem:[#allocation0]]
  $region34: #{nn2_forward.10} parent=0
    _
  %s8 = ssub.s32 1, %s6
  %s9 = scalar_select 0, %s8, %s6
  // Predicated region
  $region2: #{nn2_forward.10} parent=0 // pred_check
    _
  $region3: #{nn2_forward.10} parent=0 // pred_check_branch
    %11 = sbr.rel (0) target = $region5
  $region4: #{nn2_forward.10} parent=0 // pred_region
    _
  $region5: #{nn2_forward.10} parent=0 // pred_fallthru
    _
  // Predicated region
  $region6: #{nn2_forward.10} parent=0 // pred_check
    _
  $region7: #{nn2_forward.10} parent=0 // pred_check_branch
    %13 = sbr.rel (0) target = $region9
  $region8: #{nn2_forward.10} parent=0 // pred_region
    _
  $region9: #{nn2_forward.10} parent=0 // pred_fallthru
    _
  %v15 = vld [vmem:[%s0] sm:$0xff]
  %v16 = vld [vmem:[%s0 + $0x8] sm:$0xff]
  %v17 = vld [vmem:[%s0 + $0x10] sm:$0xff]
  %v18 = vld [vmem:[%s0 + $0x18] sm:$0xff]
  %v19 = vld [vmem:[%s0 + $0x20] sm:$0xff]
  %v20 = vld [vmem:[%s0 + $0x28] sm:$0xff]
  %v21 = vld [vmem:[%s0 + $0x30] sm:$0xff]
  %v22 = vld [vmem:[%s0 + $0x38] sm:$0xff]
  %v23 = vld [vmem:[%s0 + $0x40] sm:$0xff]
  %v24 = vld [vmem:[%s0 + $0x48] sm:$0xff]
  %v25 = vld [vmem:[%s0 + $0x50] sm:$0xff]
  %v26 = vld [vmem:[%s0 + $0x58] sm:$0xff]
  %v27 = vld [vmem:[%s0 + $0x60] sm:$0xff]
  %v28 = vld [vmem:[%s0 + $0x68] sm:$0xff]
  %v29 = vld [vmem:[%s0 + $0x70] sm:$0xff]
  %v30 = vld [vmem:[%s0 + $0x78] sm:$0xff]
  %v31 = vld [vmem:[%s0 + $0x80] sm:$0xff]
  %v32 = vld [vmem:[%s0 + $0x88] sm:$0xff]
  %v33 = vld [vmem:[%s0 + $0x90] sm:$0xff]
  %v34 = vld [vmem:[%s0 + $0x98] sm:$0xff]
  %v35 = vld [vmem:[%s0 + $0xa0] sm:$0xff]
  %v36 = vld [vmem:[%s0 + $0xa8] sm:$0xff]
  %v37 = vld [vmem:[%s0 + $0xb0] sm:$0xff]
  %v38 = vld [vmem:[%s0 + $0xb8] sm:$0xff]
  %v39 = vld [vmem:[%s0 + $0xc0] sm:$0xff]
  %v40 = vld [vmem:[%s0 + $0xc8] sm:$0xff]
  %v41 = vld [vmem:[%s0 + $0xd0] sm:$0xff]
  %v42 = vld [vmem:[%s0 + $0xd8] sm:$0xff]
  %v43 = vld [vmem:[%s0 + $0xe0] sm:$0xff]
  %v44 = vld [vmem:[%s0 + $0xe8] sm:$0xff]
  %v45 = vld [vmem:[%s0 + $0xf0] sm:$0xff]
  %v46 = vld [vmem:[%s0 + $0xf8] sm:$0xff]
  %v47 = vld [vmem:[%s0 + $0x100] sm:$0xff]
  %v48 = vld [vmem:[%s0 + $0x108] sm:$0xff]
  %v49 = vld [vmem:[%s0 + $0x110] sm:$0xff]
  %v50 = vld [vmem:[%s0 + $0x118] sm:$0xff]
  %v51 = vld [vmem:[%s1] sm:$0xf]
  %v52 = vld [vmem:[%s1 + $0x4] sm:$0xf]
  %v53 = vld [vmem:[%s1 + $0x8] sm:$0xf]
  %v54 = vld [vmem:[%s1 + $0xc] sm:$0xf]
  %v55 = vld [vmem:[%s1 + $0x10] sm:$0xf]
  %v56 = vld [vmem:[%s1 + $0x14] sm:$0xf]
  %v57 = vld [vmem:[%s1 + $0x18] sm:$0xf]
  %v58 = vld [vmem:[%s1 + $0x1c] sm:$0xf]
  %v59 = vld [vmem:[%s1 + $0x20] sm:$0xf]
  %v60 = vld [vmem:[%s1 + $0x24] sm:$0xf]
  %v61 = vld [vmem:[%s1 + $0x28] sm:$0xf]
  %v62 = vld [vmem:[%s1 + $0x2c] sm:$0xf]
  %v63 = vld [vmem:[%s1 + $0x30] sm:$0xf]
  %v64 = vld [vmem:[%s1 + $0x34] sm:$0xf]
  %v65 = vld [vmem:[%s1 + $0x38] sm:$0xf]
  %v66 = vld [vmem:[%s1 + $0x3c] sm:$0xf]
  %v67 = vld [vmem:[%s1 + $0x40] sm:$0xf]
  %v68 = vld [vmem:[%s1 + $0x44] sm:$0xf]
  %v105 = vunpack.c.l.b16 %v15
  %v106 = vunpack.c.h.b16 %v15
  %v107 = vunpack.c.l.b16 %v16
  %v108 = vunpack.c.h.b16 %v16
  %v109 = vunpack.c.l.b16 %v17
  %v110 = vunpack.c.h.b16 %v17
  %v111 = vunpack.c.l.b16 %v18
  %v112 = vunpack.c.h.b16 %v18
  %v113 = vunpack.c.l.b16 %v19
  %v114 = vunpack.c.h.b16 %v19
  %v115 = vunpack.c.l.b16 %v20
  %v116 = vunpack.c.h.b16 %v20
  %v117 = vunpack.c.l.b16 %v21
  %v118 = vunpack.c.h.b16 %v21
  %v119 = vunpack.c.l.b16 %v22
  %v120 = vunpack.c.h.b16 %v22
  %v121 = vunpack.c.l.b16 %v23
  %v122 = vunpack.c.h.b16 %v23
  %v123 = vunpack.c.l.b16 %v24
  %v124 = vunpack.c.h.b16 %v24
  %v125 = vunpack.c.l.b16 %v25
  %v126 = vunpack.c.h.b16 %v25
  %v127 = vunpack.c.l.b16 %v26
  %v128 = vunpack.c.h.b16 %v26
  %v129 = vunpack.c.l.b16 %v27
  %v130 = vunpack.c.h.b16 %v27
  %v131 = vunpack.c.l.b16 %v28
  %v132 = vunpack.c.h.b16 %v28
  %v133 = vunpack.c.l.b16 %v29
  %v134 = vunpack.c.h.b16 %v29
  %v135 = vunpack.c.l.b16 %v30
  %v136 = vunpack.c.h.b16 %v30
  %v137 = vunpack.c.l.b16 %v31
  %v138 = vunpack.c.h.b16 %v31
  %v139 = vunpack.c.l.b16 %v32
  %v140 = vunpack.c.h.b16 %v32
  %v141 = vunpack.c.l.b16 %v33
  %v142 = vunpack.c.h.b16 %v33
  %v143 = vunpack.c.l.b16 %v34
  %v144 = vunpack.c.h.b16 %v34
  %v145 = vunpack.c.l.b16 %v35
  %v146 = vunpack.c.h.b16 %v35
  %v147 = vunpack.c.l.b16 %v36
  %v148 = vunpack.c.h.b16 %v36
  %v149 = vunpack.c.l.b16 %v37
  %v150 = vunpack.c.h.b16 %v37
  %v151 = vunpack.c.l.b16 %v38
  %v152 = vunpack.c.h.b16 %v38
  %v153 = vunpack.c.l.b16 %v39
  %v154 = vunpack.c.h.b16 %v39
  %v155 = vunpack.c.l.b16 %v40
  %v156 = vunpack.c.h.b16 %v40
  %v157 = vunpack.c.l.b16 %v41
  %v158 = vunpack.c.h.b16 %v41
  %v159 = vunpack.c.l.b16 %v42
  %v160 = vunpack.c.h.b16 %v42
  %v161 = vunpack.c.l.b16 %v43
  %v162 = vunpack.c.h.b16 %v43
  %v163 = vunpack.c.l.b16 %v44
  %v164 = vunpack.c.h.b16 %v44
  %v165 = vunpack.c.l.b16 %v45
  %v166 = vunpack.c.h.b16 %v45
  %v167 = vunpack.c.l.b16 %v46
  %v168 = vunpack.c.h.b16 %v46
  %v169 = vunpack.c.l.b16 %v47
  %v170 = vunpack.c.h.b16 %v47
  %v171 = vunpack.c.l.b16 %v48
  %v172 = vunpack.c.h.b16 %v48
  %v173 = vunpack.c.l.b16 %v49
  %v174 = vunpack.c.h.b16 %v49
  %v175 = vunpack.c.l.b16 %v50
  %v176 = vunpack.c.h.b16 %v50
  %v177 = vpack.c.b16 %v107, %v105
  %v178 = vpack.c.b16 %v108, %v106
  %v179 = vpack.c.b16 %v111, %v109
  %v180 = vpack.c.b16 %v112, %v110
  %v181 = vpack.c.b16 %v115, %v113
  %v182 = vpack.c.b16 %v116, %v114
  %v183 = vpack.c.b16 %v119, %v117
  %v184 = vpack.c.b16 %v120, %v118
  %v185 = vpack.c.b16 %v123, %v121
  %v186 = vpack.c.b16 %v124, %v122
  %v187 = vpack.c.b16 %v127, %v125
  %v188 = vpack.c.b16 %v128, %v126
  %v189 = vpack.c.b16 %v131, %v129
  %v190 = vpack.c.b16 %v132, %v130
  %v191 = vpack.c.b16 %v135, %v133
  %v192 = vpack.c.b16 %v136, %v134
  %v193 = vpack.c.b16 %v139, %v137
  %v194 = vpack.c.b16 %v140, %v138
  %v195 = vpack.c.b16 %v143, %v141
  %v196 = vpack.c.b16 %v144, %v142
  %v197 = vpack.c.b16 %v147, %v145
  %v198 = vpack.c.b16 %v148, %v146
  %v199 = vpack.c.b16 %v151, %v149
  %v200 = vpack.c.b16 %v152, %v150
  %v201 = vpack.c.b16 %v155, %v153
  %v202 = vpack.c.b16 %v156, %v154
  %v203 = vpack.c.b16 %v159, %v157
  %v204 = vpack.c.b16 %v160, %v158
  %v205 = vpack.c.b16 %v163, %v161
  %v206 = vpack.c.b16 %v164, %v162
  %v207 = vpack.c.b16 %v167, %v165
  %v208 = vpack.c.b16 %v168, %v166
  %v209 = vpack.c.b16 %v171, %v169
  %v210 = vpack.c.b16 %v172, %v170
  %v211 = vpack.c.b16 %v175, %v173
  %v212 = vpack.c.b16 %v176, %v174
  %v249 = vunpack.c.l.b16 %v51
  %v250 = vunpack.c.l.b16 %v52
  %v251 = vunpack.c.l.b16 %v53
  %v252 = vunpack.c.l.b16 %v54
  %v253 = vunpack.c.l.b16 %v55
  %v254 = vunpack.c.l.b16 %v56
  %v255 = vunpack.c.l.b16 %v57
  %v256 = vunpack.c.l.b16 %v58
  %v257 = vunpack.c.l.b16 %v59
  %v258 = vunpack.c.l.b16 %v60
  %v259 = vunpack.c.l.b16 %v61
  %v260 = vunpack.c.l.b16 %v62
  %v261 = vunpack.c.l.b16 %v63
  %v262 = vunpack.c.l.b16 %v64
  %v263 = vunpack.c.l.b16 %v65
  %v264 = vunpack.c.l.b16 %v66
  %v265 = vunpack.c.l.b16 %v67
  %v266 = vunpack.c.l.b16 %v68
  %v267 = vpack.c.b16 %v250, %v249
  %v268 = vpack.c.b16 %v252, %v251
  %v269 = vpack.c.b16 %v254, %v253
  %v270 = vpack.c.b16 %v256, %v255
  %v271 = vpack.c.b16 %v258, %v257
  %v272 = vpack.c.b16 %v260, %v259
  %v273 = vpack.c.b16 %v262, %v261
  %v274 = vpack.c.b16 %v264, %v263
  %v275 = vpack.c.b16 %v266, %v265
  %vm285 = vcmask 130048
  %v287 = vsel %vm285, %v178, 0
  %v290 = vsel %vm285, %v180, 0
  %v293 = vsel %vm285, %v182, 0
  %v296 = vsel %vm285, %v184, 0
  %v299 = vsel %vm285, %v186, 0
  %v302 = vsel %vm285, %v188, 0
  %v305 = vsel %vm285, %v190, 0
  %v308 = vsel %vm285, %v192, 0
  %v311 = vsel %vm285, %v194, 0
  %v314 = vsel %vm285, %v196, 0
  %v317 = vsel %vm285, %v198, 0
  %v320 = vsel %vm285, %v200, 0
  %v323 = vsel %vm285, %v202, 0
  %v326 = vsel %vm285, %v204, 0
  %v329 = vsel %vm285, %v206, 0
  %v332 = vsel %vm285, %v208, 0
  %v335 = vsel %vm285, %v210, 0
  %v338 = vsel %vm285, %v212, 0
  %340 = vmatprep.subr.bf16.mxu0 0
  %341 = vmatpush1.bf16.msra.mxu0 %v274
  %342 = vmatprep.subr.bf16.mxu0 0
  %343 = vmatpush1.bf16.msra.mxu0 %v273
  %344 = vmatprep.subr.bf16.mxu0 0
  %345 = vmatpush1.bf16.msra.mxu0 %v272
  %346 = vmatprep.subr.bf16.mxu0 0
  %347 = vmatpush1.bf16.msra.mxu0 %v271
  %348 = vmatprep.subr.bf16.mxu0 0
  %349 = vmatpush1.bf16.msra.mxu0 %v270
  %350 = vmatprep.subr.bf16.mxu0 0
  %351 = vmatpush1.bf16.msra.mxu0 %v269
  %352 = vmatprep.subr.bf16.mxu0 0
  %353 = vmatpush1.bf16.msra.mxu0 %v268
  %354 = vmatprep.subr.bf16.mxu0 0
  %355 = vmatpush1.bf16.msra.mxu0 %v267
  %356 = vmatprep.subr.bf16.mxu0 0
  %357 = vmatpush2.bf16.msra.mxu0 0
  %358 = vmatprep.subr.bf16.mxu0 0
  %359 = vmatpush2.bf16.msra.mxu0 0
  %360 = vmatprep.subr.bf16.mxu0 0
  %361 = vmatpush2.bf16.msra.mxu0 0
  %362 = vmatprep.subr.bf16.mxu0 0
  %363 = vmatpush2.bf16.msra.mxu0 0
  %364 = vmatprep.subr.bf16.mxu0 0
  %365 = vmatpush2.bf16.msra.mxu0 0
  %366 = vmatprep.subr.bf16.mxu0 0
  %367 = vmatpush2.bf16.msra.mxu0 0
  %368 = vmatprep.subr.bf16.mxu0 0
  %369 = vmatpush2.bf16.msra.mxu0 0
  %370 = vmatprep.subr.bf16.mxu0 0
  %371 = vmatpush2.bf16.msra.mxu0 %v275
  %372 = vmatprep.mubr.bf16.mxu0 %v287
  %373 = vmatmul.mubr.bf16.gmra.mxu0 %v177
  %v374 = vpop.f32.mrf.mxu0
  %v375 = vadd.f32 0.0, %v374
  %v376 = vpop.f32.mrf.mxu0
  %v377 = vpop.f32.mrf.mxu0
  %v378 = vadd.f32 0.0, %v377
  %v379 = vpop.f32.mrf.mxu0
  %380 = vmatprep.mubr.bf16.mxu0 %v290
  %381 = vmatmul.mubr.bf16.gmra.mxu0 %v179
  %v382 = vpop.f32.mrf.mxu0
  %v383 = vadd.f32 0.0, %v382
  %v384 = vpop.f32.mrf.mxu0
  %v385 = vpop.f32.mrf.mxu0
  %v386 = vadd.f32 0.0, %v385
  %v387 = vpop.f32.mrf.mxu0
  %388 = vmatprep.mubr.bf16.mxu0 %v293
  %389 = vmatmul.mubr.bf16.gmra.mxu0 %v181
  %v390 = vpop.f32.mrf.mxu0
  %v391 = vadd.f32 0.0, %v390
  %v392 = vpop.f32.mrf.mxu0
  %v393 = vpop.f32.mrf.mxu0
  %v394 = vadd.f32 0.0, %v393
  %v395 = vpop.f32.mrf.mxu0
  %396 = vmatprep.mubr.bf16.mxu0 %v296
  %397 = vmatmul.mubr.bf16.gmra.mxu0 %v183
  %v398 = vpop.f32.mrf.mxu0
  %v399 = vadd.f32 0.0, %v398
  %v400 = vpop.f32.mrf.mxu0
  %v401 = vpop.f32.mrf.mxu0
  %v402 = vadd.f32 0.0, %v401
  %v403 = vpop.f32.mrf.mxu0
  %404 = vmatprep.mubr.bf16.mxu0 %v299
  %405 = vmatmul.mubr.bf16.gmra.mxu0 %v185
  %v406 = vpop.f32.mrf.mxu0
  %v407 = vadd.f32 0.0, %v406
  %v408 = vpop.f32.mrf.mxu0
  %v409 = vpop.f32.mrf.mxu0
  %v410 = vadd.f32 0.0, %v409
  %v411 = vpop.f32.mrf.mxu0
  %412 = vmatprep.mubr.bf16.mxu0 %v302
  %413 = vmatmul.mubr.bf16.gmra.mxu0 %v187
  %v414 = vpop.f32.mrf.mxu0
  %v415 = vadd.f32 0.0, %v414
  %v416 = vpop.f32.mrf.mxu0
  %v417 = vpop.f32.mrf.mxu0
  %v418 = vadd.f32 0.0, %v417
  %v419 = vpop.f32.mrf.mxu0
  %420 = vmatprep.mubr.bf16.mxu0 %v305
  %421 = vmatmul.mubr.bf16.gmra.mxu0 %v189
  %v422 = vpop.f32.mrf.mxu0
  %v423 = vadd.f32 0.0, %v422
  %v424 = vpop.f32.mrf.mxu0
  %v425 = vpop.f32.mrf.mxu0
  %v426 = vadd.f32 0.0, %v425
  %v427 = vpop.f32.mrf.mxu0
  %428 = vmatprep.mubr.bf16.mxu0 %v308
  %429 = vmatmul.mubr.bf16.gmra.mxu0 %v191
  %v430 = vpop.f32.mrf.mxu0
  %v431 = vadd.f32 0.0, %v430
  %v432 = vpop.f32.mrf.mxu0
  %v433 = vpop.f32.mrf.mxu0
  %v434 = vadd.f32 0.0, %v433
  %v435 = vpop.f32.mrf.mxu0
  %436 = vmatprep.mubr.bf16.mxu0 %v311
  %437 = vmatmul.mubr.bf16.gmra.mxu0 %v193
  %v438 = vpop.f32.mrf.mxu0
  %v439 = vadd.f32 0.0, %v438
  %v440 = vpop.f32.mrf.mxu0
  %v441 = vpop.f32.mrf.mxu0
  %v442 = vadd.f32 0.0, %v441
  %v443 = vpop.f32.mrf.mxu0
  %444 = vmatprep.mubr.bf16.mxu0 %v314
  %445 = vmatmul.mubr.bf16.gmra.mxu0 %v195
  %v446 = vpop.f32.mrf.mxu0
  %v447 = vadd.f32 0.0, %v446
  %v448 = vpop.f32.mrf.mxu0
  %v449 = vpop.f32.mrf.mxu0
  %v450 = vadd.f32 0.0, %v449
  %v451 = vpop.f32.mrf.mxu0
  %452 = vmatprep.mubr.bf16.mxu0 %v317
  %453 = vmatmul.mubr.bf16.gmra.mxu0 %v197
  %v454 = vpop.f32.mrf.mxu0
  %v455 = vadd.f32 0.0, %v454
  %v456 = vpop.f32.mrf.mxu0
  %v457 = vpop.f32.mrf.mxu0
  %v458 = vadd.f32 0.0, %v457
  %v459 = vpop.f32.mrf.mxu0
  %460 = vmatprep.mubr.bf16.mxu0 %v320
  %461 = vmatmul.mubr.bf16.gmra.mxu0 %v199
  %v462 = vpop.f32.mrf.mxu0
  %v463 = vadd.f32 0.0, %v462
  %v464 = vpop.f32.mrf.mxu0
  %v465 = vpop.f32.mrf.mxu0
  %v466 = vadd.f32 0.0, %v465
  %v467 = vpop.f32.mrf.mxu0
  %468 = vmatprep.mubr.bf16.mxu0 %v323
  %469 = vmatmul.mubr.bf16.gmra.mxu0 %v201
  %v470 = vpop.f32.mrf.mxu0
  %v471 = vadd.f32 0.0, %v470
  %v472 = vpop.f32.mrf.mxu0
  %v473 = vpop.f32.mrf.mxu0
  %v474 = vadd.f32 0.0, %v473
  %v475 = vpop.f32.mrf.mxu0
  %476 = vmatprep.mubr.bf16.mxu0 %v326
  %477 = vmatmul.mubr.bf16.gmra.mxu0 %v203
  %v478 = vpop.f32.mrf.mxu0
  %v479 = vadd.f32 0.0, %v478
  %v480 = vpop.f32.mrf.mxu0
  %v481 = vpop.f32.mrf.mxu0
  %v482 = vadd.f32 0.0, %v481
  %v483 = vpop.f32.mrf.mxu0
  %484 = vmatprep.mubr.bf16.mxu0 %v329
  %485 = vmatmul.mubr.bf16.gmra.mxu0 %v205
  %v486 = vpop.f32.mrf.mxu0
  %v487 = vadd.f32 0.0, %v486
  %v488 = vpop.f32.mrf.mxu0
  %v489 = vpop.f32.mrf.mxu0
  %v490 = vadd.f32 0.0, %v489
  %v491 = vpop.f32.mrf.mxu0
  %492 = vmatprep.mubr.bf16.mxu0 %v332
  %493 = vmatmul.mubr.bf16.gmra.mxu0 %v207
  %v494 = vpop.f32.mrf.mxu0
  %v495 = vadd.f32 0.0, %v494
  %v496 = vpop.f32.mrf.mxu0
  %v497 = vpop.f32.mrf.mxu0
  %v498 = vadd.f32 0.0, %v497
  %v499 = vpop.f32.mrf.mxu0
  %500 = vmatprep.mubr.bf16.mxu0 %v335
  %501 = vmatmul.mubr.bf16.gmra.mxu0 %v209
  %v502 = vpop.f32.mrf.mxu0
  %v503 = vadd.f32 0.0, %v502
  %v504 = vpop.f32.mrf.mxu0
  %v505 = vpop.f32.mrf.mxu0
  %v506 = vadd.f32 0.0, %v505
  %v507 = vpop.f32.mrf.mxu0
  %508 = vmatprep.mubr.bf16.mxu0 %v338
  %509 = vmatmul.mubr.bf16.gmra.mxu0 %v211
  %v510 = vpop.f32.mrf.mxu0
  %v511 = vadd.f32 0.0, %v510
  %v512 = vpop.f32.mrf.mxu0
  %v513 = vpop.f32.mrf.mxu0
  %v514 = vadd.f32 0.0, %v513
  %v515 = vpop.f32.mrf.mxu0
  %516 = vdwg.mxu0
  %v517 = vpack.c.bf16 %v378, %v375
  %v518 = vpack.c.bf16 %v386, %v383
  %v519 = vpack.c.bf16 %v394, %v391
  %v520 = vpack.c.bf16 %v402, %v399
  %v521 = vpack.c.bf16 %v410, %v407
  %v522 = vpack.c.bf16 %v418, %v415
  %v523 = vpack.c.bf16 %v426, %v423
  %v524 = vpack.c.bf16 %v434, %v431
  %v525 = vpack.c.bf16 %v442, %v439
  %v526 = vpack.c.bf16 %v450, %v447
  %v527 = vpack.c.bf16 %v458, %v455
  %v528 = vpack.c.bf16 %v466, %v463
  %v529 = vpack.c.bf16 %v474, %v471
  %v530 = vpack.c.bf16 %v482, %v479
  %v531 = vpack.c.bf16 %v490, %v487
  %v532 = vpack.c.bf16 %v498, %v495
  %v533 = vpack.c.bf16 %v506, %v503
  %v534 = vpack.c.bf16 %v514, %v511
  %v553 = vunpack.c.l.b16 %v517
  %v554 = vunpack.c.h.b16 %v517
  %v555 = vunpack.c.l.b16 %v518
  %v556 = vunpack.c.h.b16 %v518
  %v557 = vunpack.c.l.b16 %v519
  %v558 = vunpack.c.h.b16 %v519
  %v559 = vunpack.c.l.b16 %v520
  %v560 = vunpack.c.h.b16 %v520
  %v561 = vunpack.c.l.b16 %v521
  %v562 = vunpack.c.h.b16 %v521
  %v563 = vunpack.c.l.b16 %v522
  %v564 = vunpack.c.h.b16 %v522
  %v565 = vunpack.c.l.b16 %v523
  %v566 = vunpack.c.h.b16 %v523
  %v567 = vunpack.c.l.b16 %v524
  %v568 = vunpack.c.h.b16 %v524
  %v569 = vunpack.c.l.b16 %v525
  %v570 = vunpack.c.h.b16 %v525
  %v571 = vunpack.c.l.b16 %v526
  %v572 = vunpack.c.h.b16 %v526
  %v573 = vunpack.c.l.b16 %v527
  %v574 = vunpack.c.h.b16 %v527
  %v575 = vunpack.c.l.b16 %v528
  %v576 = vunpack.c.h.b16 %v528
  %v577 = vunpack.c.l.b16 %v529
  %v578 = vunpack.c.h.b16 %v529
  %v579 = vunpack.c.l.b16 %v530
  %v580 = vunpack.c.h.b16 %v530
  %v581 = vunpack.c.l.b16 %v531
  %v582 = vunpack.c.h.b16 %v531
  %v583 = vunpack.c.l.b16 %v532
  %v584 = vunpack.c.h.b16 %v532
  %v585 = vunpack.c.l.b16 %v533
  %v586 = vunpack.c.h.b16 %v533
  %v587 = vunpack.c.l.b16 %v534
  %v588 = vunpack.c.h.b16 %v534
  %v589 = vpack.c.b16 %v553, %v553
  %v590 = vpack.c.b16 %v554, %v554
  %v591 = vpack.c.b16 %v555, %v555
  %v592 = vpack.c.b16 %v556, %v556
  %v593 = vpack.c.b16 %v557, %v557
  %v594 = vpack.c.b16 %v558, %v558
  %v595 = vpack.c.b16 %v559, %v559
  %v596 = vpack.c.b16 %v560, %v560
  %v597 = vpack.c.b16 %v561, %v561
  %v598 = vpack.c.b16 %v562, %v562
  %v599 = vpack.c.b16 %v563, %v563
  %v600 = vpack.c.b16 %v564, %v564
  %v601 = vpack.c.b16 %v565, %v565
  %v602 = vpack.c.b16 %v566, %v566
  %v603 = vpack.c.b16 %v567, %v567
  %v604 = vpack.c.b16 %v568, %v568
  %v605 = vpack.c.b16 %v569, %v569
  %v606 = vpack.c.b16 %v570, %v570
  %v607 = vpack.c.b16 %v571, %v571
  %v608 = vpack.c.b16 %v572, %v572
  %v609 = vpack.c.b16 %v573, %v573
  %v610 = vpack.c.b16 %v574, %v574
  %v611 = vpack.c.b16 %v575, %v575
  %v612 = vpack.c.b16 %v576, %v576
  %v613 = vpack.c.b16 %v577, %v577
  %v614 = vpack.c.b16 %v578, %v578
  %v615 = vpack.c.b16 %v579, %v579
  %v616 = vpack.c.b16 %v580, %v580
  %v617 = vpack.c.b16 %v581, %v581
  %v618 = vpack.c.b16 %v582, %v582
  %v619 = vpack.c.b16 %v583, %v583
  %v620 = vpack.c.b16 %v584, %v584
  %v621 = vpack.c.b16 %v585, %v585
  %v622 = vpack.c.b16 %v586, %v586
  %v623 = vpack.c.b16 %v587, %v587
  %v624 = vpack.c.b16 %v588, %v588
  %661 = vst [vmem:[%s2] sm:$0xf] %v589
  %662 = vst [vmem:[%s2 + $0x4] sm:$0xf] %v590
  %663 = vst [vmem:[%s2 + $0x8] sm:$0xf] %v591
  %664 = vst [vmem:[%s2 + $0xc] sm:$0xf] %v592
  %665 = vst [vmem:[%s2 + $0x10] sm:$0xf] %v593
  %666 = vst [vmem:[%s2 + $0x14] sm:$0xf] %v594
  %667 = vst [vmem:[%s2 + $0x18] sm:$0xf] %v595
  %668 = vst [vmem:[%s2 + $0x1c] sm:$0xf] %v596
  %669 = vst [vmem:[%s2 + $0x20] sm:$0xf] %v597
  %670 = vst [vmem:[%s2 + $0x24] sm:$0xf] %v598
  %671 = vst [vmem:[%s2 + $0x28] sm:$0xf] %v599
  %672 = vst [vmem:[%s2 + $0x2c] sm:$0xf] %v600
  %673 = vst [vmem:[%s2 + $0x30] sm:$0xf] %v601
  %674 = vst [vmem:[%s2 + $0x34] sm:$0xf] %v602
  %675 = vst [vmem:[%s2 + $0x38] sm:$0xf] %v603
  %676 = vst [vmem:[%s2 + $0x3c] sm:$0xf] %v604
  %677 = vst [vmem:[%s2 + $0x40] sm:$0xf] %v605
  %678 = vst [vmem:[%s2 + $0x44] sm:$0xf] %v606
  %679 = vst [vmem:[%s2 + $0x48] sm:$0xf] %v607
  %680 = vst [vmem:[%s2 + $0x4c] sm:$0xf] %v608
  %681 = vst [vmem:[%s2 + $0x50] sm:$0xf] %v609
  %682 = vst [vmem:[%s2 + $0x54] sm:$0xf] %v610
  %683 = vst [vmem:[%s2 + $0x58] sm:$0xf] %v611
  %684 = vst [vmem:[%s2 + $0x5c] sm:$0xf] %v612
  %685 = vst [vmem:[%s2 + $0x60] sm:$0xf] %v613
  %686 = vst [vmem:[%s2 + $0x64] sm:$0xf] %v614
  %687 = vst [vmem:[%s2 + $0x68] sm:$0xf] %v615
  %688 = vst [vmem:[%s2 + $0x6c] sm:$0xf] %v616
  %689 = vst [vmem:[%s2 + $0x70] sm:$0xf] %v617
  %690 = vst [vmem:[%s2 + $0x74] sm:$0xf] %v618
  %691 = vst [vmem:[%s2 + $0x78] sm:$0xf] %v619
  %692 = vst [vmem:[%s2 + $0x7c] sm:$0xf] %v620
  %693 = vst [vmem:[%s2 + $0x80] sm:$0xf] %v621
  %694 = vst [vmem:[%s2 + $0x84] sm:$0xf] %v622
  %695 = vst [vmem:[%s2 + $0x88] sm:$0xf] %v623
  %696 = vst [vmem:[%s2 + $0x8c] sm:$0xf] %v624
  %v697 = vadd.f32 %v375, %v378
  %v698 = vadd.f32 %v697, %v383
  %v699 = vadd.f32 %v698, %v386
  %v700 = vadd.f32 %v699, %v391
  %v701 = vadd.f32 %v700, %v394
  %v702 = vadd.f32 %v701, %v399
  %v703 = vadd.f32 %v702, %v402
  %v704 = vadd.f32 %v703, %v407
  %v705 = vadd.f32 %v704, %v410
  %v706 = vadd.f32 %v705, %v415
  %v707 = vadd.f32 %v706, %v418
  %v708 = vadd.f32 %v707, %v423
  %v709 = vadd.f32 %v708, %v426
  %v710 = vadd.f32 %v709, %v431
  %v711 = vadd.f32 %v710, %v434
  %v712 = vadd.f32 %v711, %v439
  %v713 = vadd.f32 %v712, %v442
  %v714 = vadd.f32 %v713, %v447
  %v715 = vadd.f32 %v714, %v450
  %v716 = vadd.f32 %v715, %v455
  %v717 = vadd.f32 %v716, %v458
  %v718 = vadd.f32 %v717, %v463
  %v719 = vadd.f32 %v718, %v466
  %v720 = vadd.f32 %v719, %v471
  %v721 = vadd.f32 %v720, %v474
  %v722 = vadd.f32 %v721, %v479
  %v723 = vadd.f32 %v722, %v482
  %v724 = vadd.f32 %v723, %v487
  %v725 = vadd.f32 %v724, %v490
  %v726 = vadd.f32 %v725, %v495
  %v727 = vadd.f32 %v726, %v498
  %v728 = vadd.f32 %v727, %v503
  %v729 = vadd.f32 %v728, %v506
  %v730 = vadd.f32 %v729, %v511
  %v731 = vadd.f32 %v730, %v514
  %v732 = vrot.slane %v731, 4
  %v733 = vadd.f32 %v731, %v732
  %v734 = vrot.slane %v733, 2
  %v735 = vadd.f32 %v733, %v734
  %v736 = vrot.slane %v735, 1
  %v737 = vadd.f32 %v735, %v736
  %738 = vst [vmem:[%s3] sm:$0x1] %v737
  %v739 = vmul.f32 %v375, %v375
  %v740 = vmul.f32 %v378, %v378
  %v741 = vmul.f32 %v383, %v383
  %v742 = vmul.f32 %v386, %v386
  %v743 = vmul.f32 %v391, %v391
  %v744 = vmul.f32 %v394, %v394
  %v745 = vmul.f32 %v399, %v399
  %v746 = vmul.f32 %v402, %v402
  %v747 = vmul.f32 %v407, %v407
  %v748 = vmul.f32 %v410, %v410
  %v749 = vmul.f32 %v415, %v415
  %v750 = vmul.f32 %v418, %v418
  %v751 = vmul.f32 %v423, %v423
  %v752 = vmul.f32 %v426, %v426
  %v753 = vmul.f32 %v431, %v431
  %v754 = vmul.f32 %v434, %v434
  %v755 = vmul.f32 %v439, %v439
  %v756 = vmul.f32 %v442, %v442
  %v757 = vmul.f32 %v447, %v447
  %v758 = vmul.f32 %v450, %v450
  %v759 = vmul.f32 %v455, %v455
  %v760 = vmul.f32 %v458, %v458
  %v761 = vmul.f32 %v463, %v463
  %v762 = vmul.f32 %v466, %v466
  %v763 = vmul.f32 %v471, %v471
  %v764 = vmul.f32 %v474, %v474
  %v765 = vmul.f32 %v479, %v479
  %v766 = vmul.f32 %v482, %v482
  %v767 = vmul.f32 %v487, %v487
  %v768 = vmul.f32 %v490, %v490
  %v769 = vmul.f32 %v495, %v495
  %v770 = vmul.f32 %v498, %v498
  %v771 = vmul.f32 %v503, %v503
  %v772 = vmul.f32 %v506, %v506
  %v773 = vmul.f32 %v511, %v511
  %v774 = vmul.f32 %v514, %v514
  %v775 = vadd.f32 %v739, %v740
  %v776 = vadd.f32 %v775, %v741
  %v777 = vadd.f32 %v776, %v742
  %v778 = vadd.f32 %v777, %v743
  %v779 = vadd.f32 %v778, %v744
  %v780 = vadd.f32 %v779, %v745
  %v781 = vadd.f32 %v780, %v746
  %v782 = vadd.f32 %v781, %v747
  %v783 = vadd.f32 %v782, %v748
  %v784 = vadd.f32 %v783, %v749
  %v785 = vadd.f32 %v784, %v750
  %v786 = vadd.f32 %v785, %v751
  %v787 = vadd.f32 %v786, %v752
  %v788 = vadd.f32 %v787, %v753
  %v789 = vadd.f32 %v788, %v754
  %v790 = vadd.f32 %v789, %v755
  %v791 = vadd.f32 %v790, %v756
  %v792 = vadd.f32 %v791, %v757
  %v793 = vadd.f32 %v792, %v758
  %v794 = vadd.f32 %v793, %v759
  %v795 = vadd.f32 %v794, %v760
  %v796 = vadd.f32 %v795, %v761
  %v797 = vadd.f32 %v796, %v762
  %v798 = vadd.f32 %v797, %v763
  %v799 = vadd.f32 %v798, %v764
  %v800 = vadd.f32 %v799, %v765
  %v801 = vadd.f32 %v800, %v766
  %v802 = vadd.f32 %v801, %v767
  %v803 = vadd.f32 %v802, %v768
  %v804 = vadd.f32 %v803, %v769
  %v805 = vadd.f32 %v804, %v770
  %v806 = vadd.f32 %v805, %v771
  %v807 = vadd.f32 %v806, %v772
  %v808 = vadd.f32 %v807, %v773
  %v809 = vadd.f32 %v808, %v774
  %v810 = vrot.slane %v809, 4
  %v811 = vadd.f32 %v809, %v810
  %v812 = vrot.slane %v811, 2
  %v813 = vadd.f32 %v811, %v812
  %v814 = vrot.slane %v813, 1
  %v815 = vadd.f32 %v813, %v814
  %816 = vst [vmem:[%s4] sm:$0x1] %v815
  // Predicated region
  $region10: #{nn2_forward.10} parent=0 // pred_check
    _
  $region11: #{nn2_forward.10} parent=0 // pred_check_branch
    %818 = sbr.rel (0) target = $region13
  $region12: #{nn2_forward.10} parent=0 // pred_region
    _
  $region13: #{nn2_forward.10} parent=0 // pred_fallthru
    _
  // Predicated region
  $region14: #{nn2_forward.10} parent=0 // pred_check
    _
  $region15: #{nn2_forward.10} parent=0 // pred_check_branch
    %820 = sbr.rel (0) target = $region17
  $region16: #{nn2_forward.10} parent=0 // pred_region
    _
  $region17: #{nn2_forward.10} parent=0 // pred_fallthru
    _
  // Predicated region
  $region18: #{nn2_forward.10} parent=0 // pred_check
    _
  $region19: #{nn2_forward.10} parent=0 // pred_check_branch
    %822 = sbr.rel (0) target = $region21
  $region20: #{nn2_forward.10} parent=0 // pred_region
    _
  $region21: #{nn2_forward.10} parent=0 // pred_fallthru
    _
  // Predicated region
  $region22: #{nn2_forward.10} parent=0 // pred_check
    _
  $region23: #{nn2_forward.10} parent=0 // pred_check_branch
    %824 = sbr.rel (0) target = $region25
  $region24: #{nn2_forward.10} parent=0 // pred_region
    _
  $region25: #{nn2_forward.10} parent=0 // pred_fallthru
    _
  // Predicated region
  $region26: #{nn2_forward.10} parent=0 // pred_check
    _
  $region27: #{nn2_forward.10} parent=0 // pred_check_branch
    %826 = sbr.rel (0) target = $region29
  $region28: #{nn2_forward.10} parent=0 // pred_region
    _
  $region29: #{nn2_forward.10} parent=0 // pred_fallthru
    _
  // Predicated region
  $region30: #{nn2_forward.10} parent=0 // pred_check
    _
  $region31: #{nn2_forward.10} parent=0 // pred_check_branch
    %828 = sbr.rel (0) target = $region33
  $region32: #{nn2_forward.10} parent=0 // pred_region
    _
  $region33: #{nn2_forward.10} parent=0 // pred_fallthru
    _

// kernel: nn2_forward.13
$region0: #{nn2_forward.13}
  #allocation0 [shape = 'u32[]', space=smem, size = 0x4, offset = 0x4, fixed_abs, tag = 'smem constant byte address 0x4 - core index']
  #allocation1 [shape = 'u32[144,128]{1,0:T(1,128)}', space=vmem, size = 0x12000, scoped, tag = 'internal scratch']
  %s0 = inlined_call_operand.vmem [shape: bf16[128,128], index: 0, kind: input, shape index: {}]
  %s1 = inlined_call_operand.vmem [shape: f32[1,128], index: 1, kind: input, shape index: {}]
  %s2 = inlined_call_operand.vmem [shape: f32[1,128], index: 2, kind: input, shape index: {}]
  %s3 = inlined_call_operand.vmem [shape: bf16[128,128], index: 3, kind: output, shape index: {}]
  %s4 = sld [smem:[#allocation0]]
  $region22: #{nn2_forward.13} parent=0
    _
  %s6 = ssub.s32 1, %s4
  %s7 = scalar_select 0, %s6, %s4
  // Predicated region
  $region2: #{nn2_forward.13} parent=0 // pred_check
    _
  $region3: #{nn2_forward.13} parent=0 // pred_check_branch
    %9 = sbr.rel (0) target = $region5
  $region4: #{nn2_forward.13} parent=0 // pred_region
    _
  $region5: #{nn2_forward.13} parent=0 // pred_fallthru
    _
  // Predicated region
  $region6: #{nn2_forward.13} parent=0 // pred_check
    _
  $region7: #{nn2_forward.13} parent=0 // pred_check_branch
    %11 = sbr.rel (0) target = $region9
  $region8: #{nn2_forward.13} parent=0 // pred_region
    _
  $region9: #{nn2_forward.13} parent=0 // pred_fallthru
    _
  // Predicated region
  $region10: #{nn2_forward.13} parent=0 // pred_check
    _
  $region11: #{nn2_forward.13} parent=0 // pred_check_branch
    %13 = sbr.rel (0) target = $region13
  $region12: #{nn2_forward.13} parent=0 // pred_region
    _
  $region13: #{nn2_forward.13} parent=0 // pred_fallthru
    _
  %v14 = vld [vmem:[%s0] sm:$0xf]
  %v15 = vld [vmem:[%s0 + $0x4] sm:$0xf]
  %v16 = vld [vmem:[%s0 + $0x8] sm:$0xf]
  %v17 = vld [vmem:[%s0 + $0xc] sm:$0xf]
  %v18 = vld [vmem:[%s0 + $0x10] sm:$0xf]
  %v19 = vld [vmem:[%s0 + $0x14] sm:$0xf]
  %v20 = vld [vmem:[%s0 + $0x18] sm:$0xf]
  %v21 = vld [vmem:[%s0 + $0x1c] sm:$0xf]
  %v22 = vld [vmem:[%s0 + $0x20] sm:$0xf]
  %v23 = vld [vmem:[%s0 + $0x24] sm:$0xf]
  %v24 = vld [vmem:[%s0 + $0x28] sm:$0xf]
  %v25 = vld [vmem:[%s0 + $0x2c] sm:$0xf]
  %v26 = vld [vmem:[%s0 + $0x30] sm:$0xf]
  %v27 = vld [vmem:[%s0 + $0x34] sm:$0xf]
  %v28 = vld [vmem:[%s0 + $0x38] sm:$0xf]
  %v29 = vld [vmem:[%s0 + $0x3c] sm:$0xf]
  %v30 = vunpack.c.l.bf16 %v14
  %v31 = vunpack.c.l.bf16 %v15
  %v32 = vunpack.c.l.bf16 %v16
  %v33 = vunpack.c.l.bf16 %v17
  %v34 = vunpack.c.l.bf16 %v18
  %v35 = vunpack.c.l.bf16 %v19
  %v36 = vunpack.c.l.bf16 %v20
  %v37 = vunpack.c.l.bf16 %v21
  %v38 = vunpack.c.l.bf16 %v22
  %v39 = vunpack.c.l.bf16 %v23
  %v40 = vunpack.c.l.bf16 %v24
  %v41 = vunpack.c.l.bf16 %v25
  %v42 = vunpack.c.l.bf16 %v26
  %v43 = vunpack.c.l.bf16 %v27
  %v44 = vunpack.c.l.bf16 %v28
  %v45 = vunpack.c.l.bf16 %v29
  %v46 = vld [vmem:[%s1] sm:$0x1]
  %v48 = vlaneseq
  %v49 = vshrl.u32 %v48, 7
  %v50 = vsub.s32 0, %v49
  %v51 = vrot.slane %v46, %v50
  %v53 = vmul.f32 %v30, %v51
  %v54 = vmul.f32 %v31, %v51
  %v55 = vmul.f32 %v32, %v51
  %v56 = vmul.f32 %v33, %v51
  %v57 = vmul.f32 %v34, %v51
  %v58 = vmul.f32 %v35, %v51
  %v59 = vmul.f32 %v36, %v51
  %v60 = vmul.f32 %v37, %v51
  %v61 = vmul.f32 %v38, %v51
  %v62 = vmul.f32 %v39, %v51
  %v63 = vmul.f32 %v40, %v51
  %v64 = vmul.f32 %v41, %v51
  %v65 = vmul.f32 %v42, %v51
  %v66 = vmul.f32 %v43, %v51
  %v67 = vmul.f32 %v44, %v51
  %v68 = vmul.f32 %v45, %v51
  %v69 = vld [vmem:[%s2] sm:$0x1]
  %v71 = vlaneseq
  %v72 = vshrl.u32 %v71, 7
  %v73 = vsub.s32 0, %v72
  %v74 = vrot.slane %v69, %v73
  %v76 = vadd.f32 %v53, %v74
  %v77 = vadd.f32 %v54, %v74
  %v78 = vadd.f32 %v55, %v74
  %v79 = vadd.f32 %v56, %v74
  %v80 = vadd.f32 %v57, %v74
  %v81 = vadd.f32 %v58, %v74
  %v82 = vadd.f32 %v59, %v74
  %v83 = vadd.f32 %v60, %v74
  %v84 = vadd.f32 %v61, %v74
  %v85 = vadd.f32 %v62, %v74
  %v86 = vadd.f32 %v63, %v74
  %v87 = vadd.f32 %v64, %v74
  %v88 = vadd.f32 %v65, %v74
  %v89 = vadd.f32 %v66, %v74
  %v90 = vadd.f32 %v67, %v74
  %v91 = vadd.f32 %v68, %v74
  %v92 = vlaneseq
  %v93 = vand.u32 %v92, 127
  %vm94 = vcmp.lt.s32.totalorder %v93, 64
  %v95 = vsel %vm94, %v76, -1e+30
  %v96 = vsel %vm94, %v77, -1e+30
  %v97 = vsel %vm94, %v78, -1e+30
  %v98 = vsel %vm94, %v79, -1e+30
  %v99 = vsel %vm94, %v80, -1e+30
  %v100 = vsel %vm94, %v81, -1e+30
  %v101 = vsel %vm94, %v82, -1e+30
  %v102 = vsel %vm94, %v83, -1e+30
  %v103 = vsel %vm94, %v84, -1e+30
  %v104 = vsel %vm94, %v85, -1e+30
  %v105 = vsel %vm94, %v86, -1e+30
  %v106 = vsel %vm94, %v87, -1e+30
  %v107 = vsel %vm94, %v88, -1e+30
  %v108 = vsel %vm94, %v89, -1e+30
  %v109 = vsel %vm94, %v90, -1e+30
  %v110 = vsel %vm94, %v91, -1e+30
  %111 = vmax.xlane.f32.xlu0 %v95
  %v112 = vpop.xlane.xlu0 %111
  %113 = vmax.xlane.f32.xlu0 %v96
  %v114 = vpop.xlane.xlu0 %113
  %115 = vmax.xlane.f32.xlu0 %v97
  %v116 = vpop.xlane.xlu0 %115
  %117 = vmax.xlane.f32.xlu0 %v98
  %v118 = vpop.xlane.xlu0 %117
  %119 = vmax.xlane.f32.xlu0 %v99
  %v120 = vpop.xlane.xlu0 %119
  %121 = vmax.xlane.f32.xlu0 %v100
  %v122 = vpop.xlane.xlu0 %121
  %123 = vmax.xlane.f32.xlu0 %v101
  %v124 = vpop.xlane.xlu0 %123
  %125 = vmax.xlane.f32.xlu0 %v102
  %v126 = vpop.xlane.xlu0 %125
  %127 = vmax.xlane.f32.xlu0 %v103
  %v128 = vpop.xlane.xlu0 %127
  %129 = vmax.xlane.f32.xlu0 %v104
  %v130 = vpop.xlane.xlu0 %129
  %131 = vmax.xlane.f32.xlu0 %v105
  %v132 = vpop.xlane.xlu0 %131
  %133 = vmax.xlane.f32.xlu0 %v106
  %v134 = vpop.xlane.xlu0 %133
  %135 = vmax.xlane.f32.xlu0 %v107
  %v136 = vpop.xlane.xlu0 %135
  %137 = vmax.xlane.f32.xlu0 %v108
  %v138 = vpop.xlane.xlu0 %137
  %139 = vmax.xlane.f32.xlu0 %v109
  %v140 = vpop.xlane.xlu0 %139
  %141 = vmax.xlane.f32.xlu0 %v110
  %v142 = vpop.xlane.xlu0 %141
  %v143 = vsub.f32 %v95, %v112
  %v144 = vsub.f32 %v96, %v114
  %v145 = vsub.f32 %v97, %v116
  %v146 = vsub.f32 %v98, %v118
  %v147 = vsub.f32 %v99, %v120
  %v148 = vsub.f32 %v100, %v122
  %v149 = vsub.f32 %v101, %v124
  %v150 = vsub.f32 %v102, %v126
  %v151 = vsub.f32 %v103, %v128
  %v152 = vsub.f32 %v104, %v130
  %v153 = vsub.f32 %v105, %v132
  %v154 = vsub.f32 %v106, %v134
  %v155 = vsub.f32 %v107, %v136
  %v156 = vsub.f32 %v108, %v138
  %v157 = vsub.f32 %v109, %v140
  %v158 = vsub.f32 %v110, %v142
  %v159 = vmul.f32 %v143, 1.442695
  %v160 = vpow.pop %v159
  %v161 = vmul.f32 %v144, 1.442695
  %v162 = vpow.pop %v161
  %v163 = vmul.f32 %v145, 1.442695
  %v164 = vpow.pop %v163
  %v165 = vmul.f32 %v146, 1.442695
  %v166 = vpow.pop %v165
  %v167 = vmul.f32 %v147, 1.442695
  %v168 = vpow.pop %v167
  %v169 = vmul.f32 %v148, 1.442695
  %v170 = vpow.pop %v169
  %v171 = vmul.f32 %v149, 1.442695
  %v172 = vpow.pop %v171
  %v173 = vmul.f32 %v150, 1.442695
  %v174 = vpow.pop %v173
  %v175 = vmul.f32 %v151, 1.442695
  %v176 = vpow.pop %v175
  %v177 = vmul.f32 %v152, 1.442695
  %v178 = vpow.pop %v177
  %v179 = vmul.f32 %v153, 1.442695
  %v180 = vpow.pop %v179
  %v181 = vmul.f32 %v154, 1.442695
  %v182 = vpow.pop %v181
  %v183 = vmul.f32 %v155, 1.442695
  %v184 = vpow.pop %v183
  %v185 = vmul.f32 %v156, 1.442695
  %v186 = vpow.pop %v185
  %v187 = vmul.f32 %v157, 1.442695
  %v188 = vpow.pop %v187
  %v189 = vmul.f32 %v158, 1.442695
  %v190 = vpow.pop %v189
  %191 = vadd.xlane.f32.xlu0 %v160
  %v192 = vpop.xlane.xlu0 %191
  %193 = vadd.xlane.f32.xlu0 %v162
  %v194 = vpop.xlane.xlu0 %193
  %195 = vadd.xlane.f32.xlu0 %v164
  %v196 = vpop.xlane.xlu0 %195
  %197 = vadd.xlane.f32.xlu0 %v166
  %v198 = vpop.xlane.xlu0 %197
  %199 = vadd.xlane.f32.xlu0 %v168
  %v200 = vpop.xlane.xlu0 %199
  %201 = vadd.xlane.f32.xlu0 %v170
  %v202 = vpop.xlane.xlu0 %201
  %203 = vadd.xlane.f32.xlu0 %v172
  %v204 = vpop.xlane.xlu0 %203
  %205 = vadd.xlane.f32.xlu0 %v174
  %v206 = vpop.xlane.xlu0 %205
  %207 = vadd.xlane.f32.xlu0 %v176
  %v208 = vpop.xlane.xlu0 %207
  %209 = vadd.xlane.f32.xlu0 %v178
  %v210 = vpop.xlane.xlu0 %209
  %211 = vadd.xlane.f32.xlu0 %v180
  %v212 = vpop.xlane.xlu0 %211
  %213 = vadd.xlane.f32.xlu0 %v182
  %v214 = vpop.xlane.xlu0 %213
  %215 = vadd.xlane.f32.xlu0 %v184
  %v216 = vpop.xlane.xlu0 %215
  %217 = vadd.xlane.f32.xlu0 %v186
  %v218 = vpop.xlane.xlu0 %217
  %219 = vadd.xlane.f32.xlu0 %v188
  %v220 = vpop.xlane.xlu0 %219
  %221 = vadd.xlane.f32.xlu0 %v190
  %v222 = vpop.xlane.xlu0 %221
  %v223 = vlog2.pop %v192
  %v224 = vmul.f32 %v223, 0.6931472
  %v225 = vlog2.pop %v194
  %v226 = vmul.f32 %v225, 0.6931472
  %v227 = vlog2.pop %v196
  %v228 = vmul.f32 %v227, 0.6931472
  %v229 = vlog2.pop %v198
  %v230 = vmul.f32 %v229, 0.6931472
  %v231 = vlog2.pop %v200
  %v232 = vmul.f32 %v231, 0.6931472
  %v233 = vlog2.pop %v202
  %v234 = vmul.f32 %v233, 0.6931472
  %v235 = vlog2.pop %v204
  %v236 = vmul.f32 %v235, 0.6931472
  %v237 = vlog2.pop %v206
  %v238 = vmul.f32 %v237, 0.6931472
  %v239 = vlog2.pop %v208
  %v240 = vmul.f32 %v239, 0.6931472
  %v241 = vlog2.pop %v210
  %v242 = vmul.f32 %v241, 0.6931472
  %v243 = vlog2.pop %v212
  %v244 = vmul.f32 %v243, 0.6931472
  %v245 = vlog2.pop %v214
  %v246 = vmul.f32 %v245, 0.6931472
  %v247 = vlog2.pop %v216
  %v248 = vmul.f32 %v247, 0.6931472
  %v249 = vlog2.pop %v218
  %v250 = vmul.f32 %v249, 0.6931472
  %v251 = vlog2.pop %v220
  %v252 = vmul.f32 %v251, 0.6931472
  %v253 = vlog2.pop %v222
  %v254 = vmul.f32 %v253, 0.6931472
  %v255 = vsub.f32 %v143, %v224
  %v256 = vsub.f32 %v144, %v226
  %v257 = vsub.f32 %v145, %v228
  %v258 = vsub.f32 %v146, %v230
  %v259 = vsub.f32 %v147, %v232
  %v260 = vsub.f32 %v148, %v234
  %v261 = vsub.f32 %v149, %v236
  %v262 = vsub.f32 %v150, %v238
  %v263 = vsub.f32 %v151, %v240
  %v264 = vsub.f32 %v152, %v242
  %v265 = vsub.f32 %v153, %v244
  %v266 = vsub.f32 %v154, %v246
  %v267 = vsub.f32 %v155, %v248
  %v268 = vsub.f32 %v156, %v250
  %v269 = vsub.f32 %v157, %v252
  %v270 = vsub.f32 %v158, %v254
  %v271 = vsel %vm94, %v255, 0.0
  %v272 = vsel %vm94, %v256, 0.0
  %v273 = vsel %vm94, %v257, 0.0
  %v274 = vsel %vm94, %v258, 0.0
  %v275 = vsel %vm94, %v259, 0.0
  %v276 = vsel %vm94, %v260, 0.0
  %v277 = vsel %vm94, %v261, 0.0
  %v278 = vsel %vm94, %v262, 0.0
  %v279 = vsel %vm94, %v263, 0.0
  %v280 = vsel %vm94, %v264, 0.0
  %v281 = vsel %vm94, %v265, 0.0
  %v282 = vsel %vm94, %v266, 0.0
  %v283 = vsel %vm94, %v267, 0.0
  %v284 = vsel %vm94, %v268, 0.0
  %v285 = vsel %vm94, %v269, 0.0
  %v286 = vsel %vm94, %v270, 0.0
  %v287 = vpack.c.bf16 %v272, %v271
  %v288 = vpack.c.bf16 %v274, %v273
  %v289 = vpack.c.bf16 %v276, %v275
  %v290 = vpack.c.bf16 %v278, %v277
  %v291 = vpack.c.bf16 %v280, %v279
  %v292 = vpack.c.bf16 %v282, %v281
  %v293 = vpack.c.bf16 %v284, %v283
  %v294 = vpack.c.bf16 %v286, %v285
  %v303 = vunpack.c.l.b16 %v287
  %v304 = vunpack.c.h.b16 %v287
  %v305 = vunpack.c.l.b16 %v288
  %v306 = vunpack.c.h.b16 %v288
  %v307 = vunpack.c.l.b16 %v289
  %v308 = vunpack.c.h.b16 %v289
  %v309 = vunpack.c.l.b16 %v290
  %v310 = vunpack.c.h.b16 %v290
  %v311 = vunpack.c.l.b16 %v291
  %v312 = vunpack.c.h.b16 %v291
  %v313 = vunpack.c.l.b16 %v292
  %v314 = vunpack.c.h.b16 %v292
  %v315 = vunpack.c.l.b16 %v293
  %v316 = vunpack.c.h.b16 %v293
  %v317 = vunpack.c.l.b16 %v294
  %v318 = vunpack.c.h.b16 %v294
  %v319 = vpack.c.b16 %v303, %v303
  %v320 = vpack.c.b16 %v304, %v304
  %v321 = vpack.c.b16 %v305, %v305
  %v322 = vpack.c.b16 %v306, %v306
  %v323 = vpack.c.b16 %v307, %v307
  %v324 = vpack.c.b16 %v308, %v308
  %v325 = vpack.c.b16 %v309, %v309
  %v326 = vpack.c.b16 %v310, %v310
  %v327 = vpack.c.b16 %v311, %v311
  %v328 = vpack.c.b16 %v312, %v312
  %v329 = vpack.c.b16 %v313, %v313
  %v330 = vpack.c.b16 %v314, %v314
  %v331 = vpack.c.b16 %v315, %v315
  %v332 = vpack.c.b16 %v316, %v316
  %v333 = vpack.c.b16 %v317, %v317
  %v334 = vpack.c.b16 %v318, %v318
  %351 = vst [vmem:[%s3] sm:$0xf] %v319
  %352 = vst [vmem:[%s3 + $0x4] sm:$0xf] %v320
  %353 = vst [vmem:[%s3 + $0x8] sm:$0xf] %v321
  %354 = vst [vmem:[%s3 + $0xc] sm:$0xf] %v322
  %355 = vst [vmem:[%s3 + $0x10] sm:$0xf] %v323
  %356 = vst [vmem:[%s3 + $0x14] sm:$0xf] %v324
  %357 = vst [vmem:[%s3 + $0x18] sm:$0xf] %v325
  %358 = vst [vmem:[%s3 + $0x1c] sm:$0xf] %v326
  %359 = vst [vmem:[%s3 + $0x20] sm:$0xf] %v327
  %360 = vst [vmem:[%s3 + $0x24] sm:$0xf] %v328
  %361 = vst [vmem:[%s3 + $0x28] sm:$0xf] %v329
  %362 = vst [vmem:[%s3 + $0x2c] sm:$0xf] %v330
  %363 = vst [vmem:[%s3 + $0x30] sm:$0xf] %v331
  %364 = vst [vmem:[%s3 + $0x34] sm:$0xf] %v332
  %365 = vst [vmem:[%s3 + $0x38] sm:$0xf] %v333
  %366 = vst [vmem:[%s3 + $0x3c] sm:$0xf] %v334
  // Predicated region
  $region14: #{nn2_forward.13} parent=0 // pred_check
    _
  $region15: #{nn2_forward.13} parent=0 // pred_check_branch
    %368 = sbr.rel (0) target = $region17
  $region16: #{nn2_forward.13} parent=0 // pred_region
    _
  $region17: #{nn2_forward.13} parent=0 // pred_fallthru
    _
  // Predicated region
  $region18: #{nn2_forward.13} parent=0 // pred_check
    _
  $region19: #{nn2_forward.13} parent=0 // pred_check_branch
    %370 = sbr.rel (0) target = $region21
  $region20: #{nn2_forward.13} parent=0 // pred_region
    _
  $region21: #{nn2_forward.13} parent=0 // pred_fallthru
    _

// kernel: nn2_forward.12
$region0: #{nn2_forward.12}
  #allocation0 [shape = 'u32[]', space=smem, size = 0x4, offset = 0x4, fixed_abs, tag = 'smem constant byte address 0x4 - core index']
  #allocation1 [shape = 'u32[144,128]{1,0:T(1,128)}', space=vmem, size = 0x12000, scoped, tag = 'internal scratch']
  %s0 = inlined_call_operand.vmem [shape: bf16[128,800], index: 0, kind: input, shape index: {}]
  %s1 = inlined_call_operand.vmem [shape: bf16[800,128], index: 1, kind: input, shape index: {}]
  %s2 = inlined_call_operand.vmem [shape: bf16[128,128], index: 2, kind: output, shape index: {0}]
  %s3 = inlined_call_operand.vmem [shape: f32[1,1,128], index: 3, kind: output, shape index: {1}]
  %s4 = inlined_call_operand.vmem [shape: f32[1,1,128], index: 4, kind: output, shape index: {2}]
  %5 = xla_tuple %s2, %s3, %s4
  %s6 = sld [smem:[#allocation0]]
  $region34: #{nn2_forward.12} parent=0
    _
  %s8 = ssub.s32 1, %s6
  %s9 = scalar_select 0, %s8, %s6
  // Predicated region
  $region2: #{nn2_forward.12} parent=0 // pred_check
    _
  $region3: #{nn2_forward.12} parent=0 // pred_check_branch
    %11 = sbr.rel (0) target = $region5
  $region4: #{nn2_forward.12} parent=0 // pred_region
    _
  $region5: #{nn2_forward.12} parent=0 // pred_fallthru
    _
  // Predicated region
  $region6: #{nn2_forward.12} parent=0 // pred_check
    _
  $region7: #{nn2_forward.12} parent=0 // pred_check_branch
    %13 = sbr.rel (0) target = $region9
  $region8: #{nn2_forward.12} parent=0 // pred_region
    _
  $region9: #{nn2_forward.12} parent=0 // pred_fallthru
    _
  %v15 = vld [vmem:[%s0] sm:$0xff]
  %v16 = vld [vmem:[%s0 + $0x8] sm:$0xff]
  %v17 = vld [vmem:[%s0 + $0x10] sm:$0xff]
  %v18 = vld [vmem:[%s0 + $0x18] sm:$0xf]
  %v19 = vld [vmem:[%s0 + $0x1c] sm:$0xff]
  %v20 = vld [vmem:[%s0 + $0x24] sm:$0xff]
  %v21 = vld [vmem:[%s0 + $0x2c] sm:$0xff]
  %v22 = vld [vmem:[%s0 + $0x34] sm:$0xf]
  %v23 = vld [vmem:[%s0 + $0x38] sm:$0xff]
  %v24 = vld [vmem:[%s0 + $0x40] sm:$0xff]
  %v25 = vld [vmem:[%s0 + $0x48] sm:$0xff]
  %v26 = vld [vmem:[%s0 + $0x50] sm:$0xf]
  %v27 = vld [vmem:[%s0 + $0x54] sm:$0xff]
  %v28 = vld [vmem:[%s0 + $0x5c] sm:$0xff]
  %v29 = vld [vmem:[%s0 + $0x64] sm:$0xff]
  %v30 = vld [vmem:[%s0 + $0x6c] sm:$0xf]
  %v31 = vld [vmem:[%s0 + $0x70] sm:$0xff]
  %v32 = vld [vmem:[%s0 + $0x78] sm:$0xff]
  %v33 = vld [vmem:[%s0 + $0x80] sm:$0xff]
  %v34 = vld [vmem:[%s0 + $0x88] sm:$0xf]
  %v35 = vld [vmem:[%s0 + $0x8c] sm:$0xff]
  %v36 = vld [vmem:[%s0 + $0x94] sm:$0xff]
  %v37 = vld [vmem:[%s0 + $0x9c] sm:$0xff]
  %v38 = vld [vmem:[%s0 + $0xa4] sm:$0xf]
  %v39 = vld [vmem:[%s0 + $0xa8] sm:$0xff]
  %v40 = vld [vmem:[%s0 + $0xb0] sm:$0xff]
  %v41 = vld [vmem:[%s0 + $0xb8] sm:$0xff]
  %v42 = vld [vmem:[%s0 + $0xc0] sm:$0xf]
  %v43 = vld [vmem:[%s0 + $0xc4] sm:$0xff]
  %v44 = vld [vmem:[%s0 + $0xcc] sm:$0xff]
  %v45 = vld [vmem:[%s0 + $0xd4] sm:$0xff]
  %v46 = vld [vmem:[%s0 + $0xdc] sm:$0xf]
  %v47 = vld [vmem:[%s0 + $0xe0] sm:$0xff]
  %v48 = vld [vmem:[%s0 + $0xe8] sm:$0xff]
  %v49 = vld [vmem:[%s0 + $0xf0] sm:$0xff]
  %v50 = vld [vmem:[%s0 + $0xf8] sm:$0xf]
  %v51 = vld [vmem:[%s0 + $0xfc] sm:$0xff]
  %v52 = vld [vmem:[%s0 + $0x104] sm:$0xff]
  %v53 = vld [vmem:[%s0 + $0x10c] sm:$0xff]
  %v54 = vld [vmem:[%s0 + $0x114] sm:$0xf]
  %v55 = vld [vmem:[%s0 + $0x118] sm:$0xff]
  %v56 = vld [vmem:[%s0 + $0x120] sm:$0xff]
  %v57 = vld [vmem:[%s0 + $0x128] sm:$0xff]
  %v58 = vld [vmem:[%s0 + $0x130] sm:$0xf]
  %v59 = vld [vmem:[%s0 + $0x134] sm:$0xff]
  %v60 = vld [vmem:[%s0 + $0x13c] sm:$0xff]
  %v61 = vld [vmem:[%s0 + $0x144] sm:$0xff]
  %v62 = vld [vmem:[%s0 + $0x14c] sm:$0xf]
  %v63 = vld [vmem:[%s0 + $0x150] sm:$0xff]
  %v64 = vld [vmem:[%s0 + $0x158] sm:$0xff]
  %v65 = vld [vmem:[%s0 + $0x160] sm:$0xff]
  %v66 = vld [vmem:[%s0 + $0x168] sm:$0xf]
  %v67 = vld [vmem:[%s0 + $0x16c] sm:$0xff]
  %v68 = vld [vmem:[%s0 + $0x174] sm:$0xff]
  %v69 = vld [vmem:[%s0 + $0x17c] sm:$0xff]
  %v70 = vld [vmem:[%s0 + $0x184] sm:$0xf]
  %v71 = vld [vmem:[%s0 + $0x188] sm:$0xff]
  %v72 = vld [vmem:[%s0 + $0x190] sm:$0xff]
  %v73 = vld [vmem:[%s0 + $0x198] sm:$0xff]
  %v74 = vld [vmem:[%s0 + $0x1a0] sm:$0xf]
  %v75 = vld [vmem:[%s0 + $0x1a4] sm:$0xff]
  %v76 = vld [vmem:[%s0 + $0x1ac] sm:$0xff]
  %v77 = vld [vmem:[%s0 + $0x1b4] sm:$0xff]
  %v78 = vld [vmem:[%s0 + $0x1bc] sm:$0xf]
  %v79 = vld [vmem:[%s1] sm:$0xf]
  %v80 = vld [vmem:[%s1 + $0x4] sm:$0xf]
  %v81 = vld [vmem:[%s1 + $0x8] sm:$0xf]
  %v82 = vld [vmem:[%s1 + $0xc] sm:$0xf]
  %v83 = vld [vmem:[%s1 + $0x10] sm:$0xf]
  %v84 = vld [vmem:[%s1 + $0x14] sm:$0xf]
  %v85 = vld [vmem:[%s1 + $0x18] sm:$0xf]
  %v86 = vld [vmem:[%s1 + $0x1c] sm:$0xf]
  %v87 = vld [vmem:[%s1 + $0x20] sm:$0xf]
  %v88 = vld [vmem:[%s1 + $0x24] sm:$0xf]
  %v89 = vld [vmem:[%s1 + $0x28] sm:$0xf]
  %v90 = vld [vmem:[%s1 + $0x2c] sm:$0xf]
  %v91 = vld [vmem:[%s1 + $0x30] sm:$0xf]
  %v92 = vld [vmem:[%s1 + $0x34] sm:$0xf]
  %v93 = vld [vmem:[%s1 + $0x38] sm:$0xf]
  %v94 = vld [vmem:[%s1 + $0x3c] sm:$0xf]
  %v95 = vld [vmem:[%s1 + $0x40] sm:$0xf]
  %v96 = vld [vmem:[%s1 + $0x44] sm:$0xf]
  %v97 = vld [vmem:[%s1 + $0x48] sm:$0xf]
  %v98 = vld [vmem:[%s1 + $0x4c] sm:$0xf]
  %v99 = vld [vmem:[%s1 + $0x50] sm:$0xf]
  %v100 = vld [vmem:[%s1 + $0x54] sm:$0xf]
  %v101 = vld [vmem:[%s1 + $0x58] sm:$0xf]
  %v102 = vld [vmem:[%s1 + $0x5c] sm:$0xf]
  %v103 = vld [vmem:[%s1 + $0x60] sm:$0xf]
  %v104 = vld [vmem:[%s1 + $0x64] sm:$0xf]
  %v105 = vld [vmem:[%s1 + $0x68] sm:$0xf]
  %v106 = vld [vmem:[%s1 + $0x6c] sm:$0xf]
  %v107 = vld [vmem:[%s1 + $0x70] sm:$0xf]
  %v108 = vld [vmem:[%s1 + $0x74] sm:$0xf]
  %v109 = vld [vmem:[%s1 + $0x78] sm:$0xf]
  %v110 = vld [vmem:[%s1 + $0x7c] sm:$0xf]
  %v111 = vld [vmem:[%s1 + $0x80] sm:$0xf]
  %v112 = vld [vmem:[%s1 + $0x84] sm:$0xf]
  %v113 = vld [vmem:[%s1 + $0x88] sm:$0xf]
  %v114 = vld [vmem:[%s1 + $0x8c] sm:$0xf]
  %v115 = vld [vmem:[%s1 + $0x90] sm:$0xf]
  %v116 = vld [vmem:[%s1 + $0x94] sm:$0xf]
  %v117 = vld [vmem:[%s1 + $0x98] sm:$0xf]
  %v118 = vld [vmem:[%s1 + $0x9c] sm:$0xf]
  %v119 = vld [vmem:[%s1 + $0xa0] sm:$0xf]
  %v120 = vld [vmem:[%s1 + $0xa4] sm:$0xf]
  %v121 = vld [vmem:[%s1 + $0xa8] sm:$0xf]
  %v122 = vld [vmem:[%s1 + $0xac] sm:$0xf]
  %v123 = vld [vmem:[%s1 + $0xb0] sm:$0xf]
  %v124 = vld [vmem:[%s1 + $0xb4] sm:$0xf]
  %v125 = vld [vmem:[%s1 + $0xb8] sm:$0xf]
  %v126 = vld [vmem:[%s1 + $0xbc] sm:$0xf]
  %v127 = vld [vmem:[%s1 + $0xc0] sm:$0xf]
  %v128 = vld [vmem:[%s1 + $0xc4] sm:$0xf]
  %v129 = vld [vmem:[%s1 + $0xc8] sm:$0xf]
  %v130 = vld [vmem:[%s1 + $0xcc] sm:$0xf]
  %v131 = vld [vmem:[%s1 + $0xd0] sm:$0xf]
  %v132 = vld [vmem:[%s1 + $0xd4] sm:$0xf]
  %v133 = vld [vmem:[%s1 + $0xd8] sm:$0xf]
  %v134 = vld [vmem:[%s1 + $0xdc] sm:$0xf]
  %v135 = vld [vmem:[%s1 + $0xe0] sm:$0xf]
  %v136 = vld [vmem:[%s1 + $0xe4] sm:$0xf]
  %v137 = vld [vmem:[%s1 + $0xe8] sm:$0xf]
  %v138 = vld [vmem:[%s1 + $0xec] sm:$0xf]
  %v139 = vld [vmem:[%s1 + $0xf0] sm:$0xf]
  %v140 = vld [vmem:[%s1 + $0xf4] sm:$0xf]
  %v141 = vld [vmem:[%s1 + $0xf8] sm:$0xf]
  %v142 = vld [vmem:[%s1 + $0xfc] sm:$0xf]
  %v143 = vld [vmem:[%s1 + $0x100] sm:$0xf]
  %v144 = vld [vmem:[%s1 + $0x104] sm:$0xf]
  %v145 = vld [vmem:[%s1 + $0x108] sm:$0xf]
  %v146 = vld [vmem:[%s1 + $0x10c] sm:$0xf]
  %v147 = vld [vmem:[%s1 + $0x110] sm:$0xf]
  %v148 = vld [vmem:[%s1 + $0x114] sm:$0xf]
  %v149 = vld [vmem:[%s1 + $0x118] sm:$0xf]
  %v150 = vld [vmem:[%s1 + $0x11c] sm:$0xf]
  %v151 = vld [vmem:[%s1 + $0x120] sm:$0xf]
  %v152 = vld [vmem:[%s1 + $0x124] sm:$0xf]
  %v153 = vld [vmem:[%s1 + $0x128] sm:$0xf]
  %v154 = vld [vmem:[%s1 + $0x12c] sm:$0xf]
  %v155 = vld [vmem:[%s1 + $0x130] sm:$0xf]
  %v156 = vld [vmem:[%s1 + $0x134] sm:$0xf]
  %v157 = vld [vmem:[%s1 + $0x138] sm:$0xf]
  %v158 = vld [vmem:[%s1 + $0x13c] sm:$0xf]
  %v159 = vld [vmem:[%s1 + $0x140] sm:$0xf]
  %v160 = vld [vmem:[%s1 + $0x144] sm:$0xf]
  %v161 = vld [vmem:[%s1 + $0x148] sm:$0xf]
  %v162 = vld [vmem:[%s1 + $0x14c] sm:$0xf]
  %v163 = vld [vmem:[%s1 + $0x150] sm:$0xf]
  %v164 = vld [vmem:[%s1 + $0x154] sm:$0xf]
  %v165 = vld [vmem:[%s1 + $0x158] sm:$0xf]
  %v166 = vld [vmem:[%s1 + $0x15c] sm:$0xf]
  %v167 = vld [vmem:[%s1 + $0x160] sm:$0xf]
  %v168 = vld [vmem:[%s1 + $0x164] sm:$0xf]
  %v169 = vld [vmem:[%s1 + $0x168] sm:$0xf]
  %v170 = vld [vmem:[%s1 + $0x16c] sm:$0xf]
  %v171 = vld [vmem:[%s1 + $0x170] sm:$0xf]
  %v172 = vld [vmem:[%s1 + $0x174] sm:$0xf]
  %v173 = vld [vmem:[%s1 + $0x178] sm:$0xf]
  %v174 = vld [vmem:[%s1 + $0x17c] sm:$0xf]
  %v175 = vld [vmem:[%s1 + $0x180] sm:$0xf]
  %v176 = vld [vmem:[%s1 + $0x184] sm:$0xf]
  %v177 = vld [vmem:[%s1 + $0x188] sm:$0xf]
  %v178 = vld [vmem:[%s1 + $0x18c] sm:$0xf]
  %v243 = vunpack.c.l.b16 %v15
  %v244 = vunpack.c.h.b16 %v15
  %v245 = vunpack.c.l.b16 %v16
  %v246 = vunpack.c.h.b16 %v16
  %v247 = vunpack.c.l.b16 %v17
  %v248 = vunpack.c.h.b16 %v17
  %v249 = vunpack.c.l.b16 %v18
  %v250 = vunpack.c.l.b16 %v19
  %v251 = vunpack.c.h.b16 %v19
  %v252 = vunpack.c.l.b16 %v20
  %v253 = vunpack.c.h.b16 %v20
  %v254 = vunpack.c.l.b16 %v21
  %v255 = vunpack.c.h.b16 %v21
  %v256 = vunpack.c.l.b16 %v22
  %v257 = vunpack.c.l.b16 %v23
  %v258 = vunpack.c.h.b16 %v23
  %v259 = vunpack.c.l.b16 %v24
  %v260 = vunpack.c.h.b16 %v24
  %v261 = vunpack.c.l.b16 %v25
  %v262 = vunpack.c.h.b16 %v25
  %v263 = vunpack.c.l.b16 %v26
  %v264 = vunpack.c.l.b16 %v27
  %v265 = vunpack.c.h.b16 %v27
  %v266 = vunpack.c.l.b16 %v28
  %v267 = vunpack.c.h.b16 %v28
  %v268 = vunpack.c.l.b16 %v29
  %v269 = vunpack.c.h.b16 %v29
  %v270 = vunpack.c.l.b16 %v30
  %v271 = vunpack.c.l.b16 %v31
  %v272 = vunpack.c.h.b16 %v31
  %v273 = vunpack.c.l.b16 %v32
  %v274 = vunpack.c.h.b16 %v32
  %v275 = vunpack.c.l.b16 %v33
  %v276 = vunpack.c.h.b16 %v33
  %v277 = vunpack.c.l.b16 %v34
  %v278 = vunpack.c.l.b16 %v35
  %v279 = vunpack.c.h.b16 %v35
  %v280 = vunpack.c.l.b16 %v36
  %v281 = vunpack.c.h.b16 %v36
  %v282 = vunpack.c.l.b16 %v37
  %v283 = vunpack.c.h.b16 %v37
  %v284 = vunpack.c.l.b16 %v38
  %v285 = vunpack.c.l.b16 %v39
  %v286 = vunpack.c.h.b16 %v39
  %v287 = vunpack.c.l.b16 %v40
  %v288 = vunpack.c.h.b16 %v40
  %v289 = vunpack.c.l.b16 %v41
  %v290 = vunpack.c.h.b16 %v41
  %v291 = vunpack.c.l.b16 %v42
  %v292 = vunpack.c.l.b16 %v43
  %v293 = vunpack.c.h.b16 %v43
  %v294 = vunpack.c.l.b16 %v44
  %v295 = vunpack.c.h.b16 %v44
  %v296 = vunpack.c.l.b16 %v45
  %v297 = vunpack.c.h.b16 %v45
  %v298 = vunpack.c.l.b16 %v46
  %v299 = vunpack.c.l.b16 %v47
  %v300 = vunpack.c.h.b16 %v47
  %v301 = vunpack.c.l.b16 %v48
  %v302 = vunpack.c.h.b16 %v48
  %v303 = vunpack.c.l.b16 %v49
  %v304 = vunpack.c.h.b16 %v49
  %v305 = vunpack.c.l.b16 %v50
  %v306 = vunpack.c.l.b16 %v51
  %v307 = vunpack.c.h.b16 %v51
  %v308 = vunpack.c.l.b16 %v52
  %v309 = vunpack.c.h.b16 %v52
  %v310 = vunpack.c.l.b16 %v53
  %v311 = vunpack.c.h.b16 %v53
  %v312 = vunpack.c.l.b16 %v54
  %v313 = vunpack.c.l.b16 %v55
  %v314 = vunpack.c.h.b16 %v55
  %v315 = vunpack.c.l.b16 %v56
  %v316 = vunpack.c.h.b16 %v56
  %v317 = vunpack.c.l.b16 %v57
  %v318 = vunpack.c.h.b16 %v57
  %v319 = vunpack.c.l.b16 %v58
  %v320 = vunpack.c.l.b16 %v59
  %v321 = vunpack.c.h.b16 %v59
  %v322 = vunpack.c.l.b16 %v60
  %v323 = vunpack.c.h.b16 %v60
  %v324 = vunpack.c.l.b16 %v61
  %v325 = vunpack.c.h.b16 %v61
  %v326 = vunpack.c.l.b16 %v62
  %v327 = vunpack.c.l.b16 %v63
  %v328 = vunpack.c.h.b16 %v63
  %v329 = vunpack.c.l.b16 %v64
  %v330 = vunpack.c.h.b16 %v64
  %v331 = vunpack.c.l.b16 %v65
  %v332 = vunpack.c.h.b16 %v65
  %v333 = vunpack.c.l.b16 %v66
  %v334 = vunpack.c.l.b16 %v67
  %v335 = vunpack.c.h.b16 %v67
  %v336 = vunpack.c.l.b16 %v68
  %v337 = vunpack.c.h.b16 %v68
  %v338 = vunpack.c.l.b16 %v69
  %v339 = vunpack.c.h.b16 %v69
  %v340 = vunpack.c.l.b16 %v70
  %v341 = vunpack.c.l.b16 %v71
  %v342 = vunpack.c.h.b16 %v71
  %v343 = vunpack.c.l.b16 %v72
  %v344 = vunpack.c.h.b16 %v72
  %v345 = vunpack.c.l.b16 %v73
  %v346 = vunpack.c.h.b16 %v73
  %v347 = vunpack.c.l.b16 %v74
  %v348 = vunpack.c.l.b16 %v75
  %v349 = vunpack.c.h.b16 %v75
  %v350 = vunpack.c.l.b16 %v76
  %v351 = vunpack.c.h.b16 %v76
  %v352 = vunpack.c.l.b16 %v77
  %v353 = vunpack.c.h.b16 %v77
  %v354 = vunpack.c.l.b16 %v78
  %v355 = vpack.c.b16 %v250, %v243
  %v356 = vpack.c.b16 %v251, %v244
  %v357 = vpack.c.b16 %v252, %v245
  %v358 = vpack.c.b16 %v253, %v246
  %v359 = vpack.c.b16 %v254, %v247
  %v360 = vpack.c.b16 %v255, %v248
  %v361 = vpack.c.b16 %v256, %v249
  %v362 = vpack.c.b16 %v264, %v257
  %v363 = vpack.c.b16 %v265, %v258
  %v364 = vpack.c.b16 %v266, %v259
  %v365 = vpack.c.b16 %v267, %v260
  %v366 = vpack.c.b16 %v268, %v261
  %v367 = vpack.c.b16 %v269, %v262
  %v368 = vpack.c.b16 %v270, %v263
  %v369 = vpack.c.b16 %v278, %v271
  %v370 = vpack.c.b16 %v279, %v272
  %v371 = vpack.c.b16 %v280, %v273
  %v372 = vpack.c.b16 %v281, %v274
  %v373 = vpack.c.b16 %v282, %v275
  %v374 = vpack.c.b16 %v283, %v276
  %v375 = vpack.c.b16 %v284, %v277
  %v376 = vpack.c.b16 %v292, %v285
  %v377 = vpack.c.b16 %v293, %v286
  %v378 = vpack.c.b16 %v294, %v287
  %v379 = vpack.c.b16 %v295, %v288
  %v380 = vpack.c.b16 %v296, %v289
  %v381 = vpack.c.b16 %v297, %v290
  %v382 = vpack.c.b16 %v298, %v291
  %v383 = vpack.c.b16 %v306, %v299
  %v384 = vpack.c.b16 %v307, %v300
  %v385 = vpack.c.b16 %v308, %v301
  %v386 = vpack.c.b16 %v309, %v302
  %v387 = vpack.c.b16 %v310, %v303
  %v388 = vpack.c.b16 %v311, %v304
  %v389 = vpack.c.b16 %v312, %v305
  %v390 = vpack.c.b16 %v320, %v313
  %v391 = vpack.c.b16 %v321, %v314
  %v392 = vpack.c.b16 %v322, %v315
  %v393 = vpack.c.b16 %v323, %v316
  %v394 = vpack.c.b16 %v324, %v317
  %v395 = vpack.c.b16 %v325, %v318
  %v396 = vpack.c.b16 %v326, %v319
  %v397 = vpack.c.b16 %v334, %v327
  %v398 = vpack.c.b16 %v335, %v328
  %v399 = vpack.c.b16 %v336, %v329
  %v400 = vpack.c.b16 %v337, %v330
  %v401 = vpack.c.b16 %v338, %v331
  %v402 = vpack.c.b16 %v339, %v332
  %v403 = vpack.c.b16 %v340, %v333
  %v404 = vpack.c.b16 %v348, %v341
  %v405 = vpack.c.b16 %v349, %v342
  %v406 = vpack.c.b16 %v350, %v343
  %v407 = vpack.c.b16 %v351, %v344
  %v408 = vpack.c.b16 %v352, %v345
  %v409 = vpack.c.b16 %v353, %v346
  %v410 = vpack.c.b16 %v354, %v347
  %v559 = vunpack.c.l.b16 %v79
  %v560 = vunpack.c.l.b16 %v80
  %v561 = vunpack.c.l.b16 %v81
  %v562 = vunpack.c.l.b16 %v82
  %v563 = vunpack.c.l.b16 %v83
  %v564 = vunpack.c.l.b16 %v84
  %v565 = vunpack.c.l.b16 %v85
  %v566 = vunpack.c.l.b16 %v86
  %v567 = vunpack.c.l.b16 %v87
  %v568 = vunpack.c.l.b16 %v88
  %v569 = vunpack.c.l.b16 %v89
  %v570 = vunpack.c.l.b16 %v90
  %v571 = vunpack.c.l.b16 %v91
  %v572 = vunpack.c.l.b16 %v92
  %v573 = vunpack.c.l.b16 %v93
  %v574 = vunpack.c.l.b16 %v94
  %v575 = vunpack.c.l.b16 %v95
  %v576 = vunpack.c.l.b16 %v96
  %v577 = vunpack.c.l.b16 %v97
  %v578 = vunpack.c.l.b16 %v98
  %v579 = vunpack.c.l.b16 %v99
  %v580 = vunpack.c.l.b16 %v100
  %v581 = vunpack.c.l.b16 %v101
  %v582 = vunpack.c.l.b16 %v102
  %v583 = vunpack.c.l.b16 %v103
  %v584 = vunpack.c.l.b16 %v104
  %v585 = vunpack.c.l.b16 %v105
  %v586 = vunpack.c.l.b16 %v106
  %v587 = vunpack.c.l.b16 %v107
  %v588 = vunpack.c.l.b16 %v108
  %v589 = vunpack.c.l.b16 %v109
  %v590 = vunpack.c.l.b16 %v110
  %v591 = vunpack.c.l.b16 %v111
  %v592 = vunpack.c.l.b16 %v112
  %v593 = vunpack.c.l.b16 %v113
  %v594 = vunpack.c.l.b16 %v114
  %v595 = vunpack.c.l.b16 %v115
  %v596 = vunpack.c.l.b16 %v116
  %v597 = vunpack.c.l.b16 %v117
  %v598 = vunpack.c.l.b16 %v118
  %v599 = vunpack.c.l.b16 %v119
  %v600 = vunpack.c.l.b16 %v120
  %v601 = vunpack.c.l.b16 %v121
  %v602 = vunpack.c.l.b16 %v122
  %v603 = vunpack.c.l.b16 %v123
  %v604 = vunpack.c.l.b16 %v124
  %v605 = vunpack.c.l.b16 %v125
  %v606 = vunpack.c.l.b16 %v126
  %v607 = vunpack.c.l.b16 %v127
  %v608 = vunpack.c.l.b16 %v128
  %v609 = vunpack.c.l.b16 %v129
  %v610 = vunpack.c.l.b16 %v130
  %v611 = vunpack.c.l.b16 %v131
  %v612 = vunpack.c.l.b16 %v132
  %v613 = vunpack.c.l.b16 %v133
  %v614 = vunpack.c.l.b16 %v134
  %v615 = vunpack.c.l.b16 %v135
  %v616 = vunpack.c.l.b16 %v136
  %v617 = vunpack.c.l.b16 %v137
  %v618 = vunpack.c.l.b16 %v138
  %v619 = vunpack.c.l.b16 %v139
  %v620 = vunpack.c.l.b16 %v140
  %v621 = vunpack.c.l.b16 %v141
  %v622 = vunpack.c.l.b16 %v142
  %v623 = vunpack.c.l.b16 %v143
  %v624 = vunpack.c.l.b16 %v144
  %v625 = vunpack.c.l.b16 %v145
  %v626 = vunpack.c.l.b16 %v146
  %v627 = vunpack.c.l.b16 %v147
  %v628 = vunpack.c.l.b16 %v148
  %v629 = vunpack.c.l.b16 %v149
  %v630 = vunpack.c.l.b16 %v150
  %v631 = vunpack.c.l.b16 %v151
  %v632 = vunpack.c.l.b16 %v152
  %v633 = vunpack.c.l.b16 %v153
  %v634 = vunpack.c.l.b16 %v154
  %v635 = vunpack.c.l.b16 %v155
  %v636 = vunpack.c.l.b16 %v156
  %v637 = vunpack.c.l.b16 %v157
  %v638 = vunpack.c.l.b16 %v158
  %v639 = vunpack.c.l.b16 %v159
  %v640 = vunpack.c.l.b16 %v160
  %v641 = vunpack.c.l.b16 %v161
  %v642 = vunpack.c.l.b16 %v162
  %v643 = vunpack.c.l.b16 %v163
  %v644 = vunpack.c.l.b16 %v164
  %v645 = vunpack.c.l.b16 %v165
  %v646 = vunpack.c.l.b16 %v166
  %v647 = vunpack.c.l.b16 %v167
  %v648 = vunpack.c.l.b16 %v168
  %v649 = vunpack.c.l.b16 %v169
  %v650 = vunpack.c.l.b16 %v170
  %v651 = vunpack.c.l.b16 %v171
  %v652 = vunpack.c.l.b16 %v172
  %v653 = vunpack.c.l.b16 %v173
  %v654 = vunpack.c.l.b16 %v174
  %v655 = vunpack.c.l.b16 %v175
  %v656 = vunpack.c.l.b16 %v176
  %v657 = vunpack.c.l.b16 %v177
  %v658 = vunpack.c.l.b16 %v178
  %v659 = vpack.c.b16 %v560, %v559
  %v660 = vpack.c.b16 %v562, %v561
  %v661 = vpack.c.b16 %v564, %v563
  %v662 = vpack.c.b16 %v566, %v565
  %v663 = vpack.c.b16 %v568, %v567
  %v664 = vpack.c.b16 %v570, %v569
  %v665 = vpack.c.b16 %v572, %v571
  %v666 = vpack.c.b16 %v574, %v573
  %v667 = vpack.c.b16 %v576, %v575
  %v668 = vpack.c.b16 %v578, %v577
  %v669 = vpack.c.b16 %v580, %v579
  %v670 = vpack.c.b16 %v582, %v581
  %v671 = vpack.c.b16 %v584, %v583
  %v672 = vpack.c.b16 %v586, %v585
  %v673 = vpack.c.b16 %v588, %v587
  %v674 = vpack.c.b16 %v590, %v589
  %v675 = vpack.c.b16 %v592, %v591
  %v676 = vpack.c.b16 %v594, %v593
  %v677 = vpack.c.b16 %v596, %v595
  %v678 = vpack.c.b16 %v598, %v597
  %v679 = vpack.c.b16 %v600, %v599
  %v680 = vpack.c.b16 %v602, %v601
  %v681 = vpack.c.b16 %v604, %v603
  %v682 = vpack.c.b16 %v606, %v605
  %v683 = vpack.c.b16 %v608, %v607
  %v684 = vpack.c.b16 %v610, %v609
  %v685 = vpack.c.b16 %v612, %v611
  %v686 = vpack.c.b16 %v614, %v613
  %v687 = vpack.c.b16 %v616, %v615
  %v688 = vpack.c.b16 %v618, %v617
  %v689 = vpack.c.b16 %v620, %v619
  %v690 = vpack.c.b16 %v622, %v621
  %v691 = vpack.c.b16 %v624, %v623
  %v692 = vpack.c.b16 %v626, %v625
  %v693 = vpack.c.b16 %v628, %v627
  %v694 = vpack.c.b16 %v630, %v629
  %v695 = vpack.c.b16 %v632, %v631
  %v696 = vpack.c.b16 %v634, %v633
  %v697 = vpack.c.b16 %v636, %v635
  %v698 = vpack.c.b16 %v638, %v637
  %v699 = vpack.c.b16 %v640, %v639
  %v700 = vpack.c.b16 %v642, %v641
  %v701 = vpack.c.b16 %v644, %v643
  %v702 = vpack.c.b16 %v646, %v645
  %v703 = vpack.c.b16 %v648, %v647
  %v704 = vpack.c.b16 %v650, %v649
  %v705 = vpack.c.b16 %v652, %v651
  %v706 = vpack.c.b16 %v654, %v653
  %v707 = vpack.c.b16 %v656, %v655
  %v708 = vpack.c.b16 %v658, %v657
  %vm759 = vcmask 261120
  %v761 = vsel %vm759, %v361, 0
  %v764 = vsel %vm759, %v368, 0
  %v767 = vsel %vm759, %v375, 0
  %v770 = vsel %vm759, %v382, 0
  %v773 = vsel %vm759, %v389, 0
  %v776 = vsel %vm759, %v396, 0
  %v779 = vsel %vm759, %v403, 0
  %v782 = vsel %vm759, %v410, 0
  %784 = vmatprep.subr.bf16.mxu0 0
  %785 = vmatpush1.bf16.msra.mxu0 %v666
  %786 = vmatprep.subr.bf16.mxu0 0
  %787 = vmatpush1.bf16.msra.mxu0 %v665
  %788 = vmatprep.subr.bf16.mxu0 0
  %789 = vmatpush1.bf16.msra.mxu0 %v664
  %790 = vmatprep.subr.bf16.mxu0 0
  %791 = vmatpush1.bf16.msra.mxu0 %v663
  %792 = vmatprep.subr.bf16.mxu0 0
  %793 = vmatpush1.bf16.msra.mxu0 %v662
  %794 = vmatprep.subr.bf16.mxu0 0
  %795 = vmatpush1.bf16.msra.mxu0 %v661
  %796 = vmatprep.subr.bf16.mxu0 0
  %797 = vmatpush1.bf16.msra.mxu0 %v660
  %798 = vmatprep.subr.bf16.mxu0 0
  %799 = vmatpush1.bf16.msra.mxu0 %v659
  %800 = vmatprep.subr.bf16.mxu0 0
  %801 = vmatpush2.bf16.msra.mxu0 %v674
  %802 = vmatprep.subr.bf16.mxu0 0
  %803 = vmatpush2.bf16.msra.mxu0 %v673
  %804 = vmatprep.subr.bf16.mxu0 0
  %805 = vmatpush2.bf16.msra.mxu0 %v672
  %806 = vmatprep.subr.bf16.mxu0 0
  %807 = vmatpush2.bf16.msra.mxu0 %v671
  %808 = vmatprep.subr.bf16.mxu0 0
  %809 = vmatpush2.bf16.msra.mxu0 %v670
  %810 = vmatprep.subr.bf16.mxu0 0
  %811 = vmatpush2.bf16.msra.mxu0 %v669
  %812 = vmatprep.subr.bf16.mxu0 0
  %813 = vmatpush2.bf16.msra.mxu0 %v668
  %814 = vmatprep.subr.bf16.mxu0 0
  %815 = vmatpush2.bf16.msra.mxu0 %v667
  %816 = vmatprep.mubr.bf16.mxu0 %v356
  %817 = vmatmul.mubr.bf16.gmra.mxu0 %v355
  %v818 = vpop.f32.mrf.mxu0
  %v819 = vadd.f32 0.0, %v818
  %v820 = vpop.f32.mrf.mxu0
  %v821 = vpop.f32.mrf.mxu0
  %v822 = vadd.f32 0.0, %v821
  %v823 = vpop.f32.mrf.mxu0
  %824 = vmatprep.mubr.bf16.mxu0 %v363
  %825 = vmatmul.mubr.bf16.gmra.mxu0 %v362
  %v826 = vpop.f32.mrf.mxu0
  %v827 = vadd.f32 0.0, %v826
  %v828 = vpop.f32.mrf.mxu0
  %v829 = vpop.f32.mrf.mxu0
  %v830 = vadd.f32 0.0, %v829
  %v831 = vpop.f32.mrf.mxu0
  %832 = vmatprep.mubr.bf16.mxu0 %v370
  %833 = vmatmul.mubr.bf16.gmra.mxu0 %v369
  %v834 = vpop.f32.mrf.mxu0
  %v835 = vadd.f32 0.0, %v834
  %v836 = vpop.f32.mrf.mxu0
  %v837 = vpop.f32.mrf.mxu0
  %v838 = vadd.f32 0.0, %v837
  %v839 = vpop.f32.mrf.mxu0
  %840 = vmatprep.mubr.bf16.mxu0 %v377
  %841 = vmatmul.mubr.bf16.gmra.mxu0 %v376
  %v842 = vpop.f32.mrf.mxu0
  %v843 = vadd.f32 0.0, %v842
  %v844 = vpop.f32.mrf.mxu0
  %v845 = vpop.f32.mrf.mxu0
  %v846 = vadd.f32 0.0, %v845
  %v847 = vpop.f32.mrf.mxu0
  %848 = vmatprep.mubr.bf16.mxu0 %v384
  %849 = vmatmul.mubr.bf16.gmra.mxu0 %v383
  %v850 = vpop.f32.mrf.mxu0
  %v851 = vadd.f32 0.0, %v850
  %v852 = vpop.f32.mrf.mxu0
  %v853 = vpop.f32.mrf.mxu0
  %v854 = vadd.f32 0.0, %v853
  %v855 = vpop.f32.mrf.mxu0
  %856 = vmatprep.mubr.bf16.mxu0 %v391
  %857 = vmatmul.mubr.bf16.gmra.mxu0 %v390
  %v858 = vpop.f32.mrf.mxu0
  %v859 = vadd.f32 0.0, %v858
  %v860 = vpop.f32.mrf.mxu0
  %v861 = vpop.f32.mrf.mxu0
  %v862 = vadd.f32 0.0, %v861
  %v863 = vpop.f32.mrf.mxu0
  %864 = vmatprep.mubr.bf16.mxu0 %v398
  %865 = vmatmul.mubr.bf16.gmra.mxu0 %v397
  %v866 = vpop.f32.mrf.mxu0
  %v867 = vadd.f32 0.0, %v866
  %v868 = vpop.f32.mrf.mxu0
  %v869 = vpop.f32.mrf.mxu0
  %v870 = vadd.f32 0.0, %v869
  %v871 = vpop.f32.mrf.mxu0
  %872 = vmatprep.mubr.bf16.mxu0 %v405
  %873 = vmatmul.mubr.bf16.gmra.mxu0 %v404
  %v874 = vpop.f32.mrf.mxu0
  %v875 = vadd.f32 0.0, %v874
  %v876 = vpop.f32.mrf.mxu0
  %v877 = vpop.f32.mrf.mxu0
  %v878 = vadd.f32 0.0, %v877
  %v879 = vpop.f32.mrf.mxu0
  %880 = vdwg.mxu0
  %881 = vmatprep.subr.bf16.mxu0 0
  %882 = vmatpush1.bf16.msra.mxu0 %v682
  %883 = vmatprep.subr.bf16.mxu0 0
  %884 = vmatpush1.bf16.msra.mxu0 %v681
  %885 = vmatprep.subr.bf16.mxu0 0
  %886 = vmatpush1.bf16.msra.mxu0 %v680
  %887 = vmatprep.subr.bf16.mxu0 0
  %888 = vmatpush1.bf16.msra.mxu0 %v679
  %889 = vmatprep.subr.bf16.mxu0 0
  %890 = vmatpush1.bf16.msra.mxu0 %v678
  %891 = vmatprep.subr.bf16.mxu0 0
  %892 = vmatpush1.bf16.msra.mxu0 %v677
  %893 = vmatprep.subr.bf16.mxu0 0
  %894 = vmatpush1.bf16.msra.mxu0 %v676
  %895 = vmatprep.subr.bf16.mxu0 0
  %896 = vmatpush1.bf16.msra.mxu0 %v675
  %897 = vmatprep.subr.bf16.mxu0 0
  %898 = vmatpush2.bf16.msra.mxu0 %v690
  %899 = vmatprep.subr.bf16.mxu0 0
  %900 = vmatpush2.bf16.msra.mxu0 %v689
  %901 = vmatprep.subr.bf16.mxu0 0
  %902 = vmatpush2.bf16.msra.mxu0 %v688
  %903 = vmatprep.subr.bf16.mxu0 0
  %904 = vmatpush2.bf16.msra.mxu0 %v687
  %905 = vmatprep.subr.bf16.mxu0 0
  %906 = vmatpush2.bf16.msra.mxu0 %v686
  %907 = vmatprep.subr.bf16.mxu0 0
  %908 = vmatpush2.bf16.msra.mxu0 %v685
  %909 = vmatprep.subr.bf16.mxu0 0
  %910 = vmatpush2.bf16.msra.mxu0 %v684
  %911 = vmatprep.subr.bf16.mxu0 0
  %912 = vmatpush2.bf16.msra.mxu0 %v683
  %913 = vmatprep.mubr.bf16.mxu0 %v358
  %914 = vmatmul.mubr.bf16.gmra.mxu0 %v357
  %v915 = vpop.f32.mrf.mxu0
  %v916 = vadd.f32 %v819, %v915
  %v917 = vpop.f32.mrf.mxu0
  %v918 = vpop.f32.mrf.mxu0
  %v919 = vadd.f32 %v822, %v918
  %v920 = vpop.f32.mrf.mxu0
  %921 = vmatprep.mubr.bf16.mxu0 %v365
  %922 = vmatmul.mubr.bf16.gmra.mxu0 %v364
  %v923 = vpop.f32.mrf.mxu0
  %v924 = vadd.f32 %v827, %v923
  %v925 = vpop.f32.mrf.mxu0
  %v926 = vpop.f32.mrf.mxu0
  %v927 = vadd.f32 %v830, %v926
  %v928 = vpop.f32.mrf.mxu0
  %929 = vmatprep.mubr.bf16.mxu0 %v372
  %930 = vmatmul.mubr.bf16.gmra.mxu0 %v371
  %v931 = vpop.f32.mrf.mxu0
  %v932 = vadd.f32 %v835, %v931
  %v933 = vpop.f32.mrf.mxu0
  %v934 = vpop.f32.mrf.mxu0
  %v935 = vadd.f32 %v838, %v934
  %v936 = vpop.f32.mrf.mxu0
  %937 = vmatprep.mubr.bf16.mxu0 %v379
  %938 = vmatmul.mubr.bf16.gmra.mxu0 %v378
  %v939 = vpop.f32.mrf.mxu0
  %v940 = vadd.f32 %v843, %v939
  %v941 = vpop.f32.mrf.mxu0
  %v942 = vpop.f32.mrf.mxu0
  %v943 = vadd.f32 %v846, %v942
  %v944 = vpop.f32.mrf.mxu0
  %945 = vmatprep.mubr.bf16.mxu0 %v386
  %946 = vmatmul.mubr.bf16.gmra.mxu0 %v385
  %v947 = vpop.f32.mrf.mxu0
  %v948 = vadd.f32 %v851, %v947
  %v949 = vpop.f32.mrf.mxu0
  %v950 = vpop.f32.mrf.mxu0
  %v951 = vadd.f32 %v854, %v950
  %v952 = vpop.f32.mrf.mxu0
  %953 = vmatprep.mubr.bf16.mxu0 %v393
  %954 = vmatmul.mubr.bf16.gmra.mxu0 %v392
  %v955 = vpop.f32.mrf.mxu0
  %v956 = vadd.f32 %v859, %v955
  %v957 = vpop.f32.mrf.mxu0
  %v958 = vpop.f32.mrf.mxu0
  %v959 = vadd.f32 %v862, %v958
  %v960 = vpop.f32.mrf.mxu0
  %961 = vmatprep.mubr.bf16.mxu0 %v400
  %962 = vmatmul.mubr.bf16.gmra.mxu0 %v399
  %v963 = vpop.f32.mrf.mxu0
  %v964 = vadd.f32 %v867, %v963
  %v965 = vpop.f32.mrf.mxu0
  %v966 = vpop.f32.mrf.mxu0
  %v967 = vadd.f32 %v870, %v966
  %v968 = vpop.f32.mrf.mxu0
  %969 = vmatprep.mubr.bf16.mxu0 %v407
  %970 = vmatmul.mubr.bf16.gmra.mxu0 %v406
  %v971 = vpop.f32.mrf.mxu0
  %v972 = vadd.f32 %v875, %v971
  %v973 = vpop.f32.mrf.mxu0
  %v974 = vpop.f32.mrf.mxu0
  %v975 = vadd.f32 %v878, %v974
  %v976 = vpop.f32.mrf.mxu0
  %977 = vdwg.mxu0
  %978 = vmatprep.subr.bf16.mxu0 0
  %979 = vmatpush1.bf16.msra.mxu0 %v698
  %980 = vmatprep.subr.bf16.mxu0 0
  %981 = vmatpush1.bf16.msra.mxu0 %v697
  %982 = vmatprep.subr.bf16.mxu0 0
  %983 = vmatpush1.bf16.msra.mxu0 %v696
  %984 = vmatprep.subr.bf16.mxu0 0
  %985 = vmatpush1.bf16.msra.mxu0 %v695
  %986 = vmatprep.subr.bf16.mxu0 0
  %987 = vmatpush1.bf16.msra.mxu0 %v694
  %988 = vmatprep.subr.bf16.mxu0 0
  %989 = vmatpush1.bf16.msra.mxu0 %v693
  %990 = vmatprep.subr.bf16.mxu0 0
  %991 = vmatpush1.bf16.msra.mxu0 %v692
  %992 = vmatprep.subr.bf16.mxu0 0
  %993 = vmatpush1.bf16.msra.mxu0 %v691
  %994 = vmatprep.subr.bf16.mxu0 0
  %995 = vmatpush2.bf16.msra.mxu0 %v706
  %996 = vmatprep.subr.bf16.mxu0 0
  %997 = vmatpush2.bf16.msra.mxu0 %v705
  %998 = vmatprep.subr.bf16.mxu0 0
  %999 = vmatpush2.bf16.msra.mxu0 %v704
  %1000 = vmatprep.subr.bf16.mxu0 0
  %1001 = vmatpush2.bf16.msra.mxu0 %v703
  %1002 = vmatprep.subr.bf16.mxu0 0
  %1003 = vmatpush2.bf16.msra.mxu0 %v702
  %1004 = vmatprep.subr.bf16.mxu0 0
  %1005 = vmatpush2.bf16.msra.mxu0 %v701
  %1006 = vmatprep.subr.bf16.mxu0 0
  %1007 = vmatpush2.bf16.msra.mxu0 %v700
  %1008 = vmatprep.subr.bf16.mxu0 0
  %1009 = vmatpush2.bf16.msra.mxu0 %v699
  %1010 = vmatprep.mubr.bf16.mxu0 %v360
  %1011 = vmatmul.mubr.bf16.gmra.mxu0 %v359
  %v1012 = vpop.f32.mrf.mxu0
  %v1013 = vadd.f32 %v916, %v1012
  %v1014 = vpop.f32.mrf.mxu0
  %v1015 = vpop.f32.mrf.mxu0
  %v1016 = vadd.f32 %v919, %v1015
  %v1017 = vpop.f32.mrf.mxu0
  %1018 = vmatprep.mubr.bf16.mxu0 %v367
  %1019 = vmatmul.mubr.bf16.gmra.mxu0 %v366
  %v1020 = vpop.f32.mrf.mxu0
  %v1021 = vadd.f32 %v924, %v1020
  %v1022 = vpop.f32.mrf.mxu0
  %v1023 = vpop.f32.mrf.mxu0
  %v1024 = vadd.f32 %v927, %v1023
  %v1025 = vpop.f32.mrf.mxu0
  %1026 = vmatprep.mubr.bf16.mxu0 %v374
  %1027 = vmatmul.mubr.bf16.gmra.mxu0 %v373
  %v1028 = vpop.f32.mrf.mxu0
  %v1029 = vadd.f32 %v932, %v1028
  %v1030 = vpop.f32.mrf.mxu0
  %v1031 = vpop.f32.mrf.mxu0
  %v1032 = vadd.f32 %v935, %v1031
  %v1033 = vpop.f32.mrf.mxu0
  %1034 = vmatprep.mubr.bf16.mxu0 %v381
  %1035 = vmatmul.mubr.bf16.gmra.mxu0 %v380
  %v1036 = vpop.f32.mrf.mxu0
  %v1037 = vadd.f32 %v940, %v1036
  %v1038 = vpop.f32.mrf.mxu0
  %v1039 = vpop.f32.mrf.mxu0
  %v1040 = vadd.f32 %v943, %v1039
  %v1041 = vpop.f32.mrf.mxu0
  %1042 = vmatprep.mubr.bf16.mxu0 %v388
  %1043 = vmatmul.mubr.bf16.gmra.mxu0 %v387
  %v1044 = vpop.f32.mrf.mxu0
  %v1045 = vadd.f32 %v948, %v1044
  %v1046 = vpop.f32.mrf.mxu0
  %v1047 = vpop.f32.mrf.mxu0
  %v1048 = vadd.f32 %v951, %v1047
  %v1049 = vpop.f32.mrf.mxu0
  %1050 = vmatprep.mubr.bf16.mxu0 %v395
  %1051 = vmatmul.mubr.bf16.gmra.mxu0 %v394
  %v1052 = vpop.f32.mrf.mxu0
  %v1053 = vadd.f32 %v956, %v1052
  %v1054 = vpop.f32.mrf.mxu0
  %v1055 = vpop.f32.mrf.mxu0
  %v1056 = vadd.f32 %v959, %v1055
  %v1057 = vpop.f32.mrf.mxu0
  %1058 = vmatprep.mubr.bf16.mxu0 %v402
  %1059 = vmatmul.mubr.bf16.gmra.mxu0 %v401
  %v1060 = vpop.f32.mrf.mxu0
  %v1061 = vadd.f32 %v964, %v1060
  %v1062 = vpop.f32.mrf.mxu0
  %v1063 = vpop.f32.mrf.mxu0
  %v1064 = vadd.f32 %v967, %v1063
  %v1065 = vpop.f32.mrf.mxu0
  %1066 = vmatprep.mubr.bf16.mxu0 %v409
  %1067 = vmatmul.mubr.bf16.gmra.mxu0 %v408
  %v1068 = vpop.f32.mrf.mxu0
  %v1069 = vadd.f32 %v972, %v1068
  %v1070 = vpop.f32.mrf.mxu0
  %v1071 = vpop.f32.mrf.mxu0
  %v1072 = vadd.f32 %v975, %v1071
  %v1073 = vpop.f32.mrf.mxu0
  %1074 = vdwg.mxu0
  %1075 = vmatprep.subr.bf16.mxu0 0
  %1076 = vmatpush1.bf16.msra.mxu0 0
  %1077 = vmatprep.subr.bf16.mxu0 0
  %1078 = vmatpush1.bf16.msra.mxu0 0
  %1079 = vmatprep.subr.bf16.mxu0 0
  %1080 = vmatpush1.bf16.msra.mxu0 0
  %1081 = vmatprep.subr.bf16.mxu0 0
  %1082 = vmatpush1.bf16.msra.mxu0 0
  %1083 = vmatprep.subr.bf16.mxu0 0
  %1084 = vmatpush1.bf16.msra.mxu0 0
  %1085 = vmatprep.subr.bf16.mxu0 0
  %1086 = vmatpush1.bf16.msra.mxu0 0
  %1087 = vmatprep.subr.bf16.mxu0 0
  %1088 = vmatpush1.bf16.msra.mxu0 %v708
  %1089 = vmatprep.subr.bf16.mxu0 0
  %1090 = vmatpush1.bf16.msra.mxu0 %v707
  %1091 = vmatprep.subr.bf16.mxu0 0
  %1092 = vmatpush2.bf16.msra.mxu0 0
  %1093 = vmatprep.subr.bf16.mxu0 0
  %1094 = vmatpush2.bf16.msra.mxu0 0
  %1095 = vmatprep.subr.bf16.mxu0 0
  %1096 = vmatpush2.bf16.msra.mxu0 0
  %1097 = vmatprep.subr.bf16.mxu0 0
  %1098 = vmatpush2.bf16.msra.mxu0 0
  %1099 = vmatprep.subr.bf16.mxu0 0
  %1100 = vmatpush2.bf16.msra.mxu0 0
  %1101 = vmatprep.subr.bf16.mxu0 0
  %1102 = vmatpush2.bf16.msra.mxu0 0
  %1103 = vmatprep.subr.bf16.mxu0 0
  %1104 = vmatpush2.bf16.msra.mxu0 0
  %1105 = vmatprep.subr.bf16.mxu0 0
  %1106 = vmatpush2.bf16.msra.mxu0 0
  %1107 = vmatprep.mubr.bf16.mxu0 0
  %1108 = vmatmul.mubr.bf16.gmra.mxu0 %v761
  %v1109 = vpop.f32.mrf.mxu0
  %v1110 = vadd.f32 %v1013, %v1109
  %v1111 = vpop.f32.mrf.mxu0
  %v1112 = vpop.f32.mrf.mxu0
  %v1113 = vadd.f32 %v1016, %v1112
  %v1114 = vpop.f32.mrf.mxu0
  %1115 = vmatprep.mubr.bf16.mxu0 0
  %1116 = vmatmul.mubr.bf16.gmra.mxu0 %v764
  %v1117 = vpop.f32.mrf.mxu0
  %v1118 = vadd.f32 %v1021, %v1117
  %v1119 = vpop.f32.mrf.mxu0
  %v1120 = vpop.f32.mrf.mxu0
  %v1121 = vadd.f32 %v1024, %v1120
  %v1122 = vpop.f32.mrf.mxu0
  %1123 = vmatprep.mubr.bf16.mxu0 0
  %1124 = vmatmul.mubr.bf16.gmra.mxu0 %v767
  %v1125 = vpop.f32.mrf.mxu0
  %v1126 = vadd.f32 %v1029, %v1125
  %v1127 = vpop.f32.mrf.mxu0
  %v1128 = vpop.f32.mrf.mxu0
  %v1129 = vadd.f32 %v1032, %v1128
  %v1130 = vpop.f32.mrf.mxu0
  %1131 = vmatprep.mubr.bf16.mxu0 0
  %1132 = vmatmul.mubr.bf16.gmra.mxu0 %v770
  %v1133 = vpop.f32.mrf.mxu0
  %v1134 = vadd.f32 %v1037, %v1133
  %v1135 = vpop.f32.mrf.mxu0
  %v1136 = vpop.f32.mrf.mxu0
  %v1137 = vadd.f32 %v1040, %v1136
  %v1138 = vpop.f32.mrf.mxu0
  %1139 = vmatprep.mubr.bf16.mxu0 0
  %1140 = vmatmul.mubr.bf16.gmra.mxu0 %v773
  %v1141 = vpop.f32.mrf.mxu0
  %v1142 = vadd.f32 %v1045, %v1141
  %v1143 = vpop.f32.mrf.mxu0
  %v1144 = vpop.f32.mrf.mxu0
  %v1145 = vadd.f32 %v1048, %v1144
  %v1146 = vpop.f32.mrf.mxu0
  %1147 = vmatprep.mubr.bf16.mxu0 0
  %1148 = vmatmul.mubr.bf16.gmra.mxu0 %v776
  %v1149 = vpop.f32.mrf.mxu0
  %v1150 = vadd.f32 %v1053, %v1149
  %v1151 = vpop.f32.mrf.mxu0
  %v1152 = vpop.f32.mrf.mxu0
  %v1153 = vadd.f32 %v1056, %v1152
  %v1154 = vpop.f32.mrf.mxu0
  %1155 = vmatprep.mubr.bf16.mxu0 0
  %1156 = vmatmul.mubr.bf16.gmra.mxu0 %v779
  %v1157 = vpop.f32.mrf.mxu0
  %v1158 = vadd.f32 %v1061, %v1157
  %v1159 = vpop.f32.mrf.mxu0
  %v1160 = vpop.f32.mrf.mxu0
  %v1161 = vadd.f32 %v1064, %v1160
  %v1162 = vpop.f32.mrf.mxu0
  %1163 = vmatprep.mubr.bf16.mxu0 0
  %1164 = vmatmul.mubr.bf16.gmra.mxu0 %v782
  %v1165 = vpop.f32.mrf.mxu0
  %v1166 = vadd.f32 %v1069, %v1165
  %v1167 = vpop.f32.mrf.mxu0
  %v1168 = vpop.f32.mrf.mxu0
  %v1169 = vadd.f32 %v1072, %v1168
  %v1170 = vpop.f32.mrf.mxu0
  %1171 = vdwg.mxu0
  %v1172 = vpack.c.bf16 %v1113, %v1110
  %v1173 = vpack.c.bf16 %v1121, %v1118
  %v1174 = vpack.c.bf16 %v1129, %v1126
  %v1175 = vpack.c.bf16 %v1137, %v1134
  %v1176 = vpack.c.bf16 %v1145, %v1142
  %v1177 = vpack.c.bf16 %v1153, %v1150
  %v1178 = vpack.c.bf16 %v1161, %v1158
  %v1179 = vpack.c.bf16 %v1169, %v1166
  %v1188 = vunpack.c.l.b16 %v1172
  %v1189 = vunpack.c.h.b16 %v1172
  %v1190 = vunpack.c.l.b16 %v1173
  %v1191 = vunpack.c.h.b16 %v1173
  %v1192 = vunpack.c.l.b16 %v1174
  %v1193 = vunpack.c.h.b16 %v1174
  %v1194 = vunpack.c.l.b16 %v1175
  %v1195 = vunpack.c.h.b16 %v1175
  %v1196 = vunpack.c.l.b16 %v1176
  %v1197 = vunpack.c.h.b16 %v1176
  %v1198 = vunpack.c.l.b16 %v1177
  %v1199 = vunpack.c.h.b16 %v1177
  %v1200 = vunpack.c.l.b16 %v1178
  %v1201 = vunpack.c.h.b16 %v1178
  %v1202 = vunpack.c.l.b16 %v1179
  %v1203 = vunpack.c.h.b16 %v1179
  %v1204 = vpack.c.b16 %v1188, %v1188
  %v1205 = vpack.c.b16 %v1189, %v1189
  %v1206 = vpack.c.b16 %v1190, %v1190
  %v1207 = vpack.c.b16 %v1191, %v1191
  %v1208 = vpack.c.b16 %v1192, %v1192
  %v1209 = vpack.c.b16 %v1193, %v1193
  %v1210 = vpack.c.b16 %v1194, %v1194
  %v1211 = vpack.c.b16 %v1195, %v1195
  %v1212 = vpack.c.b16 %v1196, %v1196
  %v1213 = vpack.c.b16 %v1197, %v1197
  %v1214 = vpack.c.b16 %v1198, %v1198
  %v1215 = vpack.c.b16 %v1199, %v1199
  %v1216 = vpack.c.b16 %v1200, %v1200
  %v1217 = vpack.c.b16 %v1201, %v1201
  %v1218 = vpack.c.b16 %v1202, %v1202
  %v1219 = vpack.c.b16 %v1203, %v1203
  %1236 = vst [vmem:[%s2] sm:$0xf] %v1204
  %1237 = vst [vmem:[%s2 + $0x4] sm:$0xf] %v1205
  %1238 = vst [vmem:[%s2 + $0x8] sm:$0xf] %v1206
  %1239 = vst [vmem:[%s2 + $0xc] sm:$0xf] %v1207
  %1240 = vst [vmem:[%s2 + $0x10] sm:$0xf] %v1208
  %1241 = vst [vmem:[%s2 + $0x14] sm:$0xf] %v1209
  %1242 = vst [vmem:[%s2 + $0x18] sm:$0xf] %v1210
  %1243 = vst [vmem:[%s2 + $0x1c] sm:$0xf] %v1211
  %1244 = vst [vmem:[%s2 + $0x20] sm:$0xf] %v1212
  %1245 = vst [vmem:[%s2 + $0x24] sm:$0xf] %v1213
  %1246 = vst [vmem:[%s2 + $0x28] sm:$0xf] %v1214
  %1247 = vst [vmem:[%s2 + $0x2c] sm:$0xf] %v1215
  %1248 = vst [vmem:[%s2 + $0x30] sm:$0xf] %v1216
  %1249 = vst [vmem:[%s2 + $0x34] sm:$0xf] %v1217
  %1250 = vst [vmem:[%s2 + $0x38] sm:$0xf] %v1218
  %1251 = vst [vmem:[%s2 + $0x3c] sm:$0xf] %v1219
  %v1252 = vadd.f32 %v1110, %v1113
  %v1253 = vadd.f32 %v1252, %v1118
  %v1254 = vadd.f32 %v1253, %v1121
  %v1255 = vadd.f32 %v1254, %v1126
  %v1256 = vadd.f32 %v1255, %v1129
  %v1257 = vadd.f32 %v1256, %v1134
  %v1258 = vadd.f32 %v1257, %v1137
  %v1259 = vadd.f32 %v1258, %v1142
  %v1260 = vadd.f32 %v1259, %v1145
  %v1261 = vadd.f32 %v1260, %v1150
  %v1262 = vadd.f32 %v1261, %v1153
  %v1263 = vadd.f32 %v1262, %v1158
  %v1264 = vadd.f32 %v1263, %v1161
  %v1265 = vadd.f32 %v1264, %v1166
  %v1266 = vadd.f32 %v1265, %v1169
  %v1267 = vrot.slane %v1266, 4
  %v1268 = vadd.f32 %v1266, %v1267
  %v1269 = vrot.slane %v1268, 2
  %v1270 = vadd.f32 %v1268, %v1269
  %v1271 = vrot.slane %v1270, 1
  %v1272 = vadd.f32 %v1270, %v1271
  %1273 = vst [vmem:[%s3] sm:$0x1] %v1272
  %v1274 = vmul.f32 %v1110, %v1110
  %v1275 = vmul.f32 %v1113, %v1113
  %v1276 = vmul.f32 %v1118, %v1118
  %v1277 = vmul.f32 %v1121, %v1121
  %v1278 = vmul.f32 %v1126, %v1126
  %v1279 = vmul.f32 %v1129, %v1129
  %v1280 = vmul.f32 %v1134, %v1134
  %v1281 = vmul.f32 %v1137, %v1137
  %v1282 = vmul.f32 %v1142, %v1142
  %v1283 = vmul.f32 %v1145, %v1145
  %v1284 = vmul.f32 %v1150, %v1150
  %v1285 = vmul.f32 %v1153, %v1153
  %v1286 = vmul.f32 %v1158, %v1158
  %v1287 = vmul.f32 %v1161, %v1161
  %v1288 = vmul.f32 %v1166, %v1166
  %v1289 = vmul.f32 %v1169, %v1169
  %v1290 = vadd.f32 %v1274, %v1275
  %v1291 = vadd.f32 %v1290, %v1276
  %v1292 = vadd.f32 %v1291, %v1277
  %v1293 = vadd.f32 %v1292, %v1278
  %v1294 = vadd.f32 %v1293, %v1279
  %v1295 = vadd.f32 %v1294, %v1280
  %v1296 = vadd.f32 %v1295, %v1281
  %v1297 = vadd.f32 %v1296, %v1282
  %v1298 = vadd.f32 %v1297, %v1283
  %v1299 = vadd.f32 %v1298, %v1284
  %v1300 = vadd.f32 %v1299, %v1285
  %v1301 = vadd.f32 %v1300, %v1286
  %v1302 = vadd.f32 %v1301, %v1287
  %v1303 = vadd.f32 %v1302, %v1288
  %v1304 = vadd.f32 %v1303, %v1289
  %v1305 = vrot.slane %v1304, 4
  %v1306 = vadd.f32 %v1304, %v1305
  %v1307 = vrot.slane %v1306, 2
  %v1308 = vadd.f32 %v1306, %v1307
  %v1309 = vrot.slane %v1308, 1
  %v1310 = vadd.f32 %v1308, %v1309
  %1311 = vst [vmem:[%s4] sm:$0x1] %v1310
  // Predicated region
  $region10: #{nn2_forward.12} parent=0 // pred_check
    _
  $region11: #{nn2_forward.12} parent=0 // pred_check_branch
    %1313 = sbr.rel (0) target = $region13
  $region12: #{nn2_forward.12} parent=0 // pred_region
    _
  $region13: #{nn2_forward.12} parent=0 // pred_fallthru
    _
  // Predicated region
  $region14: #{nn2_forward.12} parent=0 // pred_check
    _
  $region15: #{nn2_forward.12} parent=0 // pred_check_branch
    %1315 = sbr.rel (0) target = $region17
  $region16: #{nn2_forward.12} parent=0 // pred_region
    _
  $region17: #{nn2_forward.12} parent=0 // pred_fallthru
    _
  // Predicated region
  $region18: #{nn2_forward.12} parent=0 // pred_check
    _
  $region19: #{nn2_forward.12} parent=0 // pred_check_branch
    %1317 = sbr.rel (0) target = $region21
  $region20: #{nn2_forward.12} parent=0 // pred_region
    _
  $region21: #{nn2_forward.12} parent=0 // pred_fallthru
    _
  // Predicated region
  $region22: #{nn2_forward.12} parent=0 // pred_check
    _
  $region23: #{nn2_forward.12} parent=0 // pred_check_branch
    %1319 = sbr.rel (0) target = $region25
  $region24: #{nn2_forward.12} parent=0 // pred_region
    _
  $region25: #{nn2_forward.12} parent=0 // pred_fallthru
    _
  // Predicated region
  $region26: #{nn2_forward.12} parent=0 // pred_check
    _
  $region27: #{nn2_forward.12} parent=0 // pred_check_branch
    %1321 = sbr.rel (0) target = $region29
  $region28: #{nn2_forward.12} parent=0 // pred_region
    _
  $region29: #{nn2_forward.12} parent=0 // pred_fallthru
    _
  // Predicated region
  $region30: #{nn2_forward.12} parent=0 // pred_check
    _
  $region31: #{nn2_forward.12} parent=0 // pred_check_branch
    %1323 = sbr.rel (0) target = $region33
  $region32: #{nn2_forward.12} parent=0 // pred_region
    _
  $region33: #{nn2_forward.12} parent=0 // pred_fallthru
    _

// kernel: nn2_forward.15
$region0: #{nn2_forward.15}
  #allocation0 [shape = 'u32[]', space=smem, size = 0x4, offset = 0x4, fixed_abs, tag = 'smem constant byte address 0x4 - core index']
  #allocation1 [shape = 'u32[144,128]{1,0:T(1,128)}', space=vmem, size = 0x12000, scoped, tag = 'internal scratch']
  %s0 = inlined_call_operand.vmem [shape: f32[8,128], index: 0, kind: input, shape index: {}]
  %s1 = inlined_call_operand.vmem [shape: f32[1,128], index: 1, kind: input, shape index: {}]
  %s2 = inlined_call_operand.vmem [shape: bf16[128,64], index: 2, kind: input, shape index: {}]
  %s3 = inlined_call_operand.vmem [shape: f32[1,64], index: 3, kind: input, shape index: {}]
  %s4 = inlined_call_operand.vmem [shape: bf16[64,32], index: 4, kind: input, shape index: {}]
  %s5 = inlined_call_operand.vmem [shape: f32[1,32], index: 5, kind: input, shape index: {}]
  %s6 = inlined_call_operand.vmem [shape: bf16[32,10], index: 6, kind: input, shape index: {}]
  %s7 = inlined_call_operand.vmem [shape: f32[1,10], index: 7, kind: input, shape index: {}]
  %s8 = inlined_call_operand.vmem [shape: f32[8,10], index: 8, kind: output, shape index: {}]
  %s9 = sld [smem:[#allocation0]]
  $region42: #{nn2_forward.15} parent=0
    _
  %s11 = ssub.s32 1, %s9
  %s12 = scalar_select 0, %s11, %s9
  // Predicated region
  $region2: #{nn2_forward.15} parent=0 // pred_check
    _
  $region3: #{nn2_forward.15} parent=0 // pred_check_branch
    %14 = sbr.rel (0) target = $region5
  $region4: #{nn2_forward.15} parent=0 // pred_region
    _
  $region5: #{nn2_forward.15} parent=0 // pred_fallthru
    _
  // Predicated region
  $region6: #{nn2_forward.15} parent=0 // pred_check
    _
  $region7: #{nn2_forward.15} parent=0 // pred_check_branch
    %16 = sbr.rel (0) target = $region9
  $region8: #{nn2_forward.15} parent=0 // pred_region
    _
  $region9: #{nn2_forward.15} parent=0 // pred_fallthru
    _
  // Predicated region
  $region10: #{nn2_forward.15} parent=0 // pred_check
    _
  $region11: #{nn2_forward.15} parent=0 // pred_check_branch
    %18 = sbr.rel (0) target = $region13
  $region12: #{nn2_forward.15} parent=0 // pred_region
    _
  $region13: #{nn2_forward.15} parent=0 // pred_fallthru
    _
  // Predicated region
  $region14: #{nn2_forward.15} parent=0 // pred_check
    _
  $region15: #{nn2_forward.15} parent=0 // pred_check_branch
    %20 = sbr.rel (0) target = $region17
  $region16: #{nn2_forward.15} parent=0 // pred_region
    _
  $region17: #{nn2_forward.15} parent=0 // pred_fallthru
    _
  // Predicated region
  $region18: #{nn2_forward.15} parent=0 // pred_check
    _
  $region19: #{nn2_forward.15} parent=0 // pred_check_branch
    %22 = sbr.rel (0) target = $region21
  $region20: #{nn2_forward.15} parent=0 // pred_region
    _
  $region21: #{nn2_forward.15} parent=0 // pred_fallthru
    _
  // Predicated region
  $region22: #{nn2_forward.15} parent=0 // pred_check
    _
  $region23: #{nn2_forward.15} parent=0 // pred_check_branch
    %24 = sbr.rel (0) target = $region25
  $region24: #{nn2_forward.15} parent=0 // pred_region
    _
  $region25: #{nn2_forward.15} parent=0 // pred_fallthru
    _
  // Predicated region
  $region26: #{nn2_forward.15} parent=0 // pred_check
    _
  $region27: #{nn2_forward.15} parent=0 // pred_check_branch
    %26 = sbr.rel (0) target = $region29
  $region28: #{nn2_forward.15} parent=0 // pred_region
    _
  $region29: #{nn2_forward.15} parent=0 // pred_fallthru
    _
  // Predicated region
  $region30: #{nn2_forward.15} parent=0 // pred_check
    _
  $region31: #{nn2_forward.15} parent=0 // pred_check_branch
    %28 = sbr.rel (0) target = $region33
  $region32: #{nn2_forward.15} parent=0 // pred_region
    _
  $region33: #{nn2_forward.15} parent=0 // pred_fallthru
    _
  %v30 = vld [vmem:[%s0] sm:$0xff]
  %v31 = vld [vmem:[%s1] sm:$0x1]
  %v33 = vlaneseq
  %v34 = vshrl.u32 %v33, 7
  %v35 = vsub.s32 0, %v34
  %v36 = vrot.slane %v31, %v35
  %v38 = vadd.f32 %v30, %v36
  %v39 = vpack.c.bf16 %v38, %v38
  %v40 = vld [vmem:[%s2] sm:$0xf]
  %v41 = vld [vmem:[%s2 + $0x4] sm:$0xf]
  %v42 = vld [vmem:[%s2 + $0x8] sm:$0xf]
  %v43 = vld [vmem:[%s2 + $0xc] sm:$0xf]
  %v44 = vld [vmem:[%s2 + $0x10] sm:$0xf]
  %v45 = vld [vmem:[%s2 + $0x14] sm:$0xf]
  %v46 = vld [vmem:[%s2 + $0x18] sm:$0xf]
  %v47 = vld [vmem:[%s2 + $0x1c] sm:$0xf]
  %v48 = vld [vmem:[%s2 + $0x20] sm:$0xf]
  %v49 = vld [vmem:[%s2 + $0x24] sm:$0xf]
  %v50 = vld [vmem:[%s2 + $0x28] sm:$0xf]
  %v51 = vld [vmem:[%s2 + $0x2c] sm:$0xf]
  %v52 = vld [vmem:[%s2 + $0x30] sm:$0xf]
  %v53 = vld [vmem:[%s2 + $0x34] sm:$0xf]
  %v54 = vld [vmem:[%s2 + $0x38] sm:$0xf]
  %v55 = vld [vmem:[%s2 + $0x3c] sm:$0xf]
  %v56 = vld [vmem:[%s3] sm:$0x1]
  %v58 = vlaneseq
  %v59 = vshrl.u32 %v58, 7
  %v60 = vsub.s32 0, %v59
  %v61 = vrot.slane %v56, %v60
  %v79 = vunpack.c.l.b16 %v40
  %v80 = vunpack.c.l.b16 %v41
  %v81 = vunpack.c.l.b16 %v42
  %v82 = vunpack.c.l.b16 %v43
  %v83 = vunpack.c.l.b16 %v44
  %v84 = vunpack.c.l.b16 %v45
  %v85 = vunpack.c.l.b16 %v46
  %v86 = vunpack.c.l.b16 %v47
  %v87 = vunpack.c.l.b16 %v48
  %v88 = vunpack.c.l.b16 %v49
  %v89 = vunpack.c.l.b16 %v50
  %v90 = vunpack.c.l.b16 %v51
  %v91 = vunpack.c.l.b16 %v52
  %v92 = vunpack.c.l.b16 %v53
  %v93 = vunpack.c.l.b16 %v54
  %v94 = vunpack.c.l.b16 %v55
  %v95 = vpack.c.b16 %v80, %v79
  %v96 = vpack.c.b16 %v82, %v81
  %v97 = vpack.c.b16 %v84, %v83
  %v98 = vpack.c.b16 %v86, %v85
  %v99 = vpack.c.b16 %v88, %v87
  %v100 = vpack.c.b16 %v90, %v89
  %v101 = vpack.c.b16 %v92, %v91
  %v102 = vpack.c.b16 %v94, %v93
  %111 = vmatprep.subr.bf16.mxu0 0
  %112 = vmatpush1.bf16.msra.mxu0 %v102
  %113 = vmatprep.subr.bf16.mxu0 0
  %114 = vmatpush1.bf16.msra.mxu0 %v101
  %115 = vmatprep.subr.bf16.mxu0 0
  %116 = vmatpush1.bf16.msra.mxu0 %v100
  %117 = vmatprep.subr.bf16.mxu0 0
  %118 = vmatpush1.bf16.msra.mxu0 %v99
  %119 = vmatprep.subr.bf16.mxu0 0
  %120 = vmatpush1.bf16.msra.mxu0 %v98
  %121 = vmatprep.subr.bf16.mxu0 0
  %122 = vmatpush1.bf16.msra.mxu0 %v97
  %123 = vmatprep.subr.bf16.mxu0 0
  %124 = vmatpush1.bf16.msra.mxu0 %v96
  %125 = vmatprep.subr.bf16.mxu0 0
  %126 = vmatpush1.bf16.msra.mxu0 %v95
  %127 = vmatprep.subr.bf16.mxu0 0
  %128 = vmatpush2.bf16.msra.mxu0 0
  %129 = vmatprep.subr.bf16.mxu0 0
  %130 = vmatpush2.bf16.msra.mxu0 0
  %131 = vmatprep.subr.bf16.mxu0 0
  %132 = vmatpush2.bf16.msra.mxu0 0
  %133 = vmatprep.subr.bf16.mxu0 0
  %134 = vmatpush2.bf16.msra.mxu0 0
  %135 = vmatprep.subr.bf16.mxu0 0
  %136 = vmatpush2.bf16.msra.mxu0 0
  %137 = vmatprep.subr.bf16.mxu0 0
  %138 = vmatpush2.bf16.msra.mxu0 0
  %139 = vmatprep.subr.bf16.mxu0 0
  %140 = vmatpush2.bf16.msra.mxu0 0
  %141 = vmatprep.subr.bf16.mxu0 0
  %142 = vmatpush2.bf16.msra.mxu0 0
  %143 = vmatprep.mubr.bf16.mxu0 0
  %144 = vmatmul.mubr.bf16.gmra.mxu0 %v39
  %v145 = vpop.f32.mrf.mxu0
  %v146 = vadd.f32 %v61, %v145
  %v147 = vpop.f32.mrf.mxu0
  %v148 = vpop.f32.mrf.mxu0
  %v149 = vpop.f32.mrf.mxu0
  %150 = vdwg.mxu0
  %v151 = vpack.c.bf16 %v146, %v146
  %v152 = vld [vmem:[%s4] sm:$0xf]
  %v153 = vld [vmem:[%s4 + $0x4] sm:$0xf]
  %v154 = vld [vmem:[%s4 + $0x8] sm:$0xf]
  %v155 = vld [vmem:[%s4 + $0xc] sm:$0xf]
  %v156 = vld [vmem:[%s4 + $0x10] sm:$0xf]
  %v157 = vld [vmem:[%s4 + $0x14] sm:$0xf]
  %v158 = vld [vmem:[%s4 + $0x18] sm:$0xf]
  %v159 = vld [vmem:[%s4 + $0x1c] sm:$0xf]
  %v160 = vld [vmem:[%s5] sm:$0x1]
  %v162 = vlaneseq
  %v163 = vshrl.u32 %v162, 7
  %v164 = vsub.s32 0, %v163
  %v165 = vrot.slane %v160, %v164
  %v175 = vunpack.c.l.b16 %v152
  %v176 = vunpack.c.l.b16 %v153
  %v177 = vunpack.c.l.b16 %v154
  %v178 = vunpack.c.l.b16 %v155
  %v179 = vunpack.c.l.b16 %v156
  %v180 = vunpack.c.l.b16 %v157
  %v181 = vunpack.c.l.b16 %v158
  %v182 = vunpack.c.l.b16 %v159
  %v183 = vpack.c.b16 %v176, %v175
  %v184 = vpack.c.b16 %v178, %v177
  %v185 = vpack.c.b16 %v180, %v179
  %v186 = vpack.c.b16 %v182, %v181
  %vm191 = vcmask 523264
  %v193 = vsel %vm191, %v151, 0
  %195 = vmatprep.subr.bf16.mxu0 0
  %196 = vmatpush1.bf16.msra.mxu0 0
  %197 = vmatprep.subr.bf16.mxu0 0
  %198 = vmatpush1.bf16.msra.mxu0 0
  %199 = vmatprep.subr.bf16.mxu0 0
  %200 = vmatpush1.bf16.msra.mxu0 0
  %201 = vmatprep.subr.bf16.mxu0 0
  %202 = vmatpush1.bf16.msra.mxu0 0
  %203 = vmatprep.subr.bf16.mxu0 0
  %204 = vmatpush1.bf16.msra.mxu0 %v186
  %205 = vmatprep.subr.bf16.mxu0 0
  %206 = vmatpush1.bf16.msra.mxu0 %v185
  %207 = vmatprep.subr.bf16.mxu0 0
  %208 = vmatpush1.bf16.msra.mxu0 %v184
  %209 = vmatprep.subr.bf16.mxu0 0
  %210 = vmatpush1.bf16.msra.mxu0 %v183
  %211 = vmatprep.subr.bf16.mxu0 0
  %212 = vmatpush2.bf16.msra.mxu0 0
  %213 = vmatprep.subr.bf16.mxu0 0
  %214 = vmatpush2.bf16.msra.mxu0 0
  %215 = vmatprep.subr.bf16.mxu0 0
  %216 = vmatpush2.bf16.msra.mxu0 0
  %217 = vmatprep.subr.bf16.mxu0 0
  %218 = vmatpush2.bf16.msra.mxu0 0
  %219 = vmatprep.subr.bf16.mxu0 0
  %220 = vmatpush2.bf16.msra.mxu0 0
  %221 = vmatprep.subr.bf16.mxu0 0
  %222 = vmatpush2.bf16.msra.mxu0 0
  %223 = vmatprep.subr.bf16.mxu0 0
  %224 = vmatpush2.bf16.msra.mxu0 0
  %225 = vmatprep.subr.bf16.mxu0 0
  %226 = vmatpush2.bf16.msra.mxu0 0
  %227 = vmatprep.mubr.bf16.mxu0 0
  %228 = vmatmul.mubr.bf16.gmra.mxu0 %v193
  %v229 = vpop.f32.mrf.mxu0
  %v230 = vadd.f32 %v165, %v229
  %v231 = vpop.f32.mrf.mxu0
  %v232 = vpop.f32.mrf.mxu0
  %v233 = vpop.f32.mrf.mxu0
  %234 = vdwg.mxu0
  %v235 = vpack.c.bf16 %v230, %v230
  %v236 = vld [vmem:[%s6] sm:$0xf]
  %v237 = vld [vmem:[%s6 + $0x4] sm:$0xf]
  %v238 = vld [vmem:[%s6 + $0x8] sm:$0xf]
  %v239 = vld [vmem:[%s6 + $0xc] sm:$0xf]
  %v240 = vld [vmem:[%s7] sm:$0x1]
  %v242 = vlaneseq
  %v243 = vshrl.u32 %v242, 7
  %v244 = vsub.s32 0, %v243
  %v245 = vrot.slane %v240, %v244
  %v251 = vunpack.c.l.b16 %v236
  %v252 = vunpack.c.l.b16 %v237
  %v253 = vunpack.c.l.b16 %v238
  %v254 = vunpack.c.l.b16 %v239
  %v255 = vpack.c.b16 %v252, %v251
  %v256 = vpack.c.b16 %v254, %v253
  %vm259 = vcmask 261120
  %v261 = vsel %vm259, %v235, 0
  %263 = vmatprep.subr.bf16.mxu0 0
  %264 = vmatpush1.bf16.msra.mxu0 0
  %265 = vmatprep.subr.bf16.mxu0 0
  %266 = vmatpush1.bf16.msra.mxu0 0
  %267 = vmatprep.subr.bf16.mxu0 0
  %268 = vmatpush1.bf16.msra.mxu0 0
  %269 = vmatprep.subr.bf16.mxu0 0
  %270 = vmatpush1.bf16.msra.mxu0 0
  %271 = vmatprep.subr.bf16.mxu0 0
  %272 = vmatpush1.bf16.msra.mxu0 0
  %273 = vmatprep.subr.bf16.mxu0 0
  %274 = vmatpush1.bf16.msra.mxu0 0
  %275 = vmatprep.subr.bf16.mxu0 0
  %276 = vmatpush1.bf16.msra.mxu0 %v256
  %277 = vmatprep.subr.bf16.mxu0 0
  %278 = vmatpush1.bf16.msra.mxu0 %v255
  %279 = vmatprep.subr.bf16.mxu0 0
  %280 = vmatpush2.bf16.msra.mxu0 0
  %281 = vmatprep.subr.bf16.mxu0 0
  %282 = vmatpush2.bf16.msra.mxu0 0
  %283 = vmatprep.subr.bf16.mxu0 0
  %284 = vmatpush2.bf16.msra.mxu0 0
  %285 = vmatprep.subr.bf16.mxu0 0
  %286 = vmatpush2.bf16.msra.mxu0 0
  %287 = vmatprep.subr.bf16.mxu0 0
  %288 = vmatpush2.bf16.msra.mxu0 0
  %289 = vmatprep.subr.bf16.mxu0 0
  %290 = vmatpush2.bf16.msra.mxu0 0
  %291 = vmatprep.subr.bf16.mxu0 0
  %292 = vmatpush2.bf16.msra.mxu0 0
  %293 = vmatprep.subr.bf16.mxu0 0
  %294 = vmatpush2.bf16.msra.mxu0 0
  %295 = vmatprep.mubr.bf16.mxu0 0
  %296 = vmatmul.mubr.bf16.gmra.mxu0 %v261
  %v297 = vpop.f32.mrf.mxu0
  %v298 = vadd.f32 %v245, %v297
  %v299 = vpop.f32.mrf.mxu0
  %v300 = vpop.f32.mrf.mxu0
  %v301 = vpop.f32.mrf.mxu0
  %302 = vdwg.mxu0
  %vm303 = vcmask 80896
  %v304 = vsel %vm303, %v298, -inf
  %305 = vmax.xlane.f32.xlu0 %v304
  %v306 = vpop.xlane.xlu0 %305
  %v307 = vsub.f32 %v298, %v306
  %v308 = vmul.f32 %v307, 1.442695
  %v309 = vpow.pop %v308
  %v310 = vsel %vm303, %v309, 0.0
  %311 = vadd.xlane.f32.xlu0 %v310
  %v312 = vpop.xlane.xlu0 %311
  %v313 = vlog2.pop %v312
  %v314 = vmul.f32 %v313, 0.6931472
  %v315 = vsub.f32 %v307, %v314
  %316 = vst.msk [vmem:[%s8] sm:$0xff] %vm303, %v315
  // Predicated region
  $region34: #{nn2_forward.15} parent=0 // pred_check
    _
  $region35: #{nn2_forward.15} parent=0 // pred_check_branch
    %318 = sbr.rel (0) target = $region37
  $region36: #{nn2_forward.15} parent=0 // pred_region
    _
  $region37: #{nn2_forward.15} parent=0 // pred_fallthru
    _
  // Predicated region
  $region38: #{nn2_forward.15} parent=0 // pred_check
    _
  $region39: #{nn2_forward.15} parent=0 // pred_check_branch
    %320 = sbr.rel (0) target = $region41
  $region40: #{nn2_forward.15} parent=0 // pred_region
    _
  $region41: #{nn2_forward.15} parent=0 // pred_fallthru
    _

// kernel: nn2_forward.14
$region0: #{nn2_forward.14}
  #allocation0 [shape = 'u32[]', space=smem, size = 0x4, offset = 0x4, fixed_abs, tag = 'smem constant byte address 0x4 - core index']
  #allocation1 [shape = 'u32[144,128]{1,0:T(1,128)}', space=vmem, size = 0x12000, scoped, tag = 'internal scratch']
  %s0 = inlined_call_operand.vmem [shape: bf16[8,4096], index: 0, kind: input, shape index: {}]
  %s1 = inlined_call_operand.vmem [shape: bf16[2,4096,64], index: 1, kind: input, shape index: {}]
  %s2 = inlined_call_operand.vmem [shape: f32[2,8,64], index: 2, kind: output, shape index: {}]
  %s3 = sld [smem:[#allocation0]]
  $region45: #{nn2_forward.14} parent=0
    _
  %s5 = ssub.s32 1, %s3
  %s6 = scalar_select 0, %s5, %s3
  loop: start=0, step=1, limit=4
  $region2: #{nn2_forward.14} parent=0 // loop_pre_header
    _
  $region3: #{nn2_forward.14} parent=0 // loop_header
    %s8 = sphi 0, %s12
    %p9 = scmp.ge.s32.totalorder %s8, 4
    %s15 = sphi 0, %s27
    %s16 = sphi 0, %s23
    %s17 = sphi 0, %s15
    %s18 = sphi 0, %s16
    %s19 = sphi 0, %s17
    %s20 = sphi 0, %s18
    %s30 = sphi 0, %s32
    %s33 = sphi 0, %s30
    %s34 = sphi 0, %s33
    %s50 = sphi 0, %s34
    %s58 = sphi 0, %s60
    %s61 = sphi 0, %s58
    %s62 = sphi 0, %s61
    %s78 = sphi 0, %s62
    %s84 = sphi 0, %s86
    %s87 = sphi 0, %s84
    %s88 = sphi 0, %s87
    %s104 = sphi 0, %s88
  $region4: #{nn2_forward.14} parent=0 // loop_header_branch
    %11 = sbr.rel (%p9) target = $region8
  $region5: #{nn2_forward.14} parent=0 // loop_body
    %s13 = ssub.s32 %s8, 1
    %s14 = ssub.s32 %s8, 2
    %s21 = sadd.s32 1, %s16
    %p22 = scmp.ge.s32.totalorder %s21, 1
    %s23 = scalar_select %p22, 0, %s21
    %s24 = sadd.s32 1, %s15
    %s25 = scalar_select %p22, %s24, %s15
    %p26 = scmp.ge.s32.totalorder %s25, 2
    %s27 = scalar_select %p26, 0, %s25
    %s28 = ssub.s32 %s16, %s23
    %p29 = scmp.eq.s32.totalorder %s28, 0
    %s31 = sadd.s32 %s30, 1
    %s32 = scalar_select %p29, %s30, %s31
    %p35 = pneg %p29
    %p36 = scmp.eq.s32.totalorder %s8, 1
    %p37 = por %p35, %p36
    %p38 = scmp.ne.s32.totalorder %s30, %s33
    %p39 = scmp.eq.s32.totalorder %s8, 0
    %p40 = por %p38, %p39
    %p41 = scmp.ne.s32.totalorder %s30, %s33
    %p42 = scmp.eq.s32.totalorder %s13, 1
    %p43 = por %p41, %p42
    %p44 = scmp.ne.s32.totalorder %s33, %s34
    %p45 = scmp.eq.s32.totalorder %s13, 0
    %p46 = por %p44, %p45
    %p47 = scmp.ne.s32.totalorder %s33, %s34
    %p48 = scmp.eq.s32.totalorder %s14, 1
    %p49 = por %p47, %p48
    %p51 = scmp.ne.s32.totalorder %s34, %s50
    %p52 = scmp.eq.s32.totalorder %s14, 0
    %p53 = por %p51, %p52
    %s54 = ssub.s32 %s15, %s27
    %s55 = ssub.s32 %s16, %s23
    %s56 = sor.u32 %s54, %s55
    %p57 = scmp.eq.s32.totalorder %s56, 0
    %s59 = sadd.s32 %s58, 1
    %s60 = scalar_select %p57, %s58, %s59
    %p63 = pneg %p57
    %p64 = scmp.eq.s32.totalorder %s8, 1
    %p65 = por %p63, %p64
    %p66 = scmp.ne.s32.totalorder %s58, %s61
    %p67 = scmp.eq.s32.totalorder %s8, 0
    %p68 = por %p66, %p67
    %p69 = scmp.ne.s32.totalorder %s58, %s61
    %p70 = scmp.eq.s32.totalorder %s13, 1
    %p71 = por %p69, %p70
    %p72 = scmp.ne.s32.totalorder %s61, %s62
    %p73 = scmp.eq.s32.totalorder %s13, 0
    %p74 = por %p72, %p73
    %p75 = scmp.ne.s32.totalorder %s61, %s62
    %p76 = scmp.eq.s32.totalorder %s14, 1
    %p77 = por %p75, %p76
    %p79 = scmp.ne.s32.totalorder %s62, %s78
    %p80 = scmp.eq.s32.totalorder %s14, 0
    %p81 = por %p79, %p80
    %s82 = ssub.s32 %s15, %s27
    %p83 = scmp.eq.s32.totalorder %s82, 0
    %s85 = sadd.s32 %s84, 1
    %s86 = scalar_select %p83, %s84, %s85
    %p89 = pneg %p83
    %p90 = scmp.eq.s32.totalorder %s8, 1
    %p91 = por %p89, %p90
    %p92 = scmp.ne.s32.totalorder %s84, %s87
    %p93 = scmp.eq.s32.totalorder %s8, 0
    %p94 = por %p92, %p93
    %p95 = scmp.ne.s32.totalorder %s84, %s87
    %p96 = scmp.eq.s32.totalorder %s13, 1
    %p97 = por %p95, %p96
    %p98 = scmp.ne.s32.totalorder %s87, %s88
    %p99 = scmp.eq.s32.totalorder %s13, 0
    %p100 = por %p98, %p99
    %p101 = scmp.ne.s32.totalorder %s87, %s88
    %p102 = scmp.eq.s32.totalorder %s14, 1
    %p103 = por %p101, %p102
    %p105 = scmp.ne.s32.totalorder %s88, %s104
    %p106 = scmp.eq.s32.totalorder %s14, 0
    %p107 = por %p105, %p106
    %p108 = scmp.le.s32.totalorder 1, %s8
    %p109 = scmp.lt.s32.totalorder %s8, 3
    %p110 = pnand %p108, %p109
    %p111 = pneg %p110
    // Predicated region
    $region9: #{nn2_forward.14} parent=5 // pred_check
      _
    $region10: #{nn2_forward.14} parent=5 // pred_check_branch
      %113 = sbr.rel (%p110) target = $region12
    $region11: #{nn2_forward.14} parent=5 // pred_region
      %s114 = ssub.s32 %s8, 1
      // Predicated region
      $region13: #{nn2_forward.14} parent=11 // pred_check
        %p115 = pneg %p46
      $region14: #{nn2_forward.14} parent=11 // pred_check_branch
        %117 = sbr.rel (%p115) target = $region16
      $region15: #{nn2_forward.14} parent=11 // pred_region
        %s118 = smul.u32 32, %s18
        %p119 = scmp.lt.s32.totalorder %s118, 31
        %s120 = scalar_select %p119, %s118, 31
        %s121 = smul.addr %s120, 4
        %s122 = scalar_lea.vmem %s0, %s121
        %s123 = smul.u32 32, %s18
      $region16: #{nn2_forward.14} parent=11 // pred_fallthru
        _
    $region12: #{nn2_forward.14} parent=5 // pred_fallthru
      _
    %p124 = scmp.lt.s32.totalorder %s8, 2
    // Predicated region
    $region17: #{nn2_forward.14} parent=5 // pred_check
      %p125 = pneg %p124
    $region18: #{nn2_forward.14} parent=5 // pred_check_branch
      %127 = sbr.rel (%p125) target = $region20
    $region19: #{nn2_forward.14} parent=5 // pred_region
      // Predicated region
      $region21: #{nn2_forward.14} parent=19 // pred_check
        %p128 = pneg %p68
      $region22: #{nn2_forward.14} parent=19 // pred_check_branch
        %130 = sbr.rel (%p128) target = $region24
      $region23: #{nn2_forward.14} parent=19 // pred_region
        %s131 = smul.u32 512, %s16
        %p132 = scmp.lt.s32.totalorder %s15, 1
        %s133 = scalar_select %p132, %s15, 1
        %p134 = scmp.lt.s32.totalorder %s131, 511
        %s135 = scalar_select %p134, %s131, 511
        %s136 = smul.addr %s133, 512
        %s137 = sadd.s32 %s135, %s136
        %s138 = smul.addr %s137, 4
        %s139 = scalar_lea.vmem %s1, %s138
        %s140 = smul.u32 512, %s16
      $region24: #{nn2_forward.14} parent=19 // pred_fallthru
        _
    $region20: #{nn2_forward.14} parent=5 // pred_fallthru
      _
    %p141 = scmp.le.s32.totalorder 1, %s8
    %p142 = scmp.lt.s32.totalorder %s8, 3
    %p143 = pnand %p141, %p142
    %p144 = pneg %p143
    // Predicated region
    $region25: #{nn2_forward.14} parent=5 // pred_check
      _
    $region26: #{nn2_forward.14} parent=5 // pred_check_branch
      %146 = sbr.rel (%p143) target = $region28
    $region27: #{nn2_forward.14} parent=5 // pred_region
      %s147 = ssub.s32 %s8, 1
      %s148 = smul.u32 32, %s18
      %p149 = scmp.lt.s32.totalorder %s148, 31
      %s150 = scalar_select %p149, %s148, 31
      %s151 = smul.addr %s150, 4
      %s152 = scalar_lea.vmem %s0, %s151
      %p153 = pneg %p46
      %p154 = pneg %p43
      %s155 = smul.u32 512, %s18
      %p156 = scmp.lt.s32.totalorder %s17, 1
      %s157 = scalar_select %p156, %s17, 1
      %p158 = scmp.lt.s32.totalorder %s155, 511
      %s159 = scalar_select %p158, %s155, 511
      %s160 = smul.addr %s157, 512
      %s161 = sadd.s32 %s159, %s160
      %s162 = smul.addr %s161, 4
      %s163 = scalar_lea.vmem %s1, %s162
      %p164 = pneg %p74
      %p165 = pneg %p71
      %p166 = pneg %p100
      %p167 = pneg %p97
      %p168 = scmp.lt.s32.totalorder %s17, 1
      %s169 = scalar_select %p168, %s17, 1
      %s170 = smul.addr %s169, 8
      %s171 = scalar_lea.vmem %s2, %s170
      %s172 = smul.u32 32, %s18
      %p173 = scmp.lt.s32.totalorder %s172, 31
      %s174 = scalar_select %p173, %s172, 31
      %s175 = smul.addr %s174, 4
      %s176 = scalar_lea.vmem %s0, %s175
      %s177 = smul.u32 32, %s18
      %s178 = smul.u32 512, %s18
      %p179 = scmp.lt.s32.totalorder %s17, 1
      %s180 = scalar_select %p179, %s17, 1
      %p181 = scmp.lt.s32.totalorder %s178, 511
      %s182 = scalar_select %p181, %s178, 511
      %s183 = smul.addr %s180, 512
      %s184 = sadd.s32 %s182, %s183
      %s185 = smul.addr %s184, 4
      %s186 = scalar_lea.vmem %s1, %s185
      %s187 = smul.u32 512, %s18
      %p188 = scmp.lt.s32.totalorder %s17, 1
      %s189 = scalar_select %p188, %s17, 1
      %s190 = smul.addr %s189, 8
      %s191 = scalar_lea.vmem %s2, %s190
      %p193 = scmp.eq.s32.totalorder %s18, 0
      // Predicated region
      $region29: #{nn2_forward.14} parent=27 // pred_check
        %p194 = pneg %p193
      $region30: #{nn2_forward.14} parent=27 // pred_check_branch
        %196 = sbr.rel (%p194) target = $region32
      $region31: #{nn2_forward.14} parent=27 // pred_region
        %vm197 = vcmask 523264
        %198 = vst.msk [vmem:[%s191] sm:$0xff] %vm197, 0.0
      $region32: #{nn2_forward.14} parent=27 // pred_fallthru
        _
      %v199 = vld [vmem:[%s191] sm:$0xff]
      %v200 = vld [vmem:[%s176] sm:$0xff]
      %v201 = vld [vmem:[%s176 + $0x8] sm:$0xff]
      %v202 = vld [vmem:[%s176 + $0x10] sm:$0xff]
      %v203 = vld [vmem:[%s176 + $0x18] sm:$0xff]
      %v204 = vld [vmem:[%s176 + $0x20] sm:$0xff]
      %v205 = vld [vmem:[%s176 + $0x28] sm:$0xff]
      %v206 = vld [vmem:[%s176 + $0x30] sm:$0xff]
      %v207 = vld [vmem:[%s176 + $0x38] sm:$0xff]
      %v208 = vld [vmem:[%s176 + $0x40] sm:$0xff]
      %v209 = vld [vmem:[%s176 + $0x48] sm:$0xff]
      %v210 = vld [vmem:[%s176 + $0x50] sm:$0xff]
      %v211 = vld [vmem:[%s176 + $0x58] sm:$0xff]
      %v212 = vld [vmem:[%s176 + $0x60] sm:$0xff]
      %v213 = vld [vmem:[%s176 + $0x68] sm:$0xff]
      %v214 = vld [vmem:[%s176 + $0x70] sm:$0xff]
      %v215 = vld [vmem:[%s176 + $0x78] sm:$0xff]
      %v216 = vld [vmem:[%s186] sm:$0xf]
      %v217 = vld [vmem:[%s186 + $0x4] sm:$0xf]
      %v218 = vld [vmem:[%s186 + $0x8] sm:$0xf]
      %v219 = vld [vmem:[%s186 + $0xc] sm:$0xf]
      %v220 = vld [vmem:[%s186 + $0x10] sm:$0xf]
      %v221 = vld [vmem:[%s186 + $0x14] sm:$0xf]
      %v222 = vld [vmem:[%s186 + $0x18] sm:$0xf]
      %v223 = vld [vmem:[%s186 + $0x1c] sm:$0xf]
      %v224 = vld [vmem:[%s186 + $0x20] sm:$0xf]
      %v225 = vld [vmem:[%s186 + $0x24] sm:$0xf]
      %v226 = vld [vmem:[%s186 + $0x28] sm:$0xf]
      %v227 = vld [vmem:[%s186 + $0x2c] sm:$0xf]
      %v228 = vld [vmem:[%s186 + $0x30] sm:$0xf]
      %v229 = vld [vmem:[%s186 + $0x34] sm:$0xf]
      %v230 = vld [vmem:[%s186 + $0x38] sm:$0xf]
      %v231 = vld [vmem:[%s186 + $0x3c] sm:$0xf]
      %v232 = vld [vmem:[%s186 + $0x40] sm:$0xf]
      %v233 = vld [vmem:[%s186 + $0x44] sm:$0xf]
      %v234 = vld [vmem:[%s186 + $0x48] sm:$0xf]
      %v235 = vld [vmem:[%s186 + $0x4c] sm:$0xf]
      %v236 = vld [vmem:[%s186 + $0x50] sm:$0xf]
      %v237 = vld [vmem:[%s186 + $0x54] sm:$0xf]
      %v238 = vld [vmem:[%s186 + $0x58] sm:$0xf]
      %v239 = vld [vmem:[%s186 + $0x5c] sm:$0xf]
      %v240 = vld [vmem:[%s186 + $0x60] sm:$0xf]
      %v241 = vld [vmem:[%s186 + $0x64] sm:$0xf]
      %v242 = vld [vmem:[%s186 + $0x68] sm:$0xf]
      %v243 = vld [vmem:[%s186 + $0x6c] sm:$0xf]
      %v244 = vld [vmem:[%s186 + $0x70] sm:$0xf]
      %v245 = vld [vmem:[%s186 + $0x74] sm:$0xf]
      %v246 = vld [vmem:[%s186 + $0x78] sm:$0xf]
      %v247 = vld [vmem:[%s186 + $0x7c] sm:$0xf]
      %v248 = vld [vmem:[%s186 + $0x80] sm:$0xf]
      %v249 = vld [vmem:[%s186 + $0x84] sm:$0xf]
      %v250 = vld [vmem:[%s186 + $0x88] sm:$0xf]
      %v251 = vld [vmem:[%s186 + $0x8c] sm:$0xf]
      %v252 = vld [vmem:[%s186 + $0x90] sm:$0xf]
      %v253 = vld [vmem:[%s186 + $0x94] sm:$0xf]
      %v254 = vld [vmem:[%s186 + $0x98] sm:$0xf]
      %v255 = vld [vmem:[%s186 + $0x9c] sm:$0xf]
      %v256 = vld [vmem:[%s186 + $0xa0] sm:$0xf]
      %v257 = vld [vmem:[%s186 + $0xa4] sm:$0xf]
      %v258 = vld [vmem:[%s186 + $0xa8] sm:$0xf]
      %v259 = vld [vmem:[%s186 + $0xac] sm:$0xf]
      %v260 = vld [vmem:[%s186 + $0xb0] sm:$0xf]
      %v261 = vld [vmem:[%s186 + $0xb4] sm:$0xf]
      %v262 = vld [vmem:[%s186 + $0xb8] sm:$0xf]
      %v263 = vld [vmem:[%s186 + $0xbc] sm:$0xf]
      %v264 = vld [vmem:[%s186 + $0xc0] sm:$0xf]
      %v265 = vld [vmem:[%s186 + $0xc4] sm:$0xf]
      %v266 = vld [vmem:[%s186 + $0xc8] sm:$0xf]
      %v267 = vld [vmem:[%s186 + $0xcc] sm:$0xf]
      %v268 = vld [vmem:[%s186 + $0xd0] sm:$0xf]
      %v269 = vld [vmem:[%s186 + $0xd4] sm:$0xf]
      %v270 = vld [vmem:[%s186 + $0xd8] sm:$0xf]
      %v271 = vld [vmem:[%s186 + $0xdc] sm:$0xf]
      %v272 = vld [vmem:[%s186 + $0xe0] sm:$0xf]
      %v273 = vld [vmem:[%s186 + $0xe4] sm:$0xf]
      %v274 = vld [vmem:[%s186 + $0xe8] sm:$0xf]
      %v275 = vld [vmem:[%s186 + $0xec] sm:$0xf]
      %v276 = vld [vmem:[%s186 + $0xf0] sm:$0xf]
      %v277 = vld [vmem:[%s186 + $0xf4] sm:$0xf]
      %v278 = vld [vmem:[%s186 + $0xf8] sm:$0xf]
      %v279 = vld [vmem:[%s186 + $0xfc] sm:$0xf]
      %v280 = vld [vmem:[%s186 + $0x100] sm:$0xf]
      %v281 = vld [vmem:[%s186 + $0x104] sm:$0xf]
      %v282 = vld [vmem:[%s186 + $0x108] sm:$0xf]
      %v283 = vld [vmem:[%s186 + $0x10c] sm:$0xf]
      %v284 = vld [vmem:[%s186 + $0x110] sm:$0xf]
      %v285 = vld [vmem:[%s186 + $0x114] sm:$0xf]
      %v286 = vld [vmem:[%s186 + $0x118] sm:$0xf]
      %v287 = vld [vmem:[%s186 + $0x11c] sm:$0xf]
      %v288 = vld [vmem:[%s186 + $0x120] sm:$0xf]
      %v289 = vld [vmem:[%s186 + $0x124] sm:$0xf]
      %v290 = vld [vmem:[%s186 + $0x128] sm:$0xf]
      %v291 = vld [vmem:[%s186 + $0x12c] sm:$0xf]
      %v292 = vld [vmem:[%s186 + $0x130] sm:$0xf]
      %v293 = vld [vmem:[%s186 + $0x134] sm:$0xf]
      %v294 = vld [vmem:[%s186 + $0x138] sm:$0xf]
      %v295 = vld [vmem:[%s186 + $0x13c] sm:$0xf]
      %v296 = vld [vmem:[%s186 + $0x140] sm:$0xf]
      %v297 = vld [vmem:[%s186 + $0x144] sm:$0xf]
      %v298 = vld [vmem:[%s186 + $0x148] sm:$0xf]
      %v299 = vld [vmem:[%s186 + $0x14c] sm:$0xf]
      %v300 = vld [vmem:[%s186 + $0x150] sm:$0xf]
      %v301 = vld [vmem:[%s186 + $0x154] sm:$0xf]
      %v302 = vld [vmem:[%s186 + $0x158] sm:$0xf]
      %v303 = vld [vmem:[%s186 + $0x15c] sm:$0xf]
      %v304 = vld [vmem:[%s186 + $0x160] sm:$0xf]
      %v305 = vld [vmem:[%s186 + $0x164] sm:$0xf]
      %v306 = vld [vmem:[%s186 + $0x168] sm:$0xf]
      %v307 = vld [vmem:[%s186 + $0x16c] sm:$0xf]
      %v308 = vld [vmem:[%s186 + $0x170] sm:$0xf]
      %v309 = vld [vmem:[%s186 + $0x174] sm:$0xf]
      %v310 = vld [vmem:[%s186 + $0x178] sm:$0xf]
      %v311 = vld [vmem:[%s186 + $0x17c] sm:$0xf]
      %v312 = vld [vmem:[%s186 + $0x180] sm:$0xf]
      %v313 = vld [vmem:[%s186 + $0x184] sm:$0xf]
      %v314 = vld [vmem:[%s186 + $0x188] sm:$0xf]
      %v315 = vld [vmem:[%s186 + $0x18c] sm:$0xf]
      %v316 = vld [vmem:[%s186 + $0x190] sm:$0xf]
      %v317 = vld [vmem:[%s186 + $0x194] sm:$0xf]
      %v318 = vld [vmem:[%s186 + $0x198] sm:$0xf]
      %v319 = vld [vmem:[%s186 + $0x19c] sm:$0xf]
      %v320 = vld [vmem:[%s186 + $0x1a0] sm:$0xf]
      %v321 = vld [vmem:[%s186 + $0x1a4] sm:$0xf]
      %v322 = vld [vmem:[%s186 + $0x1a8] sm:$0xf]
      %v323 = vld [vmem:[%s186 + $0x1ac] sm:$0xf]
      %v324 = vld [vmem:[%s186 + $0x1b0] sm:$0xf]
      %v325 = vld [vmem:[%s186 + $0x1b4] sm:$0xf]
      %v326 = vld [vmem:[%s186 + $0x1b8] sm:$0xf]
      %v327 = vld [vmem:[%s186 + $0x1bc] sm:$0xf]
      %v328 = vld [vmem:[%s186 + $0x1c0] sm:$0xf]
      %v329 = vld [vmem:[%s186 + $0x1c4] sm:$0xf]
      %v330 = vld [vmem:[%s186 + $0x1c8] sm:$0xf]
      %v331 = vld [vmem:[%s186 + $0x1cc] sm:$0xf]
      %v332 = vld [vmem:[%s186 + $0x1d0] sm:$0xf]
      %v333 = vld [vmem:[%s186 + $0x1d4] sm:$0xf]
      %v334 = vld [vmem:[%s186 + $0x1d8] sm:$0xf]
      %v335 = vld [vmem:[%s186 + $0x1dc] sm:$0xf]
      %v336 = vld [vmem:[%s186 + $0x1e0] sm:$0xf]
      %v337 = vld [vmem:[%s186 + $0x1e4] sm:$0xf]
      %v338 = vld [vmem:[%s186 + $0x1e8] sm:$0xf]
      %v339 = vld [vmem:[%s186 + $0x1ec] sm:$0xf]
      %v340 = vld [vmem:[%s186 + $0x1f0] sm:$0xf]
      %v341 = vld [vmem:[%s186 + $0x1f4] sm:$0xf]
      %v342 = vld [vmem:[%s186 + $0x1f8] sm:$0xf]
      %v343 = vld [vmem:[%s186 + $0x1fc] sm:$0xf]
      %v344 = vld [vmem:[%s186 + $0x200] sm:$0xf]
      %v345 = vld [vmem:[%s186 + $0x204] sm:$0xf]
      %v346 = vld [vmem:[%s186 + $0x208] sm:$0xf]
      %v347 = vld [vmem:[%s186 + $0x20c] sm:$0xf]
      %v348 = vld [vmem:[%s186 + $0x210] sm:$0xf]
      %v349 = vld [vmem:[%s186 + $0x214] sm:$0xf]
      %v350 = vld [vmem:[%s186 + $0x218] sm:$0xf]
      %v351 = vld [vmem:[%s186 + $0x21c] sm:$0xf]
      %v352 = vld [vmem:[%s186 + $0x220] sm:$0xf]
      %v353 = vld [vmem:[%s186 + $0x224] sm:$0xf]
      %v354 = vld [vmem:[%s186 + $0x228] sm:$0xf]
      %v355 = vld [vmem:[%s186 + $0x22c] sm:$0xf]
      %v356 = vld [vmem:[%s186 + $0x230] sm:$0xf]
      %v357 = vld [vmem:[%s186 + $0x234] sm:$0xf]
      %v358 = vld [vmem:[%s186 + $0x238] sm:$0xf]
      %v359 = vld [vmem:[%s186 + $0x23c] sm:$0xf]
      %v360 = vld [vmem:[%s186 + $0x240] sm:$0xf]
      %v361 = vld [vmem:[%s186 + $0x244] sm:$0xf]
      %v362 = vld [vmem:[%s186 + $0x248] sm:$0xf]
      %v363 = vld [vmem:[%s186 + $0x24c] sm:$0xf]
      %v364 = vld [vmem:[%s186 + $0x250] sm:$0xf]
      %v365 = vld [vmem:[%s186 + $0x254] sm:$0xf]
      %v366 = vld [vmem:[%s186 + $0x258] sm:$0xf]
      %v367 = vld [vmem:[%s186 + $0x25c] sm:$0xf]
      %v368 = vld [vmem:[%s186 + $0x260] sm:$0xf]
      %v369 = vld [vmem:[%s186 + $0x264] sm:$0xf]
      %v370 = vld [vmem:[%s186 + $0x268] sm:$0xf]
      %v371 = vld [vmem:[%s186 + $0x26c] sm:$0xf]
      %v372 = vld [vmem:[%s186 + $0x270] sm:$0xf]
      %v373 = vld [vmem:[%s186 + $0x274] sm:$0xf]
      %v374 = vld [vmem:[%s186 + $0x278] sm:$0xf]
      %v375 = vld [vmem:[%s186 + $0x27c] sm:$0xf]
      %v376 = vld [vmem:[%s186 + $0x280] sm:$0xf]
      %v377 = vld [vmem:[%s186 + $0x284] sm:$0xf]
      %v378 = vld [vmem:[%s186 + $0x288] sm:$0xf]
      %v379 = vld [vmem:[%s186 + $0x28c] sm:$0xf]
      %v380 = vld [vmem:[%s186 + $0x290] sm:$0xf]
      %v381 = vld [vmem:[%s186 + $0x294] sm:$0xf]
      %v382 = vld [vmem:[%s186 + $0x298] sm:$0xf]
      %v383 = vld [vmem:[%s186 + $0x29c] sm:$0xf]
      %v384 = vld [vmem:[%s186 + $0x2a0] sm:$0xf]
      %v385 = vld [vmem:[%s186 + $0x2a4] sm:$0xf]
      %v386 = vld [vmem:[%s186 + $0x2a8] sm:$0xf]
      %v387 = vld [vmem:[%s186 + $0x2ac] sm:$0xf]
      %v388 = vld [vmem:[%s186 + $0x2b0] sm:$0xf]
      %v389 = vld [vmem:[%s186 + $0x2b4] sm:$0xf]
      %v390 = vld [vmem:[%s186 + $0x2b8] sm:$0xf]
      %v391 = vld [vmem:[%s186 + $0x2bc] sm:$0xf]
      %v392 = vld [vmem:[%s186 + $0x2c0] sm:$0xf]
      %v393 = vld [vmem:[%s186 + $0x2c4] sm:$0xf]
      %v394 = vld [vmem:[%s186 + $0x2c8] sm:$0xf]
      %v395 = vld [vmem:[%s186 + $0x2cc] sm:$0xf]
      %v396 = vld [vmem:[%s186 + $0x2d0] sm:$0xf]
      %v397 = vld [vmem:[%s186 + $0x2d4] sm:$0xf]
      %v398 = vld [vmem:[%s186 + $0x2d8] sm:$0xf]
      %v399 = vld [vmem:[%s186 + $0x2dc] sm:$0xf]
      %v400 = vld [vmem:[%s186 + $0x2e0] sm:$0xf]
      %v401 = vld [vmem:[%s186 + $0x2e4] sm:$0xf]
      %v402 = vld [vmem:[%s186 + $0x2e8] sm:$0xf]
      %v403 = vld [vmem:[%s186 + $0x2ec] sm:$0xf]
      %v404 = vld [vmem:[%s186 + $0x2f0] sm:$0xf]
      %v405 = vld [vmem:[%s186 + $0x2f4] sm:$0xf]
      %v406 = vld [vmem:[%s186 + $0x2f8] sm:$0xf]
      %v407 = vld [vmem:[%s186 + $0x2fc] sm:$0xf]
      %v408 = vld [vmem:[%s186 + $0x300] sm:$0xf]
      %v409 = vld [vmem:[%s186 + $0x304] sm:$0xf]
      %v410 = vld [vmem:[%s186 + $0x308] sm:$0xf]
      %v411 = vld [vmem:[%s186 + $0x30c] sm:$0xf]
      %v412 = vld [vmem:[%s186 + $0x310] sm:$0xf]
      %v413 = vld [vmem:[%s186 + $0x314] sm:$0xf]
      %v414 = vld [vmem:[%s186 + $0x318] sm:$0xf]
      %v415 = vld [vmem:[%s186 + $0x31c] sm:$0xf]
      %v416 = vld [vmem:[%s186 + $0x320] sm:$0xf]
      %v417 = vld [vmem:[%s186 + $0x324] sm:$0xf]
      %v418 = vld [vmem:[%s186 + $0x328] sm:$0xf]
      %v419 = vld [vmem:[%s186 + $0x32c] sm:$0xf]
      %v420 = vld [vmem:[%s186 + $0x330] sm:$0xf]
      %v421 = vld [vmem:[%s186 + $0x334] sm:$0xf]
      %v422 = vld [vmem:[%s186 + $0x338] sm:$0xf]
      %v423 = vld [vmem:[%s186 + $0x33c] sm:$0xf]
      %v424 = vld [vmem:[%s186 + $0x340] sm:$0xf]
      %v425 = vld [vmem:[%s186 + $0x344] sm:$0xf]
      %v426 = vld [vmem:[%s186 + $0x348] sm:$0xf]
      %v427 = vld [vmem:[%s186 + $0x34c] sm:$0xf]
      %v428 = vld [vmem:[%s186 + $0x350] sm:$0xf]
      %v429 = vld [vmem:[%s186 + $0x354] sm:$0xf]
      %v430 = vld [vmem:[%s186 + $0x358] sm:$0xf]
      %v431 = vld [vmem:[%s186 + $0x35c] sm:$0xf]
      %v432 = vld [vmem:[%s186 + $0x360] sm:$0xf]
      %v433 = vld [vmem:[%s186 + $0x364] sm:$0xf]
      %v434 = vld [vmem:[%s186 + $0x368] sm:$0xf]
      %v435 = vld [vmem:[%s186 + $0x36c] sm:$0xf]
      %v436 = vld [vmem:[%s186 + $0x370] sm:$0xf]
      %v437 = vld [vmem:[%s186 + $0x374] sm:$0xf]
      %v438 = vld [vmem:[%s186 + $0x378] sm:$0xf]
      %v439 = vld [vmem:[%s186 + $0x37c] sm:$0xf]
      %v440 = vld [vmem:[%s186 + $0x380] sm:$0xf]
      %v441 = vld [vmem:[%s186 + $0x384] sm:$0xf]
      %v442 = vld [vmem:[%s186 + $0x388] sm:$0xf]
      %v443 = vld [vmem:[%s186 + $0x38c] sm:$0xf]
      %v444 = vld [vmem:[%s186 + $0x390] sm:$0xf]
      %v445 = vld [vmem:[%s186 + $0x394] sm:$0xf]
      %v446 = vld [vmem:[%s186 + $0x398] sm:$0xf]
      %v447 = vld [vmem:[%s186 + $0x39c] sm:$0xf]
      %v448 = vld [vmem:[%s186 + $0x3a0] sm:$0xf]
      %v449 = vld [vmem:[%s186 + $0x3a4] sm:$0xf]
      %v450 = vld [vmem:[%s186 + $0x3a8] sm:$0xf]
      %v451 = vld [vmem:[%s186 + $0x3ac] sm:$0xf]
      %v452 = vld [vmem:[%s186 + $0x3b0] sm:$0xf]
      %v453 = vld [vmem:[%s186 + $0x3b4] sm:$0xf]
      %v454 = vld [vmem:[%s186 + $0x3b8] sm:$0xf]
      %v455 = vld [vmem:[%s186 + $0x3bc] sm:$0xf]
      %v456 = vld [vmem:[%s186 + $0x3c0] sm:$0xf]
      %v457 = vld [vmem:[%s186 + $0x3c4] sm:$0xf]
      %v458 = vld [vmem:[%s186 + $0x3c8] sm:$0xf]
      %v459 = vld [vmem:[%s186 + $0x3cc] sm:$0xf]
      %v460 = vld [vmem:[%s186 + $0x3d0] sm:$0xf]
      %v461 = vld [vmem:[%s186 + $0x3d4] sm:$0xf]
      %v462 = vld [vmem:[%s186 + $0x3d8] sm:$0xf]
      %v463 = vld [vmem:[%s186 + $0x3dc] sm:$0xf]
      %v464 = vld [vmem:[%s186 + $0x3e0] sm:$0xf]
      %v465 = vld [vmem:[%s186 + $0x3e4] sm:$0xf]
      %v466 = vld [vmem:[%s186 + $0x3e8] sm:$0xf]
      %v467 = vld [vmem:[%s186 + $0x3ec] sm:$0xf]
      %v468 = vld [vmem:[%s186 + $0x3f0] sm:$0xf]
      %v469 = vld [vmem:[%s186 + $0x3f4] sm:$0xf]
      %v470 = vld [vmem:[%s186 + $0x3f8] sm:$0xf]
      %v471 = vld [vmem:[%s186 + $0x3fc] sm:$0xf]
      %v472 = vld [vmem:[%s186 + $0x400] sm:$0xf]
      %v473 = vld [vmem:[%s186 + $0x404] sm:$0xf]
      %v474 = vld [vmem:[%s186 + $0x408] sm:$0xf]
      %v475 = vld [vmem:[%s186 + $0x40c] sm:$0xf]
      %v476 = vld [vmem:[%s186 + $0x410] sm:$0xf]
      %v477 = vld [vmem:[%s186 + $0x414] sm:$0xf]
      %v478 = vld [vmem:[%s186 + $0x418] sm:$0xf]
      %v479 = vld [vmem:[%s186 + $0x41c] sm:$0xf]
      %v480 = vld [vmem:[%s186 + $0x420] sm:$0xf]
      %v481 = vld [vmem:[%s186 + $0x424] sm:$0xf]
      %v482 = vld [vmem:[%s186 + $0x428] sm:$0xf]
      %v483 = vld [vmem:[%s186 + $0x42c] sm:$0xf]
      %v484 = vld [vmem:[%s186 + $0x430] sm:$0xf]
      %v485 = vld [vmem:[%s186 + $0x434] sm:$0xf]
      %v486 = vld [vmem:[%s186 + $0x438] sm:$0xf]
      %v487 = vld [vmem:[%s186 + $0x43c] sm:$0xf]
      %v488 = vld [vmem:[%s186 + $0x440] sm:$0xf]
      %v489 = vld [vmem:[%s186 + $0x444] sm:$0xf]
      %v490 = vld [vmem:[%s186 + $0x448] sm:$0xf]
      %v491 = vld [vmem:[%s186 + $0x44c] sm:$0xf]
      %v492 = vld [vmem:[%s186 + $0x450] sm:$0xf]
      %v493 = vld [vmem:[%s186 + $0x454] sm:$0xf]
      %v494 = vld [vmem:[%s186 + $0x458] sm:$0xf]
      %v495 = vld [vmem:[%s186 + $0x45c] sm:$0xf]
      %v496 = vld [vmem:[%s186 + $0x460] sm:$0xf]
      %v497 = vld [vmem:[%s186 + $0x464] sm:$0xf]
      %v498 = vld [vmem:[%s186 + $0x468] sm:$0xf]
      %v499 = vld [vmem:[%s186 + $0x46c] sm:$0xf]
      %v500 = vld [vmem:[%s186 + $0x470] sm:$0xf]
      %v501 = vld [vmem:[%s186 + $0x474] sm:$0xf]
      %v502 = vld [vmem:[%s186 + $0x478] sm:$0xf]
      %v503 = vld [vmem:[%s186 + $0x47c] sm:$0xf]
      %v504 = vld [vmem:[%s186 + $0x480] sm:$0xf]
      %v505 = vld [vmem:[%s186 + $0x484] sm:$0xf]
      %v506 = vld [vmem:[%s186 + $0x488] sm:$0xf]
      %v507 = vld [vmem:[%s186 + $0x48c] sm:$0xf]
      %v508 = vld [vmem:[%s186 + $0x490] sm:$0xf]
      %v509 = vld [vmem:[%s186 + $0x494] sm:$0xf]
      %v510 = vld [vmem:[%s186 + $0x498] sm:$0xf]
      %v511 = vld [vmem:[%s186 + $0x49c] sm:$0xf]
      %v512 = vld [vmem:[%s186 + $0x4a0] sm:$0xf]
      %v513 = vld [vmem:[%s186 + $0x4a4] sm:$0xf]
      %v514 = vld [vmem:[%s186 + $0x4a8] sm:$0xf]
      %v515 = vld [vmem:[%s186 + $0x4ac] sm:$0xf]
      %v516 = vld [vmem:[%s186 + $0x4b0] sm:$0xf]
      %v517 = vld [vmem:[%s186 + $0x4b4] sm:$0xf]
      %v518 = vld [vmem:[%s186 + $0x4b8] sm:$0xf]
      %v519 = vld [vmem:[%s186 + $0x4bc] sm:$0xf]
      %v520 = vld [vmem:[%s186 + $0x4c0] sm:$0xf]
      %v521 = vld [vmem:[%s186 + $0x4c4] sm:$0xf]
      %v522 = vld [vmem:[%s186 + $0x4c8] sm:$0xf]
      %v523 = vld [vmem:[%s186 + $0x4cc] sm:$0xf]
      %v524 = vld [vmem:[%s186 + $0x4d0] sm:$0xf]
      %v525 = vld [vmem:[%s186 + $0x4d4] sm:$0xf]
      %v526 = vld [vmem:[%s186 + $0x4d8] sm:$0xf]
      %v527 = vld [vmem:[%s186 + $0x4dc] sm:$0xf]
      %v528 = vld [vmem:[%s186 + $0x4e0] sm:$0xf]
      %v529 = vld [vmem:[%s186 + $0x4e4] sm:$0xf]
      %v530 = vld [vmem:[%s186 + $0x4e8] sm:$0xf]
      %v531 = vld [vmem:[%s186 + $0x4ec] sm:$0xf]
      %v532 = vld [vmem:[%s186 + $0x4f0] sm:$0xf]
      %v533 = vld [vmem:[%s186 + $0x4f4] sm:$0xf]
      %v534 = vld [vmem:[%s186 + $0x4f8] sm:$0xf]
      %v535 = vld [vmem:[%s186 + $0x4fc] sm:$0xf]
      %v536 = vld [vmem:[%s186 + $0x500] sm:$0xf]
      %v537 = vld [vmem:[%s186 + $0x504] sm:$0xf]
      %v538 = vld [vmem:[%s186 + $0x508] sm:$0xf]
      %v539 = vld [vmem:[%s186 + $0x50c] sm:$0xf]
      %v540 = vld [vmem:[%s186 + $0x510] sm:$0xf]
      %v541 = vld [vmem:[%s186 + $0x514] sm:$0xf]
      %v542 = vld [vmem:[%s186 + $0x518] sm:$0xf]
      %v543 = vld [vmem:[%s186 + $0x51c] sm:$0xf]
      %v544 = vld [vmem:[%s186 + $0x520] sm:$0xf]
      %v545 = vld [vmem:[%s186 + $0x524] sm:$0xf]
      %v546 = vld [vmem:[%s186 + $0x528] sm:$0xf]
      %v547 = vld [vmem:[%s186 + $0x52c] sm:$0xf]
      %v548 = vld [vmem:[%s186 + $0x530] sm:$0xf]
      %v549 = vld [vmem:[%s186 + $0x534] sm:$0xf]
      %v550 = vld [vmem:[%s186 + $0x538] sm:$0xf]
      %v551 = vld [vmem:[%s186 + $0x53c] sm:$0xf]
      %v552 = vld [vmem:[%s186 + $0x540] sm:$0xf]
      %v553 = vld [vmem:[%s186 + $0x544] sm:$0xf]
      %v554 = vld [vmem:[%s186 + $0x548] sm:$0xf]
      %v555 = vld [vmem:[%s186 + $0x54c] sm:$0xf]
      %v556 = vld [vmem:[%s186 + $0x550] sm:$0xf]
      %v557 = vld [vmem:[%s186 + $0x554] sm:$0xf]
      %v558 = vld [vmem:[%s186 + $0x558] sm:$0xf]
      %v559 = vld [vmem:[%s186 + $0x55c] sm:$0xf]
      %v560 = vld [vmem:[%s186 + $0x560] sm:$0xf]
      %v561 = vld [vmem:[%s186 + $0x564] sm:$0xf]
      %v562 = vld [vmem:[%s186 + $0x568] sm:$0xf]
      %v563 = vld [vmem:[%s186 + $0x56c] sm:$0xf]
      %v564 = vld [vmem:[%s186 + $0x570] sm:$0xf]
      %v565 = vld [vmem:[%s186 + $0x574] sm:$0xf]
      %v566 = vld [vmem:[%s186 + $0x578] sm:$0xf]
      %v567 = vld [vmem:[%s186 + $0x57c] sm:$0xf]
      %v568 = vld [vmem:[%s186 + $0x580] sm:$0xf]
      %v569 = vld [vmem:[%s186 + $0x584] sm:$0xf]
      %v570 = vld [vmem:[%s186 + $0x588] sm:$0xf]
      %v571 = vld [vmem:[%s186 + $0x58c] sm:$0xf]
      %v572 = vld [vmem:[%s186 + $0x590] sm:$0xf]
      %v573 = vld [vmem:[%s186 + $0x594] sm:$0xf]
      %v574 = vld [vmem:[%s186 + $0x598] sm:$0xf]
      %v575 = vld [vmem:[%s186 + $0x59c] sm:$0xf]
      %v576 = vld [vmem:[%s186 + $0x5a0] sm:$0xf]
      %v577 = vld [vmem:[%s186 + $0x5a4] sm:$0xf]
      %v578 = vld [vmem:[%s186 + $0x5a8] sm:$0xf]
      %v579 = vld [vmem:[%s186 + $0x5ac] sm:$0xf]
      %v580 = vld [vmem:[%s186 + $0x5b0] sm:$0xf]
      %v581 = vld [vmem:[%s186 + $0x5b4] sm:$0xf]
      %v582 = vld [vmem:[%s186 + $0x5b8] sm:$0xf]
      %v583 = vld [vmem:[%s186 + $0x5bc] sm:$0xf]
      %v584 = vld [vmem:[%s186 + $0x5c0] sm:$0xf]
      %v585 = vld [vmem:[%s186 + $0x5c4] sm:$0xf]
      %v586 = vld [vmem:[%s186 + $0x5c8] sm:$0xf]
      %v587 = vld [vmem:[%s186 + $0x5cc] sm:$0xf]
      %v588 = vld [vmem:[%s186 + $0x5d0] sm:$0xf]
      %v589 = vld [vmem:[%s186 + $0x5d4] sm:$0xf]
      %v590 = vld [vmem:[%s186 + $0x5d8] sm:$0xf]
      %v591 = vld [vmem:[%s186 + $0x5dc] sm:$0xf]
      %v592 = vld [vmem:[%s186 + $0x5e0] sm:$0xf]
      %v593 = vld [vmem:[%s186 + $0x5e4] sm:$0xf]
      %v594 = vld [vmem:[%s186 + $0x5e8] sm:$0xf]
      %v595 = vld [vmem:[%s186 + $0x5ec] sm:$0xf]
      %v596 = vld [vmem:[%s186 + $0x5f0] sm:$0xf]
      %v597 = vld [vmem:[%s186 + $0x5f4] sm:$0xf]
      %v598 = vld [vmem:[%s186 + $0x5f8] sm:$0xf]
      %v599 = vld [vmem:[%s186 + $0x5fc] sm:$0xf]
      %v600 = vld [vmem:[%s186 + $0x600] sm:$0xf]
      %v601 = vld [vmem:[%s186 + $0x604] sm:$0xf]
      %v602 = vld [vmem:[%s186 + $0x608] sm:$0xf]
      %v603 = vld [vmem:[%s186 + $0x60c] sm:$0xf]
      %v604 = vld [vmem:[%s186 + $0x610] sm:$0xf]
      %v605 = vld [vmem:[%s186 + $0x614] sm:$0xf]
      %v606 = vld [vmem:[%s186 + $0x618] sm:$0xf]
      %v607 = vld [vmem:[%s186 + $0x61c] sm:$0xf]
      %v608 = vld [vmem:[%s186 + $0x620] sm:$0xf]
      %v609 = vld [vmem:[%s186 + $0x624] sm:$0xf]
      %v610 = vld [vmem:[%s186 + $0x628] sm:$0xf]
      %v611 = vld [vmem:[%s186 + $0x62c] sm:$0xf]
      %v612 = vld [vmem:[%s186 + $0x630] sm:$0xf]
      %v613 = vld [vmem:[%s186 + $0x634] sm:$0xf]
      %v614 = vld [vmem:[%s186 + $0x638] sm:$0xf]
      %v615 = vld [vmem:[%s186 + $0x63c] sm:$0xf]
      %v616 = vld [vmem:[%s186 + $0x640] sm:$0xf]
      %v617 = vld [vmem:[%s186 + $0x644] sm:$0xf]
      %v618 = vld [vmem:[%s186 + $0x648] sm:$0xf]
      %v619 = vld [vmem:[%s186 + $0x64c] sm:$0xf]
      %v620 = vld [vmem:[%s186 + $0x650] sm:$0xf]
      %v621 = vld [vmem:[%s186 + $0x654] sm:$0xf]
      %v622 = vld [vmem:[%s186 + $0x658] sm:$0xf]
      %v623 = vld [vmem:[%s186 + $0x65c] sm:$0xf]
      %v624 = vld [vmem:[%s186 + $0x660] sm:$0xf]
      %v625 = vld [vmem:[%s186 + $0x664] sm:$0xf]
      %v626 = vld [vmem:[%s186 + $0x668] sm:$0xf]
      %v627 = vld [vmem:[%s186 + $0x66c] sm:$0xf]
      %v628 = vld [vmem:[%s186 + $0x670] sm:$0xf]
      %v629 = vld [vmem:[%s186 + $0x674] sm:$0xf]
      %v630 = vld [vmem:[%s186 + $0x678] sm:$0xf]
      %v631 = vld [vmem:[%s186 + $0x67c] sm:$0xf]
      %v632 = vld [vmem:[%s186 + $0x680] sm:$0xf]
      %v633 = vld [vmem:[%s186 + $0x684] sm:$0xf]
      %v634 = vld [vmem:[%s186 + $0x688] sm:$0xf]
      %v635 = vld [vmem:[%s186 + $0x68c] sm:$0xf]
      %v636 = vld [vmem:[%s186 + $0x690] sm:$0xf]
      %v637 = vld [vmem:[%s186 + $0x694] sm:$0xf]
      %v638 = vld [vmem:[%s186 + $0x698] sm:$0xf]
      %v639 = vld [vmem:[%s186 + $0x69c] sm:$0xf]
      %v640 = vld [vmem:[%s186 + $0x6a0] sm:$0xf]
      %v641 = vld [vmem:[%s186 + $0x6a4] sm:$0xf]
      %v642 = vld [vmem:[%s186 + $0x6a8] sm:$0xf]
      %v643 = vld [vmem:[%s186 + $0x6ac] sm:$0xf]
      %v644 = vld [vmem:[%s186 + $0x6b0] sm:$0xf]
      %v645 = vld [vmem:[%s186 + $0x6b4] sm:$0xf]
      %v646 = vld [vmem:[%s186 + $0x6b8] sm:$0xf]
      %v647 = vld [vmem:[%s186 + $0x6bc] sm:$0xf]
      %v648 = vld [vmem:[%s186 + $0x6c0] sm:$0xf]
      %v649 = vld [vmem:[%s186 + $0x6c4] sm:$0xf]
      %v650 = vld [vmem:[%s186 + $0x6c8] sm:$0xf]
      %v651 = vld [vmem:[%s186 + $0x6cc] sm:$0xf]
      %v652 = vld [vmem:[%s186 + $0x6d0] sm:$0xf]
      %v653 = vld [vmem:[%s186 + $0x6d4] sm:$0xf]
      %v654 = vld [vmem:[%s186 + $0x6d8] sm:$0xf]
      %v655 = vld [vmem:[%s186 + $0x6dc] sm:$0xf]
      %v656 = vld [vmem:[%s186 + $0x6e0] sm:$0xf]
      %v657 = vld [vmem:[%s186 + $0x6e4] sm:$0xf]
      %v658 = vld [vmem:[%s186 + $0x6e8] sm:$0xf]
      %v659 = vld [vmem:[%s186 + $0x6ec] sm:$0xf]
      %v660 = vld [vmem:[%s186 + $0x6f0] sm:$0xf]
      %v661 = vld [vmem:[%s186 + $0x6f4] sm:$0xf]
      %v662 = vld [vmem:[%s186 + $0x6f8] sm:$0xf]
      %v663 = vld [vmem:[%s186 + $0x6fc] sm:$0xf]
      %v664 = vld [vmem:[%s186 + $0x700] sm:$0xf]
      %v665 = vld [vmem:[%s186 + $0x704] sm:$0xf]
      %v666 = vld [vmem:[%s186 + $0x708] sm:$0xf]
      %v667 = vld [vmem:[%s186 + $0x70c] sm:$0xf]
      %v668 = vld [vmem:[%s186 + $0x710] sm:$0xf]
      %v669 = vld [vmem:[%s186 + $0x714] sm:$0xf]
      %v670 = vld [vmem:[%s186 + $0x718] sm:$0xf]
      %v671 = vld [vmem:[%s186 + $0x71c] sm:$0xf]
      %v672 = vld [vmem:[%s186 + $0x720] sm:$0xf]
      %v673 = vld [vmem:[%s186 + $0x724] sm:$0xf]
      %v674 = vld [vmem:[%s186 + $0x728] sm:$0xf]
      %v675 = vld [vmem:[%s186 + $0x72c] sm:$0xf]
      %v676 = vld [vmem:[%s186 + $0x730] sm:$0xf]
      %v677 = vld [vmem:[%s186 + $0x734] sm:$0xf]
      %v678 = vld [vmem:[%s186 + $0x738] sm:$0xf]
      %v679 = vld [vmem:[%s186 + $0x73c] sm:$0xf]
      %v680 = vld [vmem:[%s186 + $0x740] sm:$0xf]
      %v681 = vld [vmem:[%s186 + $0x744] sm:$0xf]
      %v682 = vld [vmem:[%s186 + $0x748] sm:$0xf]
      %v683 = vld [vmem:[%s186 + $0x74c] sm:$0xf]
      %v684 = vld [vmem:[%s186 + $0x750] sm:$0xf]
      %v685 = vld [vmem:[%s186 + $0x754] sm:$0xf]
      %v686 = vld [vmem:[%s186 + $0x758] sm:$0xf]
      %v687 = vld [vmem:[%s186 + $0x75c] sm:$0xf]
      %v688 = vld [vmem:[%s186 + $0x760] sm:$0xf]
      %v689 = vld [vmem:[%s186 + $0x764] sm:$0xf]
      %v690 = vld [vmem:[%s186 + $0x768] sm:$0xf]
      %v691 = vld [vmem:[%s186 + $0x76c] sm:$0xf]
      %v692 = vld [vmem:[%s186 + $0x770] sm:$0xf]
      %v693 = vld [vmem:[%s186 + $0x774] sm:$0xf]
      %v694 = vld [vmem:[%s186 + $0x778] sm:$0xf]
      %v695 = vld [vmem:[%s186 + $0x77c] sm:$0xf]
      %v696 = vld [vmem:[%s186 + $0x780] sm:$0xf]
      %v697 = vld [vmem:[%s186 + $0x784] sm:$0xf]
      %v698 = vld [vmem:[%s186 + $0x788] sm:$0xf]
      %v699 = vld [vmem:[%s186 + $0x78c] sm:$0xf]
      %v700 = vld [vmem:[%s186 + $0x790] sm:$0xf]
      %v701 = vld [vmem:[%s186 + $0x794] sm:$0xf]
      %v702 = vld [vmem:[%s186 + $0x798] sm:$0xf]
      %v703 = vld [vmem:[%s186 + $0x79c] sm:$0xf]
      %v704 = vld [vmem:[%s186 + $0x7a0] sm:$0xf]
      %v705 = vld [vmem:[%s186 + $0x7a4] sm:$0xf]
      %v706 = vld [vmem:[%s186 + $0x7a8] sm:$0xf]
      %v707 = vld [vmem:[%s186 + $0x7ac] sm:$0xf]
      %v708 = vld [vmem:[%s186 + $0x7b0] sm:$0xf]
      %v709 = vld [vmem:[%s186 + $0x7b4] sm:$0xf]
      %v710 = vld [vmem:[%s186 + $0x7b8] sm:$0xf]
      %v711 = vld [vmem:[%s186 + $0x7bc] sm:$0xf]
      %v712 = vld [vmem:[%s186 + $0x7c0] sm:$0xf]
      %v713 = vld [vmem:[%s186 + $0x7c4] sm:$0xf]
      %v714 = vld [vmem:[%s186 + $0x7c8] sm:$0xf]
      %v715 = vld [vmem:[%s186 + $0x7cc] sm:$0xf]
      %v716 = vld [vmem:[%s186 + $0x7d0] sm:$0xf]
      %v717 = vld [vmem:[%s186 + $0x7d4] sm:$0xf]
      %v718 = vld [vmem:[%s186 + $0x7d8] sm:$0xf]
      %v719 = vld [vmem:[%s186 + $0x7dc] sm:$0xf]
      %v720 = vld [vmem:[%s186 + $0x7e0] sm:$0xf]
      %v721 = vld [vmem:[%s186 + $0x7e4] sm:$0xf]
      %v722 = vld [vmem:[%s186 + $0x7e8] sm:$0xf]
      %v723 = vld [vmem:[%s186 + $0x7ec] sm:$0xf]
      %v724 = vld [vmem:[%s186 + $0x7f0] sm:$0xf]
      %v725 = vld [vmem:[%s186 + $0x7f4] sm:$0xf]
      %v726 = vld [vmem:[%s186 + $0x7f8] sm:$0xf]
      %v727 = vld [vmem:[%s186 + $0x7fc] sm:$0xf]
      %v744 = vunpack.c.l.b16 %v200
      %v745 = vunpack.c.h.b16 %v200
      %v746 = vunpack.c.l.b16 %v201
      %v747 = vunpack.c.h.b16 %v201
      %v748 = vunpack.c.l.b16 %v202
      %v749 = vunpack.c.h.b16 %v202
      %v750 = vunpack.c.l.b16 %v203
      %v751 = vunpack.c.h.b16 %v203
      %v752 = vunpack.c.l.b16 %v204
      %v753 = vunpack.c.h.b16 %v204
      %v754 = vunpack.c.l.b16 %v205
      %v755 = vunpack.c.h.b16 %v205
      %v756 = vunpack.c.l.b16 %v206
      %v757 = vunpack.c.h.b16 %v206
      %v758 = vunpack.c.l.b16 %v207
      %v759 = vunpack.c.h.b16 %v207
      %v760 = vunpack.c.l.b16 %v208
      %v761 = vunpack.c.h.b16 %v208
      %v762 = vunpack.c.l.b16 %v209
      %v763 = vunpack.c.h.b16 %v209
      %v764 = vunpack.c.l.b16 %v210
      %v765 = vunpack.c.h.b16 %v210
      %v766 = vunpack.c.l.b16 %v211
      %v767 = vunpack.c.h.b16 %v211
      %v768 = vunpack.c.l.b16 %v212
      %v769 = vunpack.c.h.b16 %v212
      %v770 = vunpack.c.l.b16 %v213
      %v771 = vunpack.c.h.b16 %v213
      %v772 = vunpack.c.l.b16 %v214
      %v773 = vunpack.c.h.b16 %v214
      %v774 = vunpack.c.l.b16 %v215
      %v775 = vunpack.c.h.b16 %v215
      %v776 = vpack.c.b16 %v744, %v744
      %v777 = vpack.c.b16 %v745, %v745
      %v778 = vpack.c.b16 %v746, %v746
      %v779 = vpack.c.b16 %v747, %v747
      %v780 = vpack.c.b16 %v748, %v748
      %v781 = vpack.c.b16 %v749, %v749
      %v782 = vpack.c.b16 %v750, %v750
      %v783 = vpack.c.b16 %v751, %v751
      %v784 = vpack.c.b16 %v752, %v752
      %v785 = vpack.c.b16 %v753, %v753
      %v786 = vpack.c.b16 %v754, %v754
      %v787 = vpack.c.b16 %v755, %v755
      %v788 = vpack.c.b16 %v756, %v756
      %v789 = vpack.c.b16 %v757, %v757
      %v790 = vpack.c.b16 %v758, %v758
      %v791 = vpack.c.b16 %v759, %v759
      %v792 = vpack.c.b16 %v760, %v760
      %v793 = vpack.c.b16 %v761, %v761
      %v794 = vpack.c.b16 %v762, %v762
      %v795 = vpack.c.b16 %v763, %v763
      %v796 = vpack.c.b16 %v764, %v764
      %v797 = vpack.c.b16 %v765, %v765
      %v798 = vpack.c.b16 %v766, %v766
      %v799 = vpack.c.b16 %v767, %v767
      %v800 = vpack.c.b16 %v768, %v768
      %v801 = vpack.c.b16 %v769, %v769
      %v802 = vpack.c.b16 %v770, %v770
      %v803 = vpack.c.b16 %v771, %v771
      %v804 = vpack.c.b16 %v772, %v772
      %v805 = vpack.c.b16 %v773, %v773
      %v806 = vpack.c.b16 %v774, %v774
      %v807 = vpack.c.b16 %v775, %v775
      %v1352 = vunpack.c.l.b16 %v216
      %v1353 = vunpack.c.l.b16 %v217
      %v1354 = vunpack.c.l.b16 %v218
      %v1355 = vunpack.c.l.b16 %v219
      %v1356 = vunpack.c.l.b16 %v220
      %v1357 = vunpack.c.l.b16 %v221
      %v1358 = vunpack.c.l.b16 %v222
      %v1359 = vunpack.c.l.b16 %v223
      %v1360 = vunpack.c.l.b16 %v224
      %v1361 = vunpack.c.l.b16 %v225
      %v1362 = vunpack.c.l.b16 %v226
      %v1363 = vunpack.c.l.b16 %v227
      %v1364 = vunpack.c.l.b16 %v228
      %v1365 = vunpack.c.l.b16 %v229
      %v1366 = vunpack.c.l.b16 %v230
      %v1367 = vunpack.c.l.b16 %v231
      %v1368 = vunpack.c.l.b16 %v232
      %v1369 = vunpack.c.l.b16 %v233
      %v1370 = vunpack.c.l.b16 %v234
      %v1371 = vunpack.c.l.b16 %v235
      %v1372 = vunpack.c.l.b16 %v236
      %v1373 = vunpack.c.l.b16 %v237
      %v1374 = vunpack.c.l.b16 %v238
      %v1375 = vunpack.c.l.b16 %v239
      %v1376 = vunpack.c.l.b16 %v240
      %v1377 = vunpack.c.l.b16 %v241
      %v1378 = vunpack.c.l.b16 %v242
      %v1379 = vunpack.c.l.b16 %v243
      %v1380 = vunpack.c.l.b16 %v244
      %v1381 = vunpack.c.l.b16 %v245
      %v1382 = vunpack.c.l.b16 %v246
      %v1383 = vunpack.c.l.b16 %v247
      %v1384 = vunpack.c.l.b16 %v248
      %v1385 = vunpack.c.l.b16 %v249
      %v1386 = vunpack.c.l.b16 %v250
      %v1387 = vunpack.c.l.b16 %v251
      %v1388 = vunpack.c.l.b16 %v252
      %v1389 = vunpack.c.l.b16 %v253
      %v1390 = vunpack.c.l.b16 %v254
      %v1391 = vunpack.c.l.b16 %v255
      %v1392 = vunpack.c.l.b16 %v256
      %v1393 = vunpack.c.l.b16 %v257
      %v1394 = vunpack.c.l.b16 %v258
      %v1395 = vunpack.c.l.b16 %v259
      %v1396 = vunpack.c.l.b16 %v260
      %v1397 = vunpack.c.l.b16 %v261
      %v1398 = vunpack.c.l.b16 %v262
      %v1399 = vunpack.c.l.b16 %v263
      %v1400 = vunpack.c.l.b16 %v264
      %v1401 = vunpack.c.l.b16 %v265
      %v1402 = vunpack.c.l.b16 %v266
      %v1403 = vunpack.c.l.b16 %v267
      %v1404 = vunpack.c.l.b16 %v268
      %v1405 = vunpack.c.l.b16 %v269
      %v1406 = vunpack.c.l.b16 %v270
      %v1407 = vunpack.c.l.b16 %v271
      %v1408 = vunpack.c.l.b16 %v272
      %v1409 = vunpack.c.l.b16 %v273
      %v1410 = vunpack.c.l.b16 %v274
      %v1411 = vunpack.c.l.b16 %v275
      %v1412 = vunpack.c.l.b16 %v276
      %v1413 = vunpack.c.l.b16 %v277
      %v1414 = vunpack.c.l.b16 %v278
      %v1415 = vunpack.c.l.b16 %v279
      %v1416 = vunpack.c.l.b16 %v280
      %v1417 = vunpack.c.l.b16 %v281
      %v1418 = vunpack.c.l.b16 %v282
      %v1419 = vunpack.c.l.b16 %v283
      %v1420 = vunpack.c.l.b16 %v284
      %v1421 = vunpack.c.l.b16 %v285
      %v1422 = vunpack.c.l.b16 %v286
      %v1423 = vunpack.c.l.b16 %v287
      %v1424 = vunpack.c.l.b16 %v288
      %v1425 = vunpack.c.l.b16 %v289
      %v1426 = vunpack.c.l.b16 %v290
      %v1427 = vunpack.c.l.b16 %v291
      %v1428 = vunpack.c.l.b16 %v292
      %v1429 = vunpack.c.l.b16 %v293
      %v1430 = vunpack.c.l.b16 %v294
      %v1431 = vunpack.c.l.b16 %v295
      %v1432 = vunpack.c.l.b16 %v296
      %v1433 = vunpack.c.l.b16 %v297
      %v1434 = vunpack.c.l.b16 %v298
      %v1435 = vunpack.c.l.b16 %v299
      %v1436 = vunpack.c.l.b16 %v300
      %v1437 = vunpack.c.l.b16 %v301
      %v1438 = vunpack.c.l.b16 %v302
      %v1439 = vunpack.c.l.b16 %v303
      %v1440 = vunpack.c.l.b16 %v304
      %v1441 = vunpack.c.l.b16 %v305
      %v1442 = vunpack.c.l.b16 %v306
      %v1443 = vunpack.c.l.b16 %v307
      %v1444 = vunpack.c.l.b16 %v308
      %v1445 = vunpack.c.l.b16 %v309
      %v1446 = vunpack.c.l.b16 %v310
      %v1447 = vunpack.c.l.b16 %v311
      %v1448 = vunpack.c.l.b16 %v312
      %v1449 = vunpack.c.l.b16 %v313
      %v1450 = vunpack.c.l.b16 %v314
      %v1451 = vunpack.c.l.b16 %v315
      %v1452 = vunpack.c.l.b16 %v316
      %v1453 = vunpack.c.l.b16 %v317
      %v1454 = vunpack.c.l.b16 %v318
      %v1455 = vunpack.c.l.b16 %v319
      %v1456 = vunpack.c.l.b16 %v320
      %v1457 = vunpack.c.l.b16 %v321
      %v1458 = vunpack.c.l.b16 %v322
      %v1459 = vunpack.c.l.b16 %v323
      %v1460 = vunpack.c.l.b16 %v324
      %v1461 = vunpack.c.l.b16 %v325
      %v1462 = vunpack.c.l.b16 %v326
      %v1463 = vunpack.c.l.b16 %v327
      %v1464 = vunpack.c.l.b16 %v328
      %v1465 = vunpack.c.l.b16 %v329
      %v1466 = vunpack.c.l.b16 %v330
      %v1467 = vunpack.c.l.b16 %v331
      %v1468 = vunpack.c.l.b16 %v332
      %v1469 = vunpack.c.l.b16 %v333
      %v1470 = vunpack.c.l.b16 %v334
      %v1471 = vunpack.c.l.b16 %v335
      %v1472 = vunpack.c.l.b16 %v336
      %v1473 = vunpack.c.l.b16 %v337
      %v1474 = vunpack.c.l.b16 %v338
      %v1475 = vunpack.c.l.b16 %v339
      %v1476 = vunpack.c.l.b16 %v340
      %v1477 = vunpack.c.l.b16 %v341
      %v1478 = vunpack.c.l.b16 %v342
      %v1479 = vunpack.c.l.b16 %v343
      %v1480 = vunpack.c.l.b16 %v344
      %v1481 = vunpack.c.l.b16 %v345
      %v1482 = vunpack.c.l.b16 %v346
      %v1483 = vunpack.c.l.b16 %v347
      %v1484 = vunpack.c.l.b16 %v348
      %v1485 = vunpack.c.l.b16 %v349
      %v1486 = vunpack.c.l.b16 %v350
      %v1487 = vunpack.c.l.b16 %v351
      %v1488 = vunpack.c.l.b16 %v352
      %v1489 = vunpack.c.l.b16 %v353
      %v1490 = vunpack.c.l.b16 %v354
      %v1491 = vunpack.c.l.b16 %v355
      %v1492 = vunpack.c.l.b16 %v356
      %v1493 = vunpack.c.l.b16 %v357
      %v1494 = vunpack.c.l.b16 %v358
      %v1495 = vunpack.c.l.b16 %v359
      %v1496 = vunpack.c.l.b16 %v360
      %v1497 = vunpack.c.l.b16 %v361
      %v1498 = vunpack.c.l.b16 %v362
      %v1499 = vunpack.c.l.b16 %v363
      %v1500 = vunpack.c.l.b16 %v364
      %v1501 = vunpack.c.l.b16 %v365
      %v1502 = vunpack.c.l.b16 %v366
      %v1503 = vunpack.c.l.b16 %v367
      %v1504 = vunpack.c.l.b16 %v368
      %v1505 = vunpack.c.l.b16 %v369
      %v1506 = vunpack.c.l.b16 %v370
      %v1507 = vunpack.c.l.b16 %v371
      %v1508 = vunpack.c.l.b16 %v372
      %v1509 = vunpack.c.l.b16 %v373
      %v1510 = vunpack.c.l.b16 %v374
      %v1511 = vunpack.c.l.b16 %v375
      %v1512 = vunpack.c.l.b16 %v376
      %v1513 = vunpack.c.l.b16 %v377
      %v1514 = vunpack.c.l.b16 %v378
      %v1515 = vunpack.c.l.b16 %v379
      %v1516 = vunpack.c.l.b16 %v380
      %v1517 = vunpack.c.l.b16 %v381
      %v1518 = vunpack.c.l.b16 %v382
      %v1519 = vunpack.c.l.b16 %v383
      %v1520 = vunpack.c.l.b16 %v384
      %v1521 = vunpack.c.l.b16 %v385
      %v1522 = vunpack.c.l.b16 %v386
      %v1523 = vunpack.c.l.b16 %v387
      %v1524 = vunpack.c.l.b16 %v388
      %v1525 = vunpack.c.l.b16 %v389
      %v1526 = vunpack.c.l.b16 %v390
      %v1527 = vunpack.c.l.b16 %v391
      %v1528 = vunpack.c.l.b16 %v392
      %v1529 = vunpack.c.l.b16 %v393
      %v1530 = vunpack.c.l.b16 %v394
      %v1531 = vunpack.c.l.b16 %v395
      %v1532 = vunpack.c.l.b16 %v396
      %v1533 = vunpack.c.l.b16 %v397
      %v1534 = vunpack.c.l.b16 %v398
      %v1535 = vunpack.c.l.b16 %v399
      %v1536 = vunpack.c.l.b16 %v400
      %v1537 = vunpack.c.l.b16 %v401
      %v1538 = vunpack.c.l.b16 %v402
      %v1539 = vunpack.c.l.b16 %v403
      %v1540 = vunpack.c.l.b16 %v404
      %v1541 = vunpack.c.l.b16 %v405
      %v1542 = vunpack.c.l.b16 %v406
      %v1543 = vunpack.c.l.b16 %v407
      %v1544 = vunpack.c.l.b16 %v408
      %v1545 = vunpack.c.l.b16 %v409
      %v1546 = vunpack.c.l.b16 %v410
      %v1547 = vunpack.c.l.b16 %v411
      %v1548 = vunpack.c.l.b16 %v412
      %v1549 = vunpack.c.l.b16 %v413
      %v1550 = vunpack.c.l.b16 %v414
      %v1551 = vunpack.c.l.b16 %v415
      %v1552 = vunpack.c.l.b16 %v416
      %v1553 = vunpack.c.l.b16 %v417
      %v1554 = vunpack.c.l.b16 %v418
      %v1555 = vunpack.c.l.b16 %v419
      %v1556 = vunpack.c.l.b16 %v420
      %v1557 = vunpack.c.l.b16 %v421
      %v1558 = vunpack.c.l.b16 %v422
      %v1559 = vunpack.c.l.b16 %v423
      %v1560 = vunpack.c.l.b16 %v424
      %v1561 = vunpack.c.l.b16 %v425
      %v1562 = vunpack.c.l.b16 %v426
      %v1563 = vunpack.c.l.b16 %v427
      %v1564 = vunpack.c.l.b16 %v428
      %v1565 = vunpack.c.l.b16 %v429
      %v1566 = vunpack.c.l.b16 %v430
      %v1567 = vunpack.c.l.b16 %v431
      %v1568 = vunpack.c.l.b16 %v432
      %v1569 = vunpack.c.l.b16 %v433
      %v1570 = vunpack.c.l.b16 %v434
      %v1571 = vunpack.c.l.b16 %v435
      %v1572 = vunpack.c.l.b16 %v436
      %v1573 = vunpack.c.l.b16 %v437
      %v1574 = vunpack.c.l.b16 %v438
      %v1575 = vunpack.c.l.b16 %v439
      %v1576 = vunpack.c.l.b16 %v440
      %v1577 = vunpack.c.l.b16 %v441
      %v1578 = vunpack.c.l.b16 %v442
      %v1579 = vunpack.c.l.b16 %v443
      %v1580 = vunpack.c.l.b16 %v444
      %v1581 = vunpack.c.l.b16 %v445
      %v1582 = vunpack.c.l.b16 %v446
      %v1583 = vunpack.c.l.b16 %v447
      %v1584 = vunpack.c.l.b16 %v448
      %v1585 = vunpack.c.l.b16 %v449
      %v1586 = vunpack.c.l.b16 %v450
      %v1587 = vunpack.c.l.b16 %v451
      %v1588 = vunpack.c.l.b16 %v452
      %v1589 = vunpack.c.l.b16 %v453
      %v1590 = vunpack.c.l.b16 %v454
      %v1591 = vunpack.c.l.b16 %v455
      %v1592 = vunpack.c.l.b16 %v456
      %v1593 = vunpack.c.l.b16 %v457
      %v1594 = vunpack.c.l.b16 %v458
      %v1595 = vunpack.c.l.b16 %v459
      %v1596 = vunpack.c.l.b16 %v460
      %v1597 = vunpack.c.l.b16 %v461
      %v1598 = vunpack.c.l.b16 %v462
      %v1599 = vunpack.c.l.b16 %v463
      %v1600 = vunpack.c.l.b16 %v464
      %v1601 = vunpack.c.l.b16 %v465
      %v1602 = vunpack.c.l.b16 %v466
      %v1603 = vunpack.c.l.b16 %v467
      %v1604 = vunpack.c.l.b16 %v468
      %v1605 = vunpack.c.l.b16 %v469
      %v1606 = vunpack.c.l.b16 %v470
      %v1607 = vunpack.c.l.b16 %v471
      %v1608 = vunpack.c.l.b16 %v472
      %v1609 = vunpack.c.l.b16 %v473
      %v1610 = vunpack.c.l.b16 %v474
      %v1611 = vunpack.c.l.b16 %v475
      %v1612 = vunpack.c.l.b16 %v476
      %v1613 = vunpack.c.l.b16 %v477
      %v1614 = vunpack.c.l.b16 %v478
      %v1615 = vunpack.c.l.b16 %v479
      %v1616 = vunpack.c.l.b16 %v480
      %v1617 = vunpack.c.l.b16 %v481
      %v1618 = vunpack.c.l.b16 %v482
      %v1619 = vunpack.c.l.b16 %v483
      %v1620 = vunpack.c.l.b16 %v484
      %v1621 = vunpack.c.l.b16 %v485
      %v1622 = vunpack.c.l.b16 %v486
      %v1623 = vunpack.c.l.b16 %v487
      %v1624 = vunpack.c.l.b16 %v488
      %v1625 = vunpack.c.l.b16 %v489
      %v1626 = vunpack.c.l.b16 %v490
      %v1627 = vunpack.c.l.b16 %v491
      %v1628 = vunpack.c.l.b16 %v492
      %v1629 = vunpack.c.l.b16 %v493
      %v1630 = vunpack.c.l.b16 %v494
      %v1631 = vunpack.c.l.b16 %v495
      %v1632 = vunpack.c.l.b16 %v496
      %v1633 = vunpack.c.l.b16 %v497
      %v1634 = vunpack.c.l.b16 %v498
      %v1635 = vunpack.c.l.b16 %v499
      %v1636 = vunpack.c.l.b16 %v500
      %v1637 = vunpack.c.l.b16 %v501
      %v1638 = vunpack.c.l.b16 %v502
      %v1639 = vunpack.c.l.b16 %v503
      %v1640 = vunpack.c.l.b16 %v504
      %v1641 = vunpack.c.l.b16 %v505
      %v1642 = vunpack.c.l.b16 %v506
      %v1643 = vunpack.c.l.b16 %v507
      %v1644 = vunpack.c.l.b16 %v508
      %v1645 = vunpack.c.l.b16 %v509
      %v1646 = vunpack.c.l.b16 %v510
      %v1647 = vunpack.c.l.b16 %v511
      %v1648 = vunpack.c.l.b16 %v512
      %v1649 = vunpack.c.l.b16 %v513
      %v1650 = vunpack.c.l.b16 %v514
      %v1651 = vunpack.c.l.b16 %v515
      %v1652 = vunpack.c.l.b16 %v516
      %v1653 = vunpack.c.l.b16 %v517
      %v1654 = vunpack.c.l.b16 %v518
      %v1655 = vunpack.c.l.b16 %v519
      %v1656 = vunpack.c.l.b16 %v520
      %v1657 = vunpack.c.l.b16 %v521
      %v1658 = vunpack.c.l.b16 %v522
      %v1659 = vunpack.c.l.b16 %v523
      %v1660 = vunpack.c.l.b16 %v524
      %v1661 = vunpack.c.l.b16 %v525
      %v1662 = vunpack.c.l.b16 %v526
      %v1663 = vunpack.c.l.b16 %v527
      %v1664 = vunpack.c.l.b16 %v528
      %v1665 = vunpack.c.l.b16 %v529
      %v1666 = vunpack.c.l.b16 %v530
      %v1667 = vunpack.c.l.b16 %v531
      %v1668 = vunpack.c.l.b16 %v532
      %v1669 = vunpack.c.l.b16 %v533
      %v1670 = vunpack.c.l.b16 %v534
      %v1671 = vunpack.c.l.b16 %v535
      %v1672 = vunpack.c.l.b16 %v536
      %v1673 = vunpack.c.l.b16 %v537
      %v1674 = vunpack.c.l.b16 %v538
      %v1675 = vunpack.c.l.b16 %v539
      %v1676 = vunpack.c.l.b16 %v540
      %v1677 = vunpack.c.l.b16 %v541
      %v1678 = vunpack.c.l.b16 %v542
      %v1679 = vunpack.c.l.b16 %v543
      %v1680 = vunpack.c.l.b16 %v544
      %v1681 = vunpack.c.l.b16 %v545
      %v1682 = vunpack.c.l.b16 %v546
      %v1683 = vunpack.c.l.b16 %v547
      %v1684 = vunpack.c.l.b16 %v548
      %v1685 = vunpack.c.l.b16 %v549
      %v1686 = vunpack.c.l.b16 %v550
      %v1687 = vunpack.c.l.b16 %v551
      %v1688 = vunpack.c.l.b16 %v552
      %v1689 = vunpack.c.l.b16 %v553
      %v1690 = vunpack.c.l.b16 %v554
      %v1691 = vunpack.c.l.b16 %v555
      %v1692 = vunpack.c.l.b16 %v556
      %v1693 = vunpack.c.l.b16 %v557
      %v1694 = vunpack.c.l.b16 %v558
      %v1695 = vunpack.c.l.b16 %v559
      %v1696 = vunpack.c.l.b16 %v560
      %v1697 = vunpack.c.l.b16 %v561
      %v1698 = vunpack.c.l.b16 %v562
      %v1699 = vunpack.c.l.b16 %v563
      %v1700 = vunpack.c.l.b16 %v564
      %v1701 = vunpack.c.l.b16 %v565
      %v1702 = vunpack.c.l.b16 %v566
      %v1703 = vunpack.c.l.b16 %v567
      %v1704 = vunpack.c.l.b16 %v568
      %v1705 = vunpack.c.l.b16 %v569
      %v1706 = vunpack.c.l.b16 %v570
      %v1707 = vunpack.c.l.b16 %v571
      %v1708 = vunpack.c.l.b16 %v572
      %v1709 = vunpack.c.l.b16 %v573
      %v1710 = vunpack.c.l.b16 %v574
      %v1711 = vunpack.c.l.b16 %v575
      %v1712 = vunpack.c.l.b16 %v576
      %v1713 = vunpack.c.l.b16 %v577
      %v1714 = vunpack.c.l.b16 %v578
      %v1715 = vunpack.c.l.b16 %v579
      %v1716 = vunpack.c.l.b16 %v580
      %v1717 = vunpack.c.l.b16 %v581
      %v1718 = vunpack.c.l.b16 %v582
      %v1719 = vunpack.c.l.b16 %v583
      %v1720 = vunpack.c.l.b16 %v584
      %v1721 = vunpack.c.l.b16 %v585
      %v1722 = vunpack.c.l.b16 %v586
      %v1723 = vunpack.c.l.b16 %v587
      %v1724 = vunpack.c.l.b16 %v588
      %v1725 = vunpack.c.l.b16 %v589
      %v1726 = vunpack.c.l.b16 %v590
      %v1727 = vunpack.c.l.b16 %v591
      %v1728 = vunpack.c.l.b16 %v592
      %v1729 = vunpack.c.l.b16 %v593
      %v1730 = vunpack.c.l.b16 %v594
      %v1731 = vunpack.c.l.b16 %v595
      %v1732 = vunpack.c.l.b16 %v596
      %v1733 = vunpack.c.l.b16 %v597
      %v1734 = vunpack.c.l.b16 %v598
      %v1735 = vunpack.c.l.b16 %v599
      %v1736 = vunpack.c.l.b16 %v600
      %v1737 = vunpack.c.l.b16 %v601
      %v1738 = vunpack.c.l.b16 %v602
      %v1739 = vunpack.c.l.b16 %v603
      %v1740 = vunpack.c.l.b16 %v604
      %v1741 = vunpack.c.l.b16 %v605
      %v1742 = vunpack.c.l.b16 %v606
      %v1743 = vunpack.c.l.b16 %v607
      %v1744 = vunpack.c.l.b16 %v608
      %v1745 = vunpack.c.l.b16 %v609
      %v1746 = vunpack.c.l.b16 %v610
      %v1747 = vunpack.c.l.b16 %v611
      %v1748 = vunpack.c.l.b16 %v612
      %v1749 = vunpack.c.l.b16 %v613
      %v1750 = vunpack.c.l.b16 %v614
      %v1751 = vunpack.c.l.b16 %v615
      %v1752 = vunpack.c.l.b16 %v616
      %v1753 = vunpack.c.l.b16 %v617
      %v1754 = vunpack.c.l.b16 %v618
      %v1755 = vunpack.c.l.b16 %v619
      %v1756 = vunpack.c.l.b16 %v620
      %v1757 = vunpack.c.l.b16 %v621
      %v1758 = vunpack.c.l.b16 %v622
      %v1759 = vunpack.c.l.b16 %v623
      %v1760 = vunpack.c.l.b16 %v624
      %v1761 = vunpack.c.l.b16 %v625
      %v1762 = vunpack.c.l.b16 %v626
      %v1763 = vunpack.c.l.b16 %v627
      %v1764 = vunpack.c.l.b16 %v628
      %v1765 = vunpack.c.l.b16 %v629
      %v1766 = vunpack.c.l.b16 %v630
      %v1767 = vunpack.c.l.b16 %v631
      %v1768 = vunpack.c.l.b16 %v632
      %v1769 = vunpack.c.l.b16 %v633
      %v1770 = vunpack.c.l.b16 %v634
      %v1771 = vunpack.c.l.b16 %v635
      %v1772 = vunpack.c.l.b16 %v636
      %v1773 = vunpack.c.l.b16 %v637
      %v1774 = vunpack.c.l.b16 %v638
      %v1775 = vunpack.c.l.b16 %v639
      %v1776 = vunpack.c.l.b16 %v640
      %v1777 = vunpack.c.l.b16 %v641
      %v1778 = vunpack.c.l.b16 %v642
      %v1779 = vunpack.c.l.b16 %v643
      %v1780 = vunpack.c.l.b16 %v644
      %v1781 = vunpack.c.l.b16 %v645
      %v1782 = vunpack.c.l.b16 %v646
      %v1783 = vunpack.c.l.b16 %v647
      %v1784 = vunpack.c.l.b16 %v648
      %v1785 = vunpack.c.l.b16 %v649
      %v1786 = vunpack.c.l.b16 %v650
      %v1787 = vunpack.c.l.b16 %v651
      %v1788 = vunpack.c.l.b16 %v652
      %v1789 = vunpack.c.l.b16 %v653
      %v1790 = vunpack.c.l.b16 %v654
      %v1791 = vunpack.c.l.b16 %v655
      %v1792 = vunpack.c.l.b16 %v656
      %v1793 = vunpack.c.l.b16 %v657
      %v1794 = vunpack.c.l.b16 %v658
      %v1795 = vunpack.c.l.b16 %v659
      %v1796 = vunpack.c.l.b16 %v660
      %v1797 = vunpack.c.l.b16 %v661
      %v1798 = vunpack.c.l.b16 %v662
      %v1799 = vunpack.c.l.b16 %v663
      %v1800 = vunpack.c.l.b16 %v664
      %v1801 = vunpack.c.l.b16 %v665
      %v1802 = vunpack.c.l.b16 %v666
      %v1803 = vunpack.c.l.b16 %v667
      %v1804 = vunpack.c.l.b16 %v668
      %v1805 = vunpack.c.l.b16 %v669
      %v1806 = vunpack.c.l.b16 %v670
      %v1807 = vunpack.c.l.b16 %v671
      %v1808 = vunpack.c.l.b16 %v672
      %v1809 = vunpack.c.l.b16 %v673
      %v1810 = vunpack.c.l.b16 %v674
      %v1811 = vunpack.c.l.b16 %v675
      %v1812 = vunpack.c.l.b16 %v676
      %v1813 = vunpack.c.l.b16 %v677
      %v1814 = vunpack.c.l.b16 %v678
      %v1815 = vunpack.c.l.b16 %v679
      %v1816 = vunpack.c.l.b16 %v680
      %v1817 = vunpack.c.l.b16 %v681
      %v1818 = vunpack.c.l.b16 %v682
      %v1819 = vunpack.c.l.b16 %v683
      %v1820 = vunpack.c.l.b16 %v684
      %v1821 = vunpack.c.l.b16 %v685
      %v1822 = vunpack.c.l.b16 %v686
      %v1823 = vunpack.c.l.b16 %v687
      %v1824 = vunpack.c.l.b16 %v688
      %v1825 = vunpack.c.l.b16 %v689
      %v1826 = vunpack.c.l.b16 %v690
      %v1827 = vunpack.c.l.b16 %v691
      %v1828 = vunpack.c.l.b16 %v692
      %v1829 = vunpack.c.l.b16 %v693
      %v1830 = vunpack.c.l.b16 %v694
      %v1831 = vunpack.c.l.b16 %v695
      %v1832 = vunpack.c.l.b16 %v696
      %v1833 = vunpack.c.l.b16 %v697
      %v1834 = vunpack.c.l.b16 %v698
      %v1835 = vunpack.c.l.b16 %v699
      %v1836 = vunpack.c.l.b16 %v700
      %v1837 = vunpack.c.l.b16 %v701
      %v1838 = vunpack.c.l.b16 %v702
      %v1839 = vunpack.c.l.b16 %v703
      %v1840 = vunpack.c.l.b16 %v704
      %v1841 = vunpack.c.l.b16 %v705
      %v1842 = vunpack.c.l.b16 %v706
      %v1843 = vunpack.c.l.b16 %v707
      %v1844 = vunpack.c.l.b16 %v708
      %v1845 = vunpack.c.l.b16 %v709
      %v1846 = vunpack.c.l.b16 %v710
      %v1847 = vunpack.c.l.b16 %v711
      %v1848 = vunpack.c.l.b16 %v712
      %v1849 = vunpack.c.l.b16 %v713
      %v1850 = vunpack.c.l.b16 %v714
      %v1851 = vunpack.c.l.b16 %v715
      %v1852 = vunpack.c.l.b16 %v716
      %v1853 = vunpack.c.l.b16 %v717
      %v1854 = vunpack.c.l.b16 %v718
      %v1855 = vunpack.c.l.b16 %v719
      %v1856 = vunpack.c.l.b16 %v720
      %v1857 = vunpack.c.l.b16 %v721
      %v1858 = vunpack.c.l.b16 %v722
      %v1859 = vunpack.c.l.b16 %v723
      %v1860 = vunpack.c.l.b16 %v724
      %v1861 = vunpack.c.l.b16 %v725
      %v1862 = vunpack.c.l.b16 %v726
      %v1863 = vunpack.c.l.b16 %v727
      %v1864 = vpack.c.b16 %v1353, %v1352
      %v1865 = vpack.c.b16 %v1355, %v1354
      %v1866 = vpack.c.b16 %v1357, %v1356
      %v1867 = vpack.c.b16 %v1359, %v1358
      %v1868 = vpack.c.b16 %v1361, %v1360
      %v1869 = vpack.c.b16 %v1363, %v1362
      %v1870 = vpack.c.b16 %v1365, %v1364
      %v1871 = vpack.c.b16 %v1367, %v1366
      %v1872 = vpack.c.b16 %v1369, %v1368
      %v1873 = vpack.c.b16 %v1371, %v1370
      %v1874 = vpack.c.b16 %v1373, %v1372
      %v1875 = vpack.c.b16 %v1375, %v1374
      %v1876 = vpack.c.b16 %v1377, %v1376
      %v1877 = vpack.c.b16 %v1379, %v1378
      %v1878 = vpack.c.b16 %v1381, %v1380
      %v1879 = vpack.c.b16 %v1383, %v1382
      %v1880 = vpack.c.b16 %v1385, %v1384
      %v1881 = vpack.c.b16 %v1387, %v1386
      %v1882 = vpack.c.b16 %v1389, %v1388
      %v1883 = vpack.c.b16 %v1391, %v1390
      %v1884 = vpack.c.b16 %v1393, %v1392
      %v1885 = vpack.c.b16 %v1395, %v1394
      %v1886 = vpack.c.b16 %v1397, %v1396
      %v1887 = vpack.c.b16 %v1399, %v1398
      %v1888 = vpack.c.b16 %v1401, %v1400
      %v1889 = vpack.c.b16 %v1403, %v1402
      %v1890 = vpack.c.b16 %v1405, %v1404
      %v1891 = vpack.c.b16 %v1407, %v1406
      %v1892 = vpack.c.b16 %v1409, %v1408
      %v1893 = vpack.c.b16 %v1411, %v1410
      %v1894 = vpack.c.b16 %v1413, %v1412
      %v1895 = vpack.c.b16 %v1415, %v1414
      %v1896 = vpack.c.b16 %v1417, %v1416
      %v1897 = vpack.c.b16 %v1419, %v1418
      %v1898 = vpack.c.b16 %v1421, %v1420
      %v1899 = vpack.c.b16 %v1423, %v1422
      %v1900 = vpack.c.b16 %v1425, %v1424
      %v1901 = vpack.c.b16 %v1427, %v1426
      %v1902 = vpack.c.b16 %v1429, %v1428
      %v1903 = vpack.c.b16 %v1431, %v1430
      %v1904 = vpack.c.b16 %v1433, %v1432
      %v1905 = vpack.c.b16 %v1435, %v1434
      %v1906 = vpack.c.b16 %v1437, %v1436
      %v1907 = vpack.c.b16 %v1439, %v1438
      %v1908 = vpack.c.b16 %v1441, %v1440
      %v1909 = vpack.c.b16 %v1443, %v1442
      %v1910 = vpack.c.b16 %v1445, %v1444
      %v1911 = vpack.c.b16 %v1447, %v1446
      %v1912 = vpack.c.b16 %v1449, %v1448
      %v1913 = vpack.c.b16 %v1451, %v1450
      %v1914 = vpack.c.b16 %v1453, %v1452
      %v1915 = vpack.c.b16 %v1455, %v1454
      %v1916 = vpack.c.b16 %v1457, %v1456
      %v1917 = vpack.c.b16 %v1459, %v1458
      %v1918 = vpack.c.b16 %v1461, %v1460
      %v1919 = vpack.c.b16 %v1463, %v1462
      %v1920 = vpack.c.b16 %v1465, %v1464
      %v1921 = vpack.c.b16 %v1467, %v1466
      %v1922 = vpack.c.b16 %v1469, %v1468
      %v1923 = vpack.c.b16 %v1471, %v1470
      %v1924 = vpack.c.b16 %v1473, %v1472
      %v1925 = vpack.c.b16 %v1475, %v1474
      %v1926 = vpack.c.b16 %v1477, %v1476
      %v1927 = vpack.c.b16 %v1479, %v1478
      %v1928 = vpack.c.b16 %v1481, %v1480
      %v1929 = vpack.c.b16 %v1483, %v1482
      %v1930 = vpack.c.b16 %v1485, %v1484
      %v1931 = vpack.c.b16 %v1487, %v1486
      %v1932 = vpack.c.b16 %v1489, %v1488
      %v1933 = vpack.c.b16 %v1491, %v1490
      %v1934 = vpack.c.b16 %v1493, %v1492
      %v1935 = vpack.c.b16 %v1495, %v1494
      %v1936 = vpack.c.b16 %v1497, %v1496
      %v1937 = vpack.c.b16 %v1499, %v1498
      %v1938 = vpack.c.b16 %v1501, %v1500
      %v1939 = vpack.c.b16 %v1503, %v1502
      %v1940 = vpack.c.b16 %v1505, %v1504
      %v1941 = vpack.c.b16 %v1507, %v1506
      %v1942 = vpack.c.b16 %v1509, %v1508
      %v1943 = vpack.c.b16 %v1511, %v1510
      %v1944 = vpack.c.b16 %v1513, %v1512
      %v1945 = vpack.c.b16 %v1515, %v1514
      %v1946 = vpack.c.b16 %v1517, %v1516
      %v1947 = vpack.c.b16 %v1519, %v1518
      %v1948 = vpack.c.b16 %v1521, %v1520
      %v1949 = vpack.c.b16 %v1523, %v1522
      %v1950 = vpack.c.b16 %v1525, %v1524
      %v1951 = vpack.c.b16 %v1527, %v1526
      %v1952 = vpack.c.b16 %v1529, %v1528
      %v1953 = vpack.c.b16 %v1531, %v1530
      %v1954 = vpack.c.b16 %v1533, %v1532
      %v1955 = vpack.c.b16 %v1535, %v1534
      %v1956 = vpack.c.b16 %v1537, %v1536
      %v1957 = vpack.c.b16 %v1539, %v1538
      %v1958 = vpack.c.b16 %v1541, %v1540
      %v1959 = vpack.c.b16 %v1543, %v1542
      %v1960 = vpack.c.b16 %v1545, %v1544
      %v1961 = vpack.c.b16 %v1547, %v1546
      %v1962 = vpack.c.b16 %v1549, %v1548
      %v1963 = vpack.c.b16 %v1551, %v1550
      %v1964 = vpack.c.b16 %v1553, %v1552
      %v1965 = vpack.c.b16 %v1555, %v1554
      %v1966 = vpack.c.b16 %v1557, %v1556
      %v1967 = vpack.c.b16 %v1559, %v1558
      %v1968 = vpack.c.b16 %v1561, %v1560
      %v1969 = vpack.c.b16 %v1563, %v1562
      %v1970 = vpack.c.b16 %v1565, %v1564
      %v1971 = vpack.c.b16 %v1567, %v1566
      %v1972 = vpack.c.b16 %v1569, %v1568
      %v1973 = vpack.c.b16 %v1571, %v1570
      %v1974 = vpack.c.b16 %v1573, %v1572
      %v1975 = vpack.c.b16 %v1575, %v1574
      %v1976 = vpack.c.b16 %v1577, %v1576
      %v1977 = vpack.c.b16 %v1579, %v1578
      %v1978 = vpack.c.b16 %v1581, %v1580
      %v1979 = vpack.c.b16 %v1583, %v1582
      %v1980 = vpack.c.b16 %v1585, %v1584
      %v1981 = vpack.c.b16 %v1587, %v1586
      %v1982 = vpack.c.b16 %v1589, %v1588
      %v1983 = vpack.c.b16 %v1591, %v1590
      %v1984 = vpack.c.b16 %v1593, %v1592
      %v1985 = vpack.c.b16 %v1595, %v1594
      %v1986 = vpack.c.b16 %v1597, %v1596
      %v1987 = vpack.c.b16 %v1599, %v1598
      %v1988 = vpack.c.b16 %v1601, %v1600
      %v1989 = vpack.c.b16 %v1603, %v1602
      %v1990 = vpack.c.b16 %v1605, %v1604
      %v1991 = vpack.c.b16 %v1607, %v1606
      %v1992 = vpack.c.b16 %v1609, %v1608
      %v1993 = vpack.c.b16 %v1611, %v1610
      %v1994 = vpack.c.b16 %v1613, %v1612
      %v1995 = vpack.c.b16 %v1615, %v1614
      %v1996 = vpack.c.b16 %v1617, %v1616
      %v1997 = vpack.c.b16 %v1619, %v1618
      %v1998 = vpack.c.b16 %v1621, %v1620
      %v1999 = vpack.c.b16 %v1623, %v1622
      %v2000 = vpack.c.b16 %v1625, %v1624
      %v2001 = vpack.c.b16 %v1627, %v1626
      %v2002 = vpack.c.b16 %v1629, %v1628
      %v2003 = vpack.c.b16 %v1631, %v1630
      %v2004 = vpack.c.b16 %v1633, %v1632
      %v2005 = vpack.c.b16 %v1635, %v1634
      %v2006 = vpack.c.b16 %v1637, %v1636
      %v2007 = vpack.c.b16 %v1639, %v1638
      %v2008 = vpack.c.b16 %v1641, %v1640
      %v2009 = vpack.c.b16 %v1643, %v1642
      %v2010 = vpack.c.b16 %v1645, %v1644
      %v2011 = vpack.c.b16 %v1647, %v1646
      %v2012 = vpack.c.b16 %v1649, %v1648
      %v2013 = vpack.c.b16 %v1651, %v1650
      %v2014 = vpack.c.b16 %v1653, %v1652
      %v2015 = vpack.c.b16 %v1655, %v1654
      %v2016 = vpack.c.b16 %v1657, %v1656
      %v2017 = vpack.c.b16 %v1659, %v1658
      %v2018 = vpack.c.b16 %v1661, %v1660
      %v2019 = vpack.c.b16 %v1663, %v1662
      %v2020 = vpack.c.b16 %v1665, %v1664
      %v2021 = vpack.c.b16 %v1667, %v1666
      %v2022 = vpack.c.b16 %v1669, %v1668
      %v2023 = vpack.c.b16 %v1671, %v1670
      %v2024 = vpack.c.b16 %v1673, %v1672
      %v2025 = vpack.c.b16 %v1675, %v1674
      %v2026 = vpack.c.b16 %v1677, %v1676
      %v2027 = vpack.c.b16 %v1679, %v1678
      %v2028 = vpack.c.b16 %v1681, %v1680
      %v2029 = vpack.c.b16 %v1683, %v1682
      %v2030 = vpack.c.b16 %v1685, %v1684
      %v2031 = vpack.c.b16 %v1687, %v1686
      %v2032 = vpack.c.b16 %v1689, %v1688
      %v2033 = vpack.c.b16 %v1691, %v1690
      %v2034 = vpack.c.b16 %v1693, %v1692
      %v2035 = vpack.c.b16 %v1695, %v1694
      %v2036 = vpack.c.b16 %v1697, %v1696
      %v2037 = vpack.c.b16 %v1699, %v1698
      %v2038 = vpack.c.b16 %v1701, %v1700
      %v2039 = vpack.c.b16 %v1703, %v1702
      %v2040 = vpack.c.b16 %v1705, %v1704
      %v2041 = vpack.c.b16 %v1707, %v1706
      %v2042 = vpack.c.b16 %v1709, %v1708
      %v2043 = vpack.c.b16 %v1711, %v1710
      %v2044 = vpack.c.b16 %v1713, %v1712
      %v2045 = vpack.c.b16 %v1715, %v1714
      %v2046 = vpack.c.b16 %v1717, %v1716
      %v2047 = vpack.c.b16 %v1719, %v1718
      %v2048 = vpack.c.b16 %v1721, %v1720
      %v2049 = vpack.c.b16 %v1723, %v1722
      %v2050 = vpack.c.b16 %v1725, %v1724
      %v2051 = vpack.c.b16 %v1727, %v1726
      %v2052 = vpack.c.b16 %v1729, %v1728
      %v2053 = vpack.c.b16 %v1731, %v1730
      %v2054 = vpack.c.b16 %v1733, %v1732
      %v2055 = vpack.c.b16 %v1735, %v1734
      %v2056 = vpack.c.b16 %v1737, %v1736
      %v2057 = vpack.c.b16 %v1739, %v1738
      %v2058 = vpack.c.b16 %v1741, %v1740
      %v2059 = vpack.c.b16 %v1743, %v1742
      %v2060 = vpack.c.b16 %v1745, %v1744
      %v2061 = vpack.c.b16 %v1747, %v1746
      %v2062 = vpack.c.b16 %v1749, %v1748
      %v2063 = vpack.c.b16 %v1751, %v1750
      %v2064 = vpack.c.b16 %v1753, %v1752
      %v2065 = vpack.c.b16 %v1755, %v1754
      %v2066 = vpack.c.b16 %v1757, %v1756
      %v2067 = vpack.c.b16 %v1759, %v1758
      %v2068 = vpack.c.b16 %v1761, %v1760
      %v2069 = vpack.c.b16 %v1763, %v1762
      %v2070 = vpack.c.b16 %v1765, %v1764
      %v2071 = vpack.c.b16 %v1767, %v1766
      %v2072 = vpack.c.b16 %v1769, %v1768
      %v2073 = vpack.c.b16 %v1771, %v1770
      %v2074 = vpack.c.b16 %v1773, %v1772
      %v2075 = vpack.c.b16 %v1775, %v1774
      %v2076 = vpack.c.b16 %v1777, %v1776
      %v2077 = vpack.c.b16 %v1779, %v1778
      %v2078 = vpack.c.b16 %v1781, %v1780
      %v2079 = vpack.c.b16 %v1783, %v1782
      %v2080 = vpack.c.b16 %v1785, %v1784
      %v2081 = vpack.c.b16 %v1787, %v1786
      %v2082 = vpack.c.b16 %v1789, %v1788
      %v2083 = vpack.c.b16 %v1791, %v1790
      %v2084 = vpack.c.b16 %v1793, %v1792
      %v2085 = vpack.c.b16 %v1795, %v1794
      %v2086 = vpack.c.b16 %v1797, %v1796
      %v2087 = vpack.c.b16 %v1799, %v1798
      %v2088 = vpack.c.b16 %v1801, %v1800
      %v2089 = vpack.c.b16 %v1803, %v1802
      %v2090 = vpack.c.b16 %v1805, %v1804
      %v2091 = vpack.c.b16 %v1807, %v1806
      %v2092 = vpack.c.b16 %v1809, %v1808
      %v2093 = vpack.c.b16 %v1811, %v1810
      %v2094 = vpack.c.b16 %v1813, %v1812
      %v2095 = vpack.c.b16 %v1815, %v1814
      %v2096 = vpack.c.b16 %v1817, %v1816
      %v2097 = vpack.c.b16 %v1819, %v1818
      %v2098 = vpack.c.b16 %v1821, %v1820
      %v2099 = vpack.c.b16 %v1823, %v1822
      %v2100 = vpack.c.b16 %v1825, %v1824
      %v2101 = vpack.c.b16 %v1827, %v1826
      %v2102 = vpack.c.b16 %v1829, %v1828
      %v2103 = vpack.c.b16 %v1831, %v1830
      %v2104 = vpack.c.b16 %v1833, %v1832
      %v2105 = vpack.c.b16 %v1835, %v1834
      %v2106 = vpack.c.b16 %v1837, %v1836
      %v2107 = vpack.c.b16 %v1839, %v1838
      %v2108 = vpack.c.b16 %v1841, %v1840
      %v2109 = vpack.c.b16 %v1843, %v1842
      %v2110 = vpack.c.b16 %v1845, %v1844
      %v2111 = vpack.c.b16 %v1847, %v1846
      %v2112 = vpack.c.b16 %v1849, %v1848
      %v2113 = vpack.c.b16 %v1851, %v1850
      %v2114 = vpack.c.b16 %v1853, %v1852
      %v2115 = vpack.c.b16 %v1855, %v1854
      %v2116 = vpack.c.b16 %v1857, %v1856
      %v2117 = vpack.c.b16 %v1859, %v1858
      %v2118 = vpack.c.b16 %v1861, %v1860
      %v2119 = vpack.c.b16 %v1863, %v1862
      %2376 = vmatprep.subr.bf16.mxu0 0
      %2377 = vmatpush1.bf16.msra.mxu0 %v1871
      %2378 = vmatprep.subr.bf16.mxu0 0
      %2379 = vmatpush1.bf16.msra.mxu0 %v1870
      %2380 = vmatprep.subr.bf16.mxu0 0
      %2381 = vmatpush1.bf16.msra.mxu0 %v1869
      %2382 = vmatprep.subr.bf16.mxu0 0
      %2383 = vmatpush1.bf16.msra.mxu0 %v1868
      %2384 = vmatprep.subr.bf16.mxu0 0
      %2385 = vmatpush1.bf16.msra.mxu0 %v1867
      %2386 = vmatprep.subr.bf16.mxu0 0
      %2387 = vmatpush1.bf16.msra.mxu0 %v1866
      %2388 = vmatprep.subr.bf16.mxu0 0
      %2389 = vmatpush1.bf16.msra.mxu0 %v1865
      %2390 = vmatprep.subr.bf16.mxu0 0
      %2391 = vmatpush1.bf16.msra.mxu0 %v1864
      %2392 = vmatprep.subr.bf16.mxu0 0
      %2393 = vmatpush2.bf16.msra.mxu0 %v1879
      %2394 = vmatprep.subr.bf16.mxu0 0
      %2395 = vmatpush2.bf16.msra.mxu0 %v1878
      %2396 = vmatprep.subr.bf16.mxu0 0
      %2397 = vmatpush2.bf16.msra.mxu0 %v1877
      %2398 = vmatprep.subr.bf16.mxu0 0
      %2399 = vmatpush2.bf16.msra.mxu0 %v1876
      %2400 = vmatprep.subr.bf16.mxu0 0
      %2401 = vmatpush2.bf16.msra.mxu0 %v1875
      %2402 = vmatprep.subr.bf16.mxu0 0
      %2403 = vmatpush2.bf16.msra.mxu0 %v1874
      %2404 = vmatprep.subr.bf16.mxu0 0
      %2405 = vmatpush2.bf16.msra.mxu0 %v1873
      %2406 = vmatprep.subr.bf16.mxu0 0
      %2407 = vmatpush2.bf16.msra.mxu0 %v1872
      %2408 = vmatprep.mubr.bf16.mxu0 %v777
      %2409 = vmatmul.mubr.bf16.gmra.mxu0 %v776
      %v2410 = vpop.f32.mrf.mxu0
      %v2411 = vadd.f32 0.0, %v2410
      %v2412 = vpop.f32.mrf.mxu0
      %v2413 = vpop.f32.mrf.mxu0
      %v2414 = vpop.f32.mrf.mxu0
      %2415 = vdwg.mxu0
      %2416 = vmatprep.subr.bf16.mxu0 0
      %2417 = vmatpush1.bf16.msra.mxu0 %v1887
      %2418 = vmatprep.subr.bf16.mxu0 0
      %2419 = vmatpush1.bf16.msra.mxu0 %v1886
      %2420 = vmatprep.subr.bf16.mxu0 0
      %2421 = vmatpush1.bf16.msra.mxu0 %v1885
      %2422 = vmatprep.subr.bf16.mxu0 0
      %2423 = vmatpush1.bf16.msra.mxu0 %v1884
      %2424 = vmatprep.subr.bf16.mxu0 0
      %2425 = vmatpush1.bf16.msra.mxu0 %v1883
      %2426 = vmatprep.subr.bf16.mxu0 0
      %2427 = vmatpush1.bf16.msra.mxu0 %v1882
      %2428 = vmatprep.subr.bf16.mxu0 0
      %2429 = vmatpush1.bf16.msra.mxu0 %v1881
      %2430 = vmatprep.subr.bf16.mxu0 0
      %2431 = vmatpush1.bf16.msra.mxu0 %v1880
      %2432 = vmatprep.subr.bf16.mxu0 0
      %2433 = vmatpush2.bf16.msra.mxu0 %v1895
      %2434 = vmatprep.subr.bf16.mxu0 0
      %2435 = vmatpush2.bf16.msra.mxu0 %v1894
      %2436 = vmatprep.subr.bf16.mxu0 0
      %2437 = vmatpush2.bf16.msra.mxu0 %v1893
      %2438 = vmatprep.subr.bf16.mxu0 0
      %2439 = vmatpush2.bf16.msra.mxu0 %v1892
      %2440 = vmatprep.subr.bf16.mxu0 0
      %2441 = vmatpush2.bf16.msra.mxu0 %v1891
      %2442 = vmatprep.subr.bf16.mxu0 0
      %2443 = vmatpush2.bf16.msra.mxu0 %v1890
      %2444 = vmatprep.subr.bf16.mxu0 0
      %2445 = vmatpush2.bf16.msra.mxu0 %v1889
      %2446 = vmatprep.subr.bf16.mxu0 0
      %2447 = vmatpush2.bf16.msra.mxu0 %v1888
      %2448 = vmatprep.mubr.bf16.mxu0 %v779
      %2449 = vmatmul.mubr.bf16.gmra.mxu0 %v778
      %v2450 = vpop.f32.mrf.mxu0
      %v2451 = vadd.f32 %v2411, %v2450
      %v2452 = vpop.f32.mrf.mxu0
      %v2453 = vpop.f32.mrf.mxu0
      %v2454 = vpop.f32.mrf.mxu0
      %2455 = vdwg.mxu0
      %2456 = vmatprep.subr.bf16.mxu0 0
      %2457 = vmatpush1.bf16.msra.mxu0 %v1903
      %2458 = vmatprep.subr.bf16.mxu0 0
      %2459 = vmatpush1.bf16.msra.mxu0 %v1902
      %2460 = vmatprep.subr.bf16.mxu0 0
      %2461 = vmatpush1.bf16.msra.mxu0 %v1901
      %2462 = vmatprep.subr.bf16.mxu0 0
      %2463 = vmatpush1.bf16.msra.mxu0 %v1900
      %2464 = vmatprep.subr.bf16.mxu0 0
      %2465 = vmatpush1.bf16.msra.mxu0 %v1899
      %2466 = vmatprep.subr.bf16.mxu0 0
      %2467 = vmatpush1.bf16.msra.mxu0 %v1898
      %2468 = vmatprep.subr.bf16.mxu0 0
      %2469 = vmatpush1.bf16.msra.mxu0 %v1897
      %2470 = vmatprep.subr.bf16.mxu0 0
      %2471 = vmatpush1.bf16.msra.mxu0 %v1896
      %2472 = vmatprep.subr.bf16.mxu0 0
      %2473 = vmatpush2.bf16.msra.mxu0 %v1911
      %2474 = vmatprep.subr.bf16.mxu0 0
      %2475 = vmatpush2.bf16.msra.mxu0 %v1910
      %2476 = vmatprep.subr.bf16.mxu0 0
      %2477 = vmatpush2.bf16.msra.mxu0 %v1909
      %2478 = vmatprep.subr.bf16.mxu0 0
      %2479 = vmatpush2.bf16.msra.mxu0 %v1908
      %2480 = vmatprep.subr.bf16.mxu0 0
      %2481 = vmatpush2.bf16.msra.mxu0 %v1907
      %2482 = vmatprep.subr.bf16.mxu0 0
      %2483 = vmatpush2.bf16.msra.mxu0 %v1906
      %2484 = vmatprep.subr.bf16.mxu0 0
      %2485 = vmatpush2.bf16.msra.mxu0 %v1905
      %2486 = vmatprep.subr.bf16.mxu0 0
      %2487 = vmatpush2.bf16.msra.mxu0 %v1904
      %2488 = vmatprep.mubr.bf16.mxu0 %v781
      %2489 = vmatmul.mubr.bf16.gmra.mxu0 %v780
      %v2490 = vpop.f32.mrf.mxu0
      %v2491 = vadd.f32 %v2451, %v2490
      %v2492 = vpop.f32.mrf.mxu0
      %v2493 = vpop.f32.mrf.mxu0
      %v2494 = vpop.f32.mrf.mxu0
      %2495 = vdwg.mxu0
      %2496 = vmatprep.subr.bf16.mxu0 0
      %2497 = vmatpush1.bf16.msra.mxu0 %v1919
      %2498 = vmatprep.subr.bf16.mxu0 0
      %2499 = vmatpush1.bf16.msra.mxu0 %v1918
      %2500 = vmatprep.subr.bf16.mxu0 0
      %2501 = vmatpush1.bf16.msra.mxu0 %v1917
      %2502 = vmatprep.subr.bf16.mxu0 0
      %2503 = vmatpush1.bf16.msra.mxu0 %v1916
      %2504 = vmatprep.subr.bf16.mxu0 0
      %2505 = vmatpush1.bf16.msra.mxu0 %v1915
      %2506 = vmatprep.subr.bf16.mxu0 0
      %2507 = vmatpush1.bf16.msra.mxu0 %v1914
      %2508 = vmatprep.subr.bf16.mxu0 0
      %2509 = vmatpush1.bf16.msra.mxu0 %v1913
      %2510 = vmatprep.subr.bf16.mxu0 0
      %2511 = vmatpush1.bf16.msra.mxu0 %v1912
      %2512 = vmatprep.subr.bf16.mxu0 0
      %2513 = vmatpush2.bf16.msra.mxu0 %v1927
      %2514 = vmatprep.subr.bf16.mxu0 0
      %2515 = vmatpush2.bf16.msra.mxu0 %v1926
      %2516 = vmatprep.subr.bf16.mxu0 0
      %2517 = vmatpush2.bf16.msra.mxu0 %v1925
      %2518 = vmatprep.subr.bf16.mxu0 0
      %2519 = vmatpush2.bf16.msra.mxu0 %v1924
      %2520 = vmatprep.subr.bf16.mxu0 0
      %2521 = vmatpush2.bf16.msra.mxu0 %v1923
      %2522 = vmatprep.subr.bf16.mxu0 0
      %2523 = vmatpush2.bf16.msra.mxu0 %v1922
      %2524 = vmatprep.subr.bf16.mxu0 0
      %2525 = vmatpush2.bf16.msra.mxu0 %v1921
      %2526 = vmatprep.subr.bf16.mxu0 0
      %2527 = vmatpush2.bf16.msra.mxu0 %v1920
      %2528 = vmatprep.mubr.bf16.mxu0 %v783
      %2529 = vmatmul.mubr.bf16.gmra.mxu0 %v782
      %v2530 = vpop.f32.mrf.mxu0
      %v2531 = vadd.f32 %v2491, %v2530
      %v2532 = vpop.f32.mrf.mxu0
      %v2533 = vpop.f32.mrf.mxu0
      %v2534 = vpop.f32.mrf.mxu0
      %2535 = vdwg.mxu0
      %2536 = vmatprep.subr.bf16.mxu0 0
      %2537 = vmatpush1.bf16.msra.mxu0 %v1935
      %2538 = vmatprep.subr.bf16.mxu0 0
      %2539 = vmatpush1.bf16.msra.mxu0 %v1934
      %2540 = vmatprep.subr.bf16.mxu0 0
      %2541 = vmatpush1.bf16.msra.mxu0 %v1933
      %2542 = vmatprep.subr.bf16.mxu0 0
      %2543 = vmatpush1.bf16.msra.mxu0 %v1932
      %2544 = vmatprep.subr.bf16.mxu0 0
      %2545 = vmatpush1.bf16.msra.mxu0 %v1931
      %2546 = vmatprep.subr.bf16.mxu0 0
      %2547 = vmatpush1.bf16.msra.mxu0 %v1930
      %2548 = vmatprep.subr.bf16.mxu0 0
      %2549 = vmatpush1.bf16.msra.mxu0 %v1929
      %2550 = vmatprep.subr.bf16.mxu0 0
      %2551 = vmatpush1.bf16.msra.mxu0 %v1928
      %2552 = vmatprep.subr.bf16.mxu0 0
      %2553 = vmatpush2.bf16.msra.mxu0 %v1943
      %2554 = vmatprep.subr.bf16.mxu0 0
      %2555 = vmatpush2.bf16.msra.mxu0 %v1942
      %2556 = vmatprep.subr.bf16.mxu0 0
      %2557 = vmatpush2.bf16.msra.mxu0 %v1941
      %2558 = vmatprep.subr.bf16.mxu0 0
      %2559 = vmatpush2.bf16.msra.mxu0 %v1940
      %2560 = vmatprep.subr.bf16.mxu0 0
      %2561 = vmatpush2.bf16.msra.mxu0 %v1939
      %2562 = vmatprep.subr.bf16.mxu0 0
      %2563 = vmatpush2.bf16.msra.mxu0 %v1938
      %2564 = vmatprep.subr.bf16.mxu0 0
      %2565 = vmatpush2.bf16.msra.mxu0 %v1937
      %2566 = vmatprep.subr.bf16.mxu0 0
      %2567 = vmatpush2.bf16.msra.mxu0 %v1936
      %2568 = vmatprep.mubr.bf16.mxu0 %v785
      %2569 = vmatmul.mubr.bf16.gmra.mxu0 %v784
      %v2570 = vpop.f32.mrf.mxu0
      %v2571 = vadd.f32 %v2531, %v2570
      %v2572 = vpop.f32.mrf.mxu0
      %v2573 = vpop.f32.mrf.mxu0
      %v2574 = vpop.f32.mrf.mxu0
      %2575 = vdwg.mxu0
      %2576 = vmatprep.subr.bf16.mxu0 0
      %2577 = vmatpush1.bf16.msra.mxu0 %v1951
      %2578 = vmatprep.subr.bf16.mxu0 0
      %2579 = vmatpush1.bf16.msra.mxu0 %v1950
      %2580 = vmatprep.subr.bf16.mxu0 0
      %2581 = vmatpush1.bf16.msra.mxu0 %v1949
      %2582 = vmatprep.subr.bf16.mxu0 0
      %2583 = vmatpush1.bf16.msra.mxu0 %v1948
      %2584 = vmatprep.subr.bf16.mxu0 0
      %2585 = vmatpush1.bf16.msra.mxu0 %v1947
      %2586 = vmatprep.subr.bf16.mxu0 0
      %2587 = vmatpush1.bf16.msra.mxu0 %v1946
      %2588 = vmatprep.subr.bf16.mxu0 0
      %2589 = vmatpush1.bf16.msra.mxu0 %v1945
      %2590 = vmatprep.subr.bf16.mxu0 0
      %2591 = vmatpush1.bf16.msra.mxu0 %v1944
      %2592 = vmatprep.subr.bf16.mxu0 0
      %2593 = vmatpush2.bf16.msra.mxu0 %v1959
      %2594 = vmatprep.subr.bf16.mxu0 0
      %2595 = vmatpush2.bf16.msra.mxu0 %v1958
      %2596 = vmatprep.subr.bf16.mxu0 0
      %2597 = vmatpush2.bf16.msra.mxu0 %v1957
      %2598 = vmatprep.subr.bf16.mxu0 0
      %2599 = vmatpush2.bf16.msra.mxu0 %v1956
      %2600 = vmatprep.subr.bf16.mxu0 0
      %2601 = vmatpush2.bf16.msra.mxu0 %v1955
      %2602 = vmatprep.subr.bf16.mxu0 0
      %2603 = vmatpush2.bf16.msra.mxu0 %v1954
      %2604 = vmatprep.subr.bf16.mxu0 0
      %2605 = vmatpush2.bf16.msra.mxu0 %v1953
      %2606 = vmatprep.subr.bf16.mxu0 0
      %2607 = vmatpush2.bf16.msra.mxu0 %v1952
      %2608 = vmatprep.mubr.bf16.mxu0 %v787
      %2609 = vmatmul.mubr.bf16.gmra.mxu0 %v786
      %v2610 = vpop.f32.mrf.mxu0
      %v2611 = vadd.f32 %v2571, %v2610
      %v2612 = vpop.f32.mrf.mxu0
      %v2613 = vpop.f32.mrf.mxu0
      %v2614 = vpop.f32.mrf.mxu0
      %2615 = vdwg.mxu0
      %2616 = vmatprep.subr.bf16.mxu0 0
      %2617 = vmatpush1.bf16.msra.mxu0 %v1967
      %2618 = vmatprep.subr.bf16.mxu0 0
      %2619 = vmatpush1.bf16.msra.mxu0 %v1966
      %2620 = vmatprep.subr.bf16.mxu0 0
      %2621 = vmatpush1.bf16.msra.mxu0 %v1965
      %2622 = vmatprep.subr.bf16.mxu0 0
      %2623 = vmatpush1.bf16.msra.mxu0 %v1964
      %2624 = vmatprep.subr.bf16.mxu0 0
      %2625 = vmatpush1.bf16.msra.mxu0 %v1963
      %2626 = vmatprep.subr.bf16.mxu0 0
      %2627 = vmatpush1.bf16.msra.mxu0 %v1962
      %2628 = vmatprep.subr.bf16.mxu0 0
      %2629 = vmatpush1.bf16.msra.mxu0 %v1961
      %2630 = vmatprep.subr.bf16.mxu0 0
      %2631 = vmatpush1.bf16.msra.mxu0 %v1960
      %2632 = vmatprep.subr.bf16.mxu0 0
      %2633 = vmatpush2.bf16.msra.mxu0 %v1975
      %2634 = vmatprep.subr.bf16.mxu0 0
      %2635 = vmatpush2.bf16.msra.mxu0 %v1974
      %2636 = vmatprep.subr.bf16.mxu0 0
      %2637 = vmatpush2.bf16.msra.mxu0 %v1973
      %2638 = vmatprep.subr.bf16.mxu0 0
      %2639 = vmatpush2.bf16.msra.mxu0 %v1972
      %2640 = vmatprep.subr.bf16.mxu0 0
      %2641 = vmatpush2.bf16.msra.mxu0 %v1971
      %2642 = vmatprep.subr.bf16.mxu0 0
      %2643 = vmatpush2.bf16.msra.mxu0 %v1970
      %2644 = vmatprep.subr.bf16.mxu0 0
      %2645 = vmatpush2.bf16.msra.mxu0 %v1969
      %2646 = vmatprep.subr.bf16.mxu0 0
      %2647 = vmatpush2.bf16.msra.mxu0 %v1968
      %2648 = vmatprep.mubr.bf16.mxu0 %v789
      %2649 = vmatmul.mubr.bf16.gmra.mxu0 %v788
      %v2650 = vpop.f32.mrf.mxu0
      %v2651 = vadd.f32 %v2611, %v2650
      %v2652 = vpop.f32.mrf.mxu0
      %v2653 = vpop.f32.mrf.mxu0
      %v2654 = vpop.f32.mrf.mxu0
      %2655 = vdwg.mxu0
      %2656 = vmatprep.subr.bf16.mxu0 0
      %2657 = vmatpush1.bf16.msra.mxu0 %v1983
      %2658 = vmatprep.subr.bf16.mxu0 0
      %2659 = vmatpush1.bf16.msra.mxu0 %v1982
      %2660 = vmatprep.subr.bf16.mxu0 0
      %2661 = vmatpush1.bf16.msra.mxu0 %v1981
      %2662 = vmatprep.subr.bf16.mxu0 0
      %2663 = vmatpush1.bf16.msra.mxu0 %v1980
      %2664 = vmatprep.subr.bf16.mxu0 0
      %2665 = vmatpush1.bf16.msra.mxu0 %v1979
      %2666 = vmatprep.subr.bf16.mxu0 0
      %2667 = vmatpush1.bf16.msra.mxu0 %v1978
      %2668 = vmatprep.subr.bf16.mxu0 0
      %2669 = vmatpush1.bf16.msra.mxu0 %v1977
      %2670 = vmatprep.subr.bf16.mxu0 0
      %2671 = vmatpush1.bf16.msra.mxu0 %v1976
      %2672 = vmatprep.subr.bf16.mxu0 0
      %2673 = vmatpush2.bf16.msra.mxu0 %v1991
      %2674 = vmatprep.subr.bf16.mxu0 0
      %2675 = vmatpush2.bf16.msra.mxu0 %v1990
      %2676 = vmatprep.subr.bf16.mxu0 0
      %2677 = vmatpush2.bf16.msra.mxu0 %v1989
      %2678 = vmatprep.subr.bf16.mxu0 0
      %2679 = vmatpush2.bf16.msra.mxu0 %v1988
      %2680 = vmatprep.subr.bf16.mxu0 0
      %2681 = vmatpush2.bf16.msra.mxu0 %v1987
      %2682 = vmatprep.subr.bf16.mxu0 0
      %2683 = vmatpush2.bf16.msra.mxu0 %v1986
      %2684 = vmatprep.subr.bf16.mxu0 0
      %2685 = vmatpush2.bf16.msra.mxu0 %v1985
      %2686 = vmatprep.subr.bf16.mxu0 0
      %2687 = vmatpush2.bf16.msra.mxu0 %v1984
      %2688 = vmatprep.mubr.bf16.mxu0 %v791
      %2689 = vmatmul.mubr.bf16.gmra.mxu0 %v790
      %v2690 = vpop.f32.mrf.mxu0
      %v2691 = vadd.f32 %v2651, %v2690
      %v2692 = vpop.f32.mrf.mxu0
      %v2693 = vpop.f32.mrf.mxu0
      %v2694 = vpop.f32.mrf.mxu0
      %2695 = vdwg.mxu0
      %2696 = vmatprep.subr.bf16.mxu0 0
      %2697 = vmatpush1.bf16.msra.mxu0 %v1999
      %2698 = vmatprep.subr.bf16.mxu0 0
      %2699 = vmatpush1.bf16.msra.mxu0 %v1998
      %2700 = vmatprep.subr.bf16.mxu0 0
      %2701 = vmatpush1.bf16.msra.mxu0 %v1997
      %2702 = vmatprep.subr.bf16.mxu0 0
      %2703 = vmatpush1.bf16.msra.mxu0 %v1996
      %2704 = vmatprep.subr.bf16.mxu0 0
      %2705 = vmatpush1.bf16.msra.mxu0 %v1995
      %2706 = vmatprep.subr.bf16.mxu0 0
      %2707 = vmatpush1.bf16.msra.mxu0 %v1994
      %2708 = vmatprep.subr.bf16.mxu0 0
      %2709 = vmatpush1.bf16.msra.mxu0 %v1993
      %2710 = vmatprep.subr.bf16.mxu0 0
      %2711 = vmatpush1.bf16.msra.mxu0 %v1992
      %2712 = vmatprep.subr.bf16.mxu0 0
      %2713 = vmatpush2.bf16.msra.mxu0 %v2007
      %2714 = vmatprep.subr.bf16.mxu0 0
      %2715 = vmatpush2.bf16.msra.mxu0 %v2006
      %2716 = vmatprep.subr.bf16.mxu0 0
      %2717 = vmatpush2.bf16.msra.mxu0 %v2005
      %2718 = vmatprep.subr.bf16.mxu0 0
      %2719 = vmatpush2.bf16.msra.mxu0 %v2004
      %2720 = vmatprep.subr.bf16.mxu0 0
      %2721 = vmatpush2.bf16.msra.mxu0 %v2003
      %2722 = vmatprep.subr.bf16.mxu0 0
      %2723 = vmatpush2.bf16.msra.mxu0 %v2002
      %2724 = vmatprep.subr.bf16.mxu0 0
      %2725 = vmatpush2.bf16.msra.mxu0 %v2001
      %2726 = vmatprep.subr.bf16.mxu0 0
      %2727 = vmatpush2.bf16.msra.mxu0 %v2000
      %2728 = vmatprep.mubr.bf16.mxu0 %v793
      %2729 = vmatmul.mubr.bf16.gmra.mxu0 %v792
      %v2730 = vpop.f32.mrf.mxu0
      %v2731 = vadd.f32 %v2691, %v2730
      %v2732 = vpop.f32.mrf.mxu0
      %v2733 = vpop.f32.mrf.mxu0
      %v2734 = vpop.f32.mrf.mxu0
      %2735 = vdwg.mxu0
      %2736 = vmatprep.subr.bf16.mxu0 0
      %2737 = vmatpush1.bf16.msra.mxu0 %v2015
      %2738 = vmatprep.subr.bf16.mxu0 0
      %2739 = vmatpush1.bf16.msra.mxu0 %v2014
      %2740 = vmatprep.subr.bf16.mxu0 0
      %2741 = vmatpush1.bf16.msra.mxu0 %v2013
      %2742 = vmatprep.subr.bf16.mxu0 0
      %2743 = vmatpush1.bf16.msra.mxu0 %v2012
      %2744 = vmatprep.subr.bf16.mxu0 0
      %2745 = vmatpush1.bf16.msra.mxu0 %v2011
      %2746 = vmatprep.subr.bf16.mxu0 0
      %2747 = vmatpush1.bf16.msra.mxu0 %v2010
      %2748 = vmatprep.subr.bf16.mxu0 0
      %2749 = vmatpush1.bf16.msra.mxu0 %v2009
      %2750 = vmatprep.subr.bf16.mxu0 0
      %2751 = vmatpush1.bf16.msra.mxu0 %v2008
      %2752 = vmatprep.subr.bf16.mxu0 0
      %2753 = vmatpush2.bf16.msra.mxu0 %v2023
      %2754 = vmatprep.subr.bf16.mxu0 0
      %2755 = vmatpush2.bf16.msra.mxu0 %v2022
      %2756 = vmatprep.subr.bf16.mxu0 0
      %2757 = vmatpush2.bf16.msra.mxu0 %v2021
      %2758 = vmatprep.subr.bf16.mxu0 0
      %2759 = vmatpush2.bf16.msra.mxu0 %v2020
      %2760 = vmatprep.subr.bf16.mxu0 0
      %2761 = vmatpush2.bf16.msra.mxu0 %v2019
      %2762 = vmatprep.subr.bf16.mxu0 0
      %2763 = vmatpush2.bf16.msra.mxu0 %v2018
      %2764 = vmatprep.subr.bf16.mxu0 0
      %2765 = vmatpush2.bf16.msra.mxu0 %v2017
      %2766 = vmatprep.subr.bf16.mxu0 0
      %2767 = vmatpush2.bf16.msra.mxu0 %v2016
      %2768 = vmatprep.mubr.bf16.mxu0 %v795
      %2769 = vmatmul.mubr.bf16.gmra.mxu0 %v794
      %v2770 = vpop.f32.mrf.mxu0
      %v2771 = vadd.f32 %v2731, %v2770
      %v2772 = vpop.f32.mrf.mxu0
      %v2773 = vpop.f32.mrf.mxu0
      %v2774 = vpop.f32.mrf.mxu0
      %2775 = vdwg.mxu0
      %2776 = vmatprep.subr.bf16.mxu0 0
      %2777 = vmatpush1.bf16.msra.mxu0 %v2031
      %2778 = vmatprep.subr.bf16.mxu0 0
      %2779 = vmatpush1.bf16.msra.mxu0 %v2030
      %2780 = vmatprep.subr.bf16.mxu0 0
      %2781 = vmatpush1.bf16.msra.mxu0 %v2029
      %2782 = vmatprep.subr.bf16.mxu0 0
      %2783 = vmatpush1.bf16.msra.mxu0 %v2028
      %2784 = vmatprep.subr.bf16.mxu0 0
      %2785 = vmatpush1.bf16.msra.mxu0 %v2027
      %2786 = vmatprep.subr.bf16.mxu0 0
      %2787 = vmatpush1.bf16.msra.mxu0 %v2026
      %2788 = vmatprep.subr.bf16.mxu0 0
      %2789 = vmatpush1.bf16.msra.mxu0 %v2025
      %2790 = vmatprep.subr.bf16.mxu0 0
      %2791 = vmatpush1.bf16.msra.mxu0 %v2024
      %2792 = vmatprep.subr.bf16.mxu0 0
      %2793 = vmatpush2.bf16.msra.mxu0 %v2039
      %2794 = vmatprep.subr.bf16.mxu0 0
      %2795 = vmatpush2.bf16.msra.mxu0 %v2038
      %2796 = vmatprep.subr.bf16.mxu0 0
      %2797 = vmatpush2.bf16.msra.mxu0 %v2037
      %2798 = vmatprep.subr.bf16.mxu0 0
      %2799 = vmatpush2.bf16.msra.mxu0 %v2036
      %2800 = vmatprep.subr.bf16.mxu0 0
      %2801 = vmatpush2.bf16.msra.mxu0 %v2035
      %2802 = vmatprep.subr.bf16.mxu0 0
      %2803 = vmatpush2.bf16.msra.mxu0 %v2034
      %2804 = vmatprep.subr.bf16.mxu0 0
      %2805 = vmatpush2.bf16.msra.mxu0 %v2033
      %2806 = vmatprep.subr.bf16.mxu0 0
      %2807 = vmatpush2.bf16.msra.mxu0 %v2032
      %2808 = vmatprep.mubr.bf16.mxu0 %v797
      %2809 = vmatmul.mubr.bf16.gmra.mxu0 %v796
      %v2810 = vpop.f32.mrf.mxu0
      %v2811 = vadd.f32 %v2771, %v2810
      %v2812 = vpop.f32.mrf.mxu0
      %v2813 = vpop.f32.mrf.mxu0
      %v2814 = vpop.f32.mrf.mxu0
      %2815 = vdwg.mxu0
      %2816 = vmatprep.subr.bf16.mxu0 0
      %2817 = vmatpush1.bf16.msra.mxu0 %v2047
      %2818 = vmatprep.subr.bf16.mxu0 0
      %2819 = vmatpush1.bf16.msra.mxu0 %v2046
      %2820 = vmatprep.subr.bf16.mxu0 0
      %2821 = vmatpush1.bf16.msra.mxu0 %v2045
      %2822 = vmatprep.subr.bf16.mxu0 0
      %2823 = vmatpush1.bf16.msra.mxu0 %v2044
      %2824 = vmatprep.subr.bf16.mxu0 0
      %2825 = vmatpush1.bf16.msra.mxu0 %v2043
      %2826 = vmatprep.subr.bf16.mxu0 0
      %2827 = vmatpush1.bf16.msra.mxu0 %v2042
      %2828 = vmatprep.subr.bf16.mxu0 0
      %2829 = vmatpush1.bf16.msra.mxu0 %v2041
      %2830 = vmatprep.subr.bf16.mxu0 0
      %2831 = vmatpush1.bf16.msra.mxu0 %v2040
      %2832 = vmatprep.subr.bf16.mxu0 0
      %2833 = vmatpush2.bf16.msra.mxu0 %v2055
      %2834 = vmatprep.subr.bf16.mxu0 0
      %2835 = vmatpush2.bf16.msra.mxu0 %v2054
      %2836 = vmatprep.subr.bf16.mxu0 0
      %2837 = vmatpush2.bf16.msra.mxu0 %v2053
      %2838 = vmatprep.subr.bf16.mxu0 0
      %2839 = vmatpush2.bf16.msra.mxu0 %v2052
      %2840 = vmatprep.subr.bf16.mxu0 0
      %2841 = vmatpush2.bf16.msra.mxu0 %v2051
      %2842 = vmatprep.subr.bf16.mxu0 0
      %2843 = vmatpush2.bf16.msra.mxu0 %v2050
      %2844 = vmatprep.subr.bf16.mxu0 0
      %2845 = vmatpush2.bf16.msra.mxu0 %v2049
      %2846 = vmatprep.subr.bf16.mxu0 0
      %2847 = vmatpush2.bf16.msra.mxu0 %v2048
      %2848 = vmatprep.mubr.bf16.mxu0 %v799
      %2849 = vmatmul.mubr.bf16.gmra.mxu0 %v798
      %v2850 = vpop.f32.mrf.mxu0
      %v2851 = vadd.f32 %v2811, %v2850
      %v2852 = vpop.f32.mrf.mxu0
      %v2853 = vpop.f32.mrf.mxu0
      %v2854 = vpop.f32.mrf.mxu0
      %2855 = vdwg.mxu0
      %2856 = vmatprep.subr.bf16.mxu0 0
      %2857 = vmatpush1.bf16.msra.mxu0 %v2063
      %2858 = vmatprep.subr.bf16.mxu0 0
      %2859 = vmatpush1.bf16.msra.mxu0 %v2062
      %2860 = vmatprep.subr.bf16.mxu0 0
      %2861 = vmatpush1.bf16.msra.mxu0 %v2061
      %2862 = vmatprep.subr.bf16.mxu0 0
      %2863 = vmatpush1.bf16.msra.mxu0 %v2060
      %2864 = vmatprep.subr.bf16.mxu0 0
      %2865 = vmatpush1.bf16.msra.mxu0 %v2059
      %2866 = vmatprep.subr.bf16.mxu0 0
      %2867 = vmatpush1.bf16.msra.mxu0 %v2058
      %2868 = vmatprep.subr.bf16.mxu0 0
      %2869 = vmatpush1.bf16.msra.mxu0 %v2057
      %2870 = vmatprep.subr.bf16.mxu0 0
      %2871 = vmatpush1.bf16.msra.mxu0 %v2056
      %2872 = vmatprep.subr.bf16.mxu0 0
      %2873 = vmatpush2.bf16.msra.mxu0 %v2071
      %2874 = vmatprep.subr.bf16.mxu0 0
      %2875 = vmatpush2.bf16.msra.mxu0 %v2070
      %2876 = vmatprep.subr.bf16.mxu0 0
      %2877 = vmatpush2.bf16.msra.mxu0 %v2069
      %2878 = vmatprep.subr.bf16.mxu0 0
      %2879 = vmatpush2.bf16.msra.mxu0 %v2068
      %2880 = vmatprep.subr.bf16.mxu0 0
      %2881 = vmatpush2.bf16.msra.mxu0 %v2067
      %2882 = vmatprep.subr.bf16.mxu0 0
      %2883 = vmatpush2.bf16.msra.mxu0 %v2066
      %2884 = vmatprep.subr.bf16.mxu0 0
      %2885 = vmatpush2.bf16.msra.mxu0 %v2065
      %2886 = vmatprep.subr.bf16.mxu0 0
      %2887 = vmatpush2.bf16.msra.mxu0 %v2064
      %2888 = vmatprep.mubr.bf16.mxu0 %v801
      %2889 = vmatmul.mubr.bf16.gmra.mxu0 %v800
      %v2890 = vpop.f32.mrf.mxu0
      %v2891 = vadd.f32 %v2851, %v2890
      %v2892 = vpop.f32.mrf.mxu0
      %v2893 = vpop.f32.mrf.mxu0
      %v2894 = vpop.f32.mrf.mxu0
      %2895 = vdwg.mxu0
      %2896 = vmatprep.subr.bf16.mxu0 0
      %2897 = vmatpush1.bf16.msra.mxu0 %v2079
      %2898 = vmatprep.subr.bf16.mxu0 0
      %2899 = vmatpush1.bf16.msra.mxu0 %v2078
      %2900 = vmatprep.subr.bf16.mxu0 0
      %2901 = vmatpush1.bf16.msra.mxu0 %v2077
      %2902 = vmatprep.subr.bf16.mxu0 0
      %2903 = vmatpush1.bf16.msra.mxu0 %v2076
      %2904 = vmatprep.subr.bf16.mxu0 0
      %2905 = vmatpush1.bf16.msra.mxu0 %v2075
      %2906 = vmatprep.subr.bf16.mxu0 0
      %2907 = vmatpush1.bf16.msra.mxu0 %v2074
      %2908 = vmatprep.subr.bf16.mxu0 0
      %2909 = vmatpush1.bf16.msra.mxu0 %v2073
      %2910 = vmatprep.subr.bf16.mxu0 0
      %2911 = vmatpush1.bf16.msra.mxu0 %v2072
      %2912 = vmatprep.subr.bf16.mxu0 0
      %2913 = vmatpush2.bf16.msra.mxu0 %v2087
      %2914 = vmatprep.subr.bf16.mxu0 0
      %2915 = vmatpush2.bf16.msra.mxu0 %v2086
      %2916 = vmatprep.subr.bf16.mxu0 0
      %2917 = vmatpush2.bf16.msra.mxu0 %v2085
      %2918 = vmatprep.subr.bf16.mxu0 0
      %2919 = vmatpush2.bf16.msra.mxu0 %v2084
      %2920 = vmatprep.subr.bf16.mxu0 0
      %2921 = vmatpush2.bf16.msra.mxu0 %v2083
      %2922 = vmatprep.subr.bf16.mxu0 0
      %2923 = vmatpush2.bf16.msra.mxu0 %v2082
      %2924 = vmatprep.subr.bf16.mxu0 0
      %2925 = vmatpush2.bf16.msra.mxu0 %v2081
      %2926 = vmatprep.subr.bf16.mxu0 0
      %2927 = vmatpush2.bf16.msra.mxu0 %v2080
      %2928 = vmatprep.mubr.bf16.mxu0 %v803
      %2929 = vmatmul.mubr.bf16.gmra.mxu0 %v802
      %v2930 = vpop.f32.mrf.mxu0
      %v2931 = vadd.f32 %v2891, %v2930
      %v2932 = vpop.f32.mrf.mxu0
      %v2933 = vpop.f32.mrf.mxu0
      %v2934 = vpop.f32.mrf.mxu0
      %2935 = vdwg.mxu0
      %2936 = vmatprep.subr.bf16.mxu0 0
      %2937 = vmatpush1.bf16.msra.mxu0 %v2095
      %2938 = vmatprep.subr.bf16.mxu0 0
      %2939 = vmatpush1.bf16.msra.mxu0 %v2094
      %2940 = vmatprep.subr.bf16.mxu0 0
      %2941 = vmatpush1.bf16.msra.mxu0 %v2093
      %2942 = vmatprep.subr.bf16.mxu0 0
      %2943 = vmatpush1.bf16.msra.mxu0 %v2092
      %2944 = vmatprep.subr.bf16.mxu0 0
      %2945 = vmatpush1.bf16.msra.mxu0 %v2091
      %2946 = vmatprep.subr.bf16.mxu0 0
      %2947 = vmatpush1.bf16.msra.mxu0 %v2090
      %2948 = vmatprep.subr.bf16.mxu0 0
      %2949 = vmatpush1.bf16.msra.mxu0 %v2089
      %2950 = vmatprep.subr.bf16.mxu0 0
      %2951 = vmatpush1.bf16.msra.mxu0 %v2088
      %2952 = vmatprep.subr.bf16.mxu0 0
      %2953 = vmatpush2.bf16.msra.mxu0 %v2103
      %2954 = vmatprep.subr.bf16.mxu0 0
      %2955 = vmatpush2.bf16.msra.mxu0 %v2102
      %2956 = vmatprep.subr.bf16.mxu0 0
      %2957 = vmatpush2.bf16.msra.mxu0 %v2101
      %2958 = vmatprep.subr.bf16.mxu0 0
      %2959 = vmatpush2.bf16.msra.mxu0 %v2100
      %2960 = vmatprep.subr.bf16.mxu0 0
      %2961 = vmatpush2.bf16.msra.mxu0 %v2099
      %2962 = vmatprep.subr.bf16.mxu0 0
      %2963 = vmatpush2.bf16.msra.mxu0 %v2098
      %2964 = vmatprep.subr.bf16.mxu0 0
      %2965 = vmatpush2.bf16.msra.mxu0 %v2097
      %2966 = vmatprep.subr.bf16.mxu0 0
      %2967 = vmatpush2.bf16.msra.mxu0 %v2096
      %2968 = vmatprep.mubr.bf16.mxu0 %v805
      %2969 = vmatmul.mubr.bf16.gmra.mxu0 %v804
      %v2970 = vpop.f32.mrf.mxu0
      %v2971 = vadd.f32 %v2931, %v2970
      %v2972 = vpop.f32.mrf.mxu0
      %v2973 = vpop.f32.mrf.mxu0
      %v2974 = vpop.f32.mrf.mxu0
      %2975 = vdwg.mxu0
      %2976 = vmatprep.subr.bf16.mxu0 0
      %2977 = vmatpush1.bf16.msra.mxu0 %v2111
      %2978 = vmatprep.subr.bf16.mxu0 0
      %2979 = vmatpush1.bf16.msra.mxu0 %v2110
      %2980 = vmatprep.subr.bf16.mxu0 0
      %2981 = vmatpush1.bf16.msra.mxu0 %v2109
      %2982 = vmatprep.subr.bf16.mxu0 0
      %2983 = vmatpush1.bf16.msra.mxu0 %v2108
      %2984 = vmatprep.subr.bf16.mxu0 0
      %2985 = vmatpush1.bf16.msra.mxu0 %v2107
      %2986 = vmatprep.subr.bf16.mxu0 0
      %2987 = vmatpush1.bf16.msra.mxu0 %v2106
      %2988 = vmatprep.subr.bf16.mxu0 0
      %2989 = vmatpush1.bf16.msra.mxu0 %v2105
      %2990 = vmatprep.subr.bf16.mxu0 0
      %2991 = vmatpush1.bf16.msra.mxu0 %v2104
      %2992 = vmatprep.subr.bf16.mxu0 0
      %2993 = vmatpush2.bf16.msra.mxu0 %v2119
      %2994 = vmatprep.subr.bf16.mxu0 0
      %2995 = vmatpush2.bf16.msra.mxu0 %v2118
      %2996 = vmatprep.subr.bf16.mxu0 0
      %2997 = vmatpush2.bf16.msra.mxu0 %v2117
      %2998 = vmatprep.subr.bf16.mxu0 0
      %2999 = vmatpush2.bf16.msra.mxu0 %v2116
      %3000 = vmatprep.subr.bf16.mxu0 0
      %3001 = vmatpush2.bf16.msra.mxu0 %v2115
      %3002 = vmatprep.subr.bf16.mxu0 0
      %3003 = vmatpush2.bf16.msra.mxu0 %v2114
      %3004 = vmatprep.subr.bf16.mxu0 0
      %3005 = vmatpush2.bf16.msra.mxu0 %v2113
      %3006 = vmatprep.subr.bf16.mxu0 0
      %3007 = vmatpush2.bf16.msra.mxu0 %v2112
      %3008 = vmatprep.mubr.bf16.mxu0 %v807
      %3009 = vmatmul.mubr.bf16.gmra.mxu0 %v806
      %v3010 = vpop.f32.mrf.mxu0
      %v3011 = vadd.f32 %v2971, %v3010
      %v3012 = vpop.f32.mrf.mxu0
      %v3013 = vpop.f32.mrf.mxu0
      %v3014 = vpop.f32.mrf.mxu0
      %3015 = vdwg.mxu0
      %v3016 = vadd.f32 %v199, %v3011
      %vm3017 = vcmask 523264
      %3018 = vst.msk [vmem:[%s191] sm:$0xff] %vm3017, %v3016
      %p3019 = scmp.lt.s32.totalorder %s17, 1
      %s3020 = scalar_select %p3019, %s17, 1
      %s3021 = smul.addr %s3020, 8
      %s3022 = scalar_lea.vmem %s2, %s3021
      // Predicated region
      $region33: #{nn2_forward.14} parent=27 // pred_check
        %p3023 = pneg %p97
      $region34: #{nn2_forward.14} parent=27 // pred_check_branch
        %3025 = sbr.rel (%p3023) target = $region36
      $region35: #{nn2_forward.14} parent=27 // pred_region
        _
      $region36: #{nn2_forward.14} parent=27 // pred_fallthru
        _
    $region28: #{nn2_forward.14} parent=5 // pred_fallthru
      _
    %p3026 = scmp.le.s32.totalorder 2, %s8
    // Predicated region
    $region37: #{nn2_forward.14} parent=5 // pred_check
      %p3027 = pneg %p3026
    $region38: #{nn2_forward.14} parent=5 // pred_check_branch
      %3029 = sbr.rel (%p3027) target = $region40
    $region39: #{nn2_forward.14} parent=5 // pred_region
      %s3030 = ssub.s32 %s8, 2
      // Predicated region
      $region41: #{nn2_forward.14} parent=39 // pred_check
        %p3031 = pneg %p103
      $region42: #{nn2_forward.14} parent=39 // pred_check_branch
        %3033 = sbr.rel (%p3031) target = $region44
      $region43: #{nn2_forward.14} parent=39 // pred_region
        %p3034 = scmp.lt.s32.totalorder %s19, 1
        %s3035 = scalar_select %p3034, %s19, 1
        %s3036 = smul.addr %s3035, 8
        %s3037 = scalar_lea.vmem %s2, %s3036
      $region44: #{nn2_forward.14} parent=39 // pred_fallthru
        _
    $region40: #{nn2_forward.14} parent=5 // pred_fallthru
      _
  $region6: #{nn2_forward.14} parent=0 // loop_footer
    %s12 = sadd.s32 1, %s8
  $region7: #{nn2_forward.14} parent=0 // loop_footer_branch
    %7 = sbr.rel target = $region3
  $region8: #{nn2_forward.14} parent=0 // loop_exit
    _

</llo_original>
